<compile_context>
chip_gen: v7x
topology: tpu7x:2x2x1
jax: 0.10.0
libtpu: 0.0.40
codegen_flags: <defaults>
</compile_context>

<pallas_src>
import functools
import math

import jax
import jax.numpy as jnp
import numpy as np
from jax.experimental import pallas as pl
from jax.experimental.pallas import tpu as pltpu


def _choose_tile_rows(H, W, Cout, ks, N):
    """Pick th = input rows per grid step (static Python ints only).

    Legality: (th % 8 == 0 and (th*W) % 128 == 0) or th == H.
    Sizing:   ~1.5 MiB of output per step (amortizes ~0.35us/step pipeline overhead),
              capped at ~4 MiB per output block and at 64 unrolled rows (code size).
    Megacore: keep >= 2 total grid steps when the shape allows it (v7x has 2 TCs).
    """
    m0 = 128 // math.gcd(W, 128)
    m0 = m0 * 8 // math.gcd(m0, 8)                      # lcm(8, 128 / gcd(W, 128))
    out_row_bytes = Cout * ks * ks * W * 4
    target_rows = max(1, (3 * 512 * 1024) // out_row_bytes)   # ~1.5 MiB / step
    cap_rows = max(1, (4 * 1024 * 1024) // out_row_bytes)     # <= 4 MiB out block
    unroll_cap = 64                                           # keep kernel code size sane
    th = min(target_rows, cap_rows, unroll_cap)
    th = max(m0, (th // m0) * m0)                             # legal multiple of m0
    if th >= H:
        th = H                                                # whole image: always legal
    if N * (-(-H // th)) < 2 and H >= 2 * m0:                 # ensure >= 2 grid steps
        th = (((H + 1) // 2) + m0 - 1) // m0 * m0
    return th


def _make_kernel(th, W, ks, Cout, Wks):
    Ncols = Cout * ks * ks

    def kernel(x_ref, w_ref, b_ref, r_ref, o_ref):
        # x_ref: (Cin, th*W)         lane axis = h_local*W + w   (lane-dense input)
        # w_ref: (Ncols, Cin)        rows ordered (ki, kj, co)
        # b_ref: (Cout, 1)
        # r_ref: (ks*W, W*ks)        stacked scatter matrices; R_kj[w, w*ks+kj] = 1
        # o_ref: (Cout, th, ks*W*ks) lane axis = ki*(W*ks) + w*ks + kj  (== NCHW order)
        p = jnp.dot(w_ref[...], x_ref[...], preferred_element_type=jnp.float32)
        bias = b_ref[...]                                   # (Cout, 1)
        r_all = r_ref[...]                                  # (ks*W, Wks)
        for h in range(th):                                 # static unroll over the row block
            ph = p[:, h * W:(h + 1) * W]                    # (Ncols, W)
            for ki in range(ks):
                acc = None
                for kj in range(ks):
                    row0 = (ki * ks + kj) * Cout
                    piece = ph[row0:row0 + Cout, :]         # (Cout, W)
                    # Lane scatter w -> w*ks+kj via constant matmul (idle MXU).
                    scat = jnp.dot(piece, r_all[kj * W:(kj + 1) * W, :],
                                   preferred_element_type=jnp.float32)   # (Cout, Wks)
                    acc = scat if acc is None else acc + scat
                out_row = jnp.maximum(acc + bias, 0.0)      # module maps 'elu' -> nn.ReLU
                o_ref[:, h, ki * Wks:(ki + 1) * Wks] = out_row

    return kernel


def prepare_params(weight, bias):
    """One-time weight/bias repack (hoisted out of the per-call jitted path).

    weight: (Cin, Cout, kH, kW)  PyTorch ConvTranspose2d layout
    bias:   (Cout,)
    returns w_mat (Cout*ks*ks, Cin) with rows ordered (ki, kj, co), b_col (Cout, 1).
    """
    Cin, Cout, kh, kw = weight.shape
    w_mat = jnp.transpose(weight, (2, 3, 1, 0)).reshape(kh * kw * Cout, Cin)
    b_col = bias.reshape(Cout, 1)
    return w_mat, b_col


@functools.partial(jax.jit, static_argnames=("ks", "st"))
def conv2d_transpose_block(x, w_mat, b_col, *, ks, st):
    """Forward of Conv2dTransposeBlock: ReLU(ConvTranspose2d(x) + bias).

    Supports the ks == st, padding == 0 path (non-overlapping upsampling), for which
    the transposed conv is exactly a GEMM over Cin per input pixel.

    x:     (N, Cin, H, W) float32, NCHW
    w_mat: (Cout*ks*ks, Cin)  from prepare_params
    b_col: (Cout, 1)          from prepare_params
    returns (N, Cout, H*st, W*st) float32, NCHW
    """
    assert ks == st, "kernel implements the ks == stride, padding == 0 path"
    N, Cin, H, W = x.shape
    Cout = b_col.shape[0]
    Ncols = Cout * ks * ks
    assert w_mat.shape == (Ncols, Cin)
    Wks = W * ks

    th = _choose_tile_rows(H, W, Cout, ks, N)
    h_tiles = -(-H // th)

    # Compile-time constant lane-scatter matrices: R[kj*W + w, w*ks + kj] = 1.
    r_np = np.zeros((ks * W, Wks), dtype=np.float32)
    for kj in range(ks):
        for w in range(W):
            r_np[kj * W + w, w * ks + kj] = 1.0
    r_all = jnp.asarray(r_np)

    x_hw = x.reshape(N, Cin, H * W)          # metadata-only (native NCHW bytes)

    out_arr = pl.pallas_call(
        _make_kernel(th, W, ks, Cout, Wks),
        out_shape=jax.ShapeDtypeStruct((N, Cout, H, ks * Wks), jnp.float32),
        grid_spec=pltpu.PrefetchScalarGridSpec(
            num_scalar_prefetch=0,
            grid=(N, h_tiles),
            in_specs=[
                # x: (N, Cin, HW) -> (Cin, th*W) per step, batch dim squeezed.
                pl.BlockSpec((pl.Squeezed(), Cin, th * W), lambda n, t: (n, 0, t)),
                # weight matrix, grid-invariant (tiny).
                pl.BlockSpec((Ncols, Cin), lambda n, t: (0, 0)),
                # bias column.
                pl.BlockSpec((Cout, 1), lambda n, t: (0, 0)),
                # scatter matrices, grid-invariant constant.
                pl.BlockSpec((ks * W, Wks), lambda n, t: (0, 0)),
            ],
            out_specs=pl.BlockSpec(
                (pl.Squeezed(), Cout, th, ks * Wks), lambda n, t: (n, 0, t, 0)
            ),
        ),
        compiler_params=pltpu.CompilerParams(
            # Independent axes; with >=2 total steps both v7x TensorCores get work.
            dimension_semantics=("parallel", "parallel"),
            # Blocks are capped at ~4 MiB each, so 32 MiB scoped VMEM is comfortable
            # on v5e/v6e (128 MiB physical) and v7x (64 MiB physical).
            vmem_limit_bytes=32 * 1024 * 1024,
        ),
    )(x_hw, w_mat, b_col, r_all)

    # (N, Cout, H, ks*W*ks) has identical memory order to NCHW (N, Cout, H*ks, W*ks):
    # this reshape is metadata-only -- no extra HBM pass.
    return out_arr.reshape(N, Cout, H * ks, Wks)


def _reference(x, weight, bias, ks):
    # Plain-JAX reference for the same (ks == st, padding == 0) configuration.
    N, Cin, H, W = x.shape
    Cout = weight.shape[1]
    out = jnp.einsum("nihw,iokl->nohkwl", x, weight)
    out = out.reshape(N, Cout, H * ks, W * ks) + bias[None, :, None, None]
    return jnp.maximum(out, 0.0)   # module maps 'elu' -> nn.ReLU


if __name__ == "__main__":
    # Module config: Conv2dTransposeBlock(in_dim=4, out_dim=8, ks=2, st=2,
    #                                     padding=0, norm='none', activation='elu')
    in_dim, out_dim, ks, st = 4, 8, 2, 2
    N, H, W = 2, 16, 16

    key = jax.random.PRNGKey(0)
    kx, kw, kb = jax.random.split(key, 3)
    x = jax.random.normal(kx, (N, in_dim, H, W), dtype=jnp.float32)
    weight = 0.1 * jax.random.normal(kw, (in_dim, out_dim, ks, ks), dtype=jnp.float32)
    bias = 0.1 * jax.random.normal(kb, (out_dim,), dtype=jnp.float32)

    # One-time parameter repack (hoisted out of the per-call path per perf review).
    w_mat, b_col = prepare_params(weight, bias)

    out = conv2d_transpose_block(x, w_mat, b_col, ks=ks, st=st)
    out = jax.block_until_ready(out)

    ref = _reference(x, weight, bias, ks)
    assert out.shape == (N, out_dim, H * st, W * st), out.shape
    assert jnp.allclose(out, ref, atol=1e-5, rtol=1e-5), float(jnp.max(jnp.abs(out - ref)))

    # TODO(synk): other norm variants ('bn', 'in', 'group', 'adain'), tanh/lrelu
    # activations, activation_first=True, and overlapping strides (ks != st or
    # padding != 0) are not exercised by this kernel.
    print("KERNEL_OK")
</pallas_src>

<mosaic_0001>
module attributes {stable_mosaic.version = 11 : i64} {
  func.func @kernel(%arg0: i32, %arg1: i32, %arg2: memref<1x4x256xf32, #tpu.memory_space<vmem>>, %arg3: memref<32x4xf32, #tpu.memory_space<vmem>>, %arg4: memref<8x1xf32, #tpu.memory_space<vmem>>, %arg5: memref<32x32xf32, #tpu.memory_space<vmem>>, %arg6: memref<1x8x16x64xf32, #tpu.memory_space<vmem>>) attributes {dimension_semantics = [#tpu.dimension_semantics<parallel>, #tpu.dimension_semantics<parallel>], iteration_bounds = array<i64: 2, 1>, scalar_prefetch = 0 : i64, scratch_operands = 0 : i64, tpu.core_type = #tpu.core_type<tc>, window_params = [{transform_indices = @transform_0, window_bounds = array<i64: 1, 4, 256>}, {pipeline_mode = #tpu.pipeline_mode<synchronous>, transform_indices = @transform_1, window_bounds = array<i64: 32, 4>}, {pipeline_mode = #tpu.pipeline_mode<synchronous>, transform_indices = @transform_2, window_bounds = array<i64: 8, 1>}, {pipeline_mode = #tpu.pipeline_mode<synchronous>, transform_indices = @transform_3, window_bounds = array<i64: 32, 32>}, {transform_indices = @transform_4, window_bounds = array<i64: 1, 8, 16, 64>}]} {
    %c0 = arith.constant 0 : index
    %c0_0 = arith.constant 0 : index
    %0 = vector.load %arg3[%c0, %c0_0] : memref<32x4xf32, #tpu.memory_space<vmem>>, vector<32x4xf32>
    %c0_1 = arith.constant 0 : index
    %c0_2 = arith.constant 0 : index
    %c0_3 = arith.constant 0 : index
    %1 = vector.load %arg2[%c0_1, %c0_2, %c0_3] : memref<1x4x256xf32, #tpu.memory_space<vmem>>, vector<1x4x256xf32>
    %2 = vector.shape_cast %1 : vector<1x4x256xf32> to vector<4x256xf32>
    %cst = arith.constant dense<0.000000e+00> : vector<32x256xf32>
    %3 = tpu.matmul %0, %2, %cst {dimension_numbers = #tpu.dot_dimension_numbers<[1], [0], [0], [1], [0, 0, 1, 1], [], []>} : vector<32x4xf32>, vector<4x256xf32>, vector<32x256xf32> -> vector<32x256xf32>
    %c0_4 = arith.constant 0 : index
    %c0_5 = arith.constant 0 : index
    %4 = vector.load %arg4[%c0_4, %c0_5] : memref<8x1xf32, #tpu.memory_space<vmem>>, vector<8x1xf32>
    %c0_6 = arith.constant 0 : index
    %c0_7 = arith.constant 0 : index
    %5 = vector.load %arg5[%c0_6, %c0_7] : memref<32x32xf32, #tpu.memory_space<vmem>>, vector<32x32xf32>
    %6 = vector.extract_strided_slice %3 {offsets = [0, 0], sizes = [32, 16], strides = [1, 1]} : vector<32x256xf32> to vector<32x16xf32>
    %7 = vector.extract_strided_slice %6 {offsets = [0, 0], sizes = [8, 16], strides = [1, 1]} : vector<32x16xf32> to vector<8x16xf32>
    %8 = vector.extract_strided_slice %5 {offsets = [0, 0], sizes = [16, 32], strides = [1, 1]} : vector<32x32xf32> to vector<16x32xf32>
    %cst_8 = arith.constant dense<0.000000e+00> : vector<8x32xf32>
    %9 = tpu.matmul %7, %8, %cst_8 {dimension_numbers = #tpu.dot_dimension_numbers<[1], [0], [0], [1], [0, 0, 1, 1], [], []>} : vector<8x16xf32>, vector<16x32xf32>, vector<8x32xf32> -> vector<8x32xf32>
    %10 = vector.extract_strided_slice %6 {offsets = [8, 0], sizes = [8, 16], strides = [1, 1]} : vector<32x16xf32> to vector<8x16xf32>
    %11 = vector.extract_strided_slice %5 {offsets = [16, 0], sizes = [16, 32], strides = [1, 1]} : vector<32x32xf32> to vector<16x32xf32>
    %cst_9 = arith.constant dense<0.000000e+00> : vector<8x32xf32>
    %12 = tpu.matmul %10, %11, %cst_9 {dimension_numbers = #tpu.dot_dimension_numbers<[1], [0], [0], [1], [0, 0, 1, 1], [], []>} : vector<8x16xf32>, vector<16x32xf32>, vector<8x32xf32> -> vector<8x32xf32>
    %13 = arith.addf %9, %12 : vector<8x32xf32>
    %14 = vector.broadcast %4 : vector<8x1xf32> to vector<8x32xf32>
    %15 = arith.addf %13, %14 : vector<8x32xf32>
    %cst_10 = arith.constant 0.000000e+00 : f32
    %16 = vector.broadcast %cst_10 : f32 to vector<8x32xf32>
    %17 = arith.maximumf %15, %16 : vector<8x32xf32>
    %c0_11 = arith.constant 0 : index
    %c0_12 = arith.constant 0 : index
    %c0_13 = arith.constant 0 : index
    %c0_14 = arith.constant 0 : index
    %18 = vector.load %arg6[%c0_11, %c0_12, %c0_13, %c0_14] : memref<1x8x16x64xf32, #tpu.memory_space<vmem>>, vector<1x8x1x32xf32>
    %19 = vector.shape_cast %18 : vector<1x8x1x32xf32> to vector<8x32xf32>
    %20 = vector.shape_cast %17 : vector<8x32xf32> to vector<1x8x1x32xf32>
    tpu.vector_store %arg6[%c0_11, %c0_12, %c0_13, %c0_14], %20 {strides = array<i32>} : memref<1x8x16x64xf32, #tpu.memory_space<vmem>>, vector<1x8x1x32xf32>,
    %21 = vector.extract_strided_slice %6 {offsets = [16, 0], sizes = [8, 16], strides = [1, 1]} : vector<32x16xf32> to vector<8x16xf32>
    %22 = vector.extract_strided_slice %5 {offsets = [0, 0], sizes = [16, 32], strides = [1, 1]} : vector<32x32xf32> to vector<16x32xf32>
    %cst_15 = arith.constant dense<0.000000e+00> : vector<8x32xf32>
    %23 = tpu.matmul %21, %22, %cst_15 {dimension_numbers = #tpu.dot_dimension_numbers<[1], [0], [0], [1], [0, 0, 1, 1], [], []>} : vector<8x16xf32>, vector<16x32xf32>, vector<8x32xf32> -> vector<8x32xf32>
    %24 = vector.extract_strided_slice %6 {offsets = [24, 0], sizes = [8, 16], strides = [1, 1]} : vector<32x16xf32> to vector<8x16xf32>
    %25 = vector.extract_strided_slice %5 {offsets = [16, 0], sizes = [16, 32], strides = [1, 1]} : vector<32x32xf32> to vector<16x32xf32>
    %cst_16 = arith.constant dense<0.000000e+00> : vector<8x32xf32>
    %26 = tpu.matmul %24, %25, %cst_16 {dimension_numbers = #tpu.dot_dimension_numbers<[1], [0], [0], [1], [0, 0, 1, 1], [], []>} : vector<8x16xf32>, vector<16x32xf32>, vector<8x32xf32> -> vector<8x32xf32>
    %27 = arith.addf %23, %26 : vector<8x32xf32>
    %28 = vector.broadcast %4 : vector<8x1xf32> to vector<8x32xf32>
    %29 = arith.addf %27, %28 : vector<8x32xf32>
    %cst_17 = arith.constant 0.000000e+00 : f32
    %30 = vector.broadcast %cst_17 : f32 to vector<8x32xf32>
    %31 = arith.maximumf %29, %30 : vector<8x32xf32>
    %c0_18 = arith.constant 0 : index
    %c0_19 = arith.constant 0 : index
    %c0_20 = arith.constant 0 : index
    %c32 = arith.constant 32 : index
    %32 = vector.load %arg6[%c0_18, %c0_19, %c0_20, %c32] : memref<1x8x16x64xf32, #tpu.memory_space<vmem>>, vector<1x8x1x32xf32>
    %33 = vector.shape_cast %32 : vector<1x8x1x32xf32> to vector<8x32xf32>
    %34 = vector.shape_cast %31 : vector<8x32xf32> to vector<1x8x1x32xf32>
    tpu.vector_store %arg6[%c0_18, %c0_19, %c0_20, %c32], %34 {strides = array<i32>} : memref<1x8x16x64xf32, #tpu.memory_space<vmem>>, vector<1x8x1x32xf32>,
    %35 = vector.extract_strided_slice %3 {offsets = [0, 16], sizes = [32, 16], strides = [1, 1]} : vector<32x256xf32> to vector<32x16xf32>
    %36 = vector.extract_strided_slice %35 {offsets = [0, 0], sizes = [8, 16], strides = [1, 1]} : vector<32x16xf32> to vector<8x16xf32>
    %37 = vector.extract_strided_slice %5 {offsets = [0, 0], sizes = [16, 32], strides = [1, 1]} : vector<32x32xf32> to vector<16x32xf32>
    %cst_21 = arith.constant dense<0.000000e+00> : vector<8x32xf32>
    %38 = tpu.matmul %36, %37, %cst_21 {dimension_numbers = #tpu.dot_dimension_numbers<[1], [0], [0], [1], [0, 0, 1, 1], [], []>} : vector<8x16xf32>, vector<16x32xf32>, vector<8x32xf32> -> vector<8x32xf32>
    %39 = vector.extract_strided_slice %35 {offsets = [8, 0], sizes = [8, 16], strides = [1, 1]} : vector<32x16xf32> to vector<8x16xf32>
    %40 = vector.extract_strided_slice %5 {offsets = [16, 0], sizes = [16, 32], strides = [1, 1]} : vector<32x32xf32> to vector<16x32xf32>
    %cst_22 = arith.constant dense<0.000000e+00> : vector<8x32xf32>
    %41 = tpu.matmul %39, %40, %cst_22 {dimension_numbers = #tpu.dot_dimension_numbers<[1], [0], [0], [1], [0, 0, 1, 1], [], []>} : vector<8x16xf32>, vector<16x32xf32>, vector<8x32xf32> -> vector<8x32xf32>
    %42 = arith.addf %38, %41 : vector<8x32xf32>
    %43 = vector.broadcast %4 : vector<8x1xf32> to vector<8x32xf32>
    %44 = arith.addf %42, %43 : vector<8x32xf32>
    %cst_23 = arith.constant 0.000000e+00 : f32
    %45 = vector.broadcast %cst_23 : f32 to vector<8x32xf32>
    %46 = arith.maximumf %44, %45 : vector<8x32xf32>
    %c0_24 = arith.constant 0 : index
    %c0_25 = arith.constant 0 : index
    %c1 = arith.constant 1 : index
    %c0_26 = arith.constant 0 : index
    %47 = vector.load %arg6[%c0_24, %c0_25, %c1, %c0_26] : memref<1x8x16x64xf32, #tpu.memory_space<vmem>>, vector<1x8x1x32xf32>
    %48 = vector.shape_cast %47 : vector<1x8x1x32xf32> to vector<8x32xf32>
    %49 = vector.shape_cast %46 : vector<8x32xf32> to vector<1x8x1x32xf32>
    tpu.vector_store %arg6[%c0_24, %c0_25, %c1, %c0_26], %49 {strides = array<i32>} : memref<1x8x16x64xf32, #tpu.memory_space<vmem>>, vector<1x8x1x32xf32>,
    %50 = vector.extract_strided_slice %35 {offsets = [16, 0], sizes = [8, 16], strides = [1, 1]} : vector<32x16xf32> to vector<8x16xf32>
    %51 = vector.extract_strided_slice %5 {offsets = [0, 0], sizes = [16, 32], strides = [1, 1]} : vector<32x32xf32> to vector<16x32xf32>
    %cst_27 = arith.constant dense<0.000000e+00> : vector<8x32xf32>
    %52 = tpu.matmul %50, %51, %cst_27 {dimension_numbers = #tpu.dot_dimension_numbers<[1], [0], [0], [1], [0, 0, 1, 1], [], []>} : vector<8x16xf32>, vector<16x32xf32>, vector<8x32xf32> -> vector<8x32xf32>
    %53 = vector.extract_strided_slice %35 {offsets = [24, 0], sizes = [8, 16], strides = [1, 1]} : vector<32x16xf32> to vector<8x16xf32>
    %54 = vector.extract_strided_slice %5 {offsets = [16, 0], sizes = [16, 32], strides = [1, 1]} : vector<32x32xf32> to vector<16x32xf32>
    %cst_28 = arith.constant dense<0.000000e+00> : vector<8x32xf32>
    %55 = tpu.matmul %53, %54, %cst_28 {dimension_numbers = #tpu.dot_dimension_numbers<[1], [0], [0], [1], [0, 0, 1, 1], [], []>} : vector<8x16xf32>, vector<16x32xf32>, vector<8x32xf32> -> vector<8x32xf32>
    %56 = arith.addf %52, %55 : vector<8x32xf32>
    %57 = vector.broadcast %4 : vector<8x1xf32> to vector<8x32xf32>
    %58 = arith.addf %56, %57 : vector<8x32xf32>
    %cst_29 = arith.constant 0.000000e+00 : f32
    %59 = vector.broadcast %cst_29 : f32 to vector<8x32xf32>
    %60 = arith.maximumf %58, %59 : vector<8x32xf32>
    %c0_30 = arith.constant 0 : index
    %c0_31 = arith.constant 0 : index
    %c1_32 = arith.constant 1 : index
    %c32_33 = arith.constant 32 : index
    %61 = vector.load %arg6[%c0_30, %c0_31, %c1_32, %c32_33] : memref<1x8x16x64xf32, #tpu.memory_space<vmem>>, vector<1x8x1x32xf32>
    %62 = vector.shape_cast %61 : vector<1x8x1x32xf32> to vector<8x32xf32>
    %63 = vector.shape_cast %60 : vector<8x32xf32> to vector<1x8x1x32xf32>
    tpu.vector_store %arg6[%c0_30, %c0_31, %c1_32, %c32_33], %63 {strides = array<i32>} : memref<1x8x16x64xf32, #tpu.memory_space<vmem>>, vector<1x8x1x32xf32>,
    %64 = vector.extract_strided_slice %3 {offsets = [0, 32], sizes = [32, 16], strides = [1, 1]} : vector<32x256xf32> to vector<32x16xf32>
    %65 = vector.extract_strided_slice %64 {offsets = [0, 0], sizes = [8, 16], strides = [1, 1]} : vector<32x16xf32> to vector<8x16xf32>
    %66 = vector.extract_strided_slice %5 {offsets = [0, 0], sizes = [16, 32], strides = [1, 1]} : vector<32x32xf32> to vector<16x32xf32>
    %cst_34 = arith.constant dense<0.000000e+00> : vector<8x32xf32>
    %67 = tpu.matmul %65, %66, %cst_34 {dimension_numbers = #tpu.dot_dimension_numbers<[1], [0], [0], [1], [0, 0, 1, 1], [], []>} : vector<8x16xf32>, vector<16x32xf32>, vector<8x32xf32> -> vector<8x32xf32>
    %68 = vector.extract_strided_slice %64 {offsets = [8, 0], sizes = [8, 16], strides = [1, 1]} : vector<32x16xf32> to vector<8x16xf32>
    %69 = vector.extract_strided_slice %5 {offsets = [16, 0], sizes = [16, 32], strides = [1, 1]} : vector<32x32xf32> to vector<16x32xf32>
    %cst_35 = arith.constant dense<0.000000e+00> : vector<8x32xf32>
    %70 = tpu.matmul %68, %69, %cst_35 {dimension_numbers = #tpu.dot_dimension_numbers<[1], [0], [0], [1], [0, 0, 1, 1], [], []>} : vector<8x16xf32>, vector<16x32xf32>, vector<8x32xf32> -> vector<8x32xf32>
    %71 = arith.addf %67, %70 : vector<8x32xf32>
    %72 = vector.broadcast %4 : vector<8x1xf32> to vector<8x32xf32>
    %73 = arith.addf %71, %72 : vector<8x32xf32>
    %cst_36 = arith.constant 0.000000e+00 : f32
    %74 = vector.broadcast %cst_36 : f32 to vector<8x32xf32>
    %75 = arith.maximumf %73, %74 : vector<8x32xf32>
    %c0_37 = arith.constant 0 : index
    %c0_38 = arith.constant 0 : index
    %c2 = arith.constant 2 : index
    %c0_39 = arith.constant 0 : index
    %76 = vector.load %arg6[%c0_37, %c0_38, %c2, %c0_39] : memref<1x8x16x64xf32, #tpu.memory_space<vmem>>, vector<1x8x1x32xf32>
    %77 = vector.shape_cast %76 : vector<1x8x1x32xf32> to vector<8x32xf32>
    %78 = vector.shape_cast %75 : vector<8x32xf32> to vector<1x8x1x32xf32>
    tpu.vector_store %arg6[%c0_37, %c0_38, %c2, %c0_39], %78 {strides = array<i32>} : memref<1x8x16x64xf32, #tpu.memory_space<vmem>>, vector<1x8x1x32xf32>,
    %79 = vector.extract_strided_slice %64 {offsets = [16, 0], sizes = [8, 16], strides = [1, 1]} : vector<32x16xf32> to vector<8x16xf32>
    %80 = vector.extract_strided_slice %5 {offsets = [0, 0], sizes = [16, 32], strides = [1, 1]} : vector<32x32xf32> to vector<16x32xf32>
    %cst_40 = arith.constant dense<0.000000e+00> : vector<8x32xf32>
    %81 = tpu.matmul %79, %80, %cst_40 {dimension_numbers = #tpu.dot_dimension_numbers<[1], [0], [0], [1], [0, 0, 1, 1], [], []>} : vector<8x16xf32>, vector<16x32xf32>, vector<8x32xf32> -> vector<8x32xf32>
    %82 = vector.extract_strided_slice %64 {offsets = [24, 0], sizes = [8, 16], strides = [1, 1]} : vector<32x16xf32> to vector<8x16xf32>
    %83 = vector.extract_strided_slice %5 {offsets = [16, 0], sizes = [16, 32], strides = [1, 1]} : vector<32x32xf32> to vector<16x32xf32>
    %cst_41 = arith.constant dense<0.000000e+00> : vector<8x32xf32>
    %84 = tpu.matmul %82, %83, %cst_41 {dimension_numbers = #tpu.dot_dimension_numbers<[1], [0], [0], [1], [0, 0, 1, 1], [], []>} : vector<8x16xf32>, vector<16x32xf32>, vector<8x32xf32> -> vector<8x32xf32>
    %85 = arith.addf %81, %84 : vector<8x32xf32>
    %86 = vector.broadcast %4 : vector<8x1xf32> to vector<8x32xf32>
    %87 = arith.addf %85, %86 : vector<8x32xf32>
    %cst_42 = arith.constant 0.000000e+00 : f32
    %88 = vector.broadcast %cst_42 : f32 to vector<8x32xf32>
    %89 = arith.maximumf %87, %88 : vector<8x32xf32>
    %c0_43 = arith.constant 0 : index
    %c0_44 = arith.constant 0 : index
    %c2_45 = arith.constant 2 : index
    %c32_46 = arith.constant 32 : index
    %90 = vector.load %arg6[%c0_43, %c0_44, %c2_45, %c32_46] : memref<1x8x16x64xf32, #tpu.memory_space<vmem>>, vector<1x8x1x32xf32>
    %91 = vector.shape_cast %90 : vector<1x8x1x32xf32> to vector<8x32xf32>
    %92 = vector.shape_cast %89 : vector<8x32xf32> to vector<1x8x1x32xf32>
    tpu.vector_store %arg6[%c0_43, %c0_44, %c2_45, %c32_46], %92 {strides = array<i32>} : memref<1x8x16x64xf32, #tpu.memory_space<vmem>>, vector<1x8x1x32xf32>,
    %93 = vector.extract_strided_slice %3 {offsets = [0, 48], sizes = [32, 16], strides = [1, 1]} : vector<32x256xf32> to vector<32x16xf32>
    %94 = vector.extract_strided_slice %93 {offsets = [0, 0], sizes = [8, 16], strides = [1, 1]} : vector<32x16xf32> to vector<8x16xf32>
    %95 = vector.extract_strided_slice %5 {offsets = [0, 0], sizes = [16, 32], strides = [1, 1]} : vector<32x32xf32> to vector<16x32xf32>
    %cst_47 = arith.constant dense<0.000000e+00> : vector<8x32xf32>
    %96 = tpu.matmul %94, %95, %cst_47 {dimension_numbers = #tpu.dot_dimension_numbers<[1], [0], [0], [1], [0, 0, 1, 1], [], []>} : vector<8x16xf32>, vector<16x32xf32>, vector<8x32xf32> -> vector<8x32xf32>
    %97 = vector.extract_strided_slice %93 {offsets = [8, 0], sizes = [8, 16], strides = [1, 1]} : vector<32x16xf32> to vector<8x16xf32>
    %98 = vector.extract_strided_slice %5 {offsets = [16, 0], sizes = [16, 32], strides = [1, 1]} : vector<32x32xf32> to vector<16x32xf32>
    %cst_48 = arith.constant dense<0.000000e+00> : vector<8x32xf32>
    %99 = tpu.matmul %97, %98, %cst_48 {dimension_numbers = #tpu.dot_dimension_numbers<[1], [0], [0], [1], [0, 0, 1, 1], [], []>} : vector<8x16xf32>, vector<16x32xf32>, vector<8x32xf32> -> vector<8x32xf32>
    %100 = arith.addf %96, %99 : vector<8x32xf32>
    %101 = vector.broadcast %4 : vector<8x1xf32> to vector<8x32xf32>
    %102 = arith.addf %100, %101 : vector<8x32xf32>
    %cst_49 = arith.constant 0.000000e+00 : f32
    %103 = vector.broadcast %cst_49 : f32 to vector<8x32xf32>
    %104 = arith.maximumf %102, %103 : vector<8x32xf32>
    %c0_50 = arith.constant 0 : index
    %c0_51 = arith.constant 0 : index
    %c3 = arith.constant 3 : index
    %c0_52 = arith.constant 0 : index
    %105 = vector.load %arg6[%c0_50, %c0_51, %c3, %c0_52] : memref<1x8x16x64xf32, #tpu.memory_space<vmem>>, vector<1x8x1x32xf32>
    %106 = vector.shape_cast %105 : vector<1x8x1x32xf32> to vector<8x32xf32>
    %107 = vector.shape_cast %104 : vector<8x32xf32> to vector<1x8x1x32xf32>
    tpu.vector_store %arg6[%c0_50, %c0_51, %c3, %c0_52], %107 {strides = array<i32>} : memref<1x8x16x64xf32, #tpu.memory_space<vmem>>, vector<1x8x1x32xf32>,
    %108 = vector.extract_strided_slice %93 {offsets = [16, 0], sizes = [8, 16], strides = [1, 1]} : vector<32x16xf32> to vector<8x16xf32>
    %109 = vector.extract_strided_slice %5 {offsets = [0, 0], sizes = [16, 32], strides = [1, 1]} : vector<32x32xf32> to vector<16x32xf32>
    %cst_53 = arith.constant dense<0.000000e+00> : vector<8x32xf32>
    %110 = tpu.matmul %108, %109, %cst_53 {dimension_numbers = #tpu.dot_dimension_numbers<[1], [0], [0], [1], [0, 0, 1, 1], [], []>} : vector<8x16xf32>, vector<16x32xf32>, vector<8x32xf32> -> vector<8x32xf32>
    %111 = vector.extract_strided_slice %93 {offsets = [24, 0], sizes = [8, 16], strides = [1, 1]} : vector<32x16xf32> to vector<8x16xf32>
    %112 = vector.extract_strided_slice %5 {offsets = [16, 0], sizes = [16, 32], strides = [1, 1]} : vector<32x32xf32> to vector<16x32xf32>
    %cst_54 = arith.constant dense<0.000000e+00> : vector<8x32xf32>
    %113 = tpu.matmul %111, %112, %cst_54 {dimension_numbers = #tpu.dot_dimension_numbers<[1], [0], [0], [1], [0, 0, 1, 1], [], []>} : vector<8x16xf32>, vector<16x32xf32>, vector<8x32xf32> -> vector<8x32xf32>
    %114 = arith.addf %110, %113 : vector<8x32xf32>
    %115 = vector.broadcast %4 : vector<8x1xf32> to vector<8x32xf32>
    %116 = arith.addf %114, %115 : vector<8x32xf32>
    %cst_55 = arith.constant 0.000000e+00 : f32
    %117 = vector.broadcast %cst_55 : f32 to vector<8x32xf32>
    %118 = arith.maximumf %116, %117 : vector<8x32xf32>
    %c0_56 = arith.constant 0 : index
    %c0_57 = arith.constant 0 : index
    %c3_58 = arith.constant 3 : index
    %c32_59 = arith.constant 32 : index
    %119 = vector.load %arg6[%c0_56, %c0_57, %c3_58, %c32_59] : memref<1x8x16x64xf32, #tpu.memory_space<vmem>>, vector<1x8x1x32xf32>
    %120 = vector.shape_cast %119 : vector<1x8x1x32xf32> to vector<8x32xf32>
    %121 = vector.shape_cast %118 : vector<8x32xf32> to vector<1x8x1x32xf32>
    tpu.vector_store %arg6[%c0_56, %c0_57, %c3_58, %c32_59], %121 {strides = array<i32>} : memref<1x8x16x64xf32, #tpu.memory_space<vmem>>, vector<1x8x1x32xf32>,
    %122 = vector.extract_strided_slice %3 {offsets = [0, 64], sizes = [32, 16], strides = [1, 1]} : vector<32x256xf32> to vector<32x16xf32>
    %123 = vector.extract_strided_slice %122 {offsets = [0, 0], sizes = [8, 16], strides = [1, 1]} : vector<32x16xf32> to vector<8x16xf32>
    %124 = vector.extract_strided_slice %5 {offsets = [0, 0], sizes = [16, 32], strides = [1, 1]} : vector<32x32xf32> to vector<16x32xf32>
    %cst_60 = arith.constant dense<0.000000e+00> : vector<8x32xf32>
    %125 = tpu.matmul %123, %124, %cst_60 {dimension_numbers = #tpu.dot_dimension_numbers<[1], [0], [0], [1], [0, 0, 1, 1], [], []>} : vector<8x16xf32>, vector<16x32xf32>, vector<8x32xf32> -> vector<8x32xf32>
    %126 = vector.extract_strided_slice %122 {offsets = [8, 0], sizes = [8, 16], strides = [1, 1]} : vector<32x16xf32> to vector<8x16xf32>
    %127 = vector.extract_strided_slice %5 {offsets = [16, 0], sizes = [16, 32], strides = [1, 1]} : vector<32x32xf32> to vector<16x32xf32>
    %cst_61 = arith.constant dense<0.000000e+00> : vector<8x32xf32>
    %128 = tpu.matmul %126, %127, %cst_61 {dimension_numbers = #tpu.dot_dimension_numbers<[1], [0], [0], [1], [0, 0, 1, 1], [], []>} : vector<8x16xf32>, vector<16x32xf32>, vector<8x32xf32> -> vector<8x32xf32>
    %129 = arith.addf %125, %128 : vector<8x32xf32>
    %130 = vector.broadcast %4 : vector<8x1xf32> to vector<8x32xf32>
    %131 = arith.addf %129, %130 : vector<8x32xf32>
    %cst_62 = arith.constant 0.000000e+00 : f32
    %132 = vector.broadcast %cst_62 : f32 to vector<8x32xf32>
    %133 = arith.maximumf %131, %132 : vector<8x32xf32>
    %c0_63 = arith.constant 0 : index
    %c0_64 = arith.constant 0 : index
    %c4 = arith.constant 4 : index
    %c0_65 = arith.constant 0 : index
    %134 = vector.load %arg6[%c0_63, %c0_64, %c4, %c0_65] : memref<1x8x16x64xf32, #tpu.memory_space<vmem>>, vector<1x8x1x32xf32>
    %135 = vector.shape_cast %134 : vector<1x8x1x32xf32> to vector<8x32xf32>
    %136 = vector.shape_cast %133 : vector<8x32xf32> to vector<1x8x1x32xf32>
    tpu.vector_store %arg6[%c0_63, %c0_64, %c4, %c0_65], %136 {strides = array<i32>} : memref<1x8x16x64xf32, #tpu.memory_space<vmem>>, vector<1x8x1x32xf32>,
    %137 = vector.extract_strided_slice %122 {offsets = [16, 0], sizes = [8, 16], strides = [1, 1]} : vector<32x16xf32> to vector<8x16xf32>
    %138 = vector.extract_strided_slice %5 {offsets = [0, 0], sizes = [16, 32], strides = [1, 1]} : vector<32x32xf32> to vector<16x32xf32>
    %cst_66 = arith.constant dense<0.000000e+00> : vector<8x32xf32>
    %139 = tpu.matmul %137, %138, %cst_66 {dimension_numbers = #tpu.dot_dimension_numbers<[1], [0], [0], [1], [0, 0, 1, 1], [], []>} : vector<8x16xf32>, vector<16x32xf32>, vector<8x32xf32> -> vector<8x32xf32>
    %140 = vector.extract_strided_slice %122 {offsets = [24, 0], sizes = [8, 16], strides = [1, 1]} : vector<32x16xf32> to vector<8x16xf32>
    %141 = vector.extract_strided_slice %5 {offsets = [16, 0], sizes = [16, 32], strides = [1, 1]} : vector<32x32xf32> to vector<16x32xf32>
    %cst_67 = arith.constant dense<0.000000e+00> : vector<8x32xf32>
    %142 = tpu.matmul %140, %141, %cst_67 {dimension_numbers = #tpu.dot_dimension_numbers<[1], [0], [0], [1], [0, 0, 1, 1], [], []>} : vector<8x16xf32>, vector<16x32xf32>, vector<8x32xf32> -> vector<8x32xf32>
    %143 = arith.addf %139, %142 : vector<8x32xf32>
    %144 = vector.broadcast %4 : vector<8x1xf32> to vector<8x32xf32>
    %145 = arith.addf %143, %144 : vector<8x32xf32>
    %cst_68 = arith.constant 0.000000e+00 : f32
    %146 = vector.broadcast %cst_68 : f32 to vector<8x32xf32>
    %147 = arith.maximumf %145, %146 : vector<8x32xf32>
    %c0_69 = arith.constant 0 : index
    %c0_70 = arith.constant 0 : index
    %c4_71 = arith.constant 4 : index
    %c32_72 = arith.constant 32 : index
    %148 = vector.load %arg6[%c0_69, %c0_70, %c4_71, %c32_72] : memref<1x8x16x64xf32, #tpu.memory_space<vmem>>, vector<1x8x1x32xf32>
    %149 = vector.shape_cast %148 : vector<1x8x1x32xf32> to vector<8x32xf32>
    %150 = vector.shape_cast %147 : vector<8x32xf32> to vector<1x8x1x32xf32>
    tpu.vector_store %arg6[%c0_69, %c0_70, %c4_71, %c32_72], %150 {strides = array<i32>} : memref<1x8x16x64xf32, #tpu.memory_space<vmem>>, vector<1x8x1x32xf32>,
    %151 = vector.extract_strided_slice %3 {offsets = [0, 80], sizes = [32, 16], strides = [1, 1]} : vector<32x256xf32> to vector<32x16xf32>
    %152 = vector.extract_strided_slice %151 {offsets = [0, 0], sizes = [8, 16], strides = [1, 1]} : vector<32x16xf32> to vector<8x16xf32>
    %153 = vector.extract_strided_slice %5 {offsets = [0, 0], sizes = [16, 32], strides = [1, 1]} : vector<32x32xf32> to vector<16x32xf32>
    %cst_73 = arith.constant dense<0.000000e+00> : vector<8x32xf32>
    %154 = tpu.matmul %152, %153, %cst_73 {dimension_numbers = #tpu.dot_dimension_numbers<[1], [0], [0], [1], [0, 0, 1, 1], [], []>} : vector<8x16xf32>, vector<16x32xf32>, vector<8x32xf32> -> vector<8x32xf32>
    %155 = vector.extract_strided_slice %151 {offsets = [8, 0], sizes = [8, 16], strides = [1, 1]} : vector<32x16xf32> to vector<8x16xf32>
    %156 = vector.extract_strided_slice %5 {offsets = [16, 0], sizes = [16, 32], strides = [1, 1]} : vector<32x32xf32> to vector<16x32xf32>
    %cst_74 = arith.constant dense<0.000000e+00> : vector<8x32xf32>
    %157 = tpu.matmul %155, %156, %cst_74 {dimension_numbers = #tpu.dot_dimension_numbers<[1], [0], [0], [1], [0, 0, 1, 1], [], []>} : vector<8x16xf32>, vector<16x32xf32>, vector<8x32xf32> -> vector<8x32xf32>
    %158 = arith.addf %154, %157 : vector<8x32xf32>
    %159 = vector.broadcast %4 : vector<8x1xf32> to vector<8x32xf32>
    %160 = arith.addf %158, %159 : vector<8x32xf32>
    %cst_75 = arith.constant 0.000000e+00 : f32
    %161 = vector.broadcast %cst_75 : f32 to vector<8x32xf32>
    %162 = arith.maximumf %160, %161 : vector<8x32xf32>
    %c0_76 = arith.constant 0 : index
    %c0_77 = arith.constant 0 : index
    %c5 = arith.constant 5 : index
    %c0_78 = arith.constant 0 : index
    %163 = vector.load %arg6[%c0_76, %c0_77, %c5, %c0_78] : memref<1x8x16x64xf32, #tpu.memory_space<vmem>>, vector<1x8x1x32xf32>
    %164 = vector.shape_cast %163 : vector<1x8x1x32xf32> to vector<8x32xf32>
    %165 = vector.shape_cast %162 : vector<8x32xf32> to vector<1x8x1x32xf32>
    tpu.vector_store %arg6[%c0_76, %c0_77, %c5, %c0_78], %165 {strides = array<i32>} : memref<1x8x16x64xf32, #tpu.memory_space<vmem>>, vector<1x8x1x32xf32>,
    %166 = vector.extract_strided_slice %151 {offsets = [16, 0], sizes = [8, 16], strides = [1, 1]} : vector<32x16xf32> to vector<8x16xf32>
    %167 = vector.extract_strided_slice %5 {offsets = [0, 0], sizes = [16, 32], strides = [1, 1]} : vector<32x32xf32> to vector<16x32xf32>
    %cst_79 = arith.constant dense<0.000000e+00> : vector<8x32xf32>
    %168 = tpu.matmul %166, %167, %cst_79 {dimension_numbers = #tpu.dot_dimension_numbers<[1], [0], [0], [1], [0, 0, 1, 1], [], []>} : vector<8x16xf32>, vector<16x32xf32>, vector<8x32xf32> -> vector<8x32xf32>
    %169 = vector.extract_strided_slice %151 {offsets = [24, 0], sizes = [8, 16], strides = [1, 1]} : vector<32x16xf32> to vector<8x16xf32>
    %170 = vector.extract_strided_slice %5 {offsets = [16, 0], sizes = [16, 32], strides = [1, 1]} : vector<32x32xf32> to vector<16x32xf32>
    %cst_80 = arith.constant dense<0.000000e+00> : vector<8x32xf32>
    %171 = tpu.matmul %169, %170, %cst_80 {dimension_numbers = #tpu.dot_dimension_numbers<[1], [0], [0], [1], [0, 0, 1, 1], [], []>} : vector<8x16xf32>, vector<16x32xf32>, vector<8x32xf32> -> vector<8x32xf32>
    %172 = arith.addf %168, %171 : vector<8x32xf32>
    %173 = vector.broadcast %4 : vector<8x1xf32> to vector<8x32xf32>
    %174 = arith.addf %172, %173 : vector<8x32xf32>
    %cst_81 = arith.constant 0.000000e+00 : f32
    %175 = vector.broadcast %cst_81 : f32 to vector<8x32xf32>
    %176 = arith.maximumf %174, %175 : vector<8x32xf32>
    %c0_82 = arith.constant 0 : index
    %c0_83 = arith.constant 0 : index
    %c5_84 = arith.constant 5 : index
    %c32_85 = arith.constant 32 : index
    %177 = vector.load %arg6[%c0_82, %c0_83, %c5_84, %c32_85] : memref<1x8x16x64xf32, #tpu.memory_space<vmem>>, vector<1x8x1x32xf32>
    %178 = vector.shape_cast %177 : vector<1x8x1x32xf32> to vector<8x32xf32>
    %179 = vector.shape_cast %176 : vector<8x32xf32> to vector<1x8x1x32xf32>
    tpu.vector_store %arg6[%c0_82, %c0_83, %c5_84, %c32_85], %179 {strides = array<i32>} : memref<1x8x16x64xf32, #tpu.memory_space<vmem>>, vector<1x8x1x32xf32>,
    %180 = vector.extract_strided_slice %3 {offsets = [0, 96], sizes = [32, 16], strides = [1, 1]} : vector<32x256xf32> to vector<32x16xf32>
    %181 = vector.extract_strided_slice %180 {offsets = [0, 0], sizes = [8, 16], strides = [1, 1]} : vector<32x16xf32> to vector<8x16xf32>
    %182 = vector.extract_strided_slice %5 {offsets = [0, 0], sizes = [16, 32], strides = [1, 1]} : vector<32x32xf32> to vector<16x32xf32>
    %cst_86 = arith.constant dense<0.000000e+00> : vector<8x32xf32>
    %183 = tpu.matmul %181, %182, %cst_86 {dimension_numbers = #tpu.dot_dimension_numbers<[1], [0], [0], [1], [0, 0, 1, 1], [], []>} : vector<8x16xf32>, vector<16x32xf32>, vector<8x32xf32> -> vector<8x32xf32>
    %184 = vector.extract_strided_slice %180 {offsets = [8, 0], sizes = [8, 16], strides = [1, 1]} : vector<32x16xf32> to vector<8x16xf32>
    %185 = vector.extract_strided_slice %5 {offsets = [16, 0], sizes = [16, 32], strides = [1, 1]} : vector<32x32xf32> to vector<16x32xf32>
    %cst_87 = arith.constant dense<0.000000e+00> : vector<8x32xf32>
    %186 = tpu.matmul %184, %185, %cst_87 {dimension_numbers = #tpu.dot_dimension_numbers<[1], [0], [0], [1], [0, 0, 1, 1], [], []>} : vector<8x16xf32>, vector<16x32xf32>, vector<8x32xf32> -> vector<8x32xf32>
    %187 = arith.addf %183, %186 : vector<8x32xf32>
    %188 = vector.broadcast %4 : vector<8x1xf32> to vector<8x32xf32>
    %189 = arith.addf %187, %188 : vector<8x32xf32>
    %cst_88 = arith.constant 0.000000e+00 : f32
    %190 = vector.broadcast %cst_88 : f32 to vector<8x32xf32>
    %191 = arith.maximumf %189, %190 : vector<8x32xf32>
    %c0_89 = arith.constant 0 : index
    %c0_90 = arith.constant 0 : index
    %c6 = arith.constant 6 : index
    %c0_91 = arith.constant 0 : index
    %192 = vector.load %arg6[%c0_89, %c0_90, %c6, %c0_91] : memref<1x8x16x64xf32, #tpu.memory_space<vmem>>, vector<1x8x1x32xf32>
    %193 = vector.shape_cast %192 : vector<1x8x1x32xf32> to vector<8x32xf32>
    %194 = vector.shape_cast %191 : vector<8x32xf32> to vector<1x8x1x32xf32>
    tpu.vector_store %arg6[%c0_89, %c0_90, %c6, %c0_91], %194 {strides = array<i32>} : memref<1x8x16x64xf32, #tpu.memory_space<vmem>>, vector<1x8x1x32xf32>,
    %195 = vector.extract_strided_slice %180 {offsets = [16, 0], sizes = [8, 16], strides = [1, 1]} : vector<32x16xf32> to vector<8x16xf32>
    %196 = vector.extract_strided_slice %5 {offsets = [0, 0], sizes = [16, 32], strides = [1, 1]} : vector<32x32xf32> to vector<16x32xf32>
    %cst_92 = arith.constant dense<0.000000e+00> : vector<8x32xf32>
    %197 = tpu.matmul %195, %196, %cst_92 {dimension_numbers = #tpu.dot_dimension_numbers<[1], [0], [0], [1], [0, 0, 1, 1], [], []>} : vector<8x16xf32>, vector<16x32xf32>, vector<8x32xf32> -> vector<8x32xf32>
    %198 = vector.extract_strided_slice %180 {offsets = [24, 0], sizes = [8, 16], strides = [1, 1]} : vector<32x16xf32> to vector<8x16xf32>
    %199 = vector.extract_strided_slice %5 {offsets = [16, 0], sizes = [16, 32], strides = [1, 1]} : vector<32x32xf32> to vector<16x32xf32>
    %cst_93 = arith.constant dense<0.000000e+00> : vector<8x32xf32>
    %200 = tpu.matmul %198, %199, %cst_93 {dimension_numbers = #tpu.dot_dimension_numbers<[1], [0], [0], [1], [0, 0, 1, 1], [], []>} : vector<8x16xf32>, vector<16x32xf32>, vector<8x32xf32> -> vector<8x32xf32>
    %201 = arith.addf %197, %200 : vector<8x32xf32>
    %202 = vector.broadcast %4 : vector<8x1xf32> to vector<8x32xf32>
    %203 = arith.addf %201, %202 : vector<8x32xf32>
    %cst_94 = arith.constant 0.000000e+00 : f32
    %204 = vector.broadcast %cst_94 : f32 to vector<8x32xf32>
    %205 = arith.maximumf %203, %204 : vector<8x32xf32>
    %c0_95 = arith.constant 0 : index
    %c0_96 = arith.constant 0 : index
    %c6_97 = arith.constant 6 : index
    %c32_98 = arith.constant 32 : index
    %206 = vector.load %arg6[%c0_95, %c0_96, %c6_97, %c32_98] : memref<1x8x16x64xf32, #tpu.memory_space<vmem>>, vector<1x8x1x32xf32>
    %207 = vector.shape_cast %206 : vector<1x8x1x32xf32> to vector<8x32xf32>
    %208 = vector.shape_cast %205 : vector<8x32xf32> to vector<1x8x1x32xf32>
    tpu.vector_store %arg6[%c0_95, %c0_96, %c6_97, %c32_98], %208 {strides = array<i32>} : memref<1x8x16x64xf32, #tpu.memory_space<vmem>>, vector<1x8x1x32xf32>,
    %209 = vector.extract_strided_slice %3 {offsets = [0, 112], sizes = [32, 16], strides = [1, 1]} : vector<32x256xf32> to vector<32x16xf32>
    %210 = vector.extract_strided_slice %209 {offsets = [0, 0], sizes = [8, 16], strides = [1, 1]} : vector<32x16xf32> to vector<8x16xf32>
    %211 = vector.extract_strided_slice %5 {offsets = [0, 0], sizes = [16, 32], strides = [1, 1]} : vector<32x32xf32> to vector<16x32xf32>
    %cst_99 = arith.constant dense<0.000000e+00> : vector<8x32xf32>
    %212 = tpu.matmul %210, %211, %cst_99 {dimension_numbers = #tpu.dot_dimension_numbers<[1], [0], [0], [1], [0, 0, 1, 1], [], []>} : vector<8x16xf32>, vector<16x32xf32>, vector<8x32xf32> -> vector<8x32xf32>
    %213 = vector.extract_strided_slice %209 {offsets = [8, 0], sizes = [8, 16], strides = [1, 1]} : vector<32x16xf32> to vector<8x16xf32>
    %214 = vector.extract_strided_slice %5 {offsets = [16, 0], sizes = [16, 32], strides = [1, 1]} : vector<32x32xf32> to vector<16x32xf32>
    %cst_100 = arith.constant dense<0.000000e+00> : vector<8x32xf32>
    %215 = tpu.matmul %213, %214, %cst_100 {dimension_numbers = #tpu.dot_dimension_numbers<[1], [0], [0], [1], [0, 0, 1, 1], [], []>} : vector<8x16xf32>, vector<16x32xf32>, vector<8x32xf32> -> vector<8x32xf32>
    %216 = arith.addf %212, %215 : vector<8x32xf32>
    %217 = vector.broadcast %4 : vector<8x1xf32> to vector<8x32xf32>
    %218 = arith.addf %216, %217 : vector<8x32xf32>
    %cst_101 = arith.constant 0.000000e+00 : f32
    %219 = vector.broadcast %cst_101 : f32 to vector<8x32xf32>
    %220 = arith.maximumf %218, %219 : vector<8x32xf32>
    %c0_102 = arith.constant 0 : index
    %c0_103 = arith.constant 0 : index
    %c7 = arith.constant 7 : index
    %c0_104 = arith.constant 0 : index
    %221 = vector.load %arg6[%c0_102, %c0_103, %c7, %c0_104] : memref<1x8x16x64xf32, #tpu.memory_space<vmem>>, vector<1x8x1x32xf32>
    %222 = vector.shape_cast %221 : vector<1x8x1x32xf32> to vector<8x32xf32>
    %223 = vector.shape_cast %220 : vector<8x32xf32> to vector<1x8x1x32xf32>
    tpu.vector_store %arg6[%c0_102, %c0_103, %c7, %c0_104], %223 {strides = array<i32>} : memref<1x8x16x64xf32, #tpu.memory_space<vmem>>, vector<1x8x1x32xf32>,
    %224 = vector.extract_strided_slice %209 {offsets = [16, 0], sizes = [8, 16], strides = [1, 1]} : vector<32x16xf32> to vector<8x16xf32>
    %225 = vector.extract_strided_slice %5 {offsets = [0, 0], sizes = [16, 32], strides = [1, 1]} : vector<32x32xf32> to vector<16x32xf32>
    %cst_105 = arith.constant dense<0.000000e+00> : vector<8x32xf32>
    %226 = tpu.matmul %224, %225, %cst_105 {dimension_numbers = #tpu.dot_dimension_numbers<[1], [0], [0], [1], [0, 0, 1, 1], [], []>} : vector<8x16xf32>, vector<16x32xf32>, vector<8x32xf32> -> vector<8x32xf32>
    %227 = vector.extract_strided_slice %209 {offsets = [24, 0], sizes = [8, 16], strides = [1, 1]} : vector<32x16xf32> to vector<8x16xf32>
    %228 = vector.extract_strided_slice %5 {offsets = [16, 0], sizes = [16, 32], strides = [1, 1]} : vector<32x32xf32> to vector<16x32xf32>
    %cst_106 = arith.constant dense<0.000000e+00> : vector<8x32xf32>
    %229 = tpu.matmul %227, %228, %cst_106 {dimension_numbers = #tpu.dot_dimension_numbers<[1], [0], [0], [1], [0, 0, 1, 1], [], []>} : vector<8x16xf32>, vector<16x32xf32>, vector<8x32xf32> -> vector<8x32xf32>
    %230 = arith.addf %226, %229 : vector<8x32xf32>
    %231 = vector.broadcast %4 : vector<8x1xf32> to vector<8x32xf32>
    %232 = arith.addf %230, %231 : vector<8x32xf32>
    %cst_107 = arith.constant 0.000000e+00 : f32
    %233 = vector.broadcast %cst_107 : f32 to vector<8x32xf32>
    %234 = arith.maximumf %232, %233 : vector<8x32xf32>
    %c0_108 = arith.constant 0 : index
    %c0_109 = arith.constant 0 : index
    %c7_110 = arith.constant 7 : index
    %c32_111 = arith.constant 32 : index
    %235 = vector.load %arg6[%c0_108, %c0_109, %c7_110, %c32_111] : memref<1x8x16x64xf32, #tpu.memory_space<vmem>>, vector<1x8x1x32xf32>
    %236 = vector.shape_cast %235 : vector<1x8x1x32xf32> to vector<8x32xf32>
    %237 = vector.shape_cast %234 : vector<8x32xf32> to vector<1x8x1x32xf32>
    tpu.vector_store %arg6[%c0_108, %c0_109, %c7_110, %c32_111], %237 {strides = array<i32>} : memref<1x8x16x64xf32, #tpu.memory_space<vmem>>, vector<1x8x1x32xf32>,
    %238 = vector.extract_strided_slice %3 {offsets = [0, 128], sizes = [32, 16], strides = [1, 1]} : vector<32x256xf32> to vector<32x16xf32>
    %239 = vector.extract_strided_slice %238 {offsets = [0, 0], sizes = [8, 16], strides = [1, 1]} : vector<32x16xf32> to vector<8x16xf32>
    %240 = vector.extract_strided_slice %5 {offsets = [0, 0], sizes = [16, 32], strides = [1, 1]} : vector<32x32xf32> to vector<16x32xf32>
    %cst_112 = arith.constant dense<0.000000e+00> : vector<8x32xf32>
    %241 = tpu.matmul %239, %240, %cst_112 {dimension_numbers = #tpu.dot_dimension_numbers<[1], [0], [0], [1], [0, 0, 1, 1], [], []>} : vector<8x16xf32>, vector<16x32xf32>, vector<8x32xf32> -> vector<8x32xf32>
    %242 = vector.extract_strided_slice %238 {offsets = [8, 0], sizes = [8, 16], strides = [1, 1]} : vector<32x16xf32> to vector<8x16xf32>
    %243 = vector.extract_strided_slice %5 {offsets = [16, 0], sizes = [16, 32], strides = [1, 1]} : vector<32x32xf32> to vector<16x32xf32>
    %cst_113 = arith.constant dense<0.000000e+00> : vector<8x32xf32>
    %244 = tpu.matmul %242, %243, %cst_113 {dimension_numbers = #tpu.dot_dimension_numbers<[1], [0], [0], [1], [0, 0, 1, 1], [], []>} : vector<8x16xf32>, vector<16x32xf32>, vector<8x32xf32> -> vector<8x32xf32>
    %245 = arith.addf %241, %244 : vector<8x32xf32>
    %246 = vector.broadcast %4 : vector<8x1xf32> to vector<8x32xf32>
    %247 = arith.addf %245, %246 : vector<8x32xf32>
    %cst_114 = arith.constant 0.000000e+00 : f32
    %248 = vector.broadcast %cst_114 : f32 to vector<8x32xf32>
    %249 = arith.maximumf %247, %248 : vector<8x32xf32>
    %c0_115 = arith.constant 0 : index
    %c0_116 = arith.constant 0 : index
    %c8 = arith.constant 8 : index
    %c0_117 = arith.constant 0 : index
    %250 = vector.load %arg6[%c0_115, %c0_116, %c8, %c0_117] : memref<1x8x16x64xf32, #tpu.memory_space<vmem>>, vector<1x8x1x32xf32>
    %251 = vector.shape_cast %250 : vector<1x8x1x32xf32> to vector<8x32xf32>
    %252 = vector.shape_cast %249 : vector<8x32xf32> to vector<1x8x1x32xf32>
    tpu.vector_store %arg6[%c0_115, %c0_116, %c8, %c0_117], %252 {strides = array<i32>} : memref<1x8x16x64xf32, #tpu.memory_space<vmem>>, vector<1x8x1x32xf32>,
    %253 = vector.extract_strided_slice %238 {offsets = [16, 0], sizes = [8, 16], strides = [1, 1]} : vector<32x16xf32> to vector<8x16xf32>
    %254 = vector.extract_strided_slice %5 {offsets = [0, 0], sizes = [16, 32], strides = [1, 1]} : vector<32x32xf32> to vector<16x32xf32>
    %cst_118 = arith.constant dense<0.000000e+00> : vector<8x32xf32>
    %255 = tpu.matmul %253, %254, %cst_118 {dimension_numbers = #tpu.dot_dimension_numbers<[1], [0], [0], [1], [0, 0, 1, 1], [], []>} : vector<8x16xf32>, vector<16x32xf32>, vector<8x32xf32> -> vector<8x32xf32>
    %256 = vector.extract_strided_slice %238 {offsets = [24, 0], sizes = [8, 16], strides = [1, 1]} : vector<32x16xf32> to vector<8x16xf32>
    %257 = vector.extract_strided_slice %5 {offsets = [16, 0], sizes = [16, 32], strides = [1, 1]} : vector<32x32xf32> to vector<16x32xf32>
    %cst_119 = arith.constant dense<0.000000e+00> : vector<8x32xf32>
    %258 = tpu.matmul %256, %257, %cst_119 {dimension_numbers = #tpu.dot_dimension_numbers<[1], [0], [0], [1], [0, 0, 1, 1], [], []>} : vector<8x16xf32>, vector<16x32xf32>, vector<8x32xf32> -> vector<8x32xf32>
    %259 = arith.addf %255, %258 : vector<8x32xf32>
    %260 = vector.broadcast %4 : vector<8x1xf32> to vector<8x32xf32>
    %261 = arith.addf %259, %260 : vector<8x32xf32>
    %cst_120 = arith.constant 0.000000e+00 : f32
    %262 = vector.broadcast %cst_120 : f32 to vector<8x32xf32>
    %263 = arith.maximumf %261, %262 : vector<8x32xf32>
    %c0_121 = arith.constant 0 : index
    %c0_122 = arith.constant 0 : index
    %c8_123 = arith.constant 8 : index
    %c32_124 = arith.constant 32 : index
    %264 = vector.load %arg6[%c0_121, %c0_122, %c8_123, %c32_124] : memref<1x8x16x64xf32, #tpu.memory_space<vmem>>, vector<1x8x1x32xf32>
    %265 = vector.shape_cast %264 : vector<1x8x1x32xf32> to vector<8x32xf32>
    %266 = vector.shape_cast %263 : vector<8x32xf32> to vector<1x8x1x32xf32>
    tpu.vector_store %arg6[%c0_121, %c0_122, %c8_123, %c32_124], %266 {strides = array<i32>} : memref<1x8x16x64xf32, #tpu.memory_space<vmem>>, vector<1x8x1x32xf32>,
    %267 = vector.extract_strided_slice %3 {offsets = [0, 144], sizes = [32, 16], strides = [1, 1]} : vector<32x256xf32> to vector<32x16xf32>
    %268 = vector.extract_strided_slice %267 {offsets = [0, 0], sizes = [8, 16], strides = [1, 1]} : vector<32x16xf32> to vector<8x16xf32>
    %269 = vector.extract_strided_slice %5 {offsets = [0, 0], sizes = [16, 32], strides = [1, 1]} : vector<32x32xf32> to vector<16x32xf32>
    %cst_125 = arith.constant dense<0.000000e+00> : vector<8x32xf32>
    %270 = tpu.matmul %268, %269, %cst_125 {dimension_numbers = #tpu.dot_dimension_numbers<[1], [0], [0], [1], [0, 0, 1, 1], [], []>} : vector<8x16xf32>, vector<16x32xf32>, vector<8x32xf32> -> vector<8x32xf32>
    %271 = vector.extract_strided_slice %267 {offsets = [8, 0], sizes = [8, 16], strides = [1, 1]} : vector<32x16xf32> to vector<8x16xf32>
    %272 = vector.extract_strided_slice %5 {offsets = [16, 0], sizes = [16, 32], strides = [1, 1]} : vector<32x32xf32> to vector<16x32xf32>
    %cst_126 = arith.constant dense<0.000000e+00> : vector<8x32xf32>
    %273 = tpu.matmul %271, %272, %cst_126 {dimension_numbers = #tpu.dot_dimension_numbers<[1], [0], [0], [1], [0, 0, 1, 1], [], []>} : vector<8x16xf32>, vector<16x32xf32>, vector<8x32xf32> -> vector<8x32xf32>
    %274 = arith.addf %270, %273 : vector<8x32xf32>
    %275 = vector.broadcast %4 : vector<8x1xf32> to vector<8x32xf32>
    %276 = arith.addf %274, %275 : vector<8x32xf32>
    %cst_127 = arith.constant 0.000000e+00 : f32
    %277 = vector.broadcast %cst_127 : f32 to vector<8x32xf32>
    %278 = arith.maximumf %276, %277 : vector<8x32xf32>
    %c0_128 = arith.constant 0 : index
    %c0_129 = arith.constant 0 : index
    %c9 = arith.constant 9 : index
    %c0_130 = arith.constant 0 : index
    %279 = vector.load %arg6[%c0_128, %c0_129, %c9, %c0_130] : memref<1x8x16x64xf32, #tpu.memory_space<vmem>>, vector<1x8x1x32xf32>
    %280 = vector.shape_cast %279 : vector<1x8x1x32xf32> to vector<8x32xf32>
    %281 = vector.shape_cast %278 : vector<8x32xf32> to vector<1x8x1x32xf32>
    tpu.vector_store %arg6[%c0_128, %c0_129, %c9, %c0_130], %281 {strides = array<i32>} : memref<1x8x16x64xf32, #tpu.memory_space<vmem>>, vector<1x8x1x32xf32>,
    %282 = vector.extract_strided_slice %267 {offsets = [16, 0], sizes = [8, 16], strides = [1, 1]} : vector<32x16xf32> to vector<8x16xf32>
    %283 = vector.extract_strided_slice %5 {offsets = [0, 0], sizes = [16, 32], strides = [1, 1]} : vector<32x32xf32> to vector<16x32xf32>
    %cst_131 = arith.constant dense<0.000000e+00> : vector<8x32xf32>
    %284 = tpu.matmul %282, %283, %cst_131 {dimension_numbers = #tpu.dot_dimension_numbers<[1], [0], [0], [1], [0, 0, 1, 1], [], []>} : vector<8x16xf32>, vector<16x32xf32>, vector<8x32xf32> -> vector<8x32xf32>
    %285 = vector.extract_strided_slice %267 {offsets = [24, 0], sizes = [8, 16], strides = [1, 1]} : vector<32x16xf32> to vector<8x16xf32>
    %286 = vector.extract_strided_slice %5 {offsets = [16, 0], sizes = [16, 32], strides = [1, 1]} : vector<32x32xf32> to vector<16x32xf32>
    %cst_132 = arith.constant dense<0.000000e+00> : vector<8x32xf32>
    %287 = tpu.matmul %285, %286, %cst_132 {dimension_numbers = #tpu.dot_dimension_numbers<[1], [0], [0], [1], [0, 0, 1, 1], [], []>} : vector<8x16xf32>, vector<16x32xf32>, vector<8x32xf32> -> vector<8x32xf32>
    %288 = arith.addf %284, %287 : vector<8x32xf32>
    %289 = vector.broadcast %4 : vector<8x1xf32> to vector<8x32xf32>
    %290 = arith.addf %288, %289 : vector<8x32xf32>
    %cst_133 = arith.constant 0.000000e+00 : f32
    %291 = vector.broadcast %cst_133 : f32 to vector<8x32xf32>
    %292 = arith.maximumf %290, %291 : vector<8x32xf32>
    %c0_134 = arith.constant 0 : index
    %c0_135 = arith.constant 0 : index
    %c9_136 = arith.constant 9 : index
    %c32_137 = arith.constant 32 : index
    %293 = vector.load %arg6[%c0_134, %c0_135, %c9_136, %c32_137] : memref<1x8x16x64xf32, #tpu.memory_space<vmem>>, vector<1x8x1x32xf32>
    %294 = vector.shape_cast %293 : vector<1x8x1x32xf32> to vector<8x32xf32>
    %295 = vector.shape_cast %292 : vector<8x32xf32> to vector<1x8x1x32xf32>
    tpu.vector_store %arg6[%c0_134, %c0_135, %c9_136, %c32_137], %295 {strides = array<i32>} : memref<1x8x16x64xf32, #tpu.memory_space<vmem>>, vector<1x8x1x32xf32>,
    %296 = vector.extract_strided_slice %3 {offsets = [0, 160], sizes = [32, 16], strides = [1, 1]} : vector<32x256xf32> to vector<32x16xf32>
    %297 = vector.extract_strided_slice %296 {offsets = [0, 0], sizes = [8, 16], strides = [1, 1]} : vector<32x16xf32> to vector<8x16xf32>
    %298 = vector.extract_strided_slice %5 {offsets = [0, 0], sizes = [16, 32], strides = [1, 1]} : vector<32x32xf32> to vector<16x32xf32>
    %cst_138 = arith.constant dense<0.000000e+00> : vector<8x32xf32>
    %299 = tpu.matmul %297, %298, %cst_138 {dimension_numbers = #tpu.dot_dimension_numbers<[1], [0], [0], [1], [0, 0, 1, 1], [], []>} : vector<8x16xf32>, vector<16x32xf32>, vector<8x32xf32> -> vector<8x32xf32>
    %300 = vector.extract_strided_slice %296 {offsets = [8, 0], sizes = [8, 16], strides = [1, 1]} : vector<32x16xf32> to vector<8x16xf32>
    %301 = vector.extract_strided_slice %5 {offsets = [16, 0], sizes = [16, 32], strides = [1, 1]} : vector<32x32xf32> to vector<16x32xf32>
    %cst_139 = arith.constant dense<0.000000e+00> : vector<8x32xf32>
    %302 = tpu.matmul %300, %301, %cst_139 {dimension_numbers = #tpu.dot_dimension_numbers<[1], [0], [0], [1], [0, 0, 1, 1], [], []>} : vector<8x16xf32>, vector<16x32xf32>, vector<8x32xf32> -> vector<8x32xf32>
    %303 = arith.addf %299, %302 : vector<8x32xf32>
    %304 = vector.broadcast %4 : vector<8x1xf32> to vector<8x32xf32>
    %305 = arith.addf %303, %304 : vector<8x32xf32>
    %cst_140 = arith.constant 0.000000e+00 : f32
    %306 = vector.broadcast %cst_140 : f32 to vector<8x32xf32>
    %307 = arith.maximumf %305, %306 : vector<8x32xf32>
    %c0_141 = arith.constant 0 : index
    %c0_142 = arith.constant 0 : index
    %c10 = arith.constant 10 : index
    %c0_143 = arith.constant 0 : index
    %308 = vector.load %arg6[%c0_141, %c0_142, %c10, %c0_143] : memref<1x8x16x64xf32, #tpu.memory_space<vmem>>, vector<1x8x1x32xf32>
    %309 = vector.shape_cast %308 : vector<1x8x1x32xf32> to vector<8x32xf32>
    %310 = vector.shape_cast %307 : vector<8x32xf32> to vector<1x8x1x32xf32>
    tpu.vector_store %arg6[%c0_141, %c0_142, %c10, %c0_143], %310 {strides = array<i32>} : memref<1x8x16x64xf32, #tpu.memory_space<vmem>>, vector<1x8x1x32xf32>,
    %311 = vector.extract_strided_slice %296 {offsets = [16, 0], sizes = [8, 16], strides = [1, 1]} : vector<32x16xf32> to vector<8x16xf32>
    %312 = vector.extract_strided_slice %5 {offsets = [0, 0], sizes = [16, 32], strides = [1, 1]} : vector<32x32xf32> to vector<16x32xf32>
    %cst_144 = arith.constant dense<0.000000e+00> : vector<8x32xf32>
    %313 = tpu.matmul %311, %312, %cst_144 {dimension_numbers = #tpu.dot_dimension_numbers<[1], [0], [0], [1], [0, 0, 1, 1], [], []>} : vector<8x16xf32>, vector<16x32xf32>, vector<8x32xf32> -> vector<8x32xf32>
    %314 = vector.extract_strided_slice %296 {offsets = [24, 0], sizes = [8, 16], strides = [1, 1]} : vector<32x16xf32> to vector<8x16xf32>
    %315 = vector.extract_strided_slice %5 {offsets = [16, 0], sizes = [16, 32], strides = [1, 1]} : vector<32x32xf32> to vector<16x32xf32>
    %cst_145 = arith.constant dense<0.000000e+00> : vector<8x32xf32>
    %316 = tpu.matmul %314, %315, %cst_145 {dimension_numbers = #tpu.dot_dimension_numbers<[1], [0], [0], [1], [0, 0, 1, 1], [], []>} : vector<8x16xf32>, vector<16x32xf32>, vector<8x32xf32> -> vector<8x32xf32>
    %317 = arith.addf %313, %316 : vector<8x32xf32>
    %318 = vector.broadcast %4 : vector<8x1xf32> to vector<8x32xf32>
    %319 = arith.addf %317, %318 : vector<8x32xf32>
    %cst_146 = arith.constant 0.000000e+00 : f32
    %320 = vector.broadcast %cst_146 : f32 to vector<8x32xf32>
    %321 = arith.maximumf %319, %320 : vector<8x32xf32>
    %c0_147 = arith.constant 0 : index
    %c0_148 = arith.constant 0 : index
    %c10_149 = arith.constant 10 : index
    %c32_150 = arith.constant 32 : index
    %322 = vector.load %arg6[%c0_147, %c0_148, %c10_149, %c32_150] : memref<1x8x16x64xf32, #tpu.memory_space<vmem>>, vector<1x8x1x32xf32>
    %323 = vector.shape_cast %322 : vector<1x8x1x32xf32> to vector<8x32xf32>
    %324 = vector.shape_cast %321 : vector<8x32xf32> to vector<1x8x1x32xf32>
    tpu.vector_store %arg6[%c0_147, %c0_148, %c10_149, %c32_150], %324 {strides = array<i32>} : memref<1x8x16x64xf32, #tpu.memory_space<vmem>>, vector<1x8x1x32xf32>,
    %325 = vector.extract_strided_slice %3 {offsets = [0, 176], sizes = [32, 16], strides = [1, 1]} : vector<32x256xf32> to vector<32x16xf32>
    %326 = vector.extract_strided_slice %325 {offsets = [0, 0], sizes = [8, 16], strides = [1, 1]} : vector<32x16xf32> to vector<8x16xf32>
    %327 = vector.extract_strided_slice %5 {offsets = [0, 0], sizes = [16, 32], strides = [1, 1]} : vector<32x32xf32> to vector<16x32xf32>
    %cst_151 = arith.constant dense<0.000000e+00> : vector<8x32xf32>
    %328 = tpu.matmul %326, %327, %cst_151 {dimension_numbers = #tpu.dot_dimension_numbers<[1], [0], [0], [1], [0, 0, 1, 1], [], []>} : vector<8x16xf32>, vector<16x32xf32>, vector<8x32xf32> -> vector<8x32xf32>
    %329 = vector.extract_strided_slice %325 {offsets = [8, 0], sizes = [8, 16], strides = [1, 1]} : vector<32x16xf32> to vector<8x16xf32>
    %330 = vector.extract_strided_slice %5 {offsets = [16, 0], sizes = [16, 32], strides = [1, 1]} : vector<32x32xf32> to vector<16x32xf32>
    %cst_152 = arith.constant dense<0.000000e+00> : vector<8x32xf32>
    %331 = tpu.matmul %329, %330, %cst_152 {dimension_numbers = #tpu.dot_dimension_numbers<[1], [0], [0], [1], [0, 0, 1, 1], [], []>} : vector<8x16xf32>, vector<16x32xf32>, vector<8x32xf32> -> vector<8x32xf32>
    %332 = arith.addf %328, %331 : vector<8x32xf32>
    %333 = vector.broadcast %4 : vector<8x1xf32> to vector<8x32xf32>
    %334 = arith.addf %332, %333 : vector<8x32xf32>
    %cst_153 = arith.constant 0.000000e+00 : f32
    %335 = vector.broadcast %cst_153 : f32 to vector<8x32xf32>
    %336 = arith.maximumf %334, %335 : vector<8x32xf32>
    %c0_154 = arith.constant 0 : index
    %c0_155 = arith.constant 0 : index
    %c11 = arith.constant 11 : index
    %c0_156 = arith.constant 0 : index
    %337 = vector.load %arg6[%c0_154, %c0_155, %c11, %c0_156] : memref<1x8x16x64xf32, #tpu.memory_space<vmem>>, vector<1x8x1x32xf32>
    %338 = vector.shape_cast %337 : vector<1x8x1x32xf32> to vector<8x32xf32>
    %339 = vector.shape_cast %336 : vector<8x32xf32> to vector<1x8x1x32xf32>
    tpu.vector_store %arg6[%c0_154, %c0_155, %c11, %c0_156], %339 {strides = array<i32>} : memref<1x8x16x64xf32, #tpu.memory_space<vmem>>, vector<1x8x1x32xf32>,
    %340 = vector.extract_strided_slice %325 {offsets = [16, 0], sizes = [8, 16], strides = [1, 1]} : vector<32x16xf32> to vector<8x16xf32>
    %341 = vector.extract_strided_slice %5 {offsets = [0, 0], sizes = [16, 32], strides = [1, 1]} : vector<32x32xf32> to vector<16x32xf32>
    %cst_157 = arith.constant dense<0.000000e+00> : vector<8x32xf32>
    %342 = tpu.matmul %340, %341, %cst_157 {dimension_numbers = #tpu.dot_dimension_numbers<[1], [0], [0], [1], [0, 0, 1, 1], [], []>} : vector<8x16xf32>, vector<16x32xf32>, vector<8x32xf32> -> vector<8x32xf32>
    %343 = vector.extract_strided_slice %325 {offsets = [24, 0], sizes = [8, 16], strides = [1, 1]} : vector<32x16xf32> to vector<8x16xf32>
    %344 = vector.extract_strided_slice %5 {offsets = [16, 0], sizes = [16, 32], strides = [1, 1]} : vector<32x32xf32> to vector<16x32xf32>
    %cst_158 = arith.constant dense<0.000000e+00> : vector<8x32xf32>
    %345 = tpu.matmul %343, %344, %cst_158 {dimension_numbers = #tpu.dot_dimension_numbers<[1], [0], [0], [1], [0, 0, 1, 1], [], []>} : vector<8x16xf32>, vector<16x32xf32>, vector<8x32xf32> -> vector<8x32xf32>
    %346 = arith.addf %342, %345 : vector<8x32xf32>
    %347 = vector.broadcast %4 : vector<8x1xf32> to vector<8x32xf32>
    %348 = arith.addf %346, %347 : vector<8x32xf32>
    %cst_159 = arith.constant 0.000000e+00 : f32
    %349 = vector.broadcast %cst_159 : f32 to vector<8x32xf32>
    %350 = arith.maximumf %348, %349 : vector<8x32xf32>
    %c0_160 = arith.constant 0 : index
    %c0_161 = arith.constant 0 : index
    %c11_162 = arith.constant 11 : index
    %c32_163 = arith.constant 32 : index
    %351 = vector.load %arg6[%c0_160, %c0_161, %c11_162, %c32_163] : memref<1x8x16x64xf32, #tpu.memory_space<vmem>>, vector<1x8x1x32xf32>
    %352 = vector.shape_cast %351 : vector<1x8x1x32xf32> to vector<8x32xf32>
    %353 = vector.shape_cast %350 : vector<8x32xf32> to vector<1x8x1x32xf32>
    tpu.vector_store %arg6[%c0_160, %c0_161, %c11_162, %c32_163], %353 {strides = array<i32>} : memref<1x8x16x64xf32, #tpu.memory_space<vmem>>, vector<1x8x1x32xf32>,
    %354 = vector.extract_strided_slice %3 {offsets = [0, 192], sizes = [32, 16], strides = [1, 1]} : vector<32x256xf32> to vector<32x16xf32>
    %355 = vector.extract_strided_slice %354 {offsets = [0, 0], sizes = [8, 16], strides = [1, 1]} : vector<32x16xf32> to vector<8x16xf32>
    %356 = vector.extract_strided_slice %5 {offsets = [0, 0], sizes = [16, 32], strides = [1, 1]} : vector<32x32xf32> to vector<16x32xf32>
    %cst_164 = arith.constant dense<0.000000e+00> : vector<8x32xf32>
    %357 = tpu.matmul %355, %356, %cst_164 {dimension_numbers = #tpu.dot_dimension_numbers<[1], [0], [0], [1], [0, 0, 1, 1], [], []>} : vector<8x16xf32>, vector<16x32xf32>, vector<8x32xf32> -> vector<8x32xf32>
    %358 = vector.extract_strided_slice %354 {offsets = [8, 0], sizes = [8, 16], strides = [1, 1]} : vector<32x16xf32> to vector<8x16xf32>
    %359 = vector.extract_strided_slice %5 {offsets = [16, 0], sizes = [16, 32], strides = [1, 1]} : vector<32x32xf32> to vector<16x32xf32>
    %cst_165 = arith.constant dense<0.000000e+00> : vector<8x32xf32>
    %360 = tpu.matmul %358, %359, %cst_165 {dimension_numbers = #tpu.dot_dimension_numbers<[1], [0], [0], [1], [0, 0, 1, 1], [], []>} : vector<8x16xf32>, vector<16x32xf32>, vector<8x32xf32> -> vector<8x32xf32>
    %361 = arith.addf %357, %360 : vector<8x32xf32>
    %362 = vector.broadcast %4 : vector<8x1xf32> to vector<8x32xf32>
    %363 = arith.addf %361, %362 : vector<8x32xf32>
    %cst_166 = arith.constant 0.000000e+00 : f32
    %364 = vector.broadcast %cst_166 : f32 to vector<8x32xf32>
    %365 = arith.maximumf %363, %364 : vector<8x32xf32>
    %c0_167 = arith.constant 0 : index
    %c0_168 = arith.constant 0 : index
    %c12 = arith.constant 12 : index
    %c0_169 = arith.constant 0 : index
    %366 = vector.load %arg6[%c0_167, %c0_168, %c12, %c0_169] : memref<1x8x16x64xf32, #tpu.memory_space<vmem>>, vector<1x8x1x32xf32>
    %367 = vector.shape_cast %366 : vector<1x8x1x32xf32> to vector<8x32xf32>
    %368 = vector.shape_cast %365 : vector<8x32xf32> to vector<1x8x1x32xf32>
    tpu.vector_store %arg6[%c0_167, %c0_168, %c12, %c0_169], %368 {strides = array<i32>} : memref<1x8x16x64xf32, #tpu.memory_space<vmem>>, vector<1x8x1x32xf32>,
    %369 = vector.extract_strided_slice %354 {offsets = [16, 0], sizes = [8, 16], strides = [1, 1]} : vector<32x16xf32> to vector<8x16xf32>
    %370 = vector.extract_strided_slice %5 {offsets = [0, 0], sizes = [16, 32], strides = [1, 1]} : vector<32x32xf32> to vector<16x32xf32>
    %cst_170 = arith.constant dense<0.000000e+00> : vector<8x32xf32>
    %371 = tpu.matmul %369, %370, %cst_170 {dimension_numbers = #tpu.dot_dimension_numbers<[1], [0], [0], [1], [0, 0, 1, 1], [], []>} : vector<8x16xf32>, vector<16x32xf32>, vector<8x32xf32> -> vector<8x32xf32>
    %372 = vector.extract_strided_slice %354 {offsets = [24, 0], sizes = [8, 16], strides = [1, 1]} : vector<32x16xf32> to vector<8x16xf32>
    %373 = vector.extract_strided_slice %5 {offsets = [16, 0], sizes = [16, 32], strides = [1, 1]} : vector<32x32xf32> to vector<16x32xf32>
    %cst_171 = arith.constant dense<0.000000e+00> : vector<8x32xf32>
    %374 = tpu.matmul %372, %373, %cst_171 {dimension_numbers = #tpu.dot_dimension_numbers<[1], [0], [0], [1], [0, 0, 1, 1], [], []>} : vector<8x16xf32>, vector<16x32xf32>, vector<8x32xf32> -> vector<8x32xf32>
    %375 = arith.addf %371, %374 : vector<8x32xf32>
    %376 = vector.broadcast %4 : vector<8x1xf32> to vector<8x32xf32>
    %377 = arith.addf %375, %376 : vector<8x32xf32>
    %cst_172 = arith.constant 0.000000e+00 : f32
    %378 = vector.broadcast %cst_172 : f32 to vector<8x32xf32>
    %379 = arith.maximumf %377, %378 : vector<8x32xf32>
    %c0_173 = arith.constant 0 : index
    %c0_174 = arith.constant 0 : index
    %c12_175 = arith.constant 12 : index
    %c32_176 = arith.constant 32 : index
    %380 = vector.load %arg6[%c0_173, %c0_174, %c12_175, %c32_176] : memref<1x8x16x64xf32, #tpu.memory_space<vmem>>, vector<1x8x1x32xf32>
    %381 = vector.shape_cast %380 : vector<1x8x1x32xf32> to vector<8x32xf32>
    %382 = vector.shape_cast %379 : vector<8x32xf32> to vector<1x8x1x32xf32>
    tpu.vector_store %arg6[%c0_173, %c0_174, %c12_175, %c32_176], %382 {strides = array<i32>} : memref<1x8x16x64xf32, #tpu.memory_space<vmem>>, vector<1x8x1x32xf32>,
    %383 = vector.extract_strided_slice %3 {offsets = [0, 208], sizes = [32, 16], strides = [1, 1]} : vector<32x256xf32> to vector<32x16xf32>
    %384 = vector.extract_strided_slice %383 {offsets = [0, 0], sizes = [8, 16], strides = [1, 1]} : vector<32x16xf32> to vector<8x16xf32>
    %385 = vector.extract_strided_slice %5 {offsets = [0, 0], sizes = [16, 32], strides = [1, 1]} : vector<32x32xf32> to vector<16x32xf32>
    %cst_177 = arith.constant dense<0.000000e+00> : vector<8x32xf32>
    %386 = tpu.matmul %384, %385, %cst_177 {dimension_numbers = #tpu.dot_dimension_numbers<[1], [0], [0], [1], [0, 0, 1, 1], [], []>} : vector<8x16xf32>, vector<16x32xf32>, vector<8x32xf32> -> vector<8x32xf32>
    %387 = vector.extract_strided_slice %383 {offsets = [8, 0], sizes = [8, 16], strides = [1, 1]} : vector<32x16xf32> to vector<8x16xf32>
    %388 = vector.extract_strided_slice %5 {offsets = [16, 0], sizes = [16, 32], strides = [1, 1]} : vector<32x32xf32> to vector<16x32xf32>
    %cst_178 = arith.constant dense<0.000000e+00> : vector<8x32xf32>
    %389 = tpu.matmul %387, %388, %cst_178 {dimension_numbers = #tpu.dot_dimension_numbers<[1], [0], [0], [1], [0, 0, 1, 1], [], []>} : vector<8x16xf32>, vector<16x32xf32>, vector<8x32xf32> -> vector<8x32xf32>
    %390 = arith.addf %386, %389 : vector<8x32xf32>
    %391 = vector.broadcast %4 : vector<8x1xf32> to vector<8x32xf32>
    %392 = arith.addf %390, %391 : vector<8x32xf32>
    %cst_179 = arith.constant 0.000000e+00 : f32
    %393 = vector.broadcast %cst_179 : f32 to vector<8x32xf32>
    %394 = arith.maximumf %392, %393 : vector<8x32xf32>
    %c0_180 = arith.constant 0 : index
    %c0_181 = arith.constant 0 : index
    %c13 = arith.constant 13 : index
    %c0_182 = arith.constant 0 : index
    %395 = vector.load %arg6[%c0_180, %c0_181, %c13, %c0_182] : memref<1x8x16x64xf32, #tpu.memory_space<vmem>>, vector<1x8x1x32xf32>
    %396 = vector.shape_cast %395 : vector<1x8x1x32xf32> to vector<8x32xf32>
    %397 = vector.shape_cast %394 : vector<8x32xf32> to vector<1x8x1x32xf32>
    tpu.vector_store %arg6[%c0_180, %c0_181, %c13, %c0_182], %397 {strides = array<i32>} : memref<1x8x16x64xf32, #tpu.memory_space<vmem>>, vector<1x8x1x32xf32>,
    %398 = vector.extract_strided_slice %383 {offsets = [16, 0], sizes = [8, 16], strides = [1, 1]} : vector<32x16xf32> to vector<8x16xf32>
    %399 = vector.extract_strided_slice %5 {offsets = [0, 0], sizes = [16, 32], strides = [1, 1]} : vector<32x32xf32> to vector<16x32xf32>
    %cst_183 = arith.constant dense<0.000000e+00> : vector<8x32xf32>
    %400 = tpu.matmul %398, %399, %cst_183 {dimension_numbers = #tpu.dot_dimension_numbers<[1], [0], [0], [1], [0, 0, 1, 1], [], []>} : vector<8x16xf32>, vector<16x32xf32>, vector<8x32xf32> -> vector<8x32xf32>
    %401 = vector.extract_strided_slice %383 {offsets = [24, 0], sizes = [8, 16], strides = [1, 1]} : vector<32x16xf32> to vector<8x16xf32>
    %402 = vector.extract_strided_slice %5 {offsets = [16, 0], sizes = [16, 32], strides = [1, 1]} : vector<32x32xf32> to vector<16x32xf32>
    %cst_184 = arith.constant dense<0.000000e+00> : vector<8x32xf32>
    %403 = tpu.matmul %401, %402, %cst_184 {dimension_numbers = #tpu.dot_dimension_numbers<[1], [0], [0], [1], [0, 0, 1, 1], [], []>} : vector<8x16xf32>, vector<16x32xf32>, vector<8x32xf32> -> vector<8x32xf32>
    %404 = arith.addf %400, %403 : vector<8x32xf32>
    %405 = vector.broadcast %4 : vector<8x1xf32> to vector<8x32xf32>
    %406 = arith.addf %404, %405 : vector<8x32xf32>
    %cst_185 = arith.constant 0.000000e+00 : f32
    %407 = vector.broadcast %cst_185 : f32 to vector<8x32xf32>
    %408 = arith.maximumf %406, %407 : vector<8x32xf32>
    %c0_186 = arith.constant 0 : index
    %c0_187 = arith.constant 0 : index
    %c13_188 = arith.constant 13 : index
    %c32_189 = arith.constant 32 : index
    %409 = vector.load %arg6[%c0_186, %c0_187, %c13_188, %c32_189] : memref<1x8x16x64xf32, #tpu.memory_space<vmem>>, vector<1x8x1x32xf32>
    %410 = vector.shape_cast %409 : vector<1x8x1x32xf32> to vector<8x32xf32>
    %411 = vector.shape_cast %408 : vector<8x32xf32> to vector<1x8x1x32xf32>
    tpu.vector_store %arg6[%c0_186, %c0_187, %c13_188, %c32_189], %411 {strides = array<i32>} : memref<1x8x16x64xf32, #tpu.memory_space<vmem>>, vector<1x8x1x32xf32>,
    %412 = vector.extract_strided_slice %3 {offsets = [0, 224], sizes = [32, 16], strides = [1, 1]} : vector<32x256xf32> to vector<32x16xf32>
    %413 = vector.extract_strided_slice %412 {offsets = [0, 0], sizes = [8, 16], strides = [1, 1]} : vector<32x16xf32> to vector<8x16xf32>
    %414 = vector.extract_strided_slice %5 {offsets = [0, 0], sizes = [16, 32], strides = [1, 1]} : vector<32x32xf32> to vector<16x32xf32>
    %cst_190 = arith.constant dense<0.000000e+00> : vector<8x32xf32>
    %415 = tpu.matmul %413, %414, %cst_190 {dimension_numbers = #tpu.dot_dimension_numbers<[1], [0], [0], [1], [0, 0, 1, 1], [], []>} : vector<8x16xf32>, vector<16x32xf32>, vector<8x32xf32> -> vector<8x32xf32>
    %416 = vector.extract_strided_slice %412 {offsets = [8, 0], sizes = [8, 16], strides = [1, 1]} : vector<32x16xf32> to vector<8x16xf32>
    %417 = vector.extract_strided_slice %5 {offsets = [16, 0], sizes = [16, 32], strides = [1, 1]} : vector<32x32xf32> to vector<16x32xf32>
    %cst_191 = arith.constant dense<0.000000e+00> : vector<8x32xf32>
    %418 = tpu.matmul %416, %417, %cst_191 {dimension_numbers = #tpu.dot_dimension_numbers<[1], [0], [0], [1], [0, 0, 1, 1], [], []>} : vector<8x16xf32>, vector<16x32xf32>, vector<8x32xf32> -> vector<8x32xf32>
    %419 = arith.addf %415, %418 : vector<8x32xf32>
    %420 = vector.broadcast %4 : vector<8x1xf32> to vector<8x32xf32>
    %421 = arith.addf %419, %420 : vector<8x32xf32>
    %cst_192 = arith.constant 0.000000e+00 : f32
    %422 = vector.broadcast %cst_192 : f32 to vector<8x32xf32>
    %423 = arith.maximumf %421, %422 : vector<8x32xf32>
    %c0_193 = arith.constant 0 : index
    %c0_194 = arith.constant 0 : index
    %c14 = arith.constant 14 : index
    %c0_195 = arith.constant 0 : index
    %424 = vector.load %arg6[%c0_193, %c0_194, %c14, %c0_195] : memref<1x8x16x64xf32, #tpu.memory_space<vmem>>, vector<1x8x1x32xf32>
    %425 = vector.shape_cast %424 : vector<1x8x1x32xf32> to vector<8x32xf32>
    %426 = vector.shape_cast %423 : vector<8x32xf32> to vector<1x8x1x32xf32>
    tpu.vector_store %arg6[%c0_193, %c0_194, %c14, %c0_195], %426 {strides = array<i32>} : memref<1x8x16x64xf32, #tpu.memory_space<vmem>>, vector<1x8x1x32xf32>,
    %427 = vector.extract_strided_slice %412 {offsets = [16, 0], sizes = [8, 16], strides = [1, 1]} : vector<32x16xf32> to vector<8x16xf32>
    %428 = vector.extract_strided_slice %5 {offsets = [0, 0], sizes = [16, 32], strides = [1, 1]} : vector<32x32xf32> to vector<16x32xf32>
    %cst_196 = arith.constant dense<0.000000e+00> : vector<8x32xf32>
    %429 = tpu.matmul %427, %428, %cst_196 {dimension_numbers = #tpu.dot_dimension_numbers<[1], [0], [0], [1], [0, 0, 1, 1], [], []>} : vector<8x16xf32>, vector<16x32xf32>, vector<8x32xf32> -> vector<8x32xf32>
    %430 = vector.extract_strided_slice %412 {offsets = [24, 0], sizes = [8, 16], strides = [1, 1]} : vector<32x16xf32> to vector<8x16xf32>
    %431 = vector.extract_strided_slice %5 {offsets = [16, 0], sizes = [16, 32], strides = [1, 1]} : vector<32x32xf32> to vector<16x32xf32>
    %cst_197 = arith.constant dense<0.000000e+00> : vector<8x32xf32>
    %432 = tpu.matmul %430, %431, %cst_197 {dimension_numbers = #tpu.dot_dimension_numbers<[1], [0], [0], [1], [0, 0, 1, 1], [], []>} : vector<8x16xf32>, vector<16x32xf32>, vector<8x32xf32> -> vector<8x32xf32>
    %433 = arith.addf %429, %432 : vector<8x32xf32>
    %434 = vector.broadcast %4 : vector<8x1xf32> to vector<8x32xf32>
    %435 = arith.addf %433, %434 : vector<8x32xf32>
    %cst_198 = arith.constant 0.000000e+00 : f32
    %436 = vector.broadcast %cst_198 : f32 to vector<8x32xf32>
    %437 = arith.maximumf %435, %436 : vector<8x32xf32>
    %c0_199 = arith.constant 0 : index
    %c0_200 = arith.constant 0 : index
    %c14_201 = arith.constant 14 : index
    %c32_202 = arith.constant 32 : index
    %438 = vector.load %arg6[%c0_199, %c0_200, %c14_201, %c32_202] : memref<1x8x16x64xf32, #tpu.memory_space<vmem>>, vector<1x8x1x32xf32>
    %439 = vector.shape_cast %438 : vector<1x8x1x32xf32> to vector<8x32xf32>
    %440 = vector.shape_cast %437 : vector<8x32xf32> to vector<1x8x1x32xf32>
    tpu.vector_store %arg6[%c0_199, %c0_200, %c14_201, %c32_202], %440 {strides = array<i32>} : memref<1x8x16x64xf32, #tpu.memory_space<vmem>>, vector<1x8x1x32xf32>,
    %441 = vector.extract_strided_slice %3 {offsets = [0, 240], sizes = [32, 16], strides = [1, 1]} : vector<32x256xf32> to vector<32x16xf32>
    %442 = vector.extract_strided_slice %441 {offsets = [0, 0], sizes = [8, 16], strides = [1, 1]} : vector<32x16xf32> to vector<8x16xf32>
    %443 = vector.extract_strided_slice %5 {offsets = [0, 0], sizes = [16, 32], strides = [1, 1]} : vector<32x32xf32> to vector<16x32xf32>
    %cst_203 = arith.constant dense<0.000000e+00> : vector<8x32xf32>
    %444 = tpu.matmul %442, %443, %cst_203 {dimension_numbers = #tpu.dot_dimension_numbers<[1], [0], [0], [1], [0, 0, 1, 1], [], []>} : vector<8x16xf32>, vector<16x32xf32>, vector<8x32xf32> -> vector<8x32xf32>
    %445 = vector.extract_strided_slice %441 {offsets = [8, 0], sizes = [8, 16], strides = [1, 1]} : vector<32x16xf32> to vector<8x16xf32>
    %446 = vector.extract_strided_slice %5 {offsets = [16, 0], sizes = [16, 32], strides = [1, 1]} : vector<32x32xf32> to vector<16x32xf32>
    %cst_204 = arith.constant dense<0.000000e+00> : vector<8x32xf32>
    %447 = tpu.matmul %445, %446, %cst_204 {dimension_numbers = #tpu.dot_dimension_numbers<[1], [0], [0], [1], [0, 0, 1, 1], [], []>} : vector<8x16xf32>, vector<16x32xf32>, vector<8x32xf32> -> vector<8x32xf32>
    %448 = arith.addf %444, %447 : vector<8x32xf32>
    %449 = vector.broadcast %4 : vector<8x1xf32> to vector<8x32xf32>
    %450 = arith.addf %448, %449 : vector<8x32xf32>
    %cst_205 = arith.constant 0.000000e+00 : f32
    %451 = vector.broadcast %cst_205 : f32 to vector<8x32xf32>
    %452 = arith.maximumf %450, %451 : vector<8x32xf32>
    %c0_206 = arith.constant 0 : index
    %c0_207 = arith.constant 0 : index
    %c15 = arith.constant 15 : index
    %c0_208 = arith.constant 0 : index
    %453 = vector.load %arg6[%c0_206, %c0_207, %c15, %c0_208] : memref<1x8x16x64xf32, #tpu.memory_space<vmem>>, vector<1x8x1x32xf32>
    %454 = vector.shape_cast %453 : vector<1x8x1x32xf32> to vector<8x32xf32>
    %455 = vector.shape_cast %452 : vector<8x32xf32> to vector<1x8x1x32xf32>
    tpu.vector_store %arg6[%c0_206, %c0_207, %c15, %c0_208], %455 {strides = array<i32>} : memref<1x8x16x64xf32, #tpu.memory_space<vmem>>, vector<1x8x1x32xf32>,
    %456 = vector.extract_strided_slice %441 {offsets = [16, 0], sizes = [8, 16], strides = [1, 1]} : vector<32x16xf32> to vector<8x16xf32>
    %457 = vector.extract_strided_slice %5 {offsets = [0, 0], sizes = [16, 32], strides = [1, 1]} : vector<32x32xf32> to vector<16x32xf32>
    %cst_209 = arith.constant dense<0.000000e+00> : vector<8x32xf32>
    %458 = tpu.matmul %456, %457, %cst_209 {dimension_numbers = #tpu.dot_dimension_numbers<[1], [0], [0], [1], [0, 0, 1, 1], [], []>} : vector<8x16xf32>, vector<16x32xf32>, vector<8x32xf32> -> vector<8x32xf32>
    %459 = vector.extract_strided_slice %441 {offsets = [24, 0], sizes = [8, 16], strides = [1, 1]} : vector<32x16xf32> to vector<8x16xf32>
    %460 = vector.extract_strided_slice %5 {offsets = [16, 0], sizes = [16, 32], strides = [1, 1]} : vector<32x32xf32> to vector<16x32xf32>
    %cst_210 = arith.constant dense<0.000000e+00> : vector<8x32xf32>
    %461 = tpu.matmul %459, %460, %cst_210 {dimension_numbers = #tpu.dot_dimension_numbers<[1], [0], [0], [1], [0, 0, 1, 1], [], []>} : vector<8x16xf32>, vector<16x32xf32>, vector<8x32xf32> -> vector<8x32xf32>
    %462 = arith.addf %458, %461 : vector<8x32xf32>
    %463 = vector.broadcast %4 : vector<8x1xf32> to vector<8x32xf32>
    %464 = arith.addf %462, %463 : vector<8x32xf32>
    %cst_211 = arith.constant 0.000000e+00 : f32
    %465 = vector.broadcast %cst_211 : f32 to vector<8x32xf32>
    %466 = arith.maximumf %464, %465 : vector<8x32xf32>
    %c0_212 = arith.constant 0 : index
    %c0_213 = arith.constant 0 : index
    %c15_214 = arith.constant 15 : index
    %c32_215 = arith.constant 32 : index
    %467 = vector.load %arg6[%c0_212, %c0_213, %c15_214, %c32_215] : memref<1x8x16x64xf32, #tpu.memory_space<vmem>>, vector<1x8x1x32xf32>
    %468 = vector.shape_cast %467 : vector<1x8x1x32xf32> to vector<8x32xf32>
    %469 = vector.shape_cast %466 : vector<8x32xf32> to vector<1x8x1x32xf32>
    tpu.vector_store %arg6[%c0_212, %c0_213, %c15_214, %c32_215], %469 {strides = array<i32>} : memref<1x8x16x64xf32, #tpu.memory_space<vmem>>, vector<1x8x1x32xf32>,
    return
  }
  func.func @transform_0(%arg0: i32, %arg1: i32) -> (i32, i32, i32) {
    %c0_i32 = arith.constant 0 : i32
    %c0_i32_0 = arith.constant 0 : i32
    return %arg0, %c0_i32, %arg1 : i32, i32, i32
  }
  func.func @transform_1(%arg0: i32, %arg1: i32) -> (i32, i32) {
    %c0_i32 = arith.constant 0 : i32
    %c0_i32_0 = arith.constant 0 : i32
    %c0_i32_1 = arith.constant 0 : i32
    return %c0_i32, %c0_i32_0 : i32, i32
  }
  func.func @transform_2(%arg0: i32, %arg1: i32) -> (i32, i32) {
    %c0_i32 = arith.constant 0 : i32
    %c0_i32_0 = arith.constant 0 : i32
    %c0_i32_1 = arith.constant 0 : i32
    return %c0_i32, %c0_i32_0 : i32, i32
  }
  func.func @transform_3(%arg0: i32, %arg1: i32) -> (i32, i32) {
    %c0_i32 = arith.constant 0 : i32
    %c0_i32_0 = arith.constant 0 : i32
    %c0_i32_1 = arith.constant 0 : i32
    return %c0_i32, %c0_i32_0 : i32, i32
  }
  func.func @transform_4(%arg0: i32, %arg1: i32) -> (i32, i32, i32, i32) {
    %c0_i32 = arith.constant 0 : i32
    %c0_i32_0 = arith.constant 0 : i32
    %c0_i32_1 = arith.constant 0 : i32
    return %arg0, %c0_i32, %arg1, %c0_i32_0 : i32, i32, i32, i32
  }
}

</mosaic_0001>

<llo_original>
// kernel: conv2d_transpose_block.1
$region0: #{conv2d_transpose_block.1}
  #allocation0 [shape = 'u32[]', space=smem, size = 0x4, offset = 0x4, fixed_abs, tag = 'smem constant byte address 0x4 - core index']
  #allocation1 [shape = 'u32[144,128]{1,0:T(1,128)}', space=vmem, size = 0x12000, scoped, tag = 'internal scratch']
  %s0 = inlined_call_operand.vmem [shape: f32[2,4,256], index: 0, kind: input, shape index: {}]
  %s1 = inlined_call_operand.vmem [shape: f32[32,4], index: 1, kind: input, shape index: {}]
  %s2 = inlined_call_operand.vmem [shape: f32[8,1], index: 2, kind: input, shape index: {}]
  %s3 = inlined_call_operand.vmem [shape: f32[32,32], index: 3, kind: input, shape index: {}]
  %s4 = inlined_call_operand.vmem [shape: f32[2,8,16,64], index: 4, kind: output, shape index: {}]
  %s5 = sld [smem:[#allocation0]]
  $region49: #{conv2d_transpose_block.1} parent=0
    _
  %s7 = ssub.s32 1, %s5
  %s8 = scalar_select 0, %s7, %s5
  loop: start=0, step=1, limit=4
  $region2: #{conv2d_transpose_block.1} parent=0 // loop_pre_header
    _
  $region3: #{conv2d_transpose_block.1} parent=0 // loop_header
    %s10 = sphi 0, %s14
    %p11 = scmp.ge.s32.totalorder %s10, 4
    %s17 = sphi 0, %s29
    %s18 = sphi 0, %s25
    %s19 = sphi 0, %s17
    %s20 = sphi 0, %s18
    %s21 = sphi 0, %s19
    %s22 = sphi 0, %s20
    %s34 = sphi 0, %s36
    %s37 = sphi 0, %s34
    %s38 = sphi 0, %s37
    %s54 = sphi 0, %s38
    %s58 = sphi 0, %s58
    %s60 = sphi 0, %s58
    %s61 = sphi 0, %s60
    %s75 = sphi 0, %s61
    %s79 = sphi 0, %s79
    %s81 = sphi 0, %s79
    %s82 = sphi 0, %s81
    %s96 = sphi 0, %s82
    %s100 = sphi 0, %s100
    %s102 = sphi 0, %s100
    %s103 = sphi 0, %s102
    %s117 = sphi 0, %s103
    %s125 = sphi 0, %s127
    %s128 = sphi 0, %s125
    %s129 = sphi 0, %s128
    %s145 = sphi 0, %s129
  $region4: #{conv2d_transpose_block.1} parent=0 // loop_header_branch
    %13 = sbr.rel (%p11) target = $region8
  $region5: #{conv2d_transpose_block.1} parent=0 // loop_body
    %s15 = ssub.s32 %s10, 1
    %s16 = ssub.s32 %s10, 2
    %s23 = sadd.s32 1, %s18
    %p24 = scmp.ge.s32.totalorder %s23, 1
    %s25 = scalar_select %p24, 0, %s23
    %s26 = sadd.s32 1, %s17
    %s27 = scalar_select %p24, %s26, %s17
    %p28 = scmp.ge.s32.totalorder %s27, 2
    %s29 = scalar_select %p28, 0, %s27
    %s30 = ssub.s32 %s17, %s29
    %s31 = ssub.s32 %s18, %s25
    %s32 = sor.u32 %s30, %s31
    %p33 = scmp.eq.s32.totalorder %s32, 0
    %s35 = sadd.s32 %s34, 1
    %s36 = scalar_select %p33, %s34, %s35
    %p39 = pneg %p33
    %p40 = scmp.eq.s32.totalorder %s10, 1
    %p41 = por %p39, %p40
    %p42 = scmp.ne.s32.totalorder %s34, %s37
    %p43 = scmp.eq.s32.totalorder %s10, 0
    %p44 = por %p42, %p43
    %p45 = scmp.ne.s32.totalorder %s34, %s37
    %p46 = scmp.eq.s32.totalorder %s15, 1
    %p47 = por %p45, %p46
    %p48 = scmp.ne.s32.totalorder %s37, %s38
    %p49 = scmp.eq.s32.totalorder %s15, 0
    %p50 = por %p48, %p49
    %p51 = scmp.ne.s32.totalorder %s37, %s38
    %p52 = scmp.eq.s32.totalorder %s16, 1
    %p53 = por %p51, %p52
    %p55 = scmp.ne.s32.totalorder %s38, %s54
    %p56 = scmp.eq.s32.totalorder %s16, 0
    %p57 = por %p55, %p56
    %s59 = sadd.s32 %s58, 1
    %p62 = scmp.eq.s32.totalorder %s10, 1
    %p63 = scmp.ne.s32.totalorder %s58, %s60
    %p64 = scmp.eq.s32.totalorder %s10, 0
    %p65 = por %p63, %p64
    %p66 = scmp.ne.s32.totalorder %s58, %s60
    %p67 = scmp.eq.s32.totalorder %s15, 1
    %p68 = por %p66, %p67
    %p69 = scmp.ne.s32.totalorder %s60, %s61
    %p70 = scmp.eq.s32.totalorder %s15, 0
    %p71 = por %p69, %p70
    %p72 = scmp.ne.s32.totalorder %s60, %s61
    %p73 = scmp.eq.s32.totalorder %s16, 1
    %p74 = por %p72, %p73
    %p76 = scmp.ne.s32.totalorder %s61, %s75
    %p77 = scmp.eq.s32.totalorder %s16, 0
    %p78 = por %p76, %p77
    %s80 = sadd.s32 %s79, 1
    %p83 = scmp.eq.s32.totalorder %s10, 1
    %p84 = scmp.ne.s32.totalorder %s79, %s81
    %p85 = scmp.eq.s32.totalorder %s10, 0
    %p86 = por %p84, %p85
    %p87 = scmp.ne.s32.totalorder %s79, %s81
    %p88 = scmp.eq.s32.totalorder %s15, 1
    %p89 = por %p87, %p88
    %p90 = scmp.ne.s32.totalorder %s81, %s82
    %p91 = scmp.eq.s32.totalorder %s15, 0
    %p92 = por %p90, %p91
    %p93 = scmp.ne.s32.totalorder %s81, %s82
    %p94 = scmp.eq.s32.totalorder %s16, 1
    %p95 = por %p93, %p94
    %p97 = scmp.ne.s32.totalorder %s82, %s96
    %p98 = scmp.eq.s32.totalorder %s16, 0
    %p99 = por %p97, %p98
    %s101 = sadd.s32 %s100, 1
    %p104 = scmp.eq.s32.totalorder %s10, 1
    %p105 = scmp.ne.s32.totalorder %s100, %s102
    %p106 = scmp.eq.s32.totalorder %s10, 0
    %p107 = por %p105, %p106
    %p108 = scmp.ne.s32.totalorder %s100, %s102
    %p109 = scmp.eq.s32.totalorder %s15, 1
    %p110 = por %p108, %p109
    %p111 = scmp.ne.s32.totalorder %s102, %s103
    %p112 = scmp.eq.s32.totalorder %s15, 0
    %p113 = por %p111, %p112
    %p114 = scmp.ne.s32.totalorder %s102, %s103
    %p115 = scmp.eq.s32.totalorder %s16, 1
    %p116 = por %p114, %p115
    %p118 = scmp.ne.s32.totalorder %s103, %s117
    %p119 = scmp.eq.s32.totalorder %s16, 0
    %p120 = por %p118, %p119
    %s121 = ssub.s32 %s17, %s29
    %s122 = ssub.s32 %s18, %s25
    %s123 = sor.u32 %s121, %s122
    %p124 = scmp.eq.s32.totalorder %s123, 0
    %s126 = sadd.s32 %s125, 1
    %s127 = scalar_select %p124, %s125, %s126
    %p130 = pneg %p124
    %p131 = scmp.eq.s32.totalorder %s10, 1
    %p132 = por %p130, %p131
    %p133 = scmp.ne.s32.totalorder %s125, %s128
    %p134 = scmp.eq.s32.totalorder %s10, 0
    %p135 = por %p133, %p134
    %p136 = scmp.ne.s32.totalorder %s125, %s128
    %p137 = scmp.eq.s32.totalorder %s15, 1
    %p138 = por %p136, %p137
    %p139 = scmp.ne.s32.totalorder %s128, %s129
    %p140 = scmp.eq.s32.totalorder %s15, 0
    %p141 = por %p139, %p140
    %p142 = scmp.ne.s32.totalorder %s128, %s129
    %p143 = scmp.eq.s32.totalorder %s16, 1
    %p144 = por %p142, %p143
    %p146 = scmp.ne.s32.totalorder %s129, %s145
    %p147 = scmp.eq.s32.totalorder %s16, 0
    %p148 = por %p146, %p147
    %p149 = scmp.le.s32.totalorder 1, %s10
    %p150 = scmp.lt.s32.totalorder %s10, 3
    %p151 = pnand %p149, %p150
    %p152 = pneg %p151
    // Predicated region
    $region9: #{conv2d_transpose_block.1} parent=5 // pred_check
      _
    $region10: #{conv2d_transpose_block.1} parent=5 // pred_check_branch
      %154 = sbr.rel (%p151) target = $region12
    $region11: #{conv2d_transpose_block.1} parent=5 // pred_region
      %s155 = ssub.s32 %s10, 1
      // Predicated region
      $region13: #{conv2d_transpose_block.1} parent=11 // pred_check
        %p156 = pneg %p71
      $region14: #{conv2d_transpose_block.1} parent=11 // pred_check_branch
        %158 = sbr.rel (%p156) target = $region16
      $region15: #{conv2d_transpose_block.1} parent=11 // pred_region
        _
      $region16: #{conv2d_transpose_block.1} parent=11 // pred_fallthru
        _
      // Predicated region
      $region17: #{conv2d_transpose_block.1} parent=11 // pred_check
        %p159 = pneg %p92
      $region18: #{conv2d_transpose_block.1} parent=11 // pred_check_branch
        %161 = sbr.rel (%p159) target = $region20
      $region19: #{conv2d_transpose_block.1} parent=11 // pred_region
        _
      $region20: #{conv2d_transpose_block.1} parent=11 // pred_fallthru
        _
      // Predicated region
      $region21: #{conv2d_transpose_block.1} parent=11 // pred_check
        %p162 = pneg %p113
      $region22: #{conv2d_transpose_block.1} parent=11 // pred_check_branch
        %164 = sbr.rel (%p162) target = $region24
      $region23: #{conv2d_transpose_block.1} parent=11 // pred_region
        _
      $region24: #{conv2d_transpose_block.1} parent=11 // pred_fallthru
        _
    $region12: #{conv2d_transpose_block.1} parent=5 // pred_fallthru
      _
    %p165 = scmp.lt.s32.totalorder %s10, 2
    // Predicated region
    $region25: #{conv2d_transpose_block.1} parent=5 // pred_check
      %p166 = pneg %p165
    $region26: #{conv2d_transpose_block.1} parent=5 // pred_check_branch
      %168 = sbr.rel (%p166) target = $region28
    $region27: #{conv2d_transpose_block.1} parent=5 // pred_region
      // Predicated region
      $region29: #{conv2d_transpose_block.1} parent=27 // pred_check
        %p169 = pneg %p44
      $region30: #{conv2d_transpose_block.1} parent=27 // pred_check_branch
        %171 = sbr.rel (%p169) target = $region32
      $region31: #{conv2d_transpose_block.1} parent=27 // pred_region
        %s172 = smul.u32 2, %s18
        %p173 = scmp.lt.s32.totalorder %s17, 1
        %s174 = scalar_select %p173, %s17, 1
        %p175 = scmp.lt.s32.totalorder %s172, 1
        %s176 = scalar_select %p175, %s172, 1
        %s177 = smul.addr %s174, 2
        %s178 = sadd.s32 %s176, %s177
        %s179 = smul.addr %s178, 4
        %s180 = scalar_lea.vmem %s0, %s179
        %s181 = smul.u32 2, %s18
      $region32: #{conv2d_transpose_block.1} parent=27 // pred_fallthru
        _
    $region28: #{conv2d_transpose_block.1} parent=5 // pred_fallthru
      _
    %p182 = scmp.le.s32.totalorder 1, %s10
    %p183 = scmp.lt.s32.totalorder %s10, 3
    %p184 = pnand %p182, %p183
    %p185 = pneg %p184
    // Predicated region
    $region33: #{conv2d_transpose_block.1} parent=5 // pred_check
      _
    $region34: #{conv2d_transpose_block.1} parent=5 // pred_check_branch
      %187 = sbr.rel (%p184) target = $region36
    $region35: #{conv2d_transpose_block.1} parent=5 // pred_region
      %s188 = ssub.s32 %s10, 1
      %s189 = smul.u32 2, %s20
      %p190 = scmp.lt.s32.totalorder %s19, 1
      %s191 = scalar_select %p190, %s19, 1
      %p192 = scmp.lt.s32.totalorder %s189, 1
      %s193 = scalar_select %p192, %s189, 1
      %s194 = smul.addr %s191, 2
      %s195 = sadd.s32 %s193, %s194
      %s196 = smul.addr %s195, 4
      %s197 = scalar_lea.vmem %s0, %s196
      %p198 = pneg %p50
      %p199 = pneg %p47
      %p200 = pneg %p71
      %p201 = pneg %p68
      %p202 = pneg %p92
      %p203 = pneg %p89
      %p204 = pneg %p113
      %p205 = pneg %p110
      %p206 = pneg %p141
      %p207 = pneg %p138
      %s208 = smul.u32 2, %s20
      %p209 = scmp.lt.s32.totalorder %s19, 1
      %s210 = scalar_select %p209, %s19, 1
      %p211 = scmp.lt.s32.totalorder %s208, 1
      %s212 = scalar_select %p211, %s208, 1
      %s213 = smul.addr %s210, 16
      %s214 = sadd.s32 %s212, %s213
      %s215 = smul.addr %s214, 8
      %s216 = scalar_lea.vmem %s4, %s215
      %s217 = smul.u32 2, %s20
      %p218 = scmp.lt.s32.totalorder %s19, 1
      %s219 = scalar_select %p218, %s19, 1
      %p220 = scmp.lt.s32.totalorder %s217, 1
      %s221 = scalar_select %p220, %s217, 1
      %s222 = smul.addr %s219, 2
      %s223 = sadd.s32 %s221, %s222
      %s224 = smul.addr %s223, 4
      %s225 = scalar_lea.vmem %s0, %s224
      %s226 = smul.u32 2, %s20
      %s227 = smul.u32 2, %s20
      %p228 = scmp.lt.s32.totalorder %s19, 1
      %s229 = scalar_select %p228, %s19, 1
      %p230 = scmp.lt.s32.totalorder %s227, 1
      %s231 = scalar_select %p230, %s227, 1
      %s232 = smul.addr %s229, 16
      %s233 = sadd.s32 %s231, %s232
      %s234 = smul.addr %s233, 8
      %s235 = scalar_lea.vmem %s4, %s234
      %s236 = smul.u32 2, %s20
      %v237 = vld [vmem:[%s1] sm:$0xff]
      %v238 = vld [vmem:[%s1 + $0x8] sm:$0xff]
      %v239 = vld [vmem:[%s1 + $0x10] sm:$0xff]
      %v240 = vld [vmem:[%s1 + $0x18] sm:$0xff]
      %v241 = vld [vmem:[%s225] sm:$0xff]
      %v243 = vcombine.high %v241, %v241
      %vm244 = vcmask 31744
      %v246 = vsel %vm244, %v237, 0
      %v249 = vsel %vm244, %v238, 0
      %v252 = vsel %vm244, %v239, 0
      %v255 = vsel %vm244, %v240, 0
      %vm257 = vcmask 1043456
      %v258 = vsel %vm257, %v241, 0
      %v260 = vsel %vm257, %v243, 0
      %262 = vmatprep.subr.mxu0 %v260
      %263 = vmatpush1.msra.mxu0 %v258
      %264 = vmatprep.subr.mxu0 0.0
      %265 = vmatpush1.msra.mxu0 0.0
      %266 = vmatprep.subr.mxu0 0.0
      %267 = vmatpush1.msra.mxu0 0.0
      %268 = vmatprep.subr.mxu0 0.0
      %269 = vmatpush1.msra.mxu0 0.0
      %270 = vmatprep.subr.mxu0 0.0
      %271 = vmatpush1.msra.mxu0 0.0
      %272 = vmatprep.subr.mxu0 0.0
      %273 = vmatpush1.msra.mxu0 0.0
      %274 = vmatprep.subr.mxu0 0.0
      %275 = vmatpush1.msra.mxu0 0.0
      %276 = vmatprep.subr.mxu0 0.0
      %277 = vmatpush1.msra.mxu0 0.0
      %278 = vmatprep.subr.mxu0 0.0
      %279 = vmatpush1.msra.mxu0 0.0
      %280 = vmatprep.subr.mxu0 0.0
      %281 = vmatpush1.msra.mxu0 0.0
      %282 = vmatprep.subr.mxu0 0.0
      %283 = vmatpush1.msra.mxu0 0.0
      %284 = vmatprep.subr.mxu0 0.0
      %285 = vmatpush1.msra.mxu0 0.0
      %286 = vmatprep.subr.mxu0 0.0
      %287 = vmatpush1.msra.mxu0 0.0
      %288 = vmatprep.subr.mxu0 0.0
      %289 = vmatpush1.msra.mxu0 0.0
      %290 = vmatprep.subr.mxu0 0.0
      %291 = vmatpush1.msra.mxu0 0.0
      %292 = vmatprep.subr.mxu0 0.0
      %293 = vmatpush1.msra.mxu0 0.0
      %294 = vmatprep.subr.mxu0 0.0
      %295 = vmatpush1.msra.mxu0 0.0
      %296 = vmatprep.subr.mxu0 0.0
      %297 = vmatpush1.msra.mxu0 0.0
      %298 = vmatprep.subr.mxu0 0.0
      %299 = vmatpush1.msra.mxu0 0.0
      %300 = vmatprep.subr.mxu0 0.0
      %301 = vmatpush1.msra.mxu0 0.0
      %302 = vmatprep.subr.mxu0 0.0
      %303 = vmatpush1.msra.mxu0 0.0
      %304 = vmatprep.subr.mxu0 0.0
      %305 = vmatpush1.msra.mxu0 0.0
      %306 = vmatprep.subr.mxu0 0.0
      %307 = vmatpush1.msra.mxu0 0.0
      %308 = vmatprep.subr.mxu0 0.0
      %309 = vmatpush1.msra.mxu0 0.0
      %310 = vmatprep.subr.mxu0 0.0
      %311 = vmatpush1.msra.mxu0 0.0
      %312 = vmatprep.subr.mxu0 0.0
      %313 = vmatpush1.msra.mxu0 0.0
      %314 = vmatprep.subr.mxu0 0.0
      %315 = vmatpush1.msra.mxu0 0.0
      %316 = vmatprep.subr.mxu0 0.0
      %317 = vmatpush1.msra.mxu0 0.0
      %318 = vmatprep.subr.mxu0 0.0
      %319 = vmatpush1.msra.mxu0 0.0
      %320 = vmatprep.subr.mxu0 0.0
      %321 = vmatpush1.msra.mxu0 0.0
      %322 = vmatprep.subr.mxu0 0.0
      %323 = vmatpush1.msra.mxu0 0.0
      %324 = vmatprep.subr.mxu0 0.0
      %325 = vmatpush1.msra.mxu0 0.0
      %326 = vmatprep.mubr.f32.mxu0 0.0
      %327 = vmatmul.mubr.f32.gmra.mrb[0].mxu0 %v246
      %v328 = vpop.f32.mrb[0].mxu0
      %v329 = vadd.f32 0.0, %v328
      %v330 = vpop.f32.mrb[0].mxu0
      %v331 = vadd.f32 0.0, %v330
      %332 = vmatprep.mubr.f32.mxu0 0.0
      %333 = vmatmul.mubr.f32.gmra.mrb[0].mxu0 %v249
      %v334 = vpop.f32.mrb[0].mxu0
      %v335 = vadd.f32 0.0, %v334
      %v336 = vpop.f32.mrb[0].mxu0
      %v337 = vadd.f32 0.0, %v336
      %338 = vmatprep.mubr.f32.mxu0 0.0
      %339 = vmatmul.mubr.f32.gmra.mrb[0].mxu0 %v252
      %v340 = vpop.f32.mrb[0].mxu0
      %v341 = vadd.f32 0.0, %v340
      %v342 = vpop.f32.mrb[0].mxu0
      %v343 = vadd.f32 0.0, %v342
      %344 = vmatprep.mubr.f32.mxu0 0.0
      %345 = vmatmul.mubr.f32.gmra.mrb[0].mxu0 %v255
      %v346 = vpop.f32.mrb[0].mxu0
      %v347 = vadd.f32 0.0, %v346
      %v348 = vpop.f32.mrb[0].mxu0
      %v349 = vadd.f32 0.0, %v348
      %350 = vdwg.mxu0
      %v351 = vld [vmem:[%s2] sm:$0xff]
      %v352 = vld [vmem:[%s3] sm:$0xff]
      %v353 = vld [vmem:[%s3 + $0x8] sm:$0xff]
      %v354 = vld [vmem:[%s3 + $0x10] sm:$0xff]
      %v355 = vld [vmem:[%s3 + $0x18] sm:$0xff]
      %vm356 = vcmask 130048
      %v358 = vsel %vm356, %v335, 0
      %360 = vmatprep.subr.mxu0 0.0
      %361 = vmatpush1.msra.mxu0 %v354
      %362 = vmatprep.subr.mxu0 0.0
      %363 = vmatpush1.msra.mxu0 %v355
      %364 = vmatprep.subr.mxu0 0.0
      %365 = vmatpush1.msra.mxu0 0.0
      %366 = vmatprep.subr.mxu0 0.0
      %367 = vmatpush1.msra.mxu0 0.0
      %368 = vmatprep.subr.mxu0 0.0
      %369 = vmatpush1.msra.mxu0 0.0
      %370 = vmatprep.subr.mxu0 0.0
      %371 = vmatpush1.msra.mxu0 0.0
      %372 = vmatprep.subr.mxu0 0.0
      %373 = vmatpush1.msra.mxu0 0.0
      %374 = vmatprep.subr.mxu0 0.0
      %375 = vmatpush1.msra.mxu0 0.0
      %376 = vmatprep.subr.mxu0 0.0
      %377 = vmatpush1.msra.mxu0 0.0
      %378 = vmatprep.subr.mxu0 0.0
      %379 = vmatpush1.msra.mxu0 0.0
      %380 = vmatprep.subr.mxu0 0.0
      %381 = vmatpush1.msra.mxu0 0.0
      %382 = vmatprep.subr.mxu0 0.0
      %383 = vmatpush1.msra.mxu0 0.0
      %384 = vmatprep.subr.mxu0 0.0
      %385 = vmatpush1.msra.mxu0 0.0
      %386 = vmatprep.subr.mxu0 0.0
      %387 = vmatpush1.msra.mxu0 0.0
      %388 = vmatprep.subr.mxu0 0.0
      %389 = vmatpush1.msra.mxu0 0.0
      %390 = vmatprep.subr.mxu0 0.0
      %391 = vmatpush1.msra.mxu0 0.0
      %392 = vmatprep.subr.mxu0 0.0
      %393 = vmatpush1.msra.mxu0 0.0
      %394 = vmatprep.subr.mxu0 0.0
      %395 = vmatpush1.msra.mxu0 0.0
      %396 = vmatprep.subr.mxu0 0.0
      %397 = vmatpush1.msra.mxu0 0.0
      %398 = vmatprep.subr.mxu0 0.0
      %399 = vmatpush1.msra.mxu0 0.0
      %400 = vmatprep.subr.mxu0 0.0
      %401 = vmatpush1.msra.mxu0 0.0
      %402 = vmatprep.subr.mxu0 0.0
      %403 = vmatpush1.msra.mxu0 0.0
      %404 = vmatprep.subr.mxu0 0.0
      %405 = vmatpush1.msra.mxu0 0.0
      %406 = vmatprep.subr.mxu0 0.0
      %407 = vmatpush1.msra.mxu0 0.0
      %408 = vmatprep.subr.mxu0 0.0
      %409 = vmatpush1.msra.mxu0 0.0
      %410 = vmatprep.subr.mxu0 0.0
      %411 = vmatpush1.msra.mxu0 0.0
      %412 = vmatprep.subr.mxu0 0.0
      %413 = vmatpush1.msra.mxu0 0.0
      %414 = vmatprep.subr.mxu0 0.0
      %415 = vmatpush1.msra.mxu0 0.0
      %416 = vmatprep.subr.mxu0 0.0
      %417 = vmatpush1.msra.mxu0 0.0
      %418 = vmatprep.subr.mxu0 0.0
      %419 = vmatpush1.msra.mxu0 0.0
      %420 = vmatprep.subr.mxu0 0.0
      %421 = vmatpush1.msra.mxu0 0.0
      %422 = vmatprep.subr.mxu0 0.0
      %423 = vmatpush1.msra.mxu0 0.0
      %424 = vmatprep.mubr.f32.mxu0 0.0
      %425 = vmatmul.mubr.f32.gmra.mrb[0].mxu0 %v358
      %v426 = vpop.f32.mrb[0].mxu0
      %v427 = vadd.f32 0.0, %v426
      %v428 = vpop.f32.mrb[0].mxu0
      %429 = vdwg.mxu0
      %v431 = vsel %vm356, %v329, 0
      %433 = vmatprep.subr.mxu0 0.0
      %434 = vmatpush1.msra.mxu0 %v352
      %435 = vmatprep.subr.mxu0 0.0
      %436 = vmatpush1.msra.mxu0 %v353
      %437 = vmatprep.subr.mxu0 0.0
      %438 = vmatpush1.msra.mxu0 0.0
      %439 = vmatprep.subr.mxu0 0.0
      %440 = vmatpush1.msra.mxu0 0.0
      %441 = vmatprep.subr.mxu0 0.0
      %442 = vmatpush1.msra.mxu0 0.0
      %443 = vmatprep.subr.mxu0 0.0
      %444 = vmatpush1.msra.mxu0 0.0
      %445 = vmatprep.subr.mxu0 0.0
      %446 = vmatpush1.msra.mxu0 0.0
      %447 = vmatprep.subr.mxu0 0.0
      %448 = vmatpush1.msra.mxu0 0.0
      %449 = vmatprep.subr.mxu0 0.0
      %450 = vmatpush1.msra.mxu0 0.0
      %451 = vmatprep.subr.mxu0 0.0
      %452 = vmatpush1.msra.mxu0 0.0
      %453 = vmatprep.subr.mxu0 0.0
      %454 = vmatpush1.msra.mxu0 0.0
      %455 = vmatprep.subr.mxu0 0.0
      %456 = vmatpush1.msra.mxu0 0.0
      %457 = vmatprep.subr.mxu0 0.0
      %458 = vmatpush1.msra.mxu0 0.0
      %459 = vmatprep.subr.mxu0 0.0
      %460 = vmatpush1.msra.mxu0 0.0
      %461 = vmatprep.subr.mxu0 0.0
      %462 = vmatpush1.msra.mxu0 0.0
      %463 = vmatprep.subr.mxu0 0.0
      %464 = vmatpush1.msra.mxu0 0.0
      %465 = vmatprep.subr.mxu0 0.0
      %466 = vmatpush1.msra.mxu0 0.0
      %467 = vmatprep.subr.mxu0 0.0
      %468 = vmatpush1.msra.mxu0 0.0
      %469 = vmatprep.subr.mxu0 0.0
      %470 = vmatpush1.msra.mxu0 0.0
      %471 = vmatprep.subr.mxu0 0.0
      %472 = vmatpush1.msra.mxu0 0.0
      %473 = vmatprep.subr.mxu0 0.0
      %474 = vmatpush1.msra.mxu0 0.0
      %475 = vmatprep.subr.mxu0 0.0
      %476 = vmatpush1.msra.mxu0 0.0
      %477 = vmatprep.subr.mxu0 0.0
      %478 = vmatpush1.msra.mxu0 0.0
      %479 = vmatprep.subr.mxu0 0.0
      %480 = vmatpush1.msra.mxu0 0.0
      %481 = vmatprep.subr.mxu0 0.0
      %482 = vmatpush1.msra.mxu0 0.0
      %483 = vmatprep.subr.mxu0 0.0
      %484 = vmatpush1.msra.mxu0 0.0
      %485 = vmatprep.subr.mxu0 0.0
      %486 = vmatpush1.msra.mxu0 0.0
      %487 = vmatprep.subr.mxu0 0.0
      %488 = vmatpush1.msra.mxu0 0.0
      %489 = vmatprep.subr.mxu0 0.0
      %490 = vmatpush1.msra.mxu0 0.0
      %491 = vmatprep.subr.mxu0 0.0
      %492 = vmatpush1.msra.mxu0 0.0
      %493 = vmatprep.subr.mxu0 0.0
      %494 = vmatpush1.msra.mxu0 0.0
      %495 = vmatprep.subr.mxu0 0.0
      %496 = vmatpush1.msra.mxu0 0.0
      %497 = vmatprep.mubr.f32.mxu0 0.0
      %498 = vmatmul.mubr.f32.gmra.mrb[0].mxu0 %v431
      %v499 = vpop.f32.mrb[0].mxu0
      %v500 = vadd.f32 %v427, %v499
      %v501 = vpop.f32.mrb[0].mxu0
      %502 = vdwg.mxu0
      %504 = vset.pattern.permute.xlu0 0
      %505 = vperm.xlu0 %504, %v351
      %v506 = vpop.permute.xlu0 %505
      %v508 = vadd.f32 %v500, %v506
      %v509 = vmax.f32 %v508, 0.0
      %v511 = vcombine.high %v509, %v509
      %v513 = vunpack.c.l.s4 1966171168
      %v514 = vunpack.c.0.s8 %v513
      %v515 = vlaneseq
      %v516 = vshrl.u32 %v515, 7
      %v517 = vsub.s32 %v514, %v516
      %v518 = vrot.slane %v509, %v517
      %v520 = vunpack.c.l.s4 1966171168
      %v521 = vunpack.c.0.s8 %v520
      %v522 = vlaneseq
      %v523 = vshrl.u32 %v522, 7
      %v524 = vsub.s32 %v521, %v523
      %v525 = vrot.slane %v511, %v524
      %v526 = vcombine.high %v518, %v518
      %v527 = vcombine.high %v525, %v525
      %v529 = vunpack.c.l.s4 1966171168
      %v530 = vunpack.c.0.s8 %v529
      %v531 = vlaneseq
      %v532 = vshrl.u32 %v531, 7
      %v533 = vsub.s32 %v530, %v532
      %v534 = vrot.slane %v518, %v533
      %v536 = vunpack.c.l.s4 1966171168
      %v537 = vunpack.c.0.s8 %v536
      %v538 = vlaneseq
      %v539 = vshrl.u32 %v538, 7
      %v540 = vsub.s32 %v537, %v539
      %v541 = vrot.slane %v525, %v540
      %v543 = vunpack.c.l.s4 1966171168
      %v544 = vunpack.c.0.s8 %v543
      %v545 = vlaneseq
      %v546 = vshrl.u32 %v545, 7
      %v547 = vsub.s32 %v544, %v546
      %v548 = vrot.slane %v526, %v547
      %v550 = vunpack.c.l.s4 1966171168
      %v551 = vunpack.c.0.s8 %v550
      %v552 = vlaneseq
      %v553 = vshrl.u32 %v552, 7
      %v554 = vsub.s32 %v551, %v553
      %v555 = vrot.slane %v527, %v554
      %v556 = vcombine.high %v534, %v534
      %v557 = vcombine.high %v541, %v541
      %v558 = vcombine.high %v548, %v548
      %v559 = vcombine.high %v555, %v555
      %vm568 = vcmask 253952
      %569 = vst.msk [vmem:[%s235] sm:$0x1] %vm568, %v534
      %570 = vst.msk [vmem:[%s235 + $0x10] sm:$0x1] %vm568, %v548
      %571 = vst.msk [vmem:[%s235 + $0x20] sm:$0x1] %vm568, %v556
      %572 = vst.msk [vmem:[%s235 + $0x30] sm:$0x1] %vm568, %v558
      %573 = vst.msk [vmem:[%s235 + $0x40] sm:$0x1] %vm568, %v541
      %574 = vst.msk [vmem:[%s235 + $0x50] sm:$0x1] %vm568, %v555
      %575 = vst.msk [vmem:[%s235 + $0x60] sm:$0x1] %vm568, %v557
      %576 = vst.msk [vmem:[%s235 + $0x70] sm:$0x1] %vm568, %v559
      %v578 = vsel %vm356, %v347, 0
      %580 = vmatprep.subr.mxu0 0.0
      %581 = vmatpush1.msra.mxu0 %v354
      %582 = vmatprep.subr.mxu0 0.0
      %583 = vmatpush1.msra.mxu0 %v355
      %584 = vmatprep.subr.mxu0 0.0
      %585 = vmatpush1.msra.mxu0 0.0
      %586 = vmatprep.subr.mxu0 0.0
      %587 = vmatpush1.msra.mxu0 0.0
      %588 = vmatprep.subr.mxu0 0.0
      %589 = vmatpush1.msra.mxu0 0.0
      %590 = vmatprep.subr.mxu0 0.0
      %591 = vmatpush1.msra.mxu0 0.0
      %592 = vmatprep.subr.mxu0 0.0
      %593 = vmatpush1.msra.mxu0 0.0
      %594 = vmatprep.subr.mxu0 0.0
      %595 = vmatpush1.msra.mxu0 0.0
      %596 = vmatprep.subr.mxu0 0.0
      %597 = vmatpush1.msra.mxu0 0.0
      %598 = vmatprep.subr.mxu0 0.0
      %599 = vmatpush1.msra.mxu0 0.0
      %600 = vmatprep.subr.mxu0 0.0
      %601 = vmatpush1.msra.mxu0 0.0
      %602 = vmatprep.subr.mxu0 0.0
      %603 = vmatpush1.msra.mxu0 0.0
      %604 = vmatprep.subr.mxu0 0.0
      %605 = vmatpush1.msra.mxu0 0.0
      %606 = vmatprep.subr.mxu0 0.0
      %607 = vmatpush1.msra.mxu0 0.0
      %608 = vmatprep.subr.mxu0 0.0
      %609 = vmatpush1.msra.mxu0 0.0
      %610 = vmatprep.subr.mxu0 0.0
      %611 = vmatpush1.msra.mxu0 0.0
      %612 = vmatprep.subr.mxu0 0.0
      %613 = vmatpush1.msra.mxu0 0.0
      %614 = vmatprep.subr.mxu0 0.0
      %615 = vmatpush1.msra.mxu0 0.0
      %616 = vmatprep.subr.mxu0 0.0
      %617 = vmatpush1.msra.mxu0 0.0
      %618 = vmatprep.subr.mxu0 0.0
      %619 = vmatpush1.msra.mxu0 0.0
      %620 = vmatprep.subr.mxu0 0.0
      %621 = vmatpush1.msra.mxu0 0.0
      %622 = vmatprep.subr.mxu0 0.0
      %623 = vmatpush1.msra.mxu0 0.0
      %624 = vmatprep.subr.mxu0 0.0
      %625 = vmatpush1.msra.mxu0 0.0
      %626 = vmatprep.subr.mxu0 0.0
      %627 = vmatpush1.msra.mxu0 0.0
      %628 = vmatprep.subr.mxu0 0.0
      %629 = vmatpush1.msra.mxu0 0.0
      %630 = vmatprep.subr.mxu0 0.0
      %631 = vmatpush1.msra.mxu0 0.0
      %632 = vmatprep.subr.mxu0 0.0
      %633 = vmatpush1.msra.mxu0 0.0
      %634 = vmatprep.subr.mxu0 0.0
      %635 = vmatpush1.msra.mxu0 0.0
      %636 = vmatprep.subr.mxu0 0.0
      %637 = vmatpush1.msra.mxu0 0.0
      %638 = vmatprep.subr.mxu0 0.0
      %639 = vmatpush1.msra.mxu0 0.0
      %640 = vmatprep.subr.mxu0 0.0
      %641 = vmatpush1.msra.mxu0 0.0
      %642 = vmatprep.subr.mxu0 0.0
      %643 = vmatpush1.msra.mxu0 0.0
      %644 = vmatprep.mubr.f32.mxu0 0.0
      %645 = vmatmul.mubr.f32.gmra.mrb[0].mxu0 %v578
      %v646 = vpop.f32.mrb[0].mxu0
      %v647 = vadd.f32 0.0, %v646
      %v648 = vpop.f32.mrb[0].mxu0
      %649 = vdwg.mxu0
      %v651 = vsel %vm356, %v341, 0
      %653 = vmatprep.subr.mxu0 0.0
      %654 = vmatpush1.msra.mxu0 %v352
      %655 = vmatprep.subr.mxu0 0.0
      %656 = vmatpush1.msra.mxu0 %v353
      %657 = vmatprep.subr.mxu0 0.0
      %658 = vmatpush1.msra.mxu0 0.0
      %659 = vmatprep.subr.mxu0 0.0
      %660 = vmatpush1.msra.mxu0 0.0
      %661 = vmatprep.subr.mxu0 0.0
      %662 = vmatpush1.msra.mxu0 0.0
      %663 = vmatprep.subr.mxu0 0.0
      %664 = vmatpush1.msra.mxu0 0.0
      %665 = vmatprep.subr.mxu0 0.0
      %666 = vmatpush1.msra.mxu0 0.0
      %667 = vmatprep.subr.mxu0 0.0
      %668 = vmatpush1.msra.mxu0 0.0
      %669 = vmatprep.subr.mxu0 0.0
      %670 = vmatpush1.msra.mxu0 0.0
      %671 = vmatprep.subr.mxu0 0.0
      %672 = vmatpush1.msra.mxu0 0.0
      %673 = vmatprep.subr.mxu0 0.0
      %674 = vmatpush1.msra.mxu0 0.0
      %675 = vmatprep.subr.mxu0 0.0
      %676 = vmatpush1.msra.mxu0 0.0
      %677 = vmatprep.subr.mxu0 0.0
      %678 = vmatpush1.msra.mxu0 0.0
      %679 = vmatprep.subr.mxu0 0.0
      %680 = vmatpush1.msra.mxu0 0.0
      %681 = vmatprep.subr.mxu0 0.0
      %682 = vmatpush1.msra.mxu0 0.0
      %683 = vmatprep.subr.mxu0 0.0
      %684 = vmatpush1.msra.mxu0 0.0
      %685 = vmatprep.subr.mxu0 0.0
      %686 = vmatpush1.msra.mxu0 0.0
      %687 = vmatprep.subr.mxu0 0.0
      %688 = vmatpush1.msra.mxu0 0.0
      %689 = vmatprep.subr.mxu0 0.0
      %690 = vmatpush1.msra.mxu0 0.0
      %691 = vmatprep.subr.mxu0 0.0
      %692 = vmatpush1.msra.mxu0 0.0
      %693 = vmatprep.subr.mxu0 0.0
      %694 = vmatpush1.msra.mxu0 0.0
      %695 = vmatprep.subr.mxu0 0.0
      %696 = vmatpush1.msra.mxu0 0.0
      %697 = vmatprep.subr.mxu0 0.0
      %698 = vmatpush1.msra.mxu0 0.0
      %699 = vmatprep.subr.mxu0 0.0
      %700 = vmatpush1.msra.mxu0 0.0
      %701 = vmatprep.subr.mxu0 0.0
      %702 = vmatpush1.msra.mxu0 0.0
      %703 = vmatprep.subr.mxu0 0.0
      %704 = vmatpush1.msra.mxu0 0.0
      %705 = vmatprep.subr.mxu0 0.0
      %706 = vmatpush1.msra.mxu0 0.0
      %707 = vmatprep.subr.mxu0 0.0
      %708 = vmatpush1.msra.mxu0 0.0
      %709 = vmatprep.subr.mxu0 0.0
      %710 = vmatpush1.msra.mxu0 0.0
      %711 = vmatprep.subr.mxu0 0.0
      %712 = vmatpush1.msra.mxu0 0.0
      %713 = vmatprep.subr.mxu0 0.0
      %714 = vmatpush1.msra.mxu0 0.0
      %715 = vmatprep.subr.mxu0 0.0
      %716 = vmatpush1.msra.mxu0 0.0
      %717 = vmatprep.mubr.f32.mxu0 0.0
      %718 = vmatmul.mubr.f32.gmra.mrb[0].mxu0 %v651
      %v719 = vpop.f32.mrb[0].mxu0
      %v720 = vadd.f32 %v647, %v719
      %v721 = vpop.f32.mrb[0].mxu0
      %722 = vdwg.mxu0
      %v723 = vadd.f32 %v720, %v506
      %v724 = vmax.f32 %v723, 0.0
      %v726 = vcombine.high %v724, %v724
      %v728 = vunpack.c.l.s4 1966171168
      %v729 = vunpack.c.0.s8 %v728
      %v730 = vlaneseq
      %v731 = vshrl.u32 %v730, 7
      %v732 = vsub.s32 %v729, %v731
      %v733 = vrot.slane %v724, %v732
      %v735 = vunpack.c.l.s4 1966171168
      %v736 = vunpack.c.0.s8 %v735
      %v737 = vlaneseq
      %v738 = vshrl.u32 %v737, 7
      %v739 = vsub.s32 %v736, %v738
      %v740 = vrot.slane %v726, %v739
      %v741 = vcombine.high %v733, %v733
      %v742 = vcombine.high %v740, %v740
      %v744 = vunpack.c.l.s4 1966171168
      %v745 = vunpack.c.0.s8 %v744
      %v746 = vlaneseq
      %v747 = vshrl.u32 %v746, 7
      %v748 = vsub.s32 %v745, %v747
      %v749 = vrot.slane %v733, %v748
      %v751 = vunpack.c.l.s4 1966171168
      %v752 = vunpack.c.0.s8 %v751
      %v753 = vlaneseq
      %v754 = vshrl.u32 %v753, 7
      %v755 = vsub.s32 %v752, %v754
      %v756 = vrot.slane %v740, %v755
      %v758 = vunpack.c.l.s4 1966171168
      %v759 = vunpack.c.0.s8 %v758
      %v760 = vlaneseq
      %v761 = vshrl.u32 %v760, 7
      %v762 = vsub.s32 %v759, %v761
      %v763 = vrot.slane %v741, %v762
      %v765 = vunpack.c.l.s4 1966171168
      %v766 = vunpack.c.0.s8 %v765
      %v767 = vlaneseq
      %v768 = vshrl.u32 %v767, 7
      %v769 = vsub.s32 %v766, %v768
      %v770 = vrot.slane %v742, %v769
      %v771 = vcombine.high %v749, %v749
      %v772 = vcombine.high %v756, %v756
      %v773 = vcombine.high %v763, %v763
      %v774 = vcombine.high %v770, %v770
      %v775 = vlaneseq
      %v776 = vshrl.u32 %v775, 7
      %v777 = vsub.s32 0, %v776
      %v778 = vrot.slane %v749, %v777
      %v779 = vlaneseq
      %v780 = vshrl.u32 %v779, 7
      %v781 = vsub.s32 0, %v780
      %v782 = vrot.slane %v763, %v781
      %v783 = vlaneseq
      %v784 = vshrl.u32 %v783, 7
      %v785 = vsub.s32 0, %v784
      %v786 = vrot.slane %v771, %v785
      %v787 = vlaneseq
      %v788 = vshrl.u32 %v787, 7
      %v789 = vsub.s32 0, %v788
      %v790 = vrot.slane %v773, %v789
      %v791 = vlaneseq
      %v792 = vshrl.u32 %v791, 7
      %v793 = vsub.s32 0, %v792
      %v794 = vrot.slane %v756, %v793
      %v795 = vlaneseq
      %v796 = vshrl.u32 %v795, 7
      %v797 = vsub.s32 0, %v796
      %v798 = vrot.slane %v770, %v797
      %v799 = vlaneseq
      %v800 = vshrl.u32 %v799, 7
      %v801 = vsub.s32 0, %v800
      %v802 = vrot.slane %v772, %v801
      %v803 = vlaneseq
      %v804 = vshrl.u32 %v803, 7
      %v805 = vsub.s32 0, %v804
      %v806 = vrot.slane %v774, %v805
      %807 = vrot.lane.b32.xlu0 %v778, 32
      %v808 = vpop.permute.xlu0 %807
      %809 = vrot.lane.b32.xlu0 %v782, 32
      %v810 = vpop.permute.xlu0 %809
      %811 = vrot.lane.b32.xlu0 %v786, 32
      %v812 = vpop.permute.xlu0 %811
      %813 = vrot.lane.b32.xlu0 %v790, 32
      %v814 = vpop.permute.xlu0 %813
      %815 = vrot.lane.b32.xlu0 %v794, 32
      %v816 = vpop.permute.xlu0 %815
      %817 = vrot.lane.b32.xlu0 %v798, 32
      %v818 = vpop.permute.xlu0 %817
      %819 = vrot.lane.b32.xlu0 %v802, 32
      %v820 = vpop.permute.xlu0 %819
      %821 = vrot.lane.b32.xlu0 %v806, 32
      %v822 = vpop.permute.xlu0 %821
      %vm831 = vcmask 516352
      %832 = vst.msk [vmem:[%s235] sm:$0x1] %vm831, %v808
      %833 = vst.msk [vmem:[%s235 + $0x10] sm:$0x1] %vm831, %v810
      %834 = vst.msk [vmem:[%s235 + $0x20] sm:$0x1] %vm831, %v812
      %835 = vst.msk [vmem:[%s235 + $0x30] sm:$0x1] %vm831, %v814
      %836 = vst.msk [vmem:[%s235 + $0x40] sm:$0x1] %vm831, %v816
      %837 = vst.msk [vmem:[%s235 + $0x50] sm:$0x1] %vm831, %v818
      %838 = vst.msk [vmem:[%s235 + $0x60] sm:$0x1] %vm831, %v820
      %839 = vst.msk [vmem:[%s235 + $0x70] sm:$0x1] %vm831, %v822
      %840 = vrot.lane.b32.xlu0 %v335, 112
      %v841 = vpop.permute.xlu0 %840
      %v842 = vsel %vm356, %v841, 0
      %844 = vmatprep.subr.mxu0 0.0
      %845 = vmatpush1.msra.mxu0 %v354
      %846 = vmatprep.subr.mxu0 0.0
      %847 = vmatpush1.msra.mxu0 %v355
      %848 = vmatprep.subr.mxu0 0.0
      %849 = vmatpush1.msra.mxu0 0.0
      %850 = vmatprep.subr.mxu0 0.0
      %851 = vmatpush1.msra.mxu0 0.0
      %852 = vmatprep.subr.mxu0 0.0
      %853 = vmatpush1.msra.mxu0 0.0
      %854 = vmatprep.subr.mxu0 0.0
      %855 = vmatpush1.msra.mxu0 0.0
      %856 = vmatprep.subr.mxu0 0.0
      %857 = vmatpush1.msra.mxu0 0.0
      %858 = vmatprep.subr.mxu0 0.0
      %859 = vmatpush1.msra.mxu0 0.0
      %860 = vmatprep.subr.mxu0 0.0
      %861 = vmatpush1.msra.mxu0 0.0
      %862 = vmatprep.subr.mxu0 0.0
      %863 = vmatpush1.msra.mxu0 0.0
      %864 = vmatprep.subr.mxu0 0.0
      %865 = vmatpush1.msra.mxu0 0.0
      %866 = vmatprep.subr.mxu0 0.0
      %867 = vmatpush1.msra.mxu0 0.0
      %868 = vmatprep.subr.mxu0 0.0
      %869 = vmatpush1.msra.mxu0 0.0
      %870 = vmatprep.subr.mxu0 0.0
      %871 = vmatpush1.msra.mxu0 0.0
      %872 = vmatprep.subr.mxu0 0.0
      %873 = vmatpush1.msra.mxu0 0.0
      %874 = vmatprep.subr.mxu0 0.0
      %875 = vmatpush1.msra.mxu0 0.0
      %876 = vmatprep.subr.mxu0 0.0
      %877 = vmatpush1.msra.mxu0 0.0
      %878 = vmatprep.subr.mxu0 0.0
      %879 = vmatpush1.msra.mxu0 0.0
      %880 = vmatprep.subr.mxu0 0.0
      %881 = vmatpush1.msra.mxu0 0.0
      %882 = vmatprep.subr.mxu0 0.0
      %883 = vmatpush1.msra.mxu0 0.0
      %884 = vmatprep.subr.mxu0 0.0
      %885 = vmatpush1.msra.mxu0 0.0
      %886 = vmatprep.subr.mxu0 0.0
      %887 = vmatpush1.msra.mxu0 0.0
      %888 = vmatprep.subr.mxu0 0.0
      %889 = vmatpush1.msra.mxu0 0.0
      %890 = vmatprep.subr.mxu0 0.0
      %891 = vmatpush1.msra.mxu0 0.0
      %892 = vmatprep.subr.mxu0 0.0
      %893 = vmatpush1.msra.mxu0 0.0
      %894 = vmatprep.subr.mxu0 0.0
      %895 = vmatpush1.msra.mxu0 0.0
      %896 = vmatprep.subr.mxu0 0.0
      %897 = vmatpush1.msra.mxu0 0.0
      %898 = vmatprep.subr.mxu0 0.0
      %899 = vmatpush1.msra.mxu0 0.0
      %900 = vmatprep.subr.mxu0 0.0
      %901 = vmatpush1.msra.mxu0 0.0
      %902 = vmatprep.subr.mxu0 0.0
      %903 = vmatpush1.msra.mxu0 0.0
      %904 = vmatprep.subr.mxu0 0.0
      %905 = vmatpush1.msra.mxu0 0.0
      %906 = vmatprep.subr.mxu0 0.0
      %907 = vmatpush1.msra.mxu0 0.0
      %908 = vmatprep.mubr.f32.mxu0 0.0
      %909 = vmatmul.mubr.f32.gmra.mrb[0].mxu0 %v842
      %v910 = vpop.f32.mrb[0].mxu0
      %v911 = vadd.f32 0.0, %v910
      %v912 = vpop.f32.mrb[0].mxu0
      %913 = vdwg.mxu0
      %914 = vrot.lane.b32.xlu0 %v329, 112
      %v915 = vpop.permute.xlu0 %914
      %v916 = vsel %vm356, %v915, 0
      %918 = vmatprep.subr.mxu0 0.0
      %919 = vmatpush1.msra.mxu0 %v352
      %920 = vmatprep.subr.mxu0 0.0
      %921 = vmatpush1.msra.mxu0 %v353
      %922 = vmatprep.subr.mxu0 0.0
      %923 = vmatpush1.msra.mxu0 0.0
      %924 = vmatprep.subr.mxu0 0.0
      %925 = vmatpush1.msra.mxu0 0.0
      %926 = vmatprep.subr.mxu0 0.0
      %927 = vmatpush1.msra.mxu0 0.0
      %928 = vmatprep.subr.mxu0 0.0
      %929 = vmatpush1.msra.mxu0 0.0
      %930 = vmatprep.subr.mxu0 0.0
      %931 = vmatpush1.msra.mxu0 0.0
      %932 = vmatprep.subr.mxu0 0.0
      %933 = vmatpush1.msra.mxu0 0.0
      %934 = vmatprep.subr.mxu0 0.0
      %935 = vmatpush1.msra.mxu0 0.0
      %936 = vmatprep.subr.mxu0 0.0
      %937 = vmatpush1.msra.mxu0 0.0
      %938 = vmatprep.subr.mxu0 0.0
      %939 = vmatpush1.msra.mxu0 0.0
      %940 = vmatprep.subr.mxu0 0.0
      %941 = vmatpush1.msra.mxu0 0.0
      %942 = vmatprep.subr.mxu0 0.0
      %943 = vmatpush1.msra.mxu0 0.0
      %944 = vmatprep.subr.mxu0 0.0
      %945 = vmatpush1.msra.mxu0 0.0
      %946 = vmatprep.subr.mxu0 0.0
      %947 = vmatpush1.msra.mxu0 0.0
      %948 = vmatprep.subr.mxu0 0.0
      %949 = vmatpush1.msra.mxu0 0.0
      %950 = vmatprep.subr.mxu0 0.0
      %951 = vmatpush1.msra.mxu0 0.0
      %952 = vmatprep.subr.mxu0 0.0
      %953 = vmatpush1.msra.mxu0 0.0
      %954 = vmatprep.subr.mxu0 0.0
      %955 = vmatpush1.msra.mxu0 0.0
      %956 = vmatprep.subr.mxu0 0.0
      %957 = vmatpush1.msra.mxu0 0.0
      %958 = vmatprep.subr.mxu0 0.0
      %959 = vmatpush1.msra.mxu0 0.0
      %960 = vmatprep.subr.mxu0 0.0
      %961 = vmatpush1.msra.mxu0 0.0
      %962 = vmatprep.subr.mxu0 0.0
      %963 = vmatpush1.msra.mxu0 0.0
      %964 = vmatprep.subr.mxu0 0.0
      %965 = vmatpush1.msra.mxu0 0.0
      %966 = vmatprep.subr.mxu0 0.0
      %967 = vmatpush1.msra.mxu0 0.0
      %968 = vmatprep.subr.mxu0 0.0
      %969 = vmatpush1.msra.mxu0 0.0
      %970 = vmatprep.subr.mxu0 0.0
      %971 = vmatpush1.msra.mxu0 0.0
      %972 = vmatprep.subr.mxu0 0.0
      %973 = vmatpush1.msra.mxu0 0.0
      %974 = vmatprep.subr.mxu0 0.0
      %975 = vmatpush1.msra.mxu0 0.0
      %976 = vmatprep.subr.mxu0 0.0
      %977 = vmatpush1.msra.mxu0 0.0
      %978 = vmatprep.subr.mxu0 0.0
      %979 = vmatpush1.msra.mxu0 0.0
      %980 = vmatprep.subr.mxu0 0.0
      %981 = vmatpush1.msra.mxu0 0.0
      %982 = vmatprep.mubr.f32.mxu0 0.0
      %983 = vmatmul.mubr.f32.gmra.mrb[0].mxu0 %v916
      %v984 = vpop.f32.mrb[0].mxu0
      %v985 = vadd.f32 %v911, %v984
      %v986 = vpop.f32.mrb[0].mxu0
      %987 = vdwg.mxu0
      %v988 = vadd.f32 %v985, %v506
      %v989 = vmax.f32 %v988, 0.0
      %v991 = vcombine.high %v989, %v989
      %v993 = vunpack.c.l.s4 1966171168
      %v994 = vunpack.c.0.s8 %v993
      %v995 = vlaneseq
      %v996 = vshrl.u32 %v995, 7
      %v997 = vsub.s32 %v994, %v996
      %v998 = vrot.slane %v989, %v997
      %v1000 = vunpack.c.l.s4 1966171168
      %v1001 = vunpack.c.0.s8 %v1000
      %v1002 = vlaneseq
      %v1003 = vshrl.u32 %v1002, 7
      %v1004 = vsub.s32 %v1001, %v1003
      %v1005 = vrot.slane %v991, %v1004
      %v1006 = vcombine.high %v998, %v998
      %v1007 = vcombine.high %v1005, %v1005
      %v1009 = vunpack.c.l.s4 1966171168
      %v1010 = vunpack.c.0.s8 %v1009
      %v1011 = vlaneseq
      %v1012 = vshrl.u32 %v1011, 7
      %v1013 = vsub.s32 %v1010, %v1012
      %v1014 = vrot.slane %v998, %v1013
      %v1016 = vunpack.c.l.s4 1966171168
      %v1017 = vunpack.c.0.s8 %v1016
      %v1018 = vlaneseq
      %v1019 = vshrl.u32 %v1018, 7
      %v1020 = vsub.s32 %v1017, %v1019
      %v1021 = vrot.slane %v1005, %v1020
      %v1023 = vunpack.c.l.s4 1966171168
      %v1024 = vunpack.c.0.s8 %v1023
      %v1025 = vlaneseq
      %v1026 = vshrl.u32 %v1025, 7
      %v1027 = vsub.s32 %v1024, %v1026
      %v1028 = vrot.slane %v1006, %v1027
      %v1030 = vunpack.c.l.s4 1966171168
      %v1031 = vunpack.c.0.s8 %v1030
      %v1032 = vlaneseq
      %v1033 = vshrl.u32 %v1032, 7
      %v1034 = vsub.s32 %v1031, %v1033
      %v1035 = vrot.slane %v1007, %v1034
      %v1036 = vcombine.high %v1014, %v1014
      %v1037 = vcombine.high %v1021, %v1021
      %v1038 = vcombine.high %v1028, %v1028
      %v1039 = vcombine.high %v1035, %v1035
      %1048 = vst.msk [vmem:[%s235 + $0x1] sm:$0x1] %vm568, %v1014
      %1049 = vst.msk [vmem:[%s235 + $0x11] sm:$0x1] %vm568, %v1028
      %1050 = vst.msk [vmem:[%s235 + $0x21] sm:$0x1] %vm568, %v1036
      %1051 = vst.msk [vmem:[%s235 + $0x31] sm:$0x1] %vm568, %v1038
      %1052 = vst.msk [vmem:[%s235 + $0x41] sm:$0x1] %vm568, %v1021
      %1053 = vst.msk [vmem:[%s235 + $0x51] sm:$0x1] %vm568, %v1035
      %1054 = vst.msk [vmem:[%s235 + $0x61] sm:$0x1] %vm568, %v1037
      %1055 = vst.msk [vmem:[%s235 + $0x71] sm:$0x1] %vm568, %v1039
      %1056 = vrot.lane.b32.xlu0 %v347, 112
      %v1057 = vpop.permute.xlu0 %1056
      %v1058 = vsel %vm356, %v1057, 0
      %1060 = vmatprep.subr.mxu0 0.0
      %1061 = vmatpush1.msra.mxu0 %v354
      %1062 = vmatprep.subr.mxu0 0.0
      %1063 = vmatpush1.msra.mxu0 %v355
      %1064 = vmatprep.subr.mxu0 0.0
      %1065 = vmatpush1.msra.mxu0 0.0
      %1066 = vmatprep.subr.mxu0 0.0
      %1067 = vmatpush1.msra.mxu0 0.0
      %1068 = vmatprep.subr.mxu0 0.0
      %1069 = vmatpush1.msra.mxu0 0.0
      %1070 = vmatprep.subr.mxu0 0.0
      %1071 = vmatpush1.msra.mxu0 0.0
      %1072 = vmatprep.subr.mxu0 0.0
      %1073 = vmatpush1.msra.mxu0 0.0
      %1074 = vmatprep.subr.mxu0 0.0
      %1075 = vmatpush1.msra.mxu0 0.0
      %1076 = vmatprep.subr.mxu0 0.0
      %1077 = vmatpush1.msra.mxu0 0.0
      %1078 = vmatprep.subr.mxu0 0.0
      %1079 = vmatpush1.msra.mxu0 0.0
      %1080 = vmatprep.subr.mxu0 0.0
      %1081 = vmatpush1.msra.mxu0 0.0
      %1082 = vmatprep.subr.mxu0 0.0
      %1083 = vmatpush1.msra.mxu0 0.0
      %1084 = vmatprep.subr.mxu0 0.0
      %1085 = vmatpush1.msra.mxu0 0.0
      %1086 = vmatprep.subr.mxu0 0.0
      %1087 = vmatpush1.msra.mxu0 0.0
      %1088 = vmatprep.subr.mxu0 0.0
      %1089 = vmatpush1.msra.mxu0 0.0
      %1090 = vmatprep.subr.mxu0 0.0
      %1091 = vmatpush1.msra.mxu0 0.0
      %1092 = vmatprep.subr.mxu0 0.0
      %1093 = vmatpush1.msra.mxu0 0.0
      %1094 = vmatprep.subr.mxu0 0.0
      %1095 = vmatpush1.msra.mxu0 0.0
      %1096 = vmatprep.subr.mxu0 0.0
      %1097 = vmatpush1.msra.mxu0 0.0
      %1098 = vmatprep.subr.mxu0 0.0
      %1099 = vmatpush1.msra.mxu0 0.0
      %1100 = vmatprep.subr.mxu0 0.0
      %1101 = vmatpush1.msra.mxu0 0.0
      %1102 = vmatprep.subr.mxu0 0.0
      %1103 = vmatpush1.msra.mxu0 0.0
      %1104 = vmatprep.subr.mxu0 0.0
      %1105 = vmatpush1.msra.mxu0 0.0
      %1106 = vmatprep.subr.mxu0 0.0
      %1107 = vmatpush1.msra.mxu0 0.0
      %1108 = vmatprep.subr.mxu0 0.0
      %1109 = vmatpush1.msra.mxu0 0.0
      %1110 = vmatprep.subr.mxu0 0.0
      %1111 = vmatpush1.msra.mxu0 0.0
      %1112 = vmatprep.subr.mxu0 0.0
      %1113 = vmatpush1.msra.mxu0 0.0
      %1114 = vmatprep.subr.mxu0 0.0
      %1115 = vmatpush1.msra.mxu0 0.0
      %1116 = vmatprep.subr.mxu0 0.0
      %1117 = vmatpush1.msra.mxu0 0.0
      %1118 = vmatprep.subr.mxu0 0.0
      %1119 = vmatpush1.msra.mxu0 0.0
      %1120 = vmatprep.subr.mxu0 0.0
      %1121 = vmatpush1.msra.mxu0 0.0
      %1122 = vmatprep.subr.mxu0 0.0
      %1123 = vmatpush1.msra.mxu0 0.0
      %1124 = vmatprep.mubr.f32.mxu0 0.0
      %1125 = vmatmul.mubr.f32.gmra.mrb[0].mxu0 %v1058
      %v1126 = vpop.f32.mrb[0].mxu0
      %v1127 = vadd.f32 0.0, %v1126
      %v1128 = vpop.f32.mrb[0].mxu0
      %1129 = vdwg.mxu0
      %1130 = vrot.lane.b32.xlu0 %v341, 112
      %v1131 = vpop.permute.xlu0 %1130
      %v1132 = vsel %vm356, %v1131, 0
      %1134 = vmatprep.subr.mxu0 0.0
      %1135 = vmatpush1.msra.mxu0 %v352
      %1136 = vmatprep.subr.mxu0 0.0
      %1137 = vmatpush1.msra.mxu0 %v353
      %1138 = vmatprep.subr.mxu0 0.0
      %1139 = vmatpush1.msra.mxu0 0.0
      %1140 = vmatprep.subr.mxu0 0.0
      %1141 = vmatpush1.msra.mxu0 0.0
      %1142 = vmatprep.subr.mxu0 0.0
      %1143 = vmatpush1.msra.mxu0 0.0
      %1144 = vmatprep.subr.mxu0 0.0
      %1145 = vmatpush1.msra.mxu0 0.0
      %1146 = vmatprep.subr.mxu0 0.0
      %1147 = vmatpush1.msra.mxu0 0.0
      %1148 = vmatprep.subr.mxu0 0.0
      %1149 = vmatpush1.msra.mxu0 0.0
      %1150 = vmatprep.subr.mxu0 0.0
      %1151 = vmatpush1.msra.mxu0 0.0
      %1152 = vmatprep.subr.mxu0 0.0
      %1153 = vmatpush1.msra.mxu0 0.0
      %1154 = vmatprep.subr.mxu0 0.0
      %1155 = vmatpush1.msra.mxu0 0.0
      %1156 = vmatprep.subr.mxu0 0.0
      %1157 = vmatpush1.msra.mxu0 0.0
      %1158 = vmatprep.subr.mxu0 0.0
      %1159 = vmatpush1.msra.mxu0 0.0
      %1160 = vmatprep.subr.mxu0 0.0
      %1161 = vmatpush1.msra.mxu0 0.0
      %1162 = vmatprep.subr.mxu0 0.0
      %1163 = vmatpush1.msra.mxu0 0.0
      %1164 = vmatprep.subr.mxu0 0.0
      %1165 = vmatpush1.msra.mxu0 0.0
      %1166 = vmatprep.subr.mxu0 0.0
      %1167 = vmatpush1.msra.mxu0 0.0
      %1168 = vmatprep.subr.mxu0 0.0
      %1169 = vmatpush1.msra.mxu0 0.0
      %1170 = vmatprep.subr.mxu0 0.0
      %1171 = vmatpush1.msra.mxu0 0.0
      %1172 = vmatprep.subr.mxu0 0.0
      %1173 = vmatpush1.msra.mxu0 0.0
      %1174 = vmatprep.subr.mxu0 0.0
      %1175 = vmatpush1.msra.mxu0 0.0
      %1176 = vmatprep.subr.mxu0 0.0
      %1177 = vmatpush1.msra.mxu0 0.0
      %1178 = vmatprep.subr.mxu0 0.0
      %1179 = vmatpush1.msra.mxu0 0.0
      %1180 = vmatprep.subr.mxu0 0.0
      %1181 = vmatpush1.msra.mxu0 0.0
      %1182 = vmatprep.subr.mxu0 0.0
      %1183 = vmatpush1.msra.mxu0 0.0
      %1184 = vmatprep.subr.mxu0 0.0
      %1185 = vmatpush1.msra.mxu0 0.0
      %1186 = vmatprep.subr.mxu0 0.0
      %1187 = vmatpush1.msra.mxu0 0.0
      %1188 = vmatprep.subr.mxu0 0.0
      %1189 = vmatpush1.msra.mxu0 0.0
      %1190 = vmatprep.subr.mxu0 0.0
      %1191 = vmatpush1.msra.mxu0 0.0
      %1192 = vmatprep.subr.mxu0 0.0
      %1193 = vmatpush1.msra.mxu0 0.0
      %1194 = vmatprep.subr.mxu0 0.0
      %1195 = vmatpush1.msra.mxu0 0.0
      %1196 = vmatprep.subr.mxu0 0.0
      %1197 = vmatpush1.msra.mxu0 0.0
      %1198 = vmatprep.mubr.f32.mxu0 0.0
      %1199 = vmatmul.mubr.f32.gmra.mrb[0].mxu0 %v1132
      %v1200 = vpop.f32.mrb[0].mxu0
      %v1201 = vadd.f32 %v1127, %v1200
      %v1202 = vpop.f32.mrb[0].mxu0
      %1203 = vdwg.mxu0
      %v1204 = vadd.f32 %v1201, %v506
      %v1205 = vmax.f32 %v1204, 0.0
      %v1207 = vcombine.high %v1205, %v1205
      %v1209 = vunpack.c.l.s4 1966171168
      %v1210 = vunpack.c.0.s8 %v1209
      %v1211 = vlaneseq
      %v1212 = vshrl.u32 %v1211, 7
      %v1213 = vsub.s32 %v1210, %v1212
      %v1214 = vrot.slane %v1205, %v1213
      %v1216 = vunpack.c.l.s4 1966171168
      %v1217 = vunpack.c.0.s8 %v1216
      %v1218 = vlaneseq
      %v1219 = vshrl.u32 %v1218, 7
      %v1220 = vsub.s32 %v1217, %v1219
      %v1221 = vrot.slane %v1207, %v1220
      %v1222 = vcombine.high %v1214, %v1214
      %v1223 = vcombine.high %v1221, %v1221
      %v1225 = vunpack.c.l.s4 1966171168
      %v1226 = vunpack.c.0.s8 %v1225
      %v1227 = vlaneseq
      %v1228 = vshrl.u32 %v1227, 7
      %v1229 = vsub.s32 %v1226, %v1228
      %v1230 = vrot.slane %v1214, %v1229
      %v1232 = vunpack.c.l.s4 1966171168
      %v1233 = vunpack.c.0.s8 %v1232
      %v1234 = vlaneseq
      %v1235 = vshrl.u32 %v1234, 7
      %v1236 = vsub.s32 %v1233, %v1235
      %v1237 = vrot.slane %v1221, %v1236
      %v1239 = vunpack.c.l.s4 1966171168
      %v1240 = vunpack.c.0.s8 %v1239
      %v1241 = vlaneseq
      %v1242 = vshrl.u32 %v1241, 7
      %v1243 = vsub.s32 %v1240, %v1242
      %v1244 = vrot.slane %v1222, %v1243
      %v1246 = vunpack.c.l.s4 1966171168
      %v1247 = vunpack.c.0.s8 %v1246
      %v1248 = vlaneseq
      %v1249 = vshrl.u32 %v1248, 7
      %v1250 = vsub.s32 %v1247, %v1249
      %v1251 = vrot.slane %v1223, %v1250
      %v1252 = vcombine.high %v1230, %v1230
      %v1253 = vcombine.high %v1237, %v1237
      %v1254 = vcombine.high %v1244, %v1244
      %v1255 = vcombine.high %v1251, %v1251
      %v1256 = vlaneseq
      %v1257 = vshrl.u32 %v1256, 7
      %v1258 = vsub.s32 0, %v1257
      %v1259 = vrot.slane %v1230, %v1258
      %v1260 = vlaneseq
      %v1261 = vshrl.u32 %v1260, 7
      %v1262 = vsub.s32 0, %v1261
      %v1263 = vrot.slane %v1244, %v1262
      %v1264 = vlaneseq
      %v1265 = vshrl.u32 %v1264, 7
      %v1266 = vsub.s32 0, %v1265
      %v1267 = vrot.slane %v1252, %v1266
      %v1268 = vlaneseq
      %v1269 = vshrl.u32 %v1268, 7
      %v1270 = vsub.s32 0, %v1269
      %v1271 = vrot.slane %v1254, %v1270
      %v1272 = vlaneseq
      %v1273 = vshrl.u32 %v1272, 7
      %v1274 = vsub.s32 0, %v1273
      %v1275 = vrot.slane %v1237, %v1274
      %v1276 = vlaneseq
      %v1277 = vshrl.u32 %v1276, 7
      %v1278 = vsub.s32 0, %v1277
      %v1279 = vrot.slane %v1251, %v1278
      %v1280 = vlaneseq
      %v1281 = vshrl.u32 %v1280, 7
      %v1282 = vsub.s32 0, %v1281
      %v1283 = vrot.slane %v1253, %v1282
      %v1284 = vlaneseq
      %v1285 = vshrl.u32 %v1284, 7
      %v1286 = vsub.s32 0, %v1285
      %v1287 = vrot.slane %v1255, %v1286
      %1288 = vrot.lane.b32.xlu0 %v1259, 32
      %v1289 = vpop.permute.xlu0 %1288
      %1290 = vrot.lane.b32.xlu0 %v1263, 32
      %v1291 = vpop.permute.xlu0 %1290
      %1292 = vrot.lane.b32.xlu0 %v1267, 32
      %v1293 = vpop.permute.xlu0 %1292
      %1294 = vrot.lane.b32.xlu0 %v1271, 32
      %v1295 = vpop.permute.xlu0 %1294
      %1296 = vrot.lane.b32.xlu0 %v1275, 32
      %v1297 = vpop.permute.xlu0 %1296
      %1298 = vrot.lane.b32.xlu0 %v1279, 32
      %v1299 = vpop.permute.xlu0 %1298
      %1300 = vrot.lane.b32.xlu0 %v1283, 32
      %v1301 = vpop.permute.xlu0 %1300
      %1302 = vrot.lane.b32.xlu0 %v1287, 32
      %v1303 = vpop.permute.xlu0 %1302
      %1312 = vst.msk [vmem:[%s235 + $0x1] sm:$0x1] %vm831, %v1289
      %1313 = vst.msk [vmem:[%s235 + $0x11] sm:$0x1] %vm831, %v1291
      %1314 = vst.msk [vmem:[%s235 + $0x21] sm:$0x1] %vm831, %v1293
      %1315 = vst.msk [vmem:[%s235 + $0x31] sm:$0x1] %vm831, %v1295
      %1316 = vst.msk [vmem:[%s235 + $0x41] sm:$0x1] %vm831, %v1297
      %1317 = vst.msk [vmem:[%s235 + $0x51] sm:$0x1] %vm831, %v1299
      %1318 = vst.msk [vmem:[%s235 + $0x61] sm:$0x1] %vm831, %v1301
      %1319 = vst.msk [vmem:[%s235 + $0x71] sm:$0x1] %vm831, %v1303
      %1320 = vrot.lane.b32.xlu0 %v335, 96
      %v1321 = vpop.permute.xlu0 %1320
      %v1322 = vsel %vm356, %v1321, 0
      %1324 = vmatprep.subr.mxu0 0.0
      %1325 = vmatpush1.msra.mxu0 %v354
      %1326 = vmatprep.subr.mxu0 0.0
      %1327 = vmatpush1.msra.mxu0 %v355
      %1328 = vmatprep.subr.mxu0 0.0
      %1329 = vmatpush1.msra.mxu0 0.0
      %1330 = vmatprep.subr.mxu0 0.0
      %1331 = vmatpush1.msra.mxu0 0.0
      %1332 = vmatprep.subr.mxu0 0.0
      %1333 = vmatpush1.msra.mxu0 0.0
      %1334 = vmatprep.subr.mxu0 0.0
      %1335 = vmatpush1.msra.mxu0 0.0
      %1336 = vmatprep.subr.mxu0 0.0
      %1337 = vmatpush1.msra.mxu0 0.0
      %1338 = vmatprep.subr.mxu0 0.0
      %1339 = vmatpush1.msra.mxu0 0.0
      %1340 = vmatprep.subr.mxu0 0.0
      %1341 = vmatpush1.msra.mxu0 0.0
      %1342 = vmatprep.subr.mxu0 0.0
      %1343 = vmatpush1.msra.mxu0 0.0
      %1344 = vmatprep.subr.mxu0 0.0
      %1345 = vmatpush1.msra.mxu0 0.0
      %1346 = vmatprep.subr.mxu0 0.0
      %1347 = vmatpush1.msra.mxu0 0.0
      %1348 = vmatprep.subr.mxu0 0.0
      %1349 = vmatpush1.msra.mxu0 0.0
      %1350 = vmatprep.subr.mxu0 0.0
      %1351 = vmatpush1.msra.mxu0 0.0
      %1352 = vmatprep.subr.mxu0 0.0
      %1353 = vmatpush1.msra.mxu0 0.0
      %1354 = vmatprep.subr.mxu0 0.0
      %1355 = vmatpush1.msra.mxu0 0.0
      %1356 = vmatprep.subr.mxu0 0.0
      %1357 = vmatpush1.msra.mxu0 0.0
      %1358 = vmatprep.subr.mxu0 0.0
      %1359 = vmatpush1.msra.mxu0 0.0
      %1360 = vmatprep.subr.mxu0 0.0
      %1361 = vmatpush1.msra.mxu0 0.0
      %1362 = vmatprep.subr.mxu0 0.0
      %1363 = vmatpush1.msra.mxu0 0.0
      %1364 = vmatprep.subr.mxu0 0.0
      %1365 = vmatpush1.msra.mxu0 0.0
      %1366 = vmatprep.subr.mxu0 0.0
      %1367 = vmatpush1.msra.mxu0 0.0
      %1368 = vmatprep.subr.mxu0 0.0
      %1369 = vmatpush1.msra.mxu0 0.0
      %1370 = vmatprep.subr.mxu0 0.0
      %1371 = vmatpush1.msra.mxu0 0.0
      %1372 = vmatprep.subr.mxu0 0.0
      %1373 = vmatpush1.msra.mxu0 0.0
      %1374 = vmatprep.subr.mxu0 0.0
      %1375 = vmatpush1.msra.mxu0 0.0
      %1376 = vmatprep.subr.mxu0 0.0
      %1377 = vmatpush1.msra.mxu0 0.0
      %1378 = vmatprep.subr.mxu0 0.0
      %1379 = vmatpush1.msra.mxu0 0.0
      %1380 = vmatprep.subr.mxu0 0.0
      %1381 = vmatpush1.msra.mxu0 0.0
      %1382 = vmatprep.subr.mxu0 0.0
      %1383 = vmatpush1.msra.mxu0 0.0
      %1384 = vmatprep.subr.mxu0 0.0
      %1385 = vmatpush1.msra.mxu0 0.0
      %1386 = vmatprep.subr.mxu0 0.0
      %1387 = vmatpush1.msra.mxu0 0.0
      %1388 = vmatprep.mubr.f32.mxu0 0.0
      %1389 = vmatmul.mubr.f32.gmra.mrb[0].mxu0 %v1322
      %v1390 = vpop.f32.mrb[0].mxu0
      %v1391 = vadd.f32 0.0, %v1390
      %v1392 = vpop.f32.mrb[0].mxu0
      %1393 = vdwg.mxu0
      %1394 = vrot.lane.b32.xlu0 %v329, 96
      %v1395 = vpop.permute.xlu0 %1394
      %v1396 = vsel %vm356, %v1395, 0
      %1398 = vmatprep.subr.mxu0 0.0
      %1399 = vmatpush1.msra.mxu0 %v352
      %1400 = vmatprep.subr.mxu0 0.0
      %1401 = vmatpush1.msra.mxu0 %v353
      %1402 = vmatprep.subr.mxu0 0.0
      %1403 = vmatpush1.msra.mxu0 0.0
      %1404 = vmatprep.subr.mxu0 0.0
      %1405 = vmatpush1.msra.mxu0 0.0
      %1406 = vmatprep.subr.mxu0 0.0
      %1407 = vmatpush1.msra.mxu0 0.0
      %1408 = vmatprep.subr.mxu0 0.0
      %1409 = vmatpush1.msra.mxu0 0.0
      %1410 = vmatprep.subr.mxu0 0.0
      %1411 = vmatpush1.msra.mxu0 0.0
      %1412 = vmatprep.subr.mxu0 0.0
      %1413 = vmatpush1.msra.mxu0 0.0
      %1414 = vmatprep.subr.mxu0 0.0
      %1415 = vmatpush1.msra.mxu0 0.0
      %1416 = vmatprep.subr.mxu0 0.0
      %1417 = vmatpush1.msra.mxu0 0.0
      %1418 = vmatprep.subr.mxu0 0.0
      %1419 = vmatpush1.msra.mxu0 0.0
      %1420 = vmatprep.subr.mxu0 0.0
      %1421 = vmatpush1.msra.mxu0 0.0
      %1422 = vmatprep.subr.mxu0 0.0
      %1423 = vmatpush1.msra.mxu0 0.0
      %1424 = vmatprep.subr.mxu0 0.0
      %1425 = vmatpush1.msra.mxu0 0.0
      %1426 = vmatprep.subr.mxu0 0.0
      %1427 = vmatpush1.msra.mxu0 0.0
      %1428 = vmatprep.subr.mxu0 0.0
      %1429 = vmatpush1.msra.mxu0 0.0
      %1430 = vmatprep.subr.mxu0 0.0
      %1431 = vmatpush1.msra.mxu0 0.0
      %1432 = vmatprep.subr.mxu0 0.0
      %1433 = vmatpush1.msra.mxu0 0.0
      %1434 = vmatprep.subr.mxu0 0.0
      %1435 = vmatpush1.msra.mxu0 0.0
      %1436 = vmatprep.subr.mxu0 0.0
      %1437 = vmatpush1.msra.mxu0 0.0
      %1438 = vmatprep.subr.mxu0 0.0
      %1439 = vmatpush1.msra.mxu0 0.0
      %1440 = vmatprep.subr.mxu0 0.0
      %1441 = vmatpush1.msra.mxu0 0.0
      %1442 = vmatprep.subr.mxu0 0.0
      %1443 = vmatpush1.msra.mxu0 0.0
      %1444 = vmatprep.subr.mxu0 0.0
      %1445 = vmatpush1.msra.mxu0 0.0
      %1446 = vmatprep.subr.mxu0 0.0
      %1447 = vmatpush1.msra.mxu0 0.0
      %1448 = vmatprep.subr.mxu0 0.0
      %1449 = vmatpush1.msra.mxu0 0.0
      %1450 = vmatprep.subr.mxu0 0.0
      %1451 = vmatpush1.msra.mxu0 0.0
      %1452 = vmatprep.subr.mxu0 0.0
      %1453 = vmatpush1.msra.mxu0 0.0
      %1454 = vmatprep.subr.mxu0 0.0
      %1455 = vmatpush1.msra.mxu0 0.0
      %1456 = vmatprep.subr.mxu0 0.0
      %1457 = vmatpush1.msra.mxu0 0.0
      %1458 = vmatprep.subr.mxu0 0.0
      %1459 = vmatpush1.msra.mxu0 0.0
      %1460 = vmatprep.subr.mxu0 0.0
      %1461 = vmatpush1.msra.mxu0 0.0
      %1462 = vmatprep.mubr.f32.mxu0 0.0
      %1463 = vmatmul.mubr.f32.gmra.mrb[0].mxu0 %v1396
      %v1464 = vpop.f32.mrb[0].mxu0
      %v1465 = vadd.f32 %v1391, %v1464
      %v1466 = vpop.f32.mrb[0].mxu0
      %1467 = vdwg.mxu0
      %v1468 = vadd.f32 %v1465, %v506
      %v1469 = vmax.f32 %v1468, 0.0
      %v1471 = vcombine.high %v1469, %v1469
      %v1473 = vunpack.c.l.s4 1966171168
      %v1474 = vunpack.c.0.s8 %v1473
      %v1475 = vlaneseq
      %v1476 = vshrl.u32 %v1475, 7
      %v1477 = vsub.s32 %v1474, %v1476
      %v1478 = vrot.slane %v1469, %v1477
      %v1480 = vunpack.c.l.s4 1966171168
      %v1481 = vunpack.c.0.s8 %v1480
      %v1482 = vlaneseq
      %v1483 = vshrl.u32 %v1482, 7
      %v1484 = vsub.s32 %v1481, %v1483
      %v1485 = vrot.slane %v1471, %v1484
      %v1486 = vcombine.high %v1478, %v1478
      %v1487 = vcombine.high %v1485, %v1485
      %v1489 = vunpack.c.l.s4 1966171168
      %v1490 = vunpack.c.0.s8 %v1489
      %v1491 = vlaneseq
      %v1492 = vshrl.u32 %v1491, 7
      %v1493 = vsub.s32 %v1490, %v1492
      %v1494 = vrot.slane %v1478, %v1493
      %v1496 = vunpack.c.l.s4 1966171168
      %v1497 = vunpack.c.0.s8 %v1496
      %v1498 = vlaneseq
      %v1499 = vshrl.u32 %v1498, 7
      %v1500 = vsub.s32 %v1497, %v1499
      %v1501 = vrot.slane %v1485, %v1500
      %v1503 = vunpack.c.l.s4 1966171168
      %v1504 = vunpack.c.0.s8 %v1503
      %v1505 = vlaneseq
      %v1506 = vshrl.u32 %v1505, 7
      %v1507 = vsub.s32 %v1504, %v1506
      %v1508 = vrot.slane %v1486, %v1507
      %v1510 = vunpack.c.l.s4 1966171168
      %v1511 = vunpack.c.0.s8 %v1510
      %v1512 = vlaneseq
      %v1513 = vshrl.u32 %v1512, 7
      %v1514 = vsub.s32 %v1511, %v1513
      %v1515 = vrot.slane %v1487, %v1514
      %v1516 = vcombine.high %v1494, %v1494
      %v1517 = vcombine.high %v1501, %v1501
      %v1518 = vcombine.high %v1508, %v1508
      %v1519 = vcombine.high %v1515, %v1515
      %1528 = vst.msk [vmem:[%s235 + $0x2] sm:$0x1] %vm568, %v1494
      %1529 = vst.msk [vmem:[%s235 + $0x12] sm:$0x1] %vm568, %v1508
      %1530 = vst.msk [vmem:[%s235 + $0x22] sm:$0x1] %vm568, %v1516
      %1531 = vst.msk [vmem:[%s235 + $0x32] sm:$0x1] %vm568, %v1518
      %1532 = vst.msk [vmem:[%s235 + $0x42] sm:$0x1] %vm568, %v1501
      %1533 = vst.msk [vmem:[%s235 + $0x52] sm:$0x1] %vm568, %v1515
      %1534 = vst.msk [vmem:[%s235 + $0x62] sm:$0x1] %vm568, %v1517
      %1535 = vst.msk [vmem:[%s235 + $0x72] sm:$0x1] %vm568, %v1519
      %1536 = vrot.lane.b32.xlu0 %v347, 96
      %v1537 = vpop.permute.xlu0 %1536
      %v1538 = vsel %vm356, %v1537, 0
      %1540 = vmatprep.subr.mxu0 0.0
      %1541 = vmatpush1.msra.mxu0 %v354
      %1542 = vmatprep.subr.mxu0 0.0
      %1543 = vmatpush1.msra.mxu0 %v355
      %1544 = vmatprep.subr.mxu0 0.0
      %1545 = vmatpush1.msra.mxu0 0.0
      %1546 = vmatprep.subr.mxu0 0.0
      %1547 = vmatpush1.msra.mxu0 0.0
      %1548 = vmatprep.subr.mxu0 0.0
      %1549 = vmatpush1.msra.mxu0 0.0
      %1550 = vmatprep.subr.mxu0 0.0
      %1551 = vmatpush1.msra.mxu0 0.0
      %1552 = vmatprep.subr.mxu0 0.0
      %1553 = vmatpush1.msra.mxu0 0.0
      %1554 = vmatprep.subr.mxu0 0.0
      %1555 = vmatpush1.msra.mxu0 0.0
      %1556 = vmatprep.subr.mxu0 0.0
      %1557 = vmatpush1.msra.mxu0 0.0
      %1558 = vmatprep.subr.mxu0 0.0
      %1559 = vmatpush1.msra.mxu0 0.0
      %1560 = vmatprep.subr.mxu0 0.0
      %1561 = vmatpush1.msra.mxu0 0.0
      %1562 = vmatprep.subr.mxu0 0.0
      %1563 = vmatpush1.msra.mxu0 0.0
      %1564 = vmatprep.subr.mxu0 0.0
      %1565 = vmatpush1.msra.mxu0 0.0
      %1566 = vmatprep.subr.mxu0 0.0
      %1567 = vmatpush1.msra.mxu0 0.0
      %1568 = vmatprep.subr.mxu0 0.0
      %1569 = vmatpush1.msra.mxu0 0.0
      %1570 = vmatprep.subr.mxu0 0.0
      %1571 = vmatpush1.msra.mxu0 0.0
      %1572 = vmatprep.subr.mxu0 0.0
      %1573 = vmatpush1.msra.mxu0 0.0
      %1574 = vmatprep.subr.mxu0 0.0
      %1575 = vmatpush1.msra.mxu0 0.0
      %1576 = vmatprep.subr.mxu0 0.0
      %1577 = vmatpush1.msra.mxu0 0.0
      %1578 = vmatprep.subr.mxu0 0.0
      %1579 = vmatpush1.msra.mxu0 0.0
      %1580 = vmatprep.subr.mxu0 0.0
      %1581 = vmatpush1.msra.mxu0 0.0
      %1582 = vmatprep.subr.mxu0 0.0
      %1583 = vmatpush1.msra.mxu0 0.0
      %1584 = vmatprep.subr.mxu0 0.0
      %1585 = vmatpush1.msra.mxu0 0.0
      %1586 = vmatprep.subr.mxu0 0.0
      %1587 = vmatpush1.msra.mxu0 0.0
      %1588 = vmatprep.subr.mxu0 0.0
      %1589 = vmatpush1.msra.mxu0 0.0
      %1590 = vmatprep.subr.mxu0 0.0
      %1591 = vmatpush1.msra.mxu0 0.0
      %1592 = vmatprep.subr.mxu0 0.0
      %1593 = vmatpush1.msra.mxu0 0.0
      %1594 = vmatprep.subr.mxu0 0.0
      %1595 = vmatpush1.msra.mxu0 0.0
      %1596 = vmatprep.subr.mxu0 0.0
      %1597 = vmatpush1.msra.mxu0 0.0
      %1598 = vmatprep.subr.mxu0 0.0
      %1599 = vmatpush1.msra.mxu0 0.0
      %1600 = vmatprep.subr.mxu0 0.0
      %1601 = vmatpush1.msra.mxu0 0.0
      %1602 = vmatprep.subr.mxu0 0.0
      %1603 = vmatpush1.msra.mxu0 0.0
      %1604 = vmatprep.mubr.f32.mxu0 0.0
      %1605 = vmatmul.mubr.f32.gmra.mrb[0].mxu0 %v1538
      %v1606 = vpop.f32.mrb[0].mxu0
      %v1607 = vadd.f32 0.0, %v1606
      %v1608 = vpop.f32.mrb[0].mxu0
      %1609 = vdwg.mxu0
      %1610 = vrot.lane.b32.xlu0 %v341, 96
      %v1611 = vpop.permute.xlu0 %1610
      %v1612 = vsel %vm356, %v1611, 0
      %1614 = vmatprep.subr.mxu0 0.0
      %1615 = vmatpush1.msra.mxu0 %v352
      %1616 = vmatprep.subr.mxu0 0.0
      %1617 = vmatpush1.msra.mxu0 %v353
      %1618 = vmatprep.subr.mxu0 0.0
      %1619 = vmatpush1.msra.mxu0 0.0
      %1620 = vmatprep.subr.mxu0 0.0
      %1621 = vmatpush1.msra.mxu0 0.0
      %1622 = vmatprep.subr.mxu0 0.0
      %1623 = vmatpush1.msra.mxu0 0.0
      %1624 = vmatprep.subr.mxu0 0.0
      %1625 = vmatpush1.msra.mxu0 0.0
      %1626 = vmatprep.subr.mxu0 0.0
      %1627 = vmatpush1.msra.mxu0 0.0
      %1628 = vmatprep.subr.mxu0 0.0
      %1629 = vmatpush1.msra.mxu0 0.0
      %1630 = vmatprep.subr.mxu0 0.0
      %1631 = vmatpush1.msra.mxu0 0.0
      %1632 = vmatprep.subr.mxu0 0.0
      %1633 = vmatpush1.msra.mxu0 0.0
      %1634 = vmatprep.subr.mxu0 0.0
      %1635 = vmatpush1.msra.mxu0 0.0
      %1636 = vmatprep.subr.mxu0 0.0
      %1637 = vmatpush1.msra.mxu0 0.0
      %1638 = vmatprep.subr.mxu0 0.0
      %1639 = vmatpush1.msra.mxu0 0.0
      %1640 = vmatprep.subr.mxu0 0.0
      %1641 = vmatpush1.msra.mxu0 0.0
      %1642 = vmatprep.subr.mxu0 0.0
      %1643 = vmatpush1.msra.mxu0 0.0
      %1644 = vmatprep.subr.mxu0 0.0
      %1645 = vmatpush1.msra.mxu0 0.0
      %1646 = vmatprep.subr.mxu0 0.0
      %1647 = vmatpush1.msra.mxu0 0.0
      %1648 = vmatprep.subr.mxu0 0.0
      %1649 = vmatpush1.msra.mxu0 0.0
      %1650 = vmatprep.subr.mxu0 0.0
      %1651 = vmatpush1.msra.mxu0 0.0
      %1652 = vmatprep.subr.mxu0 0.0
      %1653 = vmatpush1.msra.mxu0 0.0
      %1654 = vmatprep.subr.mxu0 0.0
      %1655 = vmatpush1.msra.mxu0 0.0
      %1656 = vmatprep.subr.mxu0 0.0
      %1657 = vmatpush1.msra.mxu0 0.0
      %1658 = vmatprep.subr.mxu0 0.0
      %1659 = vmatpush1.msra.mxu0 0.0
      %1660 = vmatprep.subr.mxu0 0.0
      %1661 = vmatpush1.msra.mxu0 0.0
      %1662 = vmatprep.subr.mxu0 0.0
      %1663 = vmatpush1.msra.mxu0 0.0
      %1664 = vmatprep.subr.mxu0 0.0
      %1665 = vmatpush1.msra.mxu0 0.0
      %1666 = vmatprep.subr.mxu0 0.0
      %1667 = vmatpush1.msra.mxu0 0.0
      %1668 = vmatprep.subr.mxu0 0.0
      %1669 = vmatpush1.msra.mxu0 0.0
      %1670 = vmatprep.subr.mxu0 0.0
      %1671 = vmatpush1.msra.mxu0 0.0
      %1672 = vmatprep.subr.mxu0 0.0
      %1673 = vmatpush1.msra.mxu0 0.0
      %1674 = vmatprep.subr.mxu0 0.0
      %1675 = vmatpush1.msra.mxu0 0.0
      %1676 = vmatprep.subr.mxu0 0.0
      %1677 = vmatpush1.msra.mxu0 0.0
      %1678 = vmatprep.mubr.f32.mxu0 0.0
      %1679 = vmatmul.mubr.f32.gmra.mrb[0].mxu0 %v1612
      %v1680 = vpop.f32.mrb[0].mxu0
      %v1681 = vadd.f32 %v1607, %v1680
      %v1682 = vpop.f32.mrb[0].mxu0
      %1683 = vdwg.mxu0
      %v1684 = vadd.f32 %v1681, %v506
      %v1685 = vmax.f32 %v1684, 0.0
      %v1687 = vcombine.high %v1685, %v1685
      %v1689 = vunpack.c.l.s4 1966171168
      %v1690 = vunpack.c.0.s8 %v1689
      %v1691 = vlaneseq
      %v1692 = vshrl.u32 %v1691, 7
      %v1693 = vsub.s32 %v1690, %v1692
      %v1694 = vrot.slane %v1685, %v1693
      %v1696 = vunpack.c.l.s4 1966171168
      %v1697 = vunpack.c.0.s8 %v1696
      %v1698 = vlaneseq
      %v1699 = vshrl.u32 %v1698, 7
      %v1700 = vsub.s32 %v1697, %v1699
      %v1701 = vrot.slane %v1687, %v1700
      %v1702 = vcombine.high %v1694, %v1694
      %v1703 = vcombine.high %v1701, %v1701
      %v1705 = vunpack.c.l.s4 1966171168
      %v1706 = vunpack.c.0.s8 %v1705
      %v1707 = vlaneseq
      %v1708 = vshrl.u32 %v1707, 7
      %v1709 = vsub.s32 %v1706, %v1708
      %v1710 = vrot.slane %v1694, %v1709
      %v1712 = vunpack.c.l.s4 1966171168
      %v1713 = vunpack.c.0.s8 %v1712
      %v1714 = vlaneseq
      %v1715 = vshrl.u32 %v1714, 7
      %v1716 = vsub.s32 %v1713, %v1715
      %v1717 = vrot.slane %v1701, %v1716
      %v1719 = vunpack.c.l.s4 1966171168
      %v1720 = vunpack.c.0.s8 %v1719
      %v1721 = vlaneseq
      %v1722 = vshrl.u32 %v1721, 7
      %v1723 = vsub.s32 %v1720, %v1722
      %v1724 = vrot.slane %v1702, %v1723
      %v1726 = vunpack.c.l.s4 1966171168
      %v1727 = vunpack.c.0.s8 %v1726
      %v1728 = vlaneseq
      %v1729 = vshrl.u32 %v1728, 7
      %v1730 = vsub.s32 %v1727, %v1729
      %v1731 = vrot.slane %v1703, %v1730
      %v1732 = vcombine.high %v1710, %v1710
      %v1733 = vcombine.high %v1717, %v1717
      %v1734 = vcombine.high %v1724, %v1724
      %v1735 = vcombine.high %v1731, %v1731
      %v1736 = vlaneseq
      %v1737 = vshrl.u32 %v1736, 7
      %v1738 = vsub.s32 0, %v1737
      %v1739 = vrot.slane %v1710, %v1738
      %v1740 = vlaneseq
      %v1741 = vshrl.u32 %v1740, 7
      %v1742 = vsub.s32 0, %v1741
      %v1743 = vrot.slane %v1724, %v1742
      %v1744 = vlaneseq
      %v1745 = vshrl.u32 %v1744, 7
      %v1746 = vsub.s32 0, %v1745
      %v1747 = vrot.slane %v1732, %v1746
      %v1748 = vlaneseq
      %v1749 = vshrl.u32 %v1748, 7
      %v1750 = vsub.s32 0, %v1749
      %v1751 = vrot.slane %v1734, %v1750
      %v1752 = vlaneseq
      %v1753 = vshrl.u32 %v1752, 7
      %v1754 = vsub.s32 0, %v1753
      %v1755 = vrot.slane %v1717, %v1754
      %v1756 = vlaneseq
      %v1757 = vshrl.u32 %v1756, 7
      %v1758 = vsub.s32 0, %v1757
      %v1759 = vrot.slane %v1731, %v1758
      %v1760 = vlaneseq
      %v1761 = vshrl.u32 %v1760, 7
      %v1762 = vsub.s32 0, %v1761
      %v1763 = vrot.slane %v1733, %v1762
      %v1764 = vlaneseq
      %v1765 = vshrl.u32 %v1764, 7
      %v1766 = vsub.s32 0, %v1765
      %v1767 = vrot.slane %v1735, %v1766
      %1768 = vrot.lane.b32.xlu0 %v1739, 32
      %v1769 = vpop.permute.xlu0 %1768
      %1770 = vrot.lane.b32.xlu0 %v1743, 32
      %v1771 = vpop.permute.xlu0 %1770
      %1772 = vrot.lane.b32.xlu0 %v1747, 32
      %v1773 = vpop.permute.xlu0 %1772
      %1774 = vrot.lane.b32.xlu0 %v1751, 32
      %v1775 = vpop.permute.xlu0 %1774
      %1776 = vrot.lane.b32.xlu0 %v1755, 32
      %v1777 = vpop.permute.xlu0 %1776
      %1778 = vrot.lane.b32.xlu0 %v1759, 32
      %v1779 = vpop.permute.xlu0 %1778
      %1780 = vrot.lane.b32.xlu0 %v1763, 32
      %v1781 = vpop.permute.xlu0 %1780
      %1782 = vrot.lane.b32.xlu0 %v1767, 32
      %v1783 = vpop.permute.xlu0 %1782
      %1792 = vst.msk [vmem:[%s235 + $0x2] sm:$0x1] %vm831, %v1769
      %1793 = vst.msk [vmem:[%s235 + $0x12] sm:$0x1] %vm831, %v1771
      %1794 = vst.msk [vmem:[%s235 + $0x22] sm:$0x1] %vm831, %v1773
      %1795 = vst.msk [vmem:[%s235 + $0x32] sm:$0x1] %vm831, %v1775
      %1796 = vst.msk [vmem:[%s235 + $0x42] sm:$0x1] %vm831, %v1777
      %1797 = vst.msk [vmem:[%s235 + $0x52] sm:$0x1] %vm831, %v1779
      %1798 = vst.msk [vmem:[%s235 + $0x62] sm:$0x1] %vm831, %v1781
      %1799 = vst.msk [vmem:[%s235 + $0x72] sm:$0x1] %vm831, %v1783
      %1800 = vrot.lane.b32.xlu0 %v335, 80
      %v1801 = vpop.permute.xlu0 %1800
      %v1802 = vsel %vm356, %v1801, 0
      %1804 = vmatprep.subr.mxu0 0.0
      %1805 = vmatpush1.msra.mxu0 %v354
      %1806 = vmatprep.subr.mxu0 0.0
      %1807 = vmatpush1.msra.mxu0 %v355
      %1808 = vmatprep.subr.mxu0 0.0
      %1809 = vmatpush1.msra.mxu0 0.0
      %1810 = vmatprep.subr.mxu0 0.0
      %1811 = vmatpush1.msra.mxu0 0.0
      %1812 = vmatprep.subr.mxu0 0.0
      %1813 = vmatpush1.msra.mxu0 0.0
      %1814 = vmatprep.subr.mxu0 0.0
      %1815 = vmatpush1.msra.mxu0 0.0
      %1816 = vmatprep.subr.mxu0 0.0
      %1817 = vmatpush1.msra.mxu0 0.0
      %1818 = vmatprep.subr.mxu0 0.0
      %1819 = vmatpush1.msra.mxu0 0.0
      %1820 = vmatprep.subr.mxu0 0.0
      %1821 = vmatpush1.msra.mxu0 0.0
      %1822 = vmatprep.subr.mxu0 0.0
      %1823 = vmatpush1.msra.mxu0 0.0
      %1824 = vmatprep.subr.mxu0 0.0
      %1825 = vmatpush1.msra.mxu0 0.0
      %1826 = vmatprep.subr.mxu0 0.0
      %1827 = vmatpush1.msra.mxu0 0.0
      %1828 = vmatprep.subr.mxu0 0.0
      %1829 = vmatpush1.msra.mxu0 0.0
      %1830 = vmatprep.subr.mxu0 0.0
      %1831 = vmatpush1.msra.mxu0 0.0
      %1832 = vmatprep.subr.mxu0 0.0
      %1833 = vmatpush1.msra.mxu0 0.0
      %1834 = vmatprep.subr.mxu0 0.0
      %1835 = vmatpush1.msra.mxu0 0.0
      %1836 = vmatprep.subr.mxu0 0.0
      %1837 = vmatpush1.msra.mxu0 0.0
      %1838 = vmatprep.subr.mxu0 0.0
      %1839 = vmatpush1.msra.mxu0 0.0
      %1840 = vmatprep.subr.mxu0 0.0
      %1841 = vmatpush1.msra.mxu0 0.0
      %1842 = vmatprep.subr.mxu0 0.0
      %1843 = vmatpush1.msra.mxu0 0.0
      %1844 = vmatprep.subr.mxu0 0.0
      %1845 = vmatpush1.msra.mxu0 0.0
      %1846 = vmatprep.subr.mxu0 0.0
      %1847 = vmatpush1.msra.mxu0 0.0
      %1848 = vmatprep.subr.mxu0 0.0
      %1849 = vmatpush1.msra.mxu0 0.0
      %1850 = vmatprep.subr.mxu0 0.0
      %1851 = vmatpush1.msra.mxu0 0.0
      %1852 = vmatprep.subr.mxu0 0.0
      %1853 = vmatpush1.msra.mxu0 0.0
      %1854 = vmatprep.subr.mxu0 0.0
      %1855 = vmatpush1.msra.mxu0 0.0
      %1856 = vmatprep.subr.mxu0 0.0
      %1857 = vmatpush1.msra.mxu0 0.0
      %1858 = vmatprep.subr.mxu0 0.0
      %1859 = vmatpush1.msra.mxu0 0.0
      %1860 = vmatprep.subr.mxu0 0.0
      %1861 = vmatpush1.msra.mxu0 0.0
      %1862 = vmatprep.subr.mxu0 0.0
      %1863 = vmatpush1.msra.mxu0 0.0
      %1864 = vmatprep.subr.mxu0 0.0
      %1865 = vmatpush1.msra.mxu0 0.0
      %1866 = vmatprep.subr.mxu0 0.0
      %1867 = vmatpush1.msra.mxu0 0.0
      %1868 = vmatprep.mubr.f32.mxu0 0.0
      %1869 = vmatmul.mubr.f32.gmra.mrb[0].mxu0 %v1802
      %v1870 = vpop.f32.mrb[0].mxu0
      %v1871 = vadd.f32 0.0, %v1870
      %v1872 = vpop.f32.mrb[0].mxu0
      %1873 = vdwg.mxu0
      %1874 = vrot.lane.b32.xlu0 %v329, 80
      %v1875 = vpop.permute.xlu0 %1874
      %v1876 = vsel %vm356, %v1875, 0
      %1878 = vmatprep.subr.mxu0 0.0
      %1879 = vmatpush1.msra.mxu0 %v352
      %1880 = vmatprep.subr.mxu0 0.0
      %1881 = vmatpush1.msra.mxu0 %v353
      %1882 = vmatprep.subr.mxu0 0.0
      %1883 = vmatpush1.msra.mxu0 0.0
      %1884 = vmatprep.subr.mxu0 0.0
      %1885 = vmatpush1.msra.mxu0 0.0
      %1886 = vmatprep.subr.mxu0 0.0
      %1887 = vmatpush1.msra.mxu0 0.0
      %1888 = vmatprep.subr.mxu0 0.0
      %1889 = vmatpush1.msra.mxu0 0.0
      %1890 = vmatprep.subr.mxu0 0.0
      %1891 = vmatpush1.msra.mxu0 0.0
      %1892 = vmatprep.subr.mxu0 0.0
      %1893 = vmatpush1.msra.mxu0 0.0
      %1894 = vmatprep.subr.mxu0 0.0
      %1895 = vmatpush1.msra.mxu0 0.0
      %1896 = vmatprep.subr.mxu0 0.0
      %1897 = vmatpush1.msra.mxu0 0.0
      %1898 = vmatprep.subr.mxu0 0.0
      %1899 = vmatpush1.msra.mxu0 0.0
      %1900 = vmatprep.subr.mxu0 0.0
      %1901 = vmatpush1.msra.mxu0 0.0
      %1902 = vmatprep.subr.mxu0 0.0
      %1903 = vmatpush1.msra.mxu0 0.0
      %1904 = vmatprep.subr.mxu0 0.0
      %1905 = vmatpush1.msra.mxu0 0.0
      %1906 = vmatprep.subr.mxu0 0.0
      %1907 = vmatpush1.msra.mxu0 0.0
      %1908 = vmatprep.subr.mxu0 0.0
      %1909 = vmatpush1.msra.mxu0 0.0
      %1910 = vmatprep.subr.mxu0 0.0
      %1911 = vmatpush1.msra.mxu0 0.0
      %1912 = vmatprep.subr.mxu0 0.0
      %1913 = vmatpush1.msra.mxu0 0.0
      %1914 = vmatprep.subr.mxu0 0.0
      %1915 = vmatpush1.msra.mxu0 0.0
      %1916 = vmatprep.subr.mxu0 0.0
      %1917 = vmatpush1.msra.mxu0 0.0
      %1918 = vmatprep.subr.mxu0 0.0
      %1919 = vmatpush1.msra.mxu0 0.0
      %1920 = vmatprep.subr.mxu0 0.0
      %1921 = vmatpush1.msra.mxu0 0.0
      %1922 = vmatprep.subr.mxu0 0.0
      %1923 = vmatpush1.msra.mxu0 0.0
      %1924 = vmatprep.subr.mxu0 0.0
      %1925 = vmatpush1.msra.mxu0 0.0
      %1926 = vmatprep.subr.mxu0 0.0
      %1927 = vmatpush1.msra.mxu0 0.0
      %1928 = vmatprep.subr.mxu0 0.0
      %1929 = vmatpush1.msra.mxu0 0.0
      %1930 = vmatprep.subr.mxu0 0.0
      %1931 = vmatpush1.msra.mxu0 0.0
      %1932 = vmatprep.subr.mxu0 0.0
      %1933 = vmatpush1.msra.mxu0 0.0
      %1934 = vmatprep.subr.mxu0 0.0
      %1935 = vmatpush1.msra.mxu0 0.0
      %1936 = vmatprep.subr.mxu0 0.0
      %1937 = vmatpush1.msra.mxu0 0.0
      %1938 = vmatprep.subr.mxu0 0.0
      %1939 = vmatpush1.msra.mxu0 0.0
      %1940 = vmatprep.subr.mxu0 0.0
      %1941 = vmatpush1.msra.mxu0 0.0
      %1942 = vmatprep.mubr.f32.mxu0 0.0
      %1943 = vmatmul.mubr.f32.gmra.mrb[0].mxu0 %v1876
      %v1944 = vpop.f32.mrb[0].mxu0
      %v1945 = vadd.f32 %v1871, %v1944
      %v1946 = vpop.f32.mrb[0].mxu0
      %1947 = vdwg.mxu0
      %v1948 = vadd.f32 %v1945, %v506
      %v1949 = vmax.f32 %v1948, 0.0
      %v1951 = vcombine.high %v1949, %v1949
      %v1953 = vunpack.c.l.s4 1966171168
      %v1954 = vunpack.c.0.s8 %v1953
      %v1955 = vlaneseq
      %v1956 = vshrl.u32 %v1955, 7
      %v1957 = vsub.s32 %v1954, %v1956
      %v1958 = vrot.slane %v1949, %v1957
      %v1960 = vunpack.c.l.s4 1966171168
      %v1961 = vunpack.c.0.s8 %v1960
      %v1962 = vlaneseq
      %v1963 = vshrl.u32 %v1962, 7
      %v1964 = vsub.s32 %v1961, %v1963
      %v1965 = vrot.slane %v1951, %v1964
      %v1966 = vcombine.high %v1958, %v1958
      %v1967 = vcombine.high %v1965, %v1965
      %v1969 = vunpack.c.l.s4 1966171168
      %v1970 = vunpack.c.0.s8 %v1969
      %v1971 = vlaneseq
      %v1972 = vshrl.u32 %v1971, 7
      %v1973 = vsub.s32 %v1970, %v1972
      %v1974 = vrot.slane %v1958, %v1973
      %v1976 = vunpack.c.l.s4 1966171168
      %v1977 = vunpack.c.0.s8 %v1976
      %v1978 = vlaneseq
      %v1979 = vshrl.u32 %v1978, 7
      %v1980 = vsub.s32 %v1977, %v1979
      %v1981 = vrot.slane %v1965, %v1980
      %v1983 = vunpack.c.l.s4 1966171168
      %v1984 = vunpack.c.0.s8 %v1983
      %v1985 = vlaneseq
      %v1986 = vshrl.u32 %v1985, 7
      %v1987 = vsub.s32 %v1984, %v1986
      %v1988 = vrot.slane %v1966, %v1987
      %v1990 = vunpack.c.l.s4 1966171168
      %v1991 = vunpack.c.0.s8 %v1990
      %v1992 = vlaneseq
      %v1993 = vshrl.u32 %v1992, 7
      %v1994 = vsub.s32 %v1991, %v1993
      %v1995 = vrot.slane %v1967, %v1994
      %v1996 = vcombine.high %v1974, %v1974
      %v1997 = vcombine.high %v1981, %v1981
      %v1998 = vcombine.high %v1988, %v1988
      %v1999 = vcombine.high %v1995, %v1995
      %2008 = vst.msk [vmem:[%s235 + $0x3] sm:$0x1] %vm568, %v1974
      %2009 = vst.msk [vmem:[%s235 + $0x13] sm:$0x1] %vm568, %v1988
      %2010 = vst.msk [vmem:[%s235 + $0x23] sm:$0x1] %vm568, %v1996
      %2011 = vst.msk [vmem:[%s235 + $0x33] sm:$0x1] %vm568, %v1998
      %2012 = vst.msk [vmem:[%s235 + $0x43] sm:$0x1] %vm568, %v1981
      %2013 = vst.msk [vmem:[%s235 + $0x53] sm:$0x1] %vm568, %v1995
      %2014 = vst.msk [vmem:[%s235 + $0x63] sm:$0x1] %vm568, %v1997
      %2015 = vst.msk [vmem:[%s235 + $0x73] sm:$0x1] %vm568, %v1999
      %2016 = vrot.lane.b32.xlu0 %v347, 80
      %v2017 = vpop.permute.xlu0 %2016
      %v2018 = vsel %vm356, %v2017, 0
      %2020 = vmatprep.subr.mxu0 0.0
      %2021 = vmatpush1.msra.mxu0 %v354
      %2022 = vmatprep.subr.mxu0 0.0
      %2023 = vmatpush1.msra.mxu0 %v355
      %2024 = vmatprep.subr.mxu0 0.0
      %2025 = vmatpush1.msra.mxu0 0.0
      %2026 = vmatprep.subr.mxu0 0.0
      %2027 = vmatpush1.msra.mxu0 0.0
      %2028 = vmatprep.subr.mxu0 0.0
      %2029 = vmatpush1.msra.mxu0 0.0
      %2030 = vmatprep.subr.mxu0 0.0
      %2031 = vmatpush1.msra.mxu0 0.0
      %2032 = vmatprep.subr.mxu0 0.0
      %2033 = vmatpush1.msra.mxu0 0.0
      %2034 = vmatprep.subr.mxu0 0.0
      %2035 = vmatpush1.msra.mxu0 0.0
      %2036 = vmatprep.subr.mxu0 0.0
      %2037 = vmatpush1.msra.mxu0 0.0
      %2038 = vmatprep.subr.mxu0 0.0
      %2039 = vmatpush1.msra.mxu0 0.0
      %2040 = vmatprep.subr.mxu0 0.0
      %2041 = vmatpush1.msra.mxu0 0.0
      %2042 = vmatprep.subr.mxu0 0.0
      %2043 = vmatpush1.msra.mxu0 0.0
      %2044 = vmatprep.subr.mxu0 0.0
      %2045 = vmatpush1.msra.mxu0 0.0
      %2046 = vmatprep.subr.mxu0 0.0
      %2047 = vmatpush1.msra.mxu0 0.0
      %2048 = vmatprep.subr.mxu0 0.0
      %2049 = vmatpush1.msra.mxu0 0.0
      %2050 = vmatprep.subr.mxu0 0.0
      %2051 = vmatpush1.msra.mxu0 0.0
      %2052 = vmatprep.subr.mxu0 0.0
      %2053 = vmatpush1.msra.mxu0 0.0
      %2054 = vmatprep.subr.mxu0 0.0
      %2055 = vmatpush1.msra.mxu0 0.0
      %2056 = vmatprep.subr.mxu0 0.0
      %2057 = vmatpush1.msra.mxu0 0.0
      %2058 = vmatprep.subr.mxu0 0.0
      %2059 = vmatpush1.msra.mxu0 0.0
      %2060 = vmatprep.subr.mxu0 0.0
      %2061 = vmatpush1.msra.mxu0 0.0
      %2062 = vmatprep.subr.mxu0 0.0
      %2063 = vmatpush1.msra.mxu0 0.0
      %2064 = vmatprep.subr.mxu0 0.0
      %2065 = vmatpush1.msra.mxu0 0.0
      %2066 = vmatprep.subr.mxu0 0.0
      %2067 = vmatpush1.msra.mxu0 0.0
      %2068 = vmatprep.subr.mxu0 0.0
      %2069 = vmatpush1.msra.mxu0 0.0
      %2070 = vmatprep.subr.mxu0 0.0
      %2071 = vmatpush1.msra.mxu0 0.0
      %2072 = vmatprep.subr.mxu0 0.0
      %2073 = vmatpush1.msra.mxu0 0.0
      %2074 = vmatprep.subr.mxu0 0.0
      %2075 = vmatpush1.msra.mxu0 0.0
      %2076 = vmatprep.subr.mxu0 0.0
      %2077 = vmatpush1.msra.mxu0 0.0
      %2078 = vmatprep.subr.mxu0 0.0
      %2079 = vmatpush1.msra.mxu0 0.0
      %2080 = vmatprep.subr.mxu0 0.0
      %2081 = vmatpush1.msra.mxu0 0.0
      %2082 = vmatprep.subr.mxu0 0.0
      %2083 = vmatpush1.msra.mxu0 0.0
      %2084 = vmatprep.mubr.f32.mxu0 0.0
      %2085 = vmatmul.mubr.f32.gmra.mrb[0].mxu0 %v2018
      %v2086 = vpop.f32.mrb[0].mxu0
      %v2087 = vadd.f32 0.0, %v2086
      %v2088 = vpop.f32.mrb[0].mxu0
      %2089 = vdwg.mxu0
      %2090 = vrot.lane.b32.xlu0 %v341, 80
      %v2091 = vpop.permute.xlu0 %2090
      %v2092 = vsel %vm356, %v2091, 0
      %2094 = vmatprep.subr.mxu0 0.0
      %2095 = vmatpush1.msra.mxu0 %v352
      %2096 = vmatprep.subr.mxu0 0.0
      %2097 = vmatpush1.msra.mxu0 %v353
      %2098 = vmatprep.subr.mxu0 0.0
      %2099 = vmatpush1.msra.mxu0 0.0
      %2100 = vmatprep.subr.mxu0 0.0
      %2101 = vmatpush1.msra.mxu0 0.0
      %2102 = vmatprep.subr.mxu0 0.0
      %2103 = vmatpush1.msra.mxu0 0.0
      %2104 = vmatprep.subr.mxu0 0.0
      %2105 = vmatpush1.msra.mxu0 0.0
      %2106 = vmatprep.subr.mxu0 0.0
      %2107 = vmatpush1.msra.mxu0 0.0
      %2108 = vmatprep.subr.mxu0 0.0
      %2109 = vmatpush1.msra.mxu0 0.0
      %2110 = vmatprep.subr.mxu0 0.0
      %2111 = vmatpush1.msra.mxu0 0.0
      %2112 = vmatprep.subr.mxu0 0.0
      %2113 = vmatpush1.msra.mxu0 0.0
      %2114 = vmatprep.subr.mxu0 0.0
      %2115 = vmatpush1.msra.mxu0 0.0
      %2116 = vmatprep.subr.mxu0 0.0
      %2117 = vmatpush1.msra.mxu0 0.0
      %2118 = vmatprep.subr.mxu0 0.0
      %2119 = vmatpush1.msra.mxu0 0.0
      %2120 = vmatprep.subr.mxu0 0.0
      %2121 = vmatpush1.msra.mxu0 0.0
      %2122 = vmatprep.subr.mxu0 0.0
      %2123 = vmatpush1.msra.mxu0 0.0
      %2124 = vmatprep.subr.mxu0 0.0
      %2125 = vmatpush1.msra.mxu0 0.0
      %2126 = vmatprep.subr.mxu0 0.0
      %2127 = vmatpush1.msra.mxu0 0.0
      %2128 = vmatprep.subr.mxu0 0.0
      %2129 = vmatpush1.msra.mxu0 0.0
      %2130 = vmatprep.subr.mxu0 0.0
      %2131 = vmatpush1.msra.mxu0 0.0
      %2132 = vmatprep.subr.mxu0 0.0
      %2133 = vmatpush1.msra.mxu0 0.0
      %2134 = vmatprep.subr.mxu0 0.0
      %2135 = vmatpush1.msra.mxu0 0.0
      %2136 = vmatprep.subr.mxu0 0.0
      %2137 = vmatpush1.msra.mxu0 0.0
      %2138 = vmatprep.subr.mxu0 0.0
      %2139 = vmatpush1.msra.mxu0 0.0
      %2140 = vmatprep.subr.mxu0 0.0
      %2141 = vmatpush1.msra.mxu0 0.0
      %2142 = vmatprep.subr.mxu0 0.0
      %2143 = vmatpush1.msra.mxu0 0.0
      %2144 = vmatprep.subr.mxu0 0.0
      %2145 = vmatpush1.msra.mxu0 0.0
      %2146 = vmatprep.subr.mxu0 0.0
      %2147 = vmatpush1.msra.mxu0 0.0
      %2148 = vmatprep.subr.mxu0 0.0
      %2149 = vmatpush1.msra.mxu0 0.0
      %2150 = vmatprep.subr.mxu0 0.0
      %2151 = vmatpush1.msra.mxu0 0.0
      %2152 = vmatprep.subr.mxu0 0.0
      %2153 = vmatpush1.msra.mxu0 0.0
      %2154 = vmatprep.subr.mxu0 0.0
      %2155 = vmatpush1.msra.mxu0 0.0
      %2156 = vmatprep.subr.mxu0 0.0
      %2157 = vmatpush1.msra.mxu0 0.0
      %2158 = vmatprep.mubr.f32.mxu0 0.0
      %2159 = vmatmul.mubr.f32.gmra.mrb[0].mxu0 %v2092
      %v2160 = vpop.f32.mrb[0].mxu0
      %v2161 = vadd.f32 %v2087, %v2160
      %v2162 = vpop.f32.mrb[0].mxu0
      %2163 = vdwg.mxu0
      %v2164 = vadd.f32 %v2161, %v506
      %v2165 = vmax.f32 %v2164, 0.0
      %v2167 = vcombine.high %v2165, %v2165
      %v2169 = vunpack.c.l.s4 1966171168
      %v2170 = vunpack.c.0.s8 %v2169
      %v2171 = vlaneseq
      %v2172 = vshrl.u32 %v2171, 7
      %v2173 = vsub.s32 %v2170, %v2172
      %v2174 = vrot.slane %v2165, %v2173
      %v2176 = vunpack.c.l.s4 1966171168
      %v2177 = vunpack.c.0.s8 %v2176
      %v2178 = vlaneseq
      %v2179 = vshrl.u32 %v2178, 7
      %v2180 = vsub.s32 %v2177, %v2179
      %v2181 = vrot.slane %v2167, %v2180
      %v2182 = vcombine.high %v2174, %v2174
      %v2183 = vcombine.high %v2181, %v2181
      %v2185 = vunpack.c.l.s4 1966171168
      %v2186 = vunpack.c.0.s8 %v2185
      %v2187 = vlaneseq
      %v2188 = vshrl.u32 %v2187, 7
      %v2189 = vsub.s32 %v2186, %v2188
      %v2190 = vrot.slane %v2174, %v2189
      %v2192 = vunpack.c.l.s4 1966171168
      %v2193 = vunpack.c.0.s8 %v2192
      %v2194 = vlaneseq
      %v2195 = vshrl.u32 %v2194, 7
      %v2196 = vsub.s32 %v2193, %v2195
      %v2197 = vrot.slane %v2181, %v2196
      %v2199 = vunpack.c.l.s4 1966171168
      %v2200 = vunpack.c.0.s8 %v2199
      %v2201 = vlaneseq
      %v2202 = vshrl.u32 %v2201, 7
      %v2203 = vsub.s32 %v2200, %v2202
      %v2204 = vrot.slane %v2182, %v2203
      %v2206 = vunpack.c.l.s4 1966171168
      %v2207 = vunpack.c.0.s8 %v2206
      %v2208 = vlaneseq
      %v2209 = vshrl.u32 %v2208, 7
      %v2210 = vsub.s32 %v2207, %v2209
      %v2211 = vrot.slane %v2183, %v2210
      %v2212 = vcombine.high %v2190, %v2190
      %v2213 = vcombine.high %v2197, %v2197
      %v2214 = vcombine.high %v2204, %v2204
      %v2215 = vcombine.high %v2211, %v2211
      %v2216 = vlaneseq
      %v2217 = vshrl.u32 %v2216, 7
      %v2218 = vsub.s32 0, %v2217
      %v2219 = vrot.slane %v2190, %v2218
      %v2220 = vlaneseq
      %v2221 = vshrl.u32 %v2220, 7
      %v2222 = vsub.s32 0, %v2221
      %v2223 = vrot.slane %v2204, %v2222
      %v2224 = vlaneseq
      %v2225 = vshrl.u32 %v2224, 7
      %v2226 = vsub.s32 0, %v2225
      %v2227 = vrot.slane %v2212, %v2226
      %v2228 = vlaneseq
      %v2229 = vshrl.u32 %v2228, 7
      %v2230 = vsub.s32 0, %v2229
      %v2231 = vrot.slane %v2214, %v2230
      %v2232 = vlaneseq
      %v2233 = vshrl.u32 %v2232, 7
      %v2234 = vsub.s32 0, %v2233
      %v2235 = vrot.slane %v2197, %v2234
      %v2236 = vlaneseq
      %v2237 = vshrl.u32 %v2236, 7
      %v2238 = vsub.s32 0, %v2237
      %v2239 = vrot.slane %v2211, %v2238
      %v2240 = vlaneseq
      %v2241 = vshrl.u32 %v2240, 7
      %v2242 = vsub.s32 0, %v2241
      %v2243 = vrot.slane %v2213, %v2242
      %v2244 = vlaneseq
      %v2245 = vshrl.u32 %v2244, 7
      %v2246 = vsub.s32 0, %v2245
      %v2247 = vrot.slane %v2215, %v2246
      %2248 = vrot.lane.b32.xlu0 %v2219, 32
      %v2249 = vpop.permute.xlu0 %2248
      %2250 = vrot.lane.b32.xlu0 %v2223, 32
      %v2251 = vpop.permute.xlu0 %2250
      %2252 = vrot.lane.b32.xlu0 %v2227, 32
      %v2253 = vpop.permute.xlu0 %2252
      %2254 = vrot.lane.b32.xlu0 %v2231, 32
      %v2255 = vpop.permute.xlu0 %2254
      %2256 = vrot.lane.b32.xlu0 %v2235, 32
      %v2257 = vpop.permute.xlu0 %2256
      %2258 = vrot.lane.b32.xlu0 %v2239, 32
      %v2259 = vpop.permute.xlu0 %2258
      %2260 = vrot.lane.b32.xlu0 %v2243, 32
      %v2261 = vpop.permute.xlu0 %2260
      %2262 = vrot.lane.b32.xlu0 %v2247, 32
      %v2263 = vpop.permute.xlu0 %2262
      %2272 = vst.msk [vmem:[%s235 + $0x3] sm:$0x1] %vm831, %v2249
      %2273 = vst.msk [vmem:[%s235 + $0x13] sm:$0x1] %vm831, %v2251
      %2274 = vst.msk [vmem:[%s235 + $0x23] sm:$0x1] %vm831, %v2253
      %2275 = vst.msk [vmem:[%s235 + $0x33] sm:$0x1] %vm831, %v2255
      %2276 = vst.msk [vmem:[%s235 + $0x43] sm:$0x1] %vm831, %v2257
      %2277 = vst.msk [vmem:[%s235 + $0x53] sm:$0x1] %vm831, %v2259
      %2278 = vst.msk [vmem:[%s235 + $0x63] sm:$0x1] %vm831, %v2261
      %2279 = vst.msk [vmem:[%s235 + $0x73] sm:$0x1] %vm831, %v2263
      %2280 = vrot.lane.b32.xlu0 %v335, 64
      %v2281 = vpop.permute.xlu0 %2280
      %v2282 = vsel %vm356, %v2281, 0
      %2284 = vmatprep.subr.mxu0 0.0
      %2285 = vmatpush1.msra.mxu0 %v354
      %2286 = vmatprep.subr.mxu0 0.0
      %2287 = vmatpush1.msra.mxu0 %v355
      %2288 = vmatprep.subr.mxu0 0.0
      %2289 = vmatpush1.msra.mxu0 0.0
      %2290 = vmatprep.subr.mxu0 0.0
      %2291 = vmatpush1.msra.mxu0 0.0
      %2292 = vmatprep.subr.mxu0 0.0
      %2293 = vmatpush1.msra.mxu0 0.0
      %2294 = vmatprep.subr.mxu0 0.0
      %2295 = vmatpush1.msra.mxu0 0.0
      %2296 = vmatprep.subr.mxu0 0.0
      %2297 = vmatpush1.msra.mxu0 0.0
      %2298 = vmatprep.subr.mxu0 0.0
      %2299 = vmatpush1.msra.mxu0 0.0
      %2300 = vmatprep.subr.mxu0 0.0
      %2301 = vmatpush1.msra.mxu0 0.0
      %2302 = vmatprep.subr.mxu0 0.0
      %2303 = vmatpush1.msra.mxu0 0.0
      %2304 = vmatprep.subr.mxu0 0.0
      %2305 = vmatpush1.msra.mxu0 0.0
      %2306 = vmatprep.subr.mxu0 0.0
      %2307 = vmatpush1.msra.mxu0 0.0
      %2308 = vmatprep.subr.mxu0 0.0
      %2309 = vmatpush1.msra.mxu0 0.0
      %2310 = vmatprep.subr.mxu0 0.0
      %2311 = vmatpush1.msra.mxu0 0.0
      %2312 = vmatprep.subr.mxu0 0.0
      %2313 = vmatpush1.msra.mxu0 0.0
      %2314 = vmatprep.subr.mxu0 0.0
      %2315 = vmatpush1.msra.mxu0 0.0
      %2316 = vmatprep.subr.mxu0 0.0
      %2317 = vmatpush1.msra.mxu0 0.0
      %2318 = vmatprep.subr.mxu0 0.0
      %2319 = vmatpush1.msra.mxu0 0.0
      %2320 = vmatprep.subr.mxu0 0.0
      %2321 = vmatpush1.msra.mxu0 0.0
      %2322 = vmatprep.subr.mxu0 0.0
      %2323 = vmatpush1.msra.mxu0 0.0
      %2324 = vmatprep.subr.mxu0 0.0
      %2325 = vmatpush1.msra.mxu0 0.0
      %2326 = vmatprep.subr.mxu0 0.0
      %2327 = vmatpush1.msra.mxu0 0.0
      %2328 = vmatprep.subr.mxu0 0.0
      %2329 = vmatpush1.msra.mxu0 0.0
      %2330 = vmatprep.subr.mxu0 0.0
      %2331 = vmatpush1.msra.mxu0 0.0
      %2332 = vmatprep.subr.mxu0 0.0
      %2333 = vmatpush1.msra.mxu0 0.0
      %2334 = vmatprep.subr.mxu0 0.0
      %2335 = vmatpush1.msra.mxu0 0.0
      %2336 = vmatprep.subr.mxu0 0.0
      %2337 = vmatpush1.msra.mxu0 0.0
      %2338 = vmatprep.subr.mxu0 0.0
      %2339 = vmatpush1.msra.mxu0 0.0
      %2340 = vmatprep.subr.mxu0 0.0
      %2341 = vmatpush1.msra.mxu0 0.0
      %2342 = vmatprep.subr.mxu0 0.0
      %2343 = vmatpush1.msra.mxu0 0.0
      %2344 = vmatprep.subr.mxu0 0.0
      %2345 = vmatpush1.msra.mxu0 0.0
      %2346 = vmatprep.subr.mxu0 0.0
      %2347 = vmatpush1.msra.mxu0 0.0
      %2348 = vmatprep.mubr.f32.mxu0 0.0
      %2349 = vmatmul.mubr.f32.gmra.mrb[0].mxu0 %v2282
      %v2350 = vpop.f32.mrb[0].mxu0
      %v2351 = vadd.f32 0.0, %v2350
      %v2352 = vpop.f32.mrb[0].mxu0
      %2353 = vdwg.mxu0
      %2354 = vrot.lane.b32.xlu0 %v329, 64
      %v2355 = vpop.permute.xlu0 %2354
      %v2356 = vsel %vm356, %v2355, 0
      %2358 = vmatprep.subr.mxu0 0.0
      %2359 = vmatpush1.msra.mxu0 %v352
      %2360 = vmatprep.subr.mxu0 0.0
      %2361 = vmatpush1.msra.mxu0 %v353
      %2362 = vmatprep.subr.mxu0 0.0
      %2363 = vmatpush1.msra.mxu0 0.0
      %2364 = vmatprep.subr.mxu0 0.0
      %2365 = vmatpush1.msra.mxu0 0.0
      %2366 = vmatprep.subr.mxu0 0.0
      %2367 = vmatpush1.msra.mxu0 0.0
      %2368 = vmatprep.subr.mxu0 0.0
      %2369 = vmatpush1.msra.mxu0 0.0
      %2370 = vmatprep.subr.mxu0 0.0
      %2371 = vmatpush1.msra.mxu0 0.0
      %2372 = vmatprep.subr.mxu0 0.0
      %2373 = vmatpush1.msra.mxu0 0.0
      %2374 = vmatprep.subr.mxu0 0.0
      %2375 = vmatpush1.msra.mxu0 0.0
      %2376 = vmatprep.subr.mxu0 0.0
      %2377 = vmatpush1.msra.mxu0 0.0
      %2378 = vmatprep.subr.mxu0 0.0
      %2379 = vmatpush1.msra.mxu0 0.0
      %2380 = vmatprep.subr.mxu0 0.0
      %2381 = vmatpush1.msra.mxu0 0.0
      %2382 = vmatprep.subr.mxu0 0.0
      %2383 = vmatpush1.msra.mxu0 0.0
      %2384 = vmatprep.subr.mxu0 0.0
      %2385 = vmatpush1.msra.mxu0 0.0
      %2386 = vmatprep.subr.mxu0 0.0
      %2387 = vmatpush1.msra.mxu0 0.0
      %2388 = vmatprep.subr.mxu0 0.0
      %2389 = vmatpush1.msra.mxu0 0.0
      %2390 = vmatprep.subr.mxu0 0.0
      %2391 = vmatpush1.msra.mxu0 0.0
      %2392 = vmatprep.subr.mxu0 0.0
      %2393 = vmatpush1.msra.mxu0 0.0
      %2394 = vmatprep.subr.mxu0 0.0
      %2395 = vmatpush1.msra.mxu0 0.0
      %2396 = vmatprep.subr.mxu0 0.0
      %2397 = vmatpush1.msra.mxu0 0.0
      %2398 = vmatprep.subr.mxu0 0.0
      %2399 = vmatpush1.msra.mxu0 0.0
      %2400 = vmatprep.subr.mxu0 0.0
      %2401 = vmatpush1.msra.mxu0 0.0
      %2402 = vmatprep.subr.mxu0 0.0
      %2403 = vmatpush1.msra.mxu0 0.0
      %2404 = vmatprep.subr.mxu0 0.0
      %2405 = vmatpush1.msra.mxu0 0.0
      %2406 = vmatprep.subr.mxu0 0.0
      %2407 = vmatpush1.msra.mxu0 0.0
      %2408 = vmatprep.subr.mxu0 0.0
      %2409 = vmatpush1.msra.mxu0 0.0
      %2410 = vmatprep.subr.mxu0 0.0
      %2411 = vmatpush1.msra.mxu0 0.0
      %2412 = vmatprep.subr.mxu0 0.0
      %2413 = vmatpush1.msra.mxu0 0.0
      %2414 = vmatprep.subr.mxu0 0.0
      %2415 = vmatpush1.msra.mxu0 0.0
      %2416 = vmatprep.subr.mxu0 0.0
      %2417 = vmatpush1.msra.mxu0 0.0
      %2418 = vmatprep.subr.mxu0 0.0
      %2419 = vmatpush1.msra.mxu0 0.0
      %2420 = vmatprep.subr.mxu0 0.0
      %2421 = vmatpush1.msra.mxu0 0.0
      %2422 = vmatprep.mubr.f32.mxu0 0.0
      %2423 = vmatmul.mubr.f32.gmra.mrb[0].mxu0 %v2356
      %v2424 = vpop.f32.mrb[0].mxu0
      %v2425 = vadd.f32 %v2351, %v2424
      %v2426 = vpop.f32.mrb[0].mxu0
      %2427 = vdwg.mxu0
      %v2428 = vadd.f32 %v2425, %v506
      %v2429 = vmax.f32 %v2428, 0.0
      %v2431 = vcombine.high %v2429, %v2429
      %v2433 = vunpack.c.l.s4 1966171168
      %v2434 = vunpack.c.0.s8 %v2433
      %v2435 = vlaneseq
      %v2436 = vshrl.u32 %v2435, 7
      %v2437 = vsub.s32 %v2434, %v2436
      %v2438 = vrot.slane %v2429, %v2437
      %v2440 = vunpack.c.l.s4 1966171168
      %v2441 = vunpack.c.0.s8 %v2440
      %v2442 = vlaneseq
      %v2443 = vshrl.u32 %v2442, 7
      %v2444 = vsub.s32 %v2441, %v2443
      %v2445 = vrot.slane %v2431, %v2444
      %v2446 = vcombine.high %v2438, %v2438
      %v2447 = vcombine.high %v2445, %v2445
      %v2449 = vunpack.c.l.s4 1966171168
      %v2450 = vunpack.c.0.s8 %v2449
      %v2451 = vlaneseq
      %v2452 = vshrl.u32 %v2451, 7
      %v2453 = vsub.s32 %v2450, %v2452
      %v2454 = vrot.slane %v2438, %v2453
      %v2456 = vunpack.c.l.s4 1966171168
      %v2457 = vunpack.c.0.s8 %v2456
      %v2458 = vlaneseq
      %v2459 = vshrl.u32 %v2458, 7
      %v2460 = vsub.s32 %v2457, %v2459
      %v2461 = vrot.slane %v2445, %v2460
      %v2463 = vunpack.c.l.s4 1966171168
      %v2464 = vunpack.c.0.s8 %v2463
      %v2465 = vlaneseq
      %v2466 = vshrl.u32 %v2465, 7
      %v2467 = vsub.s32 %v2464, %v2466
      %v2468 = vrot.slane %v2446, %v2467
      %v2470 = vunpack.c.l.s4 1966171168
      %v2471 = vunpack.c.0.s8 %v2470
      %v2472 = vlaneseq
      %v2473 = vshrl.u32 %v2472, 7
      %v2474 = vsub.s32 %v2471, %v2473
      %v2475 = vrot.slane %v2447, %v2474
      %v2476 = vcombine.high %v2454, %v2454
      %v2477 = vcombine.high %v2461, %v2461
      %v2478 = vcombine.high %v2468, %v2468
      %v2479 = vcombine.high %v2475, %v2475
      %2488 = vst.msk [vmem:[%s235 + $0x4] sm:$0x1] %vm568, %v2454
      %2489 = vst.msk [vmem:[%s235 + $0x14] sm:$0x1] %vm568, %v2468
      %2490 = vst.msk [vmem:[%s235 + $0x24] sm:$0x1] %vm568, %v2476
      %2491 = vst.msk [vmem:[%s235 + $0x34] sm:$0x1] %vm568, %v2478
      %2492 = vst.msk [vmem:[%s235 + $0x44] sm:$0x1] %vm568, %v2461
      %2493 = vst.msk [vmem:[%s235 + $0x54] sm:$0x1] %vm568, %v2475
      %2494 = vst.msk [vmem:[%s235 + $0x64] sm:$0x1] %vm568, %v2477
      %2495 = vst.msk [vmem:[%s235 + $0x74] sm:$0x1] %vm568, %v2479
      %2496 = vrot.lane.b32.xlu0 %v347, 64
      %v2497 = vpop.permute.xlu0 %2496
      %v2498 = vsel %vm356, %v2497, 0
      %2500 = vmatprep.subr.mxu0 0.0
      %2501 = vmatpush1.msra.mxu0 %v354
      %2502 = vmatprep.subr.mxu0 0.0
      %2503 = vmatpush1.msra.mxu0 %v355
      %2504 = vmatprep.subr.mxu0 0.0
      %2505 = vmatpush1.msra.mxu0 0.0
      %2506 = vmatprep.subr.mxu0 0.0
      %2507 = vmatpush1.msra.mxu0 0.0
      %2508 = vmatprep.subr.mxu0 0.0
      %2509 = vmatpush1.msra.mxu0 0.0
      %2510 = vmatprep.subr.mxu0 0.0
      %2511 = vmatpush1.msra.mxu0 0.0
      %2512 = vmatprep.subr.mxu0 0.0
      %2513 = vmatpush1.msra.mxu0 0.0
      %2514 = vmatprep.subr.mxu0 0.0
      %2515 = vmatpush1.msra.mxu0 0.0
      %2516 = vmatprep.subr.mxu0 0.0
      %2517 = vmatpush1.msra.mxu0 0.0
      %2518 = vmatprep.subr.mxu0 0.0
      %2519 = vmatpush1.msra.mxu0 0.0
      %2520 = vmatprep.subr.mxu0 0.0
      %2521 = vmatpush1.msra.mxu0 0.0
      %2522 = vmatprep.subr.mxu0 0.0
      %2523 = vmatpush1.msra.mxu0 0.0
      %2524 = vmatprep.subr.mxu0 0.0
      %2525 = vmatpush1.msra.mxu0 0.0
      %2526 = vmatprep.subr.mxu0 0.0
      %2527 = vmatpush1.msra.mxu0 0.0
      %2528 = vmatprep.subr.mxu0 0.0
      %2529 = vmatpush1.msra.mxu0 0.0
      %2530 = vmatprep.subr.mxu0 0.0
      %2531 = vmatpush1.msra.mxu0 0.0
      %2532 = vmatprep.subr.mxu0 0.0
      %2533 = vmatpush1.msra.mxu0 0.0
      %2534 = vmatprep.subr.mxu0 0.0
      %2535 = vmatpush1.msra.mxu0 0.0
      %2536 = vmatprep.subr.mxu0 0.0
      %2537 = vmatpush1.msra.mxu0 0.0
      %2538 = vmatprep.subr.mxu0 0.0
      %2539 = vmatpush1.msra.mxu0 0.0
      %2540 = vmatprep.subr.mxu0 0.0
      %2541 = vmatpush1.msra.mxu0 0.0
      %2542 = vmatprep.subr.mxu0 0.0
      %2543 = vmatpush1.msra.mxu0 0.0
      %2544 = vmatprep.subr.mxu0 0.0
      %2545 = vmatpush1.msra.mxu0 0.0
      %2546 = vmatprep.subr.mxu0 0.0
      %2547 = vmatpush1.msra.mxu0 0.0
      %2548 = vmatprep.subr.mxu0 0.0
      %2549 = vmatpush1.msra.mxu0 0.0
      %2550 = vmatprep.subr.mxu0 0.0
      %2551 = vmatpush1.msra.mxu0 0.0
      %2552 = vmatprep.subr.mxu0 0.0
      %2553 = vmatpush1.msra.mxu0 0.0
      %2554 = vmatprep.subr.mxu0 0.0
      %2555 = vmatpush1.msra.mxu0 0.0
      %2556 = vmatprep.subr.mxu0 0.0
      %2557 = vmatpush1.msra.mxu0 0.0
      %2558 = vmatprep.subr.mxu0 0.0
      %2559 = vmatpush1.msra.mxu0 0.0
      %2560 = vmatprep.subr.mxu0 0.0
      %2561 = vmatpush1.msra.mxu0 0.0
      %2562 = vmatprep.subr.mxu0 0.0
      %2563 = vmatpush1.msra.mxu0 0.0
      %2564 = vmatprep.mubr.f32.mxu0 0.0
      %2565 = vmatmul.mubr.f32.gmra.mrb[0].mxu0 %v2498
      %v2566 = vpop.f32.mrb[0].mxu0
      %v2567 = vadd.f32 0.0, %v2566
      %v2568 = vpop.f32.mrb[0].mxu0
      %2569 = vdwg.mxu0
      %2570 = vrot.lane.b32.xlu0 %v341, 64
      %v2571 = vpop.permute.xlu0 %2570
      %v2572 = vsel %vm356, %v2571, 0
      %2574 = vmatprep.subr.mxu0 0.0
      %2575 = vmatpush1.msra.mxu0 %v352
      %2576 = vmatprep.subr.mxu0 0.0
      %2577 = vmatpush1.msra.mxu0 %v353
      %2578 = vmatprep.subr.mxu0 0.0
      %2579 = vmatpush1.msra.mxu0 0.0
      %2580 = vmatprep.subr.mxu0 0.0
      %2581 = vmatpush1.msra.mxu0 0.0
      %2582 = vmatprep.subr.mxu0 0.0
      %2583 = vmatpush1.msra.mxu0 0.0
      %2584 = vmatprep.subr.mxu0 0.0
      %2585 = vmatpush1.msra.mxu0 0.0
      %2586 = vmatprep.subr.mxu0 0.0
      %2587 = vmatpush1.msra.mxu0 0.0
      %2588 = vmatprep.subr.mxu0 0.0
      %2589 = vmatpush1.msra.mxu0 0.0
      %2590 = vmatprep.subr.mxu0 0.0
      %2591 = vmatpush1.msra.mxu0 0.0
      %2592 = vmatprep.subr.mxu0 0.0
      %2593 = vmatpush1.msra.mxu0 0.0
      %2594 = vmatprep.subr.mxu0 0.0
      %2595 = vmatpush1.msra.mxu0 0.0
      %2596 = vmatprep.subr.mxu0 0.0
      %2597 = vmatpush1.msra.mxu0 0.0
      %2598 = vmatprep.subr.mxu0 0.0
      %2599 = vmatpush1.msra.mxu0 0.0
      %2600 = vmatprep.subr.mxu0 0.0
      %2601 = vmatpush1.msra.mxu0 0.0
      %2602 = vmatprep.subr.mxu0 0.0
      %2603 = vmatpush1.msra.mxu0 0.0
      %2604 = vmatprep.subr.mxu0 0.0
      %2605 = vmatpush1.msra.mxu0 0.0
      %2606 = vmatprep.subr.mxu0 0.0
      %2607 = vmatpush1.msra.mxu0 0.0
      %2608 = vmatprep.subr.mxu0 0.0
      %2609 = vmatpush1.msra.mxu0 0.0
      %2610 = vmatprep.subr.mxu0 0.0
      %2611 = vmatpush1.msra.mxu0 0.0
      %2612 = vmatprep.subr.mxu0 0.0
      %2613 = vmatpush1.msra.mxu0 0.0
      %2614 = vmatprep.subr.mxu0 0.0
      %2615 = vmatpush1.msra.mxu0 0.0
      %2616 = vmatprep.subr.mxu0 0.0
      %2617 = vmatpush1.msra.mxu0 0.0
      %2618 = vmatprep.subr.mxu0 0.0
      %2619 = vmatpush1.msra.mxu0 0.0
      %2620 = vmatprep.subr.mxu0 0.0
      %2621 = vmatpush1.msra.mxu0 0.0
      %2622 = vmatprep.subr.mxu0 0.0
      %2623 = vmatpush1.msra.mxu0 0.0
      %2624 = vmatprep.subr.mxu0 0.0
      %2625 = vmatpush1.msra.mxu0 0.0
      %2626 = vmatprep.subr.mxu0 0.0
      %2627 = vmatpush1.msra.mxu0 0.0
      %2628 = vmatprep.subr.mxu0 0.0
      %2629 = vmatpush1.msra.mxu0 0.0
      %2630 = vmatprep.subr.mxu0 0.0
      %2631 = vmatpush1.msra.mxu0 0.0
      %2632 = vmatprep.subr.mxu0 0.0
      %2633 = vmatpush1.msra.mxu0 0.0
      %2634 = vmatprep.subr.mxu0 0.0
      %2635 = vmatpush1.msra.mxu0 0.0
      %2636 = vmatprep.subr.mxu0 0.0
      %2637 = vmatpush1.msra.mxu0 0.0
      %2638 = vmatprep.mubr.f32.mxu0 0.0
      %2639 = vmatmul.mubr.f32.gmra.mrb[0].mxu0 %v2572
      %v2640 = vpop.f32.mrb[0].mxu0
      %v2641 = vadd.f32 %v2567, %v2640
      %v2642 = vpop.f32.mrb[0].mxu0
      %2643 = vdwg.mxu0
      %v2644 = vadd.f32 %v2641, %v506
      %v2645 = vmax.f32 %v2644, 0.0
      %v2647 = vcombine.high %v2645, %v2645
      %v2649 = vunpack.c.l.s4 1966171168
      %v2650 = vunpack.c.0.s8 %v2649
      %v2651 = vlaneseq
      %v2652 = vshrl.u32 %v2651, 7
      %v2653 = vsub.s32 %v2650, %v2652
      %v2654 = vrot.slane %v2645, %v2653
      %v2656 = vunpack.c.l.s4 1966171168
      %v2657 = vunpack.c.0.s8 %v2656
      %v2658 = vlaneseq
      %v2659 = vshrl.u32 %v2658, 7
      %v2660 = vsub.s32 %v2657, %v2659
      %v2661 = vrot.slane %v2647, %v2660
      %v2662 = vcombine.high %v2654, %v2654
      %v2663 = vcombine.high %v2661, %v2661
      %v2665 = vunpack.c.l.s4 1966171168
      %v2666 = vunpack.c.0.s8 %v2665
      %v2667 = vlaneseq
      %v2668 = vshrl.u32 %v2667, 7
      %v2669 = vsub.s32 %v2666, %v2668
      %v2670 = vrot.slane %v2654, %v2669
      %v2672 = vunpack.c.l.s4 1966171168
      %v2673 = vunpack.c.0.s8 %v2672
      %v2674 = vlaneseq
      %v2675 = vshrl.u32 %v2674, 7
      %v2676 = vsub.s32 %v2673, %v2675
      %v2677 = vrot.slane %v2661, %v2676
      %v2679 = vunpack.c.l.s4 1966171168
      %v2680 = vunpack.c.0.s8 %v2679
      %v2681 = vlaneseq
      %v2682 = vshrl.u32 %v2681, 7
      %v2683 = vsub.s32 %v2680, %v2682
      %v2684 = vrot.slane %v2662, %v2683
      %v2686 = vunpack.c.l.s4 1966171168
      %v2687 = vunpack.c.0.s8 %v2686
      %v2688 = vlaneseq
      %v2689 = vshrl.u32 %v2688, 7
      %v2690 = vsub.s32 %v2687, %v2689
      %v2691 = vrot.slane %v2663, %v2690
      %v2692 = vcombine.high %v2670, %v2670
      %v2693 = vcombine.high %v2677, %v2677
      %v2694 = vcombine.high %v2684, %v2684
      %v2695 = vcombine.high %v2691, %v2691
      %v2696 = vlaneseq
      %v2697 = vshrl.u32 %v2696, 7
      %v2698 = vsub.s32 0, %v2697
      %v2699 = vrot.slane %v2670, %v2698
      %v2700 = vlaneseq
      %v2701 = vshrl.u32 %v2700, 7
      %v2702 = vsub.s32 0, %v2701
      %v2703 = vrot.slane %v2684, %v2702
      %v2704 = vlaneseq
      %v2705 = vshrl.u32 %v2704, 7
      %v2706 = vsub.s32 0, %v2705
      %v2707 = vrot.slane %v2692, %v2706
      %v2708 = vlaneseq
      %v2709 = vshrl.u32 %v2708, 7
      %v2710 = vsub.s32 0, %v2709
      %v2711 = vrot.slane %v2694, %v2710
      %v2712 = vlaneseq
      %v2713 = vshrl.u32 %v2712, 7
      %v2714 = vsub.s32 0, %v2713
      %v2715 = vrot.slane %v2677, %v2714
      %v2716 = vlaneseq
      %v2717 = vshrl.u32 %v2716, 7
      %v2718 = vsub.s32 0, %v2717
      %v2719 = vrot.slane %v2691, %v2718
      %v2720 = vlaneseq
      %v2721 = vshrl.u32 %v2720, 7
      %v2722 = vsub.s32 0, %v2721
      %v2723 = vrot.slane %v2693, %v2722
      %v2724 = vlaneseq
      %v2725 = vshrl.u32 %v2724, 7
      %v2726 = vsub.s32 0, %v2725
      %v2727 = vrot.slane %v2695, %v2726
      %2728 = vrot.lane.b32.xlu0 %v2699, 32
      %v2729 = vpop.permute.xlu0 %2728
      %2730 = vrot.lane.b32.xlu0 %v2703, 32
      %v2731 = vpop.permute.xlu0 %2730
      %2732 = vrot.lane.b32.xlu0 %v2707, 32
      %v2733 = vpop.permute.xlu0 %2732
      %2734 = vrot.lane.b32.xlu0 %v2711, 32
      %v2735 = vpop.permute.xlu0 %2734
      %2736 = vrot.lane.b32.xlu0 %v2715, 32
      %v2737 = vpop.permute.xlu0 %2736
      %2738 = vrot.lane.b32.xlu0 %v2719, 32
      %v2739 = vpop.permute.xlu0 %2738
      %2740 = vrot.lane.b32.xlu0 %v2723, 32
      %v2741 = vpop.permute.xlu0 %2740
      %2742 = vrot.lane.b32.xlu0 %v2727, 32
      %v2743 = vpop.permute.xlu0 %2742
      %2752 = vst.msk [vmem:[%s235 + $0x4] sm:$0x1] %vm831, %v2729
      %2753 = vst.msk [vmem:[%s235 + $0x14] sm:$0x1] %vm831, %v2731
      %2754 = vst.msk [vmem:[%s235 + $0x24] sm:$0x1] %vm831, %v2733
      %2755 = vst.msk [vmem:[%s235 + $0x34] sm:$0x1] %vm831, %v2735
      %2756 = vst.msk [vmem:[%s235 + $0x44] sm:$0x1] %vm831, %v2737
      %2757 = vst.msk [vmem:[%s235 + $0x54] sm:$0x1] %vm831, %v2739
      %2758 = vst.msk [vmem:[%s235 + $0x64] sm:$0x1] %vm831, %v2741
      %2759 = vst.msk [vmem:[%s235 + $0x74] sm:$0x1] %vm831, %v2743
      %2760 = vrot.lane.b32.xlu0 %v335, 48
      %v2761 = vpop.permute.xlu0 %2760
      %v2762 = vsel %vm356, %v2761, 0
      %2764 = vmatprep.subr.mxu0 0.0
      %2765 = vmatpush1.msra.mxu0 %v354
      %2766 = vmatprep.subr.mxu0 0.0
      %2767 = vmatpush1.msra.mxu0 %v355
      %2768 = vmatprep.subr.mxu0 0.0
      %2769 = vmatpush1.msra.mxu0 0.0
      %2770 = vmatprep.subr.mxu0 0.0
      %2771 = vmatpush1.msra.mxu0 0.0
      %2772 = vmatprep.subr.mxu0 0.0
      %2773 = vmatpush1.msra.mxu0 0.0
      %2774 = vmatprep.subr.mxu0 0.0
      %2775 = vmatpush1.msra.mxu0 0.0
      %2776 = vmatprep.subr.mxu0 0.0
      %2777 = vmatpush1.msra.mxu0 0.0
      %2778 = vmatprep.subr.mxu0 0.0
      %2779 = vmatpush1.msra.mxu0 0.0
      %2780 = vmatprep.subr.mxu0 0.0
      %2781 = vmatpush1.msra.mxu0 0.0
      %2782 = vmatprep.subr.mxu0 0.0
      %2783 = vmatpush1.msra.mxu0 0.0
      %2784 = vmatprep.subr.mxu0 0.0
      %2785 = vmatpush1.msra.mxu0 0.0
      %2786 = vmatprep.subr.mxu0 0.0
      %2787 = vmatpush1.msra.mxu0 0.0
      %2788 = vmatprep.subr.mxu0 0.0
      %2789 = vmatpush1.msra.mxu0 0.0
      %2790 = vmatprep.subr.mxu0 0.0
      %2791 = vmatpush1.msra.mxu0 0.0
      %2792 = vmatprep.subr.mxu0 0.0
      %2793 = vmatpush1.msra.mxu0 0.0
      %2794 = vmatprep.subr.mxu0 0.0
      %2795 = vmatpush1.msra.mxu0 0.0
      %2796 = vmatprep.subr.mxu0 0.0
      %2797 = vmatpush1.msra.mxu0 0.0
      %2798 = vmatprep.subr.mxu0 0.0
      %2799 = vmatpush1.msra.mxu0 0.0
      %2800 = vmatprep.subr.mxu0 0.0
      %2801 = vmatpush1.msra.mxu0 0.0
      %2802 = vmatprep.subr.mxu0 0.0
      %2803 = vmatpush1.msra.mxu0 0.0
      %2804 = vmatprep.subr.mxu0 0.0
      %2805 = vmatpush1.msra.mxu0 0.0
      %2806 = vmatprep.subr.mxu0 0.0
      %2807 = vmatpush1.msra.mxu0 0.0
      %2808 = vmatprep.subr.mxu0 0.0
      %2809 = vmatpush1.msra.mxu0 0.0
      %2810 = vmatprep.subr.mxu0 0.0
      %2811 = vmatpush1.msra.mxu0 0.0
      %2812 = vmatprep.subr.mxu0 0.0
      %2813 = vmatpush1.msra.mxu0 0.0
      %2814 = vmatprep.subr.mxu0 0.0
      %2815 = vmatpush1.msra.mxu0 0.0
      %2816 = vmatprep.subr.mxu0 0.0
      %2817 = vmatpush1.msra.mxu0 0.0
      %2818 = vmatprep.subr.mxu0 0.0
      %2819 = vmatpush1.msra.mxu0 0.0
      %2820 = vmatprep.subr.mxu0 0.0
      %2821 = vmatpush1.msra.mxu0 0.0
      %2822 = vmatprep.subr.mxu0 0.0
      %2823 = vmatpush1.msra.mxu0 0.0
      %2824 = vmatprep.subr.mxu0 0.0
      %2825 = vmatpush1.msra.mxu0 0.0
      %2826 = vmatprep.subr.mxu0 0.0
      %2827 = vmatpush1.msra.mxu0 0.0
      %2828 = vmatprep.mubr.f32.mxu0 0.0
      %2829 = vmatmul.mubr.f32.gmra.mrb[0].mxu0 %v2762
      %v2830 = vpop.f32.mrb[0].mxu0
      %v2831 = vadd.f32 0.0, %v2830
      %v2832 = vpop.f32.mrb[0].mxu0
      %2833 = vdwg.mxu0
      %2834 = vrot.lane.b32.xlu0 %v329, 48
      %v2835 = vpop.permute.xlu0 %2834
      %v2836 = vsel %vm356, %v2835, 0
      %2838 = vmatprep.subr.mxu0 0.0
      %2839 = vmatpush1.msra.mxu0 %v352
      %2840 = vmatprep.subr.mxu0 0.0
      %2841 = vmatpush1.msra.mxu0 %v353
      %2842 = vmatprep.subr.mxu0 0.0
      %2843 = vmatpush1.msra.mxu0 0.0
      %2844 = vmatprep.subr.mxu0 0.0
      %2845 = vmatpush1.msra.mxu0 0.0
      %2846 = vmatprep.subr.mxu0 0.0
      %2847 = vmatpush1.msra.mxu0 0.0
      %2848 = vmatprep.subr.mxu0 0.0
      %2849 = vmatpush1.msra.mxu0 0.0
      %2850 = vmatprep.subr.mxu0 0.0
      %2851 = vmatpush1.msra.mxu0 0.0
      %2852 = vmatprep.subr.mxu0 0.0
      %2853 = vmatpush1.msra.mxu0 0.0
      %2854 = vmatprep.subr.mxu0 0.0
      %2855 = vmatpush1.msra.mxu0 0.0
      %2856 = vmatprep.subr.mxu0 0.0
      %2857 = vmatpush1.msra.mxu0 0.0
      %2858 = vmatprep.subr.mxu0 0.0
      %2859 = vmatpush1.msra.mxu0 0.0
      %2860 = vmatprep.subr.mxu0 0.0
      %2861 = vmatpush1.msra.mxu0 0.0
      %2862 = vmatprep.subr.mxu0 0.0
      %2863 = vmatpush1.msra.mxu0 0.0
      %2864 = vmatprep.subr.mxu0 0.0
      %2865 = vmatpush1.msra.mxu0 0.0
      %2866 = vmatprep.subr.mxu0 0.0
      %2867 = vmatpush1.msra.mxu0 0.0
      %2868 = vmatprep.subr.mxu0 0.0
      %2869 = vmatpush1.msra.mxu0 0.0
      %2870 = vmatprep.subr.mxu0 0.0
      %2871 = vmatpush1.msra.mxu0 0.0
      %2872 = vmatprep.subr.mxu0 0.0
      %2873 = vmatpush1.msra.mxu0 0.0
      %2874 = vmatprep.subr.mxu0 0.0
      %2875 = vmatpush1.msra.mxu0 0.0
      %2876 = vmatprep.subr.mxu0 0.0
      %2877 = vmatpush1.msra.mxu0 0.0
      %2878 = vmatprep.subr.mxu0 0.0
      %2879 = vmatpush1.msra.mxu0 0.0
      %2880 = vmatprep.subr.mxu0 0.0
      %2881 = vmatpush1.msra.mxu0 0.0
      %2882 = vmatprep.subr.mxu0 0.0
      %2883 = vmatpush1.msra.mxu0 0.0
      %2884 = vmatprep.subr.mxu0 0.0
      %2885 = vmatpush1.msra.mxu0 0.0
      %2886 = vmatprep.subr.mxu0 0.0
      %2887 = vmatpush1.msra.mxu0 0.0
      %2888 = vmatprep.subr.mxu0 0.0
      %2889 = vmatpush1.msra.mxu0 0.0
      %2890 = vmatprep.subr.mxu0 0.0
      %2891 = vmatpush1.msra.mxu0 0.0
      %2892 = vmatprep.subr.mxu0 0.0
      %2893 = vmatpush1.msra.mxu0 0.0
      %2894 = vmatprep.subr.mxu0 0.0
      %2895 = vmatpush1.msra.mxu0 0.0
      %2896 = vmatprep.subr.mxu0 0.0
      %2897 = vmatpush1.msra.mxu0 0.0
      %2898 = vmatprep.subr.mxu0 0.0
      %2899 = vmatpush1.msra.mxu0 0.0
      %2900 = vmatprep.subr.mxu0 0.0
      %2901 = vmatpush1.msra.mxu0 0.0
      %2902 = vmatprep.mubr.f32.mxu0 0.0
      %2903 = vmatmul.mubr.f32.gmra.mrb[0].mxu0 %v2836
      %v2904 = vpop.f32.mrb[0].mxu0
      %v2905 = vadd.f32 %v2831, %v2904
      %v2906 = vpop.f32.mrb[0].mxu0
      %2907 = vdwg.mxu0
      %v2908 = vadd.f32 %v2905, %v506
      %v2909 = vmax.f32 %v2908, 0.0
      %v2911 = vcombine.high %v2909, %v2909
      %v2913 = vunpack.c.l.s4 1966171168
      %v2914 = vunpack.c.0.s8 %v2913
      %v2915 = vlaneseq
      %v2916 = vshrl.u32 %v2915, 7
      %v2917 = vsub.s32 %v2914, %v2916
      %v2918 = vrot.slane %v2909, %v2917
      %v2920 = vunpack.c.l.s4 1966171168
      %v2921 = vunpack.c.0.s8 %v2920
      %v2922 = vlaneseq
      %v2923 = vshrl.u32 %v2922, 7
      %v2924 = vsub.s32 %v2921, %v2923
      %v2925 = vrot.slane %v2911, %v2924
      %v2926 = vcombine.high %v2918, %v2918
      %v2927 = vcombine.high %v2925, %v2925
      %v2929 = vunpack.c.l.s4 1966171168
      %v2930 = vunpack.c.0.s8 %v2929
      %v2931 = vlaneseq
      %v2932 = vshrl.u32 %v2931, 7
      %v2933 = vsub.s32 %v2930, %v2932
      %v2934 = vrot.slane %v2918, %v2933
      %v2936 = vunpack.c.l.s4 1966171168
      %v2937 = vunpack.c.0.s8 %v2936
      %v2938 = vlaneseq
      %v2939 = vshrl.u32 %v2938, 7
      %v2940 = vsub.s32 %v2937, %v2939
      %v2941 = vrot.slane %v2925, %v2940
      %v2943 = vunpack.c.l.s4 1966171168
      %v2944 = vunpack.c.0.s8 %v2943
      %v2945 = vlaneseq
      %v2946 = vshrl.u32 %v2945, 7
      %v2947 = vsub.s32 %v2944, %v2946
      %v2948 = vrot.slane %v2926, %v2947
      %v2950 = vunpack.c.l.s4 1966171168
      %v2951 = vunpack.c.0.s8 %v2950
      %v2952 = vlaneseq
      %v2953 = vshrl.u32 %v2952, 7
      %v2954 = vsub.s32 %v2951, %v2953
      %v2955 = vrot.slane %v2927, %v2954
      %v2956 = vcombine.high %v2934, %v2934
      %v2957 = vcombine.high %v2941, %v2941
      %v2958 = vcombine.high %v2948, %v2948
      %v2959 = vcombine.high %v2955, %v2955
      %2968 = vst.msk [vmem:[%s235 + $0x5] sm:$0x1] %vm568, %v2934
      %2969 = vst.msk [vmem:[%s235 + $0x15] sm:$0x1] %vm568, %v2948
      %2970 = vst.msk [vmem:[%s235 + $0x25] sm:$0x1] %vm568, %v2956
      %2971 = vst.msk [vmem:[%s235 + $0x35] sm:$0x1] %vm568, %v2958
      %2972 = vst.msk [vmem:[%s235 + $0x45] sm:$0x1] %vm568, %v2941
      %2973 = vst.msk [vmem:[%s235 + $0x55] sm:$0x1] %vm568, %v2955
      %2974 = vst.msk [vmem:[%s235 + $0x65] sm:$0x1] %vm568, %v2957
      %2975 = vst.msk [vmem:[%s235 + $0x75] sm:$0x1] %vm568, %v2959
      %2976 = vrot.lane.b32.xlu0 %v347, 48
      %v2977 = vpop.permute.xlu0 %2976
      %v2978 = vsel %vm356, %v2977, 0
      %2980 = vmatprep.subr.mxu0 0.0
      %2981 = vmatpush1.msra.mxu0 %v354
      %2982 = vmatprep.subr.mxu0 0.0
      %2983 = vmatpush1.msra.mxu0 %v355
      %2984 = vmatprep.subr.mxu0 0.0
      %2985 = vmatpush1.msra.mxu0 0.0
      %2986 = vmatprep.subr.mxu0 0.0
      %2987 = vmatpush1.msra.mxu0 0.0
      %2988 = vmatprep.subr.mxu0 0.0
      %2989 = vmatpush1.msra.mxu0 0.0
      %2990 = vmatprep.subr.mxu0 0.0
      %2991 = vmatpush1.msra.mxu0 0.0
      %2992 = vmatprep.subr.mxu0 0.0
      %2993 = vmatpush1.msra.mxu0 0.0
      %2994 = vmatprep.subr.mxu0 0.0
      %2995 = vmatpush1.msra.mxu0 0.0
      %2996 = vmatprep.subr.mxu0 0.0
      %2997 = vmatpush1.msra.mxu0 0.0
      %2998 = vmatprep.subr.mxu0 0.0
      %2999 = vmatpush1.msra.mxu0 0.0
      %3000 = vmatprep.subr.mxu0 0.0
      %3001 = vmatpush1.msra.mxu0 0.0
      %3002 = vmatprep.subr.mxu0 0.0
      %3003 = vmatpush1.msra.mxu0 0.0
      %3004 = vmatprep.subr.mxu0 0.0
      %3005 = vmatpush1.msra.mxu0 0.0
      %3006 = vmatprep.subr.mxu0 0.0
      %3007 = vmatpush1.msra.mxu0 0.0
      %3008 = vmatprep.subr.mxu0 0.0
      %3009 = vmatpush1.msra.mxu0 0.0
      %3010 = vmatprep.subr.mxu0 0.0
      %3011 = vmatpush1.msra.mxu0 0.0
      %3012 = vmatprep.subr.mxu0 0.0
      %3013 = vmatpush1.msra.mxu0 0.0
      %3014 = vmatprep.subr.mxu0 0.0
      %3015 = vmatpush1.msra.mxu0 0.0
      %3016 = vmatprep.subr.mxu0 0.0
      %3017 = vmatpush1.msra.mxu0 0.0
      %3018 = vmatprep.subr.mxu0 0.0
      %3019 = vmatpush1.msra.mxu0 0.0
      %3020 = vmatprep.subr.mxu0 0.0
      %3021 = vmatpush1.msra.mxu0 0.0
      %3022 = vmatprep.subr.mxu0 0.0
      %3023 = vmatpush1.msra.mxu0 0.0
      %3024 = vmatprep.subr.mxu0 0.0
      %3025 = vmatpush1.msra.mxu0 0.0
      %3026 = vmatprep.subr.mxu0 0.0
      %3027 = vmatpush1.msra.mxu0 0.0
      %3028 = vmatprep.subr.mxu0 0.0
      %3029 = vmatpush1.msra.mxu0 0.0
      %3030 = vmatprep.subr.mxu0 0.0
      %3031 = vmatpush1.msra.mxu0 0.0
      %3032 = vmatprep.subr.mxu0 0.0
      %3033 = vmatpush1.msra.mxu0 0.0
      %3034 = vmatprep.subr.mxu0 0.0
      %3035 = vmatpush1.msra.mxu0 0.0
      %3036 = vmatprep.subr.mxu0 0.0
      %3037 = vmatpush1.msra.mxu0 0.0
      %3038 = vmatprep.subr.mxu0 0.0
      %3039 = vmatpush1.msra.mxu0 0.0
      %3040 = vmatprep.subr.mxu0 0.0
      %3041 = vmatpush1.msra.mxu0 0.0
      %3042 = vmatprep.subr.mxu0 0.0
      %3043 = vmatpush1.msra.mxu0 0.0
      %3044 = vmatprep.mubr.f32.mxu0 0.0
      %3045 = vmatmul.mubr.f32.gmra.mrb[0].mxu0 %v2978
      %v3046 = vpop.f32.mrb[0].mxu0
      %v3047 = vadd.f32 0.0, %v3046
      %v3048 = vpop.f32.mrb[0].mxu0
      %3049 = vdwg.mxu0
      %3050 = vrot.lane.b32.xlu0 %v341, 48
      %v3051 = vpop.permute.xlu0 %3050
      %v3052 = vsel %vm356, %v3051, 0
      %3054 = vmatprep.subr.mxu0 0.0
      %3055 = vmatpush1.msra.mxu0 %v352
      %3056 = vmatprep.subr.mxu0 0.0
      %3057 = vmatpush1.msra.mxu0 %v353
      %3058 = vmatprep.subr.mxu0 0.0
      %3059 = vmatpush1.msra.mxu0 0.0
      %3060 = vmatprep.subr.mxu0 0.0
      %3061 = vmatpush1.msra.mxu0 0.0
      %3062 = vmatprep.subr.mxu0 0.0
      %3063 = vmatpush1.msra.mxu0 0.0
      %3064 = vmatprep.subr.mxu0 0.0
      %3065 = vmatpush1.msra.mxu0 0.0
      %3066 = vmatprep.subr.mxu0 0.0
      %3067 = vmatpush1.msra.mxu0 0.0
      %3068 = vmatprep.subr.mxu0 0.0
      %3069 = vmatpush1.msra.mxu0 0.0
      %3070 = vmatprep.subr.mxu0 0.0
      %3071 = vmatpush1.msra.mxu0 0.0
      %3072 = vmatprep.subr.mxu0 0.0
      %3073 = vmatpush1.msra.mxu0 0.0
      %3074 = vmatprep.subr.mxu0 0.0
      %3075 = vmatpush1.msra.mxu0 0.0
      %3076 = vmatprep.subr.mxu0 0.0
      %3077 = vmatpush1.msra.mxu0 0.0
      %3078 = vmatprep.subr.mxu0 0.0
      %3079 = vmatpush1.msra.mxu0 0.0
      %3080 = vmatprep.subr.mxu0 0.0
      %3081 = vmatpush1.msra.mxu0 0.0
      %3082 = vmatprep.subr.mxu0 0.0
      %3083 = vmatpush1.msra.mxu0 0.0
      %3084 = vmatprep.subr.mxu0 0.0
      %3085 = vmatpush1.msra.mxu0 0.0
      %3086 = vmatprep.subr.mxu0 0.0
      %3087 = vmatpush1.msra.mxu0 0.0
      %3088 = vmatprep.subr.mxu0 0.0
      %3089 = vmatpush1.msra.mxu0 0.0
      %3090 = vmatprep.subr.mxu0 0.0
      %3091 = vmatpush1.msra.mxu0 0.0
      %3092 = vmatprep.subr.mxu0 0.0
      %3093 = vmatpush1.msra.mxu0 0.0
      %3094 = vmatprep.subr.mxu0 0.0
      %3095 = vmatpush1.msra.mxu0 0.0
      %3096 = vmatprep.subr.mxu0 0.0
      %3097 = vmatpush1.msra.mxu0 0.0
      %3098 = vmatprep.subr.mxu0 0.0
      %3099 = vmatpush1.msra.mxu0 0.0
      %3100 = vmatprep.subr.mxu0 0.0
      %3101 = vmatpush1.msra.mxu0 0.0
      %3102 = vmatprep.subr.mxu0 0.0
      %3103 = vmatpush1.msra.mxu0 0.0
      %3104 = vmatprep.subr.mxu0 0.0
      %3105 = vmatpush1.msra.mxu0 0.0
      %3106 = vmatprep.subr.mxu0 0.0
      %3107 = vmatpush1.msra.mxu0 0.0
      %3108 = vmatprep.subr.mxu0 0.0
      %3109 = vmatpush1.msra.mxu0 0.0
      %3110 = vmatprep.subr.mxu0 0.0
      %3111 = vmatpush1.msra.mxu0 0.0
      %3112 = vmatprep.subr.mxu0 0.0
      %3113 = vmatpush1.msra.mxu0 0.0
      %3114 = vmatprep.subr.mxu0 0.0
      %3115 = vmatpush1.msra.mxu0 0.0
      %3116 = vmatprep.subr.mxu0 0.0
      %3117 = vmatpush1.msra.mxu0 0.0
      %3118 = vmatprep.mubr.f32.mxu0 0.0
      %3119 = vmatmul.mubr.f32.gmra.mrb[0].mxu0 %v3052
      %v3120 = vpop.f32.mrb[0].mxu0
      %v3121 = vadd.f32 %v3047, %v3120
      %v3122 = vpop.f32.mrb[0].mxu0
      %3123 = vdwg.mxu0
      %v3124 = vadd.f32 %v3121, %v506
      %v3125 = vmax.f32 %v3124, 0.0
      %v3127 = vcombine.high %v3125, %v3125
      %v3129 = vunpack.c.l.s4 1966171168
      %v3130 = vunpack.c.0.s8 %v3129
      %v3131 = vlaneseq
      %v3132 = vshrl.u32 %v3131, 7
      %v3133 = vsub.s32 %v3130, %v3132
      %v3134 = vrot.slane %v3125, %v3133
      %v3136 = vunpack.c.l.s4 1966171168
      %v3137 = vunpack.c.0.s8 %v3136
      %v3138 = vlaneseq
      %v3139 = vshrl.u32 %v3138, 7
      %v3140 = vsub.s32 %v3137, %v3139
      %v3141 = vrot.slane %v3127, %v3140
      %v3142 = vcombine.high %v3134, %v3134
      %v3143 = vcombine.high %v3141, %v3141
      %v3145 = vunpack.c.l.s4 1966171168
      %v3146 = vunpack.c.0.s8 %v3145
      %v3147 = vlaneseq
      %v3148 = vshrl.u32 %v3147, 7
      %v3149 = vsub.s32 %v3146, %v3148
      %v3150 = vrot.slane %v3134, %v3149
      %v3152 = vunpack.c.l.s4 1966171168
      %v3153 = vunpack.c.0.s8 %v3152
      %v3154 = vlaneseq
      %v3155 = vshrl.u32 %v3154, 7
      %v3156 = vsub.s32 %v3153, %v3155
      %v3157 = vrot.slane %v3141, %v3156
      %v3159 = vunpack.c.l.s4 1966171168
      %v3160 = vunpack.c.0.s8 %v3159
      %v3161 = vlaneseq
      %v3162 = vshrl.u32 %v3161, 7
      %v3163 = vsub.s32 %v3160, %v3162
      %v3164 = vrot.slane %v3142, %v3163
      %v3166 = vunpack.c.l.s4 1966171168
      %v3167 = vunpack.c.0.s8 %v3166
      %v3168 = vlaneseq
      %v3169 = vshrl.u32 %v3168, 7
      %v3170 = vsub.s32 %v3167, %v3169
      %v3171 = vrot.slane %v3143, %v3170
      %v3172 = vcombine.high %v3150, %v3150
      %v3173 = vcombine.high %v3157, %v3157
      %v3174 = vcombine.high %v3164, %v3164
      %v3175 = vcombine.high %v3171, %v3171
      %v3176 = vlaneseq
      %v3177 = vshrl.u32 %v3176, 7
      %v3178 = vsub.s32 0, %v3177
      %v3179 = vrot.slane %v3150, %v3178
      %v3180 = vlaneseq
      %v3181 = vshrl.u32 %v3180, 7
      %v3182 = vsub.s32 0, %v3181
      %v3183 = vrot.slane %v3164, %v3182
      %v3184 = vlaneseq
      %v3185 = vshrl.u32 %v3184, 7
      %v3186 = vsub.s32 0, %v3185
      %v3187 = vrot.slane %v3172, %v3186
      %v3188 = vlaneseq
      %v3189 = vshrl.u32 %v3188, 7
      %v3190 = vsub.s32 0, %v3189
      %v3191 = vrot.slane %v3174, %v3190
      %v3192 = vlaneseq
      %v3193 = vshrl.u32 %v3192, 7
      %v3194 = vsub.s32 0, %v3193
      %v3195 = vrot.slane %v3157, %v3194
      %v3196 = vlaneseq
      %v3197 = vshrl.u32 %v3196, 7
      %v3198 = vsub.s32 0, %v3197
      %v3199 = vrot.slane %v3171, %v3198
      %v3200 = vlaneseq
      %v3201 = vshrl.u32 %v3200, 7
      %v3202 = vsub.s32 0, %v3201
      %v3203 = vrot.slane %v3173, %v3202
      %v3204 = vlaneseq
      %v3205 = vshrl.u32 %v3204, 7
      %v3206 = vsub.s32 0, %v3205
      %v3207 = vrot.slane %v3175, %v3206
      %3208 = vrot.lane.b32.xlu0 %v3179, 32
      %v3209 = vpop.permute.xlu0 %3208
      %3210 = vrot.lane.b32.xlu0 %v3183, 32
      %v3211 = vpop.permute.xlu0 %3210
      %3212 = vrot.lane.b32.xlu0 %v3187, 32
      %v3213 = vpop.permute.xlu0 %3212
      %3214 = vrot.lane.b32.xlu0 %v3191, 32
      %v3215 = vpop.permute.xlu0 %3214
      %3216 = vrot.lane.b32.xlu0 %v3195, 32
      %v3217 = vpop.permute.xlu0 %3216
      %3218 = vrot.lane.b32.xlu0 %v3199, 32
      %v3219 = vpop.permute.xlu0 %3218
      %3220 = vrot.lane.b32.xlu0 %v3203, 32
      %v3221 = vpop.permute.xlu0 %3220
      %3222 = vrot.lane.b32.xlu0 %v3207, 32
      %v3223 = vpop.permute.xlu0 %3222
      %3232 = vst.msk [vmem:[%s235 + $0x5] sm:$0x1] %vm831, %v3209
      %3233 = vst.msk [vmem:[%s235 + $0x15] sm:$0x1] %vm831, %v3211
      %3234 = vst.msk [vmem:[%s235 + $0x25] sm:$0x1] %vm831, %v3213
      %3235 = vst.msk [vmem:[%s235 + $0x35] sm:$0x1] %vm831, %v3215
      %3236 = vst.msk [vmem:[%s235 + $0x45] sm:$0x1] %vm831, %v3217
      %3237 = vst.msk [vmem:[%s235 + $0x55] sm:$0x1] %vm831, %v3219
      %3238 = vst.msk [vmem:[%s235 + $0x65] sm:$0x1] %vm831, %v3221
      %3239 = vst.msk [vmem:[%s235 + $0x75] sm:$0x1] %vm831, %v3223
      %3240 = vrot.lane.b32.xlu0 %v335, 32
      %v3241 = vpop.permute.xlu0 %3240
      %v3242 = vsel %vm356, %v3241, 0
      %3244 = vmatprep.subr.mxu0 0.0
      %3245 = vmatpush1.msra.mxu0 %v354
      %3246 = vmatprep.subr.mxu0 0.0
      %3247 = vmatpush1.msra.mxu0 %v355
      %3248 = vmatprep.subr.mxu0 0.0
      %3249 = vmatpush1.msra.mxu0 0.0
      %3250 = vmatprep.subr.mxu0 0.0
      %3251 = vmatpush1.msra.mxu0 0.0
      %3252 = vmatprep.subr.mxu0 0.0
      %3253 = vmatpush1.msra.mxu0 0.0
      %3254 = vmatprep.subr.mxu0 0.0
      %3255 = vmatpush1.msra.mxu0 0.0
      %3256 = vmatprep.subr.mxu0 0.0
      %3257 = vmatpush1.msra.mxu0 0.0
      %3258 = vmatprep.subr.mxu0 0.0
      %3259 = vmatpush1.msra.mxu0 0.0
      %3260 = vmatprep.subr.mxu0 0.0
      %3261 = vmatpush1.msra.mxu0 0.0
      %3262 = vmatprep.subr.mxu0 0.0
      %3263 = vmatpush1.msra.mxu0 0.0
      %3264 = vmatprep.subr.mxu0 0.0
      %3265 = vmatpush1.msra.mxu0 0.0
      %3266 = vmatprep.subr.mxu0 0.0
      %3267 = vmatpush1.msra.mxu0 0.0
      %3268 = vmatprep.subr.mxu0 0.0
      %3269 = vmatpush1.msra.mxu0 0.0
      %3270 = vmatprep.subr.mxu0 0.0
      %3271 = vmatpush1.msra.mxu0 0.0
      %3272 = vmatprep.subr.mxu0 0.0
      %3273 = vmatpush1.msra.mxu0 0.0
      %3274 = vmatprep.subr.mxu0 0.0
      %3275 = vmatpush1.msra.mxu0 0.0
      %3276 = vmatprep.subr.mxu0 0.0
      %3277 = vmatpush1.msra.mxu0 0.0
      %3278 = vmatprep.subr.mxu0 0.0
      %3279 = vmatpush1.msra.mxu0 0.0
      %3280 = vmatprep.subr.mxu0 0.0
      %3281 = vmatpush1.msra.mxu0 0.0
      %3282 = vmatprep.subr.mxu0 0.0
      %3283 = vmatpush1.msra.mxu0 0.0
      %3284 = vmatprep.subr.mxu0 0.0
      %3285 = vmatpush1.msra.mxu0 0.0
      %3286 = vmatprep.subr.mxu0 0.0
      %3287 = vmatpush1.msra.mxu0 0.0
      %3288 = vmatprep.subr.mxu0 0.0
      %3289 = vmatpush1.msra.mxu0 0.0
      %3290 = vmatprep.subr.mxu0 0.0
      %3291 = vmatpush1.msra.mxu0 0.0
      %3292 = vmatprep.subr.mxu0 0.0
      %3293 = vmatpush1.msra.mxu0 0.0
      %3294 = vmatprep.subr.mxu0 0.0
      %3295 = vmatpush1.msra.mxu0 0.0
      %3296 = vmatprep.subr.mxu0 0.0
      %3297 = vmatpush1.msra.mxu0 0.0
      %3298 = vmatprep.subr.mxu0 0.0
      %3299 = vmatpush1.msra.mxu0 0.0
      %3300 = vmatprep.subr.mxu0 0.0
      %3301 = vmatpush1.msra.mxu0 0.0
      %3302 = vmatprep.subr.mxu0 0.0
      %3303 = vmatpush1.msra.mxu0 0.0
      %3304 = vmatprep.subr.mxu0 0.0
      %3305 = vmatpush1.msra.mxu0 0.0
      %3306 = vmatprep.subr.mxu0 0.0
      %3307 = vmatpush1.msra.mxu0 0.0
      %3308 = vmatprep.mubr.f32.mxu0 0.0
      %3309 = vmatmul.mubr.f32.gmra.mrb[0].mxu0 %v3242
      %v3310 = vpop.f32.mrb[0].mxu0
      %v3311 = vadd.f32 0.0, %v3310
      %v3312 = vpop.f32.mrb[0].mxu0
      %3313 = vdwg.mxu0
      %3314 = vrot.lane.b32.xlu0 %v329, 32
      %v3315 = vpop.permute.xlu0 %3314
      %v3316 = vsel %vm356, %v3315, 0
      %3318 = vmatprep.subr.mxu0 0.0
      %3319 = vmatpush1.msra.mxu0 %v352
      %3320 = vmatprep.subr.mxu0 0.0
      %3321 = vmatpush1.msra.mxu0 %v353
      %3322 = vmatprep.subr.mxu0 0.0
      %3323 = vmatpush1.msra.mxu0 0.0
      %3324 = vmatprep.subr.mxu0 0.0
      %3325 = vmatpush1.msra.mxu0 0.0
      %3326 = vmatprep.subr.mxu0 0.0
      %3327 = vmatpush1.msra.mxu0 0.0
      %3328 = vmatprep.subr.mxu0 0.0
      %3329 = vmatpush1.msra.mxu0 0.0
      %3330 = vmatprep.subr.mxu0 0.0
      %3331 = vmatpush1.msra.mxu0 0.0
      %3332 = vmatprep.subr.mxu0 0.0
      %3333 = vmatpush1.msra.mxu0 0.0
      %3334 = vmatprep.subr.mxu0 0.0
      %3335 = vmatpush1.msra.mxu0 0.0
      %3336 = vmatprep.subr.mxu0 0.0
      %3337 = vmatpush1.msra.mxu0 0.0
      %3338 = vmatprep.subr.mxu0 0.0
      %3339 = vmatpush1.msra.mxu0 0.0
      %3340 = vmatprep.subr.mxu0 0.0
      %3341 = vmatpush1.msra.mxu0 0.0
      %3342 = vmatprep.subr.mxu0 0.0
      %3343 = vmatpush1.msra.mxu0 0.0
      %3344 = vmatprep.subr.mxu0 0.0
      %3345 = vmatpush1.msra.mxu0 0.0
      %3346 = vmatprep.subr.mxu0 0.0
      %3347 = vmatpush1.msra.mxu0 0.0
      %3348 = vmatprep.subr.mxu0 0.0
      %3349 = vmatpush1.msra.mxu0 0.0
      %3350 = vmatprep.subr.mxu0 0.0
      %3351 = vmatpush1.msra.mxu0 0.0
      %3352 = vmatprep.subr.mxu0 0.0
      %3353 = vmatpush1.msra.mxu0 0.0
      %3354 = vmatprep.subr.mxu0 0.0
      %3355 = vmatpush1.msra.mxu0 0.0
      %3356 = vmatprep.subr.mxu0 0.0
      %3357 = vmatpush1.msra.mxu0 0.0
      %3358 = vmatprep.subr.mxu0 0.0
      %3359 = vmatpush1.msra.mxu0 0.0
      %3360 = vmatprep.subr.mxu0 0.0
      %3361 = vmatpush1.msra.mxu0 0.0
      %3362 = vmatprep.subr.mxu0 0.0
      %3363 = vmatpush1.msra.mxu0 0.0
      %3364 = vmatprep.subr.mxu0 0.0
      %3365 = vmatpush1.msra.mxu0 0.0
      %3366 = vmatprep.subr.mxu0 0.0
      %3367 = vmatpush1.msra.mxu0 0.0
      %3368 = vmatprep.subr.mxu0 0.0
      %3369 = vmatpush1.msra.mxu0 0.0
      %3370 = vmatprep.subr.mxu0 0.0
      %3371 = vmatpush1.msra.mxu0 0.0
      %3372 = vmatprep.subr.mxu0 0.0
      %3373 = vmatpush1.msra.mxu0 0.0
      %3374 = vmatprep.subr.mxu0 0.0
      %3375 = vmatpush1.msra.mxu0 0.0
      %3376 = vmatprep.subr.mxu0 0.0
      %3377 = vmatpush1.msra.mxu0 0.0
      %3378 = vmatprep.subr.mxu0 0.0
      %3379 = vmatpush1.msra.mxu0 0.0
      %3380 = vmatprep.subr.mxu0 0.0
      %3381 = vmatpush1.msra.mxu0 0.0
      %3382 = vmatprep.mubr.f32.mxu0 0.0
      %3383 = vmatmul.mubr.f32.gmra.mrb[0].mxu0 %v3316
      %v3384 = vpop.f32.mrb[0].mxu0
      %v3385 = vadd.f32 %v3311, %v3384
      %v3386 = vpop.f32.mrb[0].mxu0
      %3387 = vdwg.mxu0
      %v3388 = vadd.f32 %v3385, %v506
      %v3389 = vmax.f32 %v3388, 0.0
      %v3391 = vcombine.high %v3389, %v3389
      %v3393 = vunpack.c.l.s4 1966171168
      %v3394 = vunpack.c.0.s8 %v3393
      %v3395 = vlaneseq
      %v3396 = vshrl.u32 %v3395, 7
      %v3397 = vsub.s32 %v3394, %v3396
      %v3398 = vrot.slane %v3389, %v3397
      %v3400 = vunpack.c.l.s4 1966171168
      %v3401 = vunpack.c.0.s8 %v3400
      %v3402 = vlaneseq
      %v3403 = vshrl.u32 %v3402, 7
      %v3404 = vsub.s32 %v3401, %v3403
      %v3405 = vrot.slane %v3391, %v3404
      %v3406 = vcombine.high %v3398, %v3398
      %v3407 = vcombine.high %v3405, %v3405
      %v3409 = vunpack.c.l.s4 1966171168
      %v3410 = vunpack.c.0.s8 %v3409
      %v3411 = vlaneseq
      %v3412 = vshrl.u32 %v3411, 7
      %v3413 = vsub.s32 %v3410, %v3412
      %v3414 = vrot.slane %v3398, %v3413
      %v3416 = vunpack.c.l.s4 1966171168
      %v3417 = vunpack.c.0.s8 %v3416
      %v3418 = vlaneseq
      %v3419 = vshrl.u32 %v3418, 7
      %v3420 = vsub.s32 %v3417, %v3419
      %v3421 = vrot.slane %v3405, %v3420
      %v3423 = vunpack.c.l.s4 1966171168
      %v3424 = vunpack.c.0.s8 %v3423
      %v3425 = vlaneseq
      %v3426 = vshrl.u32 %v3425, 7
      %v3427 = vsub.s32 %v3424, %v3426
      %v3428 = vrot.slane %v3406, %v3427
      %v3430 = vunpack.c.l.s4 1966171168
      %v3431 = vunpack.c.0.s8 %v3430
      %v3432 = vlaneseq
      %v3433 = vshrl.u32 %v3432, 7
      %v3434 = vsub.s32 %v3431, %v3433
      %v3435 = vrot.slane %v3407, %v3434
      %v3436 = vcombine.high %v3414, %v3414
      %v3437 = vcombine.high %v3421, %v3421
      %v3438 = vcombine.high %v3428, %v3428
      %v3439 = vcombine.high %v3435, %v3435
      %3448 = vst.msk [vmem:[%s235 + $0x6] sm:$0x1] %vm568, %v3414
      %3449 = vst.msk [vmem:[%s235 + $0x16] sm:$0x1] %vm568, %v3428
      %3450 = vst.msk [vmem:[%s235 + $0x26] sm:$0x1] %vm568, %v3436
      %3451 = vst.msk [vmem:[%s235 + $0x36] sm:$0x1] %vm568, %v3438
      %3452 = vst.msk [vmem:[%s235 + $0x46] sm:$0x1] %vm568, %v3421
      %3453 = vst.msk [vmem:[%s235 + $0x56] sm:$0x1] %vm568, %v3435
      %3454 = vst.msk [vmem:[%s235 + $0x66] sm:$0x1] %vm568, %v3437
      %3455 = vst.msk [vmem:[%s235 + $0x76] sm:$0x1] %vm568, %v3439
      %3456 = vrot.lane.b32.xlu0 %v347, 32
      %v3457 = vpop.permute.xlu0 %3456
      %v3458 = vsel %vm356, %v3457, 0
      %3460 = vmatprep.subr.mxu0 0.0
      %3461 = vmatpush1.msra.mxu0 %v354
      %3462 = vmatprep.subr.mxu0 0.0
      %3463 = vmatpush1.msra.mxu0 %v355
      %3464 = vmatprep.subr.mxu0 0.0
      %3465 = vmatpush1.msra.mxu0 0.0
      %3466 = vmatprep.subr.mxu0 0.0
      %3467 = vmatpush1.msra.mxu0 0.0
      %3468 = vmatprep.subr.mxu0 0.0
      %3469 = vmatpush1.msra.mxu0 0.0
      %3470 = vmatprep.subr.mxu0 0.0
      %3471 = vmatpush1.msra.mxu0 0.0
      %3472 = vmatprep.subr.mxu0 0.0
      %3473 = vmatpush1.msra.mxu0 0.0
      %3474 = vmatprep.subr.mxu0 0.0
      %3475 = vmatpush1.msra.mxu0 0.0
      %3476 = vmatprep.subr.mxu0 0.0
      %3477 = vmatpush1.msra.mxu0 0.0
      %3478 = vmatprep.subr.mxu0 0.0
      %3479 = vmatpush1.msra.mxu0 0.0
      %3480 = vmatprep.subr.mxu0 0.0
      %3481 = vmatpush1.msra.mxu0 0.0
      %3482 = vmatprep.subr.mxu0 0.0
      %3483 = vmatpush1.msra.mxu0 0.0
      %3484 = vmatprep.subr.mxu0 0.0
      %3485 = vmatpush1.msra.mxu0 0.0
      %3486 = vmatprep.subr.mxu0 0.0
      %3487 = vmatpush1.msra.mxu0 0.0
      %3488 = vmatprep.subr.mxu0 0.0
      %3489 = vmatpush1.msra.mxu0 0.0
      %3490 = vmatprep.subr.mxu0 0.0
      %3491 = vmatpush1.msra.mxu0 0.0
      %3492 = vmatprep.subr.mxu0 0.0
      %3493 = vmatpush1.msra.mxu0 0.0
      %3494 = vmatprep.subr.mxu0 0.0
      %3495 = vmatpush1.msra.mxu0 0.0
      %3496 = vmatprep.subr.mxu0 0.0
      %3497 = vmatpush1.msra.mxu0 0.0
      %3498 = vmatprep.subr.mxu0 0.0
      %3499 = vmatpush1.msra.mxu0 0.0
      %3500 = vmatprep.subr.mxu0 0.0
      %3501 = vmatpush1.msra.mxu0 0.0
      %3502 = vmatprep.subr.mxu0 0.0
      %3503 = vmatpush1.msra.mxu0 0.0
      %3504 = vmatprep.subr.mxu0 0.0
      %3505 = vmatpush1.msra.mxu0 0.0
      %3506 = vmatprep.subr.mxu0 0.0
      %3507 = vmatpush1.msra.mxu0 0.0
      %3508 = vmatprep.subr.mxu0 0.0
      %3509 = vmatpush1.msra.mxu0 0.0
      %3510 = vmatprep.subr.mxu0 0.0
      %3511 = vmatpush1.msra.mxu0 0.0
      %3512 = vmatprep.subr.mxu0 0.0
      %3513 = vmatpush1.msra.mxu0 0.0
      %3514 = vmatprep.subr.mxu0 0.0
      %3515 = vmatpush1.msra.mxu0 0.0
      %3516 = vmatprep.subr.mxu0 0.0
      %3517 = vmatpush1.msra.mxu0 0.0
      %3518 = vmatprep.subr.mxu0 0.0
      %3519 = vmatpush1.msra.mxu0 0.0
      %3520 = vmatprep.subr.mxu0 0.0
      %3521 = vmatpush1.msra.mxu0 0.0
      %3522 = vmatprep.subr.mxu0 0.0
      %3523 = vmatpush1.msra.mxu0 0.0
      %3524 = vmatprep.mubr.f32.mxu0 0.0
      %3525 = vmatmul.mubr.f32.gmra.mrb[0].mxu0 %v3458
      %v3526 = vpop.f32.mrb[0].mxu0
      %v3527 = vadd.f32 0.0, %v3526
      %v3528 = vpop.f32.mrb[0].mxu0
      %3529 = vdwg.mxu0
      %3530 = vrot.lane.b32.xlu0 %v341, 32
      %v3531 = vpop.permute.xlu0 %3530
      %v3532 = vsel %vm356, %v3531, 0
      %3534 = vmatprep.subr.mxu0 0.0
      %3535 = vmatpush1.msra.mxu0 %v352
      %3536 = vmatprep.subr.mxu0 0.0
      %3537 = vmatpush1.msra.mxu0 %v353
      %3538 = vmatprep.subr.mxu0 0.0
      %3539 = vmatpush1.msra.mxu0 0.0
      %3540 = vmatprep.subr.mxu0 0.0
      %3541 = vmatpush1.msra.mxu0 0.0
      %3542 = vmatprep.subr.mxu0 0.0
      %3543 = vmatpush1.msra.mxu0 0.0
      %3544 = vmatprep.subr.mxu0 0.0
      %3545 = vmatpush1.msra.mxu0 0.0
      %3546 = vmatprep.subr.mxu0 0.0
      %3547 = vmatpush1.msra.mxu0 0.0
      %3548 = vmatprep.subr.mxu0 0.0
      %3549 = vmatpush1.msra.mxu0 0.0
      %3550 = vmatprep.subr.mxu0 0.0
      %3551 = vmatpush1.msra.mxu0 0.0
      %3552 = vmatprep.subr.mxu0 0.0
      %3553 = vmatpush1.msra.mxu0 0.0
      %3554 = vmatprep.subr.mxu0 0.0
      %3555 = vmatpush1.msra.mxu0 0.0
      %3556 = vmatprep.subr.mxu0 0.0
      %3557 = vmatpush1.msra.mxu0 0.0
      %3558 = vmatprep.subr.mxu0 0.0
      %3559 = vmatpush1.msra.mxu0 0.0
      %3560 = vmatprep.subr.mxu0 0.0
      %3561 = vmatpush1.msra.mxu0 0.0
      %3562 = vmatprep.subr.mxu0 0.0
      %3563 = vmatpush1.msra.mxu0 0.0
      %3564 = vmatprep.subr.mxu0 0.0
      %3565 = vmatpush1.msra.mxu0 0.0
      %3566 = vmatprep.subr.mxu0 0.0
      %3567 = vmatpush1.msra.mxu0 0.0
      %3568 = vmatprep.subr.mxu0 0.0
      %3569 = vmatpush1.msra.mxu0 0.0
      %3570 = vmatprep.subr.mxu0 0.0
      %3571 = vmatpush1.msra.mxu0 0.0
      %3572 = vmatprep.subr.mxu0 0.0
      %3573 = vmatpush1.msra.mxu0 0.0
      %3574 = vmatprep.subr.mxu0 0.0
      %3575 = vmatpush1.msra.mxu0 0.0
      %3576 = vmatprep.subr.mxu0 0.0
      %3577 = vmatpush1.msra.mxu0 0.0
      %3578 = vmatprep.subr.mxu0 0.0
      %3579 = vmatpush1.msra.mxu0 0.0
      %3580 = vmatprep.subr.mxu0 0.0
      %3581 = vmatpush1.msra.mxu0 0.0
      %3582 = vmatprep.subr.mxu0 0.0
      %3583 = vmatpush1.msra.mxu0 0.0
      %3584 = vmatprep.subr.mxu0 0.0
      %3585 = vmatpush1.msra.mxu0 0.0
      %3586 = vmatprep.subr.mxu0 0.0
      %3587 = vmatpush1.msra.mxu0 0.0
      %3588 = vmatprep.subr.mxu0 0.0
      %3589 = vmatpush1.msra.mxu0 0.0
      %3590 = vmatprep.subr.mxu0 0.0
      %3591 = vmatpush1.msra.mxu0 0.0
      %3592 = vmatprep.subr.mxu0 0.0
      %3593 = vmatpush1.msra.mxu0 0.0
      %3594 = vmatprep.subr.mxu0 0.0
      %3595 = vmatpush1.msra.mxu0 0.0
      %3596 = vmatprep.subr.mxu0 0.0
      %3597 = vmatpush1.msra.mxu0 0.0
      %3598 = vmatprep.mubr.f32.mxu0 0.0
      %3599 = vmatmul.mubr.f32.gmra.mrb[0].mxu0 %v3532
      %v3600 = vpop.f32.mrb[0].mxu0
      %v3601 = vadd.f32 %v3527, %v3600
      %v3602 = vpop.f32.mrb[0].mxu0
      %3603 = vdwg.mxu0
      %v3604 = vadd.f32 %v3601, %v506
      %v3605 = vmax.f32 %v3604, 0.0
      %v3607 = vcombine.high %v3605, %v3605
      %v3609 = vunpack.c.l.s4 1966171168
      %v3610 = vunpack.c.0.s8 %v3609
      %v3611 = vlaneseq
      %v3612 = vshrl.u32 %v3611, 7
      %v3613 = vsub.s32 %v3610, %v3612
      %v3614 = vrot.slane %v3605, %v3613
      %v3616 = vunpack.c.l.s4 1966171168
      %v3617 = vunpack.c.0.s8 %v3616
      %v3618 = vlaneseq
      %v3619 = vshrl.u32 %v3618, 7
      %v3620 = vsub.s32 %v3617, %v3619
      %v3621 = vrot.slane %v3607, %v3620
      %v3622 = vcombine.high %v3614, %v3614
      %v3623 = vcombine.high %v3621, %v3621
      %v3625 = vunpack.c.l.s4 1966171168
      %v3626 = vunpack.c.0.s8 %v3625
      %v3627 = vlaneseq
      %v3628 = vshrl.u32 %v3627, 7
      %v3629 = vsub.s32 %v3626, %v3628
      %v3630 = vrot.slane %v3614, %v3629
      %v3632 = vunpack.c.l.s4 1966171168
      %v3633 = vunpack.c.0.s8 %v3632
      %v3634 = vlaneseq
      %v3635 = vshrl.u32 %v3634, 7
      %v3636 = vsub.s32 %v3633, %v3635
      %v3637 = vrot.slane %v3621, %v3636
      %v3639 = vunpack.c.l.s4 1966171168
      %v3640 = vunpack.c.0.s8 %v3639
      %v3641 = vlaneseq
      %v3642 = vshrl.u32 %v3641, 7
      %v3643 = vsub.s32 %v3640, %v3642
      %v3644 = vrot.slane %v3622, %v3643
      %v3646 = vunpack.c.l.s4 1966171168
      %v3647 = vunpack.c.0.s8 %v3646
      %v3648 = vlaneseq
      %v3649 = vshrl.u32 %v3648, 7
      %v3650 = vsub.s32 %v3647, %v3649
      %v3651 = vrot.slane %v3623, %v3650
      %v3652 = vcombine.high %v3630, %v3630
      %v3653 = vcombine.high %v3637, %v3637
      %v3654 = vcombine.high %v3644, %v3644
      %v3655 = vcombine.high %v3651, %v3651
      %v3656 = vlaneseq
      %v3657 = vshrl.u32 %v3656, 7
      %v3658 = vsub.s32 0, %v3657
      %v3659 = vrot.slane %v3630, %v3658
      %v3660 = vlaneseq
      %v3661 = vshrl.u32 %v3660, 7
      %v3662 = vsub.s32 0, %v3661
      %v3663 = vrot.slane %v3644, %v3662
      %v3664 = vlaneseq
      %v3665 = vshrl.u32 %v3664, 7
      %v3666 = vsub.s32 0, %v3665
      %v3667 = vrot.slane %v3652, %v3666
      %v3668 = vlaneseq
      %v3669 = vshrl.u32 %v3668, 7
      %v3670 = vsub.s32 0, %v3669
      %v3671 = vrot.slane %v3654, %v3670
      %v3672 = vlaneseq
      %v3673 = vshrl.u32 %v3672, 7
      %v3674 = vsub.s32 0, %v3673
      %v3675 = vrot.slane %v3637, %v3674
      %v3676 = vlaneseq
      %v3677 = vshrl.u32 %v3676, 7
      %v3678 = vsub.s32 0, %v3677
      %v3679 = vrot.slane %v3651, %v3678
      %v3680 = vlaneseq
      %v3681 = vshrl.u32 %v3680, 7
      %v3682 = vsub.s32 0, %v3681
      %v3683 = vrot.slane %v3653, %v3682
      %v3684 = vlaneseq
      %v3685 = vshrl.u32 %v3684, 7
      %v3686 = vsub.s32 0, %v3685
      %v3687 = vrot.slane %v3655, %v3686
      %3688 = vrot.lane.b32.xlu0 %v3659, 32
      %v3689 = vpop.permute.xlu0 %3688
      %3690 = vrot.lane.b32.xlu0 %v3663, 32
      %v3691 = vpop.permute.xlu0 %3690
      %3692 = vrot.lane.b32.xlu0 %v3667, 32
      %v3693 = vpop.permute.xlu0 %3692
      %3694 = vrot.lane.b32.xlu0 %v3671, 32
      %v3695 = vpop.permute.xlu0 %3694
      %3696 = vrot.lane.b32.xlu0 %v3675, 32
      %v3697 = vpop.permute.xlu0 %3696
      %3698 = vrot.lane.b32.xlu0 %v3679, 32
      %v3699 = vpop.permute.xlu0 %3698
      %3700 = vrot.lane.b32.xlu0 %v3683, 32
      %v3701 = vpop.permute.xlu0 %3700
      %3702 = vrot.lane.b32.xlu0 %v3687, 32
      %v3703 = vpop.permute.xlu0 %3702
      %3712 = vst.msk [vmem:[%s235 + $0x6] sm:$0x1] %vm831, %v3689
      %3713 = vst.msk [vmem:[%s235 + $0x16] sm:$0x1] %vm831, %v3691
      %3714 = vst.msk [vmem:[%s235 + $0x26] sm:$0x1] %vm831, %v3693
      %3715 = vst.msk [vmem:[%s235 + $0x36] sm:$0x1] %vm831, %v3695
      %3716 = vst.msk [vmem:[%s235 + $0x46] sm:$0x1] %vm831, %v3697
      %3717 = vst.msk [vmem:[%s235 + $0x56] sm:$0x1] %vm831, %v3699
      %3718 = vst.msk [vmem:[%s235 + $0x66] sm:$0x1] %vm831, %v3701
      %3719 = vst.msk [vmem:[%s235 + $0x76] sm:$0x1] %vm831, %v3703
      %3720 = vrot.lane.b32.xlu0 %v335, 16
      %v3721 = vpop.permute.xlu0 %3720
      %v3722 = vsel %vm356, %v3721, 0
      %3724 = vmatprep.subr.mxu0 0.0
      %3725 = vmatpush1.msra.mxu0 %v354
      %3726 = vmatprep.subr.mxu0 0.0
      %3727 = vmatpush1.msra.mxu0 %v355
      %3728 = vmatprep.subr.mxu0 0.0
      %3729 = vmatpush1.msra.mxu0 0.0
      %3730 = vmatprep.subr.mxu0 0.0
      %3731 = vmatpush1.msra.mxu0 0.0
      %3732 = vmatprep.subr.mxu0 0.0
      %3733 = vmatpush1.msra.mxu0 0.0
      %3734 = vmatprep.subr.mxu0 0.0
      %3735 = vmatpush1.msra.mxu0 0.0
      %3736 = vmatprep.subr.mxu0 0.0
      %3737 = vmatpush1.msra.mxu0 0.0
      %3738 = vmatprep.subr.mxu0 0.0
      %3739 = vmatpush1.msra.mxu0 0.0
      %3740 = vmatprep.subr.mxu0 0.0
      %3741 = vmatpush1.msra.mxu0 0.0
      %3742 = vmatprep.subr.mxu0 0.0
      %3743 = vmatpush1.msra.mxu0 0.0
      %3744 = vmatprep.subr.mxu0 0.0
      %3745 = vmatpush1.msra.mxu0 0.0
      %3746 = vmatprep.subr.mxu0 0.0
      %3747 = vmatpush1.msra.mxu0 0.0
      %3748 = vmatprep.subr.mxu0 0.0
      %3749 = vmatpush1.msra.mxu0 0.0
      %3750 = vmatprep.subr.mxu0 0.0
      %3751 = vmatpush1.msra.mxu0 0.0
      %3752 = vmatprep.subr.mxu0 0.0
      %3753 = vmatpush1.msra.mxu0 0.0
      %3754 = vmatprep.subr.mxu0 0.0
      %3755 = vmatpush1.msra.mxu0 0.0
      %3756 = vmatprep.subr.mxu0 0.0
      %3757 = vmatpush1.msra.mxu0 0.0
      %3758 = vmatprep.subr.mxu0 0.0
      %3759 = vmatpush1.msra.mxu0 0.0
      %3760 = vmatprep.subr.mxu0 0.0
      %3761 = vmatpush1.msra.mxu0 0.0
      %3762 = vmatprep.subr.mxu0 0.0
      %3763 = vmatpush1.msra.mxu0 0.0
      %3764 = vmatprep.subr.mxu0 0.0
      %3765 = vmatpush1.msra.mxu0 0.0
      %3766 = vmatprep.subr.mxu0 0.0
      %3767 = vmatpush1.msra.mxu0 0.0
      %3768 = vmatprep.subr.mxu0 0.0
      %3769 = vmatpush1.msra.mxu0 0.0
      %3770 = vmatprep.subr.mxu0 0.0
      %3771 = vmatpush1.msra.mxu0 0.0
      %3772 = vmatprep.subr.mxu0 0.0
      %3773 = vmatpush1.msra.mxu0 0.0
      %3774 = vmatprep.subr.mxu0 0.0
      %3775 = vmatpush1.msra.mxu0 0.0
      %3776 = vmatprep.subr.mxu0 0.0
      %3777 = vmatpush1.msra.mxu0 0.0
      %3778 = vmatprep.subr.mxu0 0.0
      %3779 = vmatpush1.msra.mxu0 0.0
      %3780 = vmatprep.subr.mxu0 0.0
      %3781 = vmatpush1.msra.mxu0 0.0
      %3782 = vmatprep.subr.mxu0 0.0
      %3783 = vmatpush1.msra.mxu0 0.0
      %3784 = vmatprep.subr.mxu0 0.0
      %3785 = vmatpush1.msra.mxu0 0.0
      %3786 = vmatprep.subr.mxu0 0.0
      %3787 = vmatpush1.msra.mxu0 0.0
      %3788 = vmatprep.mubr.f32.mxu0 0.0
      %3789 = vmatmul.mubr.f32.gmra.mrb[0].mxu0 %v3722
      %v3790 = vpop.f32.mrb[0].mxu0
      %v3791 = vadd.f32 0.0, %v3790
      %v3792 = vpop.f32.mrb[0].mxu0
      %3793 = vdwg.mxu0
      %3794 = vrot.lane.b32.xlu0 %v329, 16
      %v3795 = vpop.permute.xlu0 %3794
      %v3796 = vsel %vm356, %v3795, 0
      %3798 = vmatprep.subr.mxu0 0.0
      %3799 = vmatpush1.msra.mxu0 %v352
      %3800 = vmatprep.subr.mxu0 0.0
      %3801 = vmatpush1.msra.mxu0 %v353
      %3802 = vmatprep.subr.mxu0 0.0
      %3803 = vmatpush1.msra.mxu0 0.0
      %3804 = vmatprep.subr.mxu0 0.0
      %3805 = vmatpush1.msra.mxu0 0.0
      %3806 = vmatprep.subr.mxu0 0.0
      %3807 = vmatpush1.msra.mxu0 0.0
      %3808 = vmatprep.subr.mxu0 0.0
      %3809 = vmatpush1.msra.mxu0 0.0
      %3810 = vmatprep.subr.mxu0 0.0
      %3811 = vmatpush1.msra.mxu0 0.0
      %3812 = vmatprep.subr.mxu0 0.0
      %3813 = vmatpush1.msra.mxu0 0.0
      %3814 = vmatprep.subr.mxu0 0.0
      %3815 = vmatpush1.msra.mxu0 0.0
      %3816 = vmatprep.subr.mxu0 0.0
      %3817 = vmatpush1.msra.mxu0 0.0
      %3818 = vmatprep.subr.mxu0 0.0
      %3819 = vmatpush1.msra.mxu0 0.0
      %3820 = vmatprep.subr.mxu0 0.0
      %3821 = vmatpush1.msra.mxu0 0.0
      %3822 = vmatprep.subr.mxu0 0.0
      %3823 = vmatpush1.msra.mxu0 0.0
      %3824 = vmatprep.subr.mxu0 0.0
      %3825 = vmatpush1.msra.mxu0 0.0
      %3826 = vmatprep.subr.mxu0 0.0
      %3827 = vmatpush1.msra.mxu0 0.0
      %3828 = vmatprep.subr.mxu0 0.0
      %3829 = vmatpush1.msra.mxu0 0.0
      %3830 = vmatprep.subr.mxu0 0.0
      %3831 = vmatpush1.msra.mxu0 0.0
      %3832 = vmatprep.subr.mxu0 0.0
      %3833 = vmatpush1.msra.mxu0 0.0
      %3834 = vmatprep.subr.mxu0 0.0
      %3835 = vmatpush1.msra.mxu0 0.0
      %3836 = vmatprep.subr.mxu0 0.0
      %3837 = vmatpush1.msra.mxu0 0.0
      %3838 = vmatprep.subr.mxu0 0.0
      %3839 = vmatpush1.msra.mxu0 0.0
      %3840 = vmatprep.subr.mxu0 0.0
      %3841 = vmatpush1.msra.mxu0 0.0
      %3842 = vmatprep.subr.mxu0 0.0
      %3843 = vmatpush1.msra.mxu0 0.0
      %3844 = vmatprep.subr.mxu0 0.0
      %3845 = vmatpush1.msra.mxu0 0.0
      %3846 = vmatprep.subr.mxu0 0.0
      %3847 = vmatpush1.msra.mxu0 0.0
      %3848 = vmatprep.subr.mxu0 0.0
      %3849 = vmatpush1.msra.mxu0 0.0
      %3850 = vmatprep.subr.mxu0 0.0
      %3851 = vmatpush1.msra.mxu0 0.0
      %3852 = vmatprep.subr.mxu0 0.0
      %3853 = vmatpush1.msra.mxu0 0.0
      %3854 = vmatprep.subr.mxu0 0.0
      %3855 = vmatpush1.msra.mxu0 0.0
      %3856 = vmatprep.subr.mxu0 0.0
      %3857 = vmatpush1.msra.mxu0 0.0
      %3858 = vmatprep.subr.mxu0 0.0
      %3859 = vmatpush1.msra.mxu0 0.0
      %3860 = vmatprep.subr.mxu0 0.0
      %3861 = vmatpush1.msra.mxu0 0.0
      %3862 = vmatprep.mubr.f32.mxu0 0.0
      %3863 = vmatmul.mubr.f32.gmra.mrb[0].mxu0 %v3796
      %v3864 = vpop.f32.mrb[0].mxu0
      %v3865 = vadd.f32 %v3791, %v3864
      %v3866 = vpop.f32.mrb[0].mxu0
      %3867 = vdwg.mxu0
      %v3868 = vadd.f32 %v3865, %v506
      %v3869 = vmax.f32 %v3868, 0.0
      %v3871 = vcombine.high %v3869, %v3869
      %v3873 = vunpack.c.l.s4 1966171168
      %v3874 = vunpack.c.0.s8 %v3873
      %v3875 = vlaneseq
      %v3876 = vshrl.u32 %v3875, 7
      %v3877 = vsub.s32 %v3874, %v3876
      %v3878 = vrot.slane %v3869, %v3877
      %v3880 = vunpack.c.l.s4 1966171168
      %v3881 = vunpack.c.0.s8 %v3880
      %v3882 = vlaneseq
      %v3883 = vshrl.u32 %v3882, 7
      %v3884 = vsub.s32 %v3881, %v3883
      %v3885 = vrot.slane %v3871, %v3884
      %v3886 = vcombine.high %v3878, %v3878
      %v3887 = vcombine.high %v3885, %v3885
      %v3889 = vunpack.c.l.s4 1966171168
      %v3890 = vunpack.c.0.s8 %v3889
      %v3891 = vlaneseq
      %v3892 = vshrl.u32 %v3891, 7
      %v3893 = vsub.s32 %v3890, %v3892
      %v3894 = vrot.slane %v3878, %v3893
      %v3896 = vunpack.c.l.s4 1966171168
      %v3897 = vunpack.c.0.s8 %v3896
      %v3898 = vlaneseq
      %v3899 = vshrl.u32 %v3898, 7
      %v3900 = vsub.s32 %v3897, %v3899
      %v3901 = vrot.slane %v3885, %v3900
      %v3903 = vunpack.c.l.s4 1966171168
      %v3904 = vunpack.c.0.s8 %v3903
      %v3905 = vlaneseq
      %v3906 = vshrl.u32 %v3905, 7
      %v3907 = vsub.s32 %v3904, %v3906
      %v3908 = vrot.slane %v3886, %v3907
      %v3910 = vunpack.c.l.s4 1966171168
      %v3911 = vunpack.c.0.s8 %v3910
      %v3912 = vlaneseq
      %v3913 = vshrl.u32 %v3912, 7
      %v3914 = vsub.s32 %v3911, %v3913
      %v3915 = vrot.slane %v3887, %v3914
      %v3916 = vcombine.high %v3894, %v3894
      %v3917 = vcombine.high %v3901, %v3901
      %v3918 = vcombine.high %v3908, %v3908
      %v3919 = vcombine.high %v3915, %v3915
      %3928 = vst.msk [vmem:[%s235 + $0x7] sm:$0x1] %vm568, %v3894
      %3929 = vst.msk [vmem:[%s235 + $0x17] sm:$0x1] %vm568, %v3908
      %3930 = vst.msk [vmem:[%s235 + $0x27] sm:$0x1] %vm568, %v3916
      %3931 = vst.msk [vmem:[%s235 + $0x37] sm:$0x1] %vm568, %v3918
      %3932 = vst.msk [vmem:[%s235 + $0x47] sm:$0x1] %vm568, %v3901
      %3933 = vst.msk [vmem:[%s235 + $0x57] sm:$0x1] %vm568, %v3915
      %3934 = vst.msk [vmem:[%s235 + $0x67] sm:$0x1] %vm568, %v3917
      %3935 = vst.msk [vmem:[%s235 + $0x77] sm:$0x1] %vm568, %v3919
      %3936 = vrot.lane.b32.xlu0 %v347, 16
      %v3937 = vpop.permute.xlu0 %3936
      %v3938 = vsel %vm356, %v3937, 0
      %3940 = vmatprep.subr.mxu0 0.0
      %3941 = vmatpush1.msra.mxu0 %v354
      %3942 = vmatprep.subr.mxu0 0.0
      %3943 = vmatpush1.msra.mxu0 %v355
      %3944 = vmatprep.subr.mxu0 0.0
      %3945 = vmatpush1.msra.mxu0 0.0
      %3946 = vmatprep.subr.mxu0 0.0
      %3947 = vmatpush1.msra.mxu0 0.0
      %3948 = vmatprep.subr.mxu0 0.0
      %3949 = vmatpush1.msra.mxu0 0.0
      %3950 = vmatprep.subr.mxu0 0.0
      %3951 = vmatpush1.msra.mxu0 0.0
      %3952 = vmatprep.subr.mxu0 0.0
      %3953 = vmatpush1.msra.mxu0 0.0
      %3954 = vmatprep.subr.mxu0 0.0
      %3955 = vmatpush1.msra.mxu0 0.0
      %3956 = vmatprep.subr.mxu0 0.0
      %3957 = vmatpush1.msra.mxu0 0.0
      %3958 = vmatprep.subr.mxu0 0.0
      %3959 = vmatpush1.msra.mxu0 0.0
      %3960 = vmatprep.subr.mxu0 0.0
      %3961 = vmatpush1.msra.mxu0 0.0
      %3962 = vmatprep.subr.mxu0 0.0
      %3963 = vmatpush1.msra.mxu0 0.0
      %3964 = vmatprep.subr.mxu0 0.0
      %3965 = vmatpush1.msra.mxu0 0.0
      %3966 = vmatprep.subr.mxu0 0.0
      %3967 = vmatpush1.msra.mxu0 0.0
      %3968 = vmatprep.subr.mxu0 0.0
      %3969 = vmatpush1.msra.mxu0 0.0
      %3970 = vmatprep.subr.mxu0 0.0
      %3971 = vmatpush1.msra.mxu0 0.0
      %3972 = vmatprep.subr.mxu0 0.0
      %3973 = vmatpush1.msra.mxu0 0.0
      %3974 = vmatprep.subr.mxu0 0.0
      %3975 = vmatpush1.msra.mxu0 0.0
      %3976 = vmatprep.subr.mxu0 0.0
      %3977 = vmatpush1.msra.mxu0 0.0
      %3978 = vmatprep.subr.mxu0 0.0
      %3979 = vmatpush1.msra.mxu0 0.0
      %3980 = vmatprep.subr.mxu0 0.0
      %3981 = vmatpush1.msra.mxu0 0.0
      %3982 = vmatprep.subr.mxu0 0.0
      %3983 = vmatpush1.msra.mxu0 0.0
      %3984 = vmatprep.subr.mxu0 0.0
      %3985 = vmatpush1.msra.mxu0 0.0
      %3986 = vmatprep.subr.mxu0 0.0
      %3987 = vmatpush1.msra.mxu0 0.0
      %3988 = vmatprep.subr.mxu0 0.0
      %3989 = vmatpush1.msra.mxu0 0.0
      %3990 = vmatprep.subr.mxu0 0.0
      %3991 = vmatpush1.msra.mxu0 0.0
      %3992 = vmatprep.subr.mxu0 0.0
      %3993 = vmatpush1.msra.mxu0 0.0
      %3994 = vmatprep.subr.mxu0 0.0
      %3995 = vmatpush1.msra.mxu0 0.0
      %3996 = vmatprep.subr.mxu0 0.0
      %3997 = vmatpush1.msra.mxu0 0.0
      %3998 = vmatprep.subr.mxu0 0.0
      %3999 = vmatpush1.msra.mxu0 0.0
      %4000 = vmatprep.subr.mxu0 0.0
      %4001 = vmatpush1.msra.mxu0 0.0
      %4002 = vmatprep.subr.mxu0 0.0
      %4003 = vmatpush1.msra.mxu0 0.0
      %4004 = vmatprep.mubr.f32.mxu0 0.0
      %4005 = vmatmul.mubr.f32.gmra.mrb[0].mxu0 %v3938
      %v4006 = vpop.f32.mrb[0].mxu0
      %v4007 = vadd.f32 0.0, %v4006
      %v4008 = vpop.f32.mrb[0].mxu0
      %4009 = vdwg.mxu0
      %4010 = vrot.lane.b32.xlu0 %v341, 16
      %v4011 = vpop.permute.xlu0 %4010
      %v4012 = vsel %vm356, %v4011, 0
      %4014 = vmatprep.subr.mxu0 0.0
      %4015 = vmatpush1.msra.mxu0 %v352
      %4016 = vmatprep.subr.mxu0 0.0
      %4017 = vmatpush1.msra.mxu0 %v353
      %4018 = vmatprep.subr.mxu0 0.0
      %4019 = vmatpush1.msra.mxu0 0.0
      %4020 = vmatprep.subr.mxu0 0.0
      %4021 = vmatpush1.msra.mxu0 0.0
      %4022 = vmatprep.subr.mxu0 0.0
      %4023 = vmatpush1.msra.mxu0 0.0
      %4024 = vmatprep.subr.mxu0 0.0
      %4025 = vmatpush1.msra.mxu0 0.0
      %4026 = vmatprep.subr.mxu0 0.0
      %4027 = vmatpush1.msra.mxu0 0.0
      %4028 = vmatprep.subr.mxu0 0.0
      %4029 = vmatpush1.msra.mxu0 0.0
      %4030 = vmatprep.subr.mxu0 0.0
      %4031 = vmatpush1.msra.mxu0 0.0
      %4032 = vmatprep.subr.mxu0 0.0
      %4033 = vmatpush1.msra.mxu0 0.0
      %4034 = vmatprep.subr.mxu0 0.0
      %4035 = vmatpush1.msra.mxu0 0.0
      %4036 = vmatprep.subr.mxu0 0.0
      %4037 = vmatpush1.msra.mxu0 0.0
      %4038 = vmatprep.subr.mxu0 0.0
      %4039 = vmatpush1.msra.mxu0 0.0
      %4040 = vmatprep.subr.mxu0 0.0
      %4041 = vmatpush1.msra.mxu0 0.0
      %4042 = vmatprep.subr.mxu0 0.0
      %4043 = vmatpush1.msra.mxu0 0.0
      %4044 = vmatprep.subr.mxu0 0.0
      %4045 = vmatpush1.msra.mxu0 0.0
      %4046 = vmatprep.subr.mxu0 0.0
      %4047 = vmatpush1.msra.mxu0 0.0
      %4048 = vmatprep.subr.mxu0 0.0
      %4049 = vmatpush1.msra.mxu0 0.0
      %4050 = vmatprep.subr.mxu0 0.0
      %4051 = vmatpush1.msra.mxu0 0.0
      %4052 = vmatprep.subr.mxu0 0.0
      %4053 = vmatpush1.msra.mxu0 0.0
      %4054 = vmatprep.subr.mxu0 0.0
      %4055 = vmatpush1.msra.mxu0 0.0
      %4056 = vmatprep.subr.mxu0 0.0
      %4057 = vmatpush1.msra.mxu0 0.0
      %4058 = vmatprep.subr.mxu0 0.0
      %4059 = vmatpush1.msra.mxu0 0.0
      %4060 = vmatprep.subr.mxu0 0.0
      %4061 = vmatpush1.msra.mxu0 0.0
      %4062 = vmatprep.subr.mxu0 0.0
      %4063 = vmatpush1.msra.mxu0 0.0
      %4064 = vmatprep.subr.mxu0 0.0
      %4065 = vmatpush1.msra.mxu0 0.0
      %4066 = vmatprep.subr.mxu0 0.0
      %4067 = vmatpush1.msra.mxu0 0.0
      %4068 = vmatprep.subr.mxu0 0.0
      %4069 = vmatpush1.msra.mxu0 0.0
      %4070 = vmatprep.subr.mxu0 0.0
      %4071 = vmatpush1.msra.mxu0 0.0
      %4072 = vmatprep.subr.mxu0 0.0
      %4073 = vmatpush1.msra.mxu0 0.0
      %4074 = vmatprep.subr.mxu0 0.0
      %4075 = vmatpush1.msra.mxu0 0.0
      %4076 = vmatprep.subr.mxu0 0.0
      %4077 = vmatpush1.msra.mxu0 0.0
      %4078 = vmatprep.mubr.f32.mxu0 0.0
      %4079 = vmatmul.mubr.f32.gmra.mrb[0].mxu0 %v4012
      %v4080 = vpop.f32.mrb[0].mxu0
      %v4081 = vadd.f32 %v4007, %v4080
      %v4082 = vpop.f32.mrb[0].mxu0
      %4083 = vdwg.mxu0
      %v4084 = vadd.f32 %v4081, %v506
      %v4085 = vmax.f32 %v4084, 0.0
      %v4087 = vcombine.high %v4085, %v4085
      %v4089 = vunpack.c.l.s4 1966171168
      %v4090 = vunpack.c.0.s8 %v4089
      %v4091 = vlaneseq
      %v4092 = vshrl.u32 %v4091, 7
      %v4093 = vsub.s32 %v4090, %v4092
      %v4094 = vrot.slane %v4085, %v4093
      %v4096 = vunpack.c.l.s4 1966171168
      %v4097 = vunpack.c.0.s8 %v4096
      %v4098 = vlaneseq
      %v4099 = vshrl.u32 %v4098, 7
      %v4100 = vsub.s32 %v4097, %v4099
      %v4101 = vrot.slane %v4087, %v4100
      %v4102 = vcombine.high %v4094, %v4094
      %v4103 = vcombine.high %v4101, %v4101
      %v4105 = vunpack.c.l.s4 1966171168
      %v4106 = vunpack.c.0.s8 %v4105
      %v4107 = vlaneseq
      %v4108 = vshrl.u32 %v4107, 7
      %v4109 = vsub.s32 %v4106, %v4108
      %v4110 = vrot.slane %v4094, %v4109
      %v4112 = vunpack.c.l.s4 1966171168
      %v4113 = vunpack.c.0.s8 %v4112
      %v4114 = vlaneseq
      %v4115 = vshrl.u32 %v4114, 7
      %v4116 = vsub.s32 %v4113, %v4115
      %v4117 = vrot.slane %v4101, %v4116
      %v4119 = vunpack.c.l.s4 1966171168
      %v4120 = vunpack.c.0.s8 %v4119
      %v4121 = vlaneseq
      %v4122 = vshrl.u32 %v4121, 7
      %v4123 = vsub.s32 %v4120, %v4122
      %v4124 = vrot.slane %v4102, %v4123
      %v4126 = vunpack.c.l.s4 1966171168
      %v4127 = vunpack.c.0.s8 %v4126
      %v4128 = vlaneseq
      %v4129 = vshrl.u32 %v4128, 7
      %v4130 = vsub.s32 %v4127, %v4129
      %v4131 = vrot.slane %v4103, %v4130
      %v4132 = vcombine.high %v4110, %v4110
      %v4133 = vcombine.high %v4117, %v4117
      %v4134 = vcombine.high %v4124, %v4124
      %v4135 = vcombine.high %v4131, %v4131
      %v4136 = vlaneseq
      %v4137 = vshrl.u32 %v4136, 7
      %v4138 = vsub.s32 0, %v4137
      %v4139 = vrot.slane %v4110, %v4138
      %v4140 = vlaneseq
      %v4141 = vshrl.u32 %v4140, 7
      %v4142 = vsub.s32 0, %v4141
      %v4143 = vrot.slane %v4124, %v4142
      %v4144 = vlaneseq
      %v4145 = vshrl.u32 %v4144, 7
      %v4146 = vsub.s32 0, %v4145
      %v4147 = vrot.slane %v4132, %v4146
      %v4148 = vlaneseq
      %v4149 = vshrl.u32 %v4148, 7
      %v4150 = vsub.s32 0, %v4149
      %v4151 = vrot.slane %v4134, %v4150
      %v4152 = vlaneseq
      %v4153 = vshrl.u32 %v4152, 7
      %v4154 = vsub.s32 0, %v4153
      %v4155 = vrot.slane %v4117, %v4154
      %v4156 = vlaneseq
      %v4157 = vshrl.u32 %v4156, 7
      %v4158 = vsub.s32 0, %v4157
      %v4159 = vrot.slane %v4131, %v4158
      %v4160 = vlaneseq
      %v4161 = vshrl.u32 %v4160, 7
      %v4162 = vsub.s32 0, %v4161
      %v4163 = vrot.slane %v4133, %v4162
      %v4164 = vlaneseq
      %v4165 = vshrl.u32 %v4164, 7
      %v4166 = vsub.s32 0, %v4165
      %v4167 = vrot.slane %v4135, %v4166
      %4168 = vrot.lane.b32.xlu0 %v4139, 32
      %v4169 = vpop.permute.xlu0 %4168
      %4170 = vrot.lane.b32.xlu0 %v4143, 32
      %v4171 = vpop.permute.xlu0 %4170
      %4172 = vrot.lane.b32.xlu0 %v4147, 32
      %v4173 = vpop.permute.xlu0 %4172
      %4174 = vrot.lane.b32.xlu0 %v4151, 32
      %v4175 = vpop.permute.xlu0 %4174
      %4176 = vrot.lane.b32.xlu0 %v4155, 32
      %v4177 = vpop.permute.xlu0 %4176
      %4178 = vrot.lane.b32.xlu0 %v4159, 32
      %v4179 = vpop.permute.xlu0 %4178
      %4180 = vrot.lane.b32.xlu0 %v4163, 32
      %v4181 = vpop.permute.xlu0 %4180
      %4182 = vrot.lane.b32.xlu0 %v4167, 32
      %v4183 = vpop.permute.xlu0 %4182
      %4192 = vst.msk [vmem:[%s235 + $0x7] sm:$0x1] %vm831, %v4169
      %4193 = vst.msk [vmem:[%s235 + $0x17] sm:$0x1] %vm831, %v4171
      %4194 = vst.msk [vmem:[%s235 + $0x27] sm:$0x1] %vm831, %v4173
      %4195 = vst.msk [vmem:[%s235 + $0x37] sm:$0x1] %vm831, %v4175
      %4196 = vst.msk [vmem:[%s235 + $0x47] sm:$0x1] %vm831, %v4177
      %4197 = vst.msk [vmem:[%s235 + $0x57] sm:$0x1] %vm831, %v4179
      %4198 = vst.msk [vmem:[%s235 + $0x67] sm:$0x1] %vm831, %v4181
      %4199 = vst.msk [vmem:[%s235 + $0x77] sm:$0x1] %vm831, %v4183
      %v4201 = vsel %vm356, %v337, 0
      %4203 = vmatprep.subr.mxu0 0.0
      %4204 = vmatpush1.msra.mxu0 %v354
      %4205 = vmatprep.subr.mxu0 0.0
      %4206 = vmatpush1.msra.mxu0 %v355
      %4207 = vmatprep.subr.mxu0 0.0
      %4208 = vmatpush1.msra.mxu0 0.0
      %4209 = vmatprep.subr.mxu0 0.0
      %4210 = vmatpush1.msra.mxu0 0.0
      %4211 = vmatprep.subr.mxu0 0.0
      %4212 = vmatpush1.msra.mxu0 0.0
      %4213 = vmatprep.subr.mxu0 0.0
      %4214 = vmatpush1.msra.mxu0 0.0
      %4215 = vmatprep.subr.mxu0 0.0
      %4216 = vmatpush1.msra.mxu0 0.0
      %4217 = vmatprep.subr.mxu0 0.0
      %4218 = vmatpush1.msra.mxu0 0.0
      %4219 = vmatprep.subr.mxu0 0.0
      %4220 = vmatpush1.msra.mxu0 0.0
      %4221 = vmatprep.subr.mxu0 0.0
      %4222 = vmatpush1.msra.mxu0 0.0
      %4223 = vmatprep.subr.mxu0 0.0
      %4224 = vmatpush1.msra.mxu0 0.0
      %4225 = vmatprep.subr.mxu0 0.0
      %4226 = vmatpush1.msra.mxu0 0.0
      %4227 = vmatprep.subr.mxu0 0.0
      %4228 = vmatpush1.msra.mxu0 0.0
      %4229 = vmatprep.subr.mxu0 0.0
      %4230 = vmatpush1.msra.mxu0 0.0
      %4231 = vmatprep.subr.mxu0 0.0
      %4232 = vmatpush1.msra.mxu0 0.0
      %4233 = vmatprep.subr.mxu0 0.0
      %4234 = vmatpush1.msra.mxu0 0.0
      %4235 = vmatprep.subr.mxu0 0.0
      %4236 = vmatpush1.msra.mxu0 0.0
      %4237 = vmatprep.subr.mxu0 0.0
      %4238 = vmatpush1.msra.mxu0 0.0
      %4239 = vmatprep.subr.mxu0 0.0
      %4240 = vmatpush1.msra.mxu0 0.0
      %4241 = vmatprep.subr.mxu0 0.0
      %4242 = vmatpush1.msra.mxu0 0.0
      %4243 = vmatprep.subr.mxu0 0.0
      %4244 = vmatpush1.msra.mxu0 0.0
      %4245 = vmatprep.subr.mxu0 0.0
      %4246 = vmatpush1.msra.mxu0 0.0
      %4247 = vmatprep.subr.mxu0 0.0
      %4248 = vmatpush1.msra.mxu0 0.0
      %4249 = vmatprep.subr.mxu0 0.0
      %4250 = vmatpush1.msra.mxu0 0.0
      %4251 = vmatprep.subr.mxu0 0.0
      %4252 = vmatpush1.msra.mxu0 0.0
      %4253 = vmatprep.subr.mxu0 0.0
      %4254 = vmatpush1.msra.mxu0 0.0
      %4255 = vmatprep.subr.mxu0 0.0
      %4256 = vmatpush1.msra.mxu0 0.0
      %4257 = vmatprep.subr.mxu0 0.0
      %4258 = vmatpush1.msra.mxu0 0.0
      %4259 = vmatprep.subr.mxu0 0.0
      %4260 = vmatpush1.msra.mxu0 0.0
      %4261 = vmatprep.subr.mxu0 0.0
      %4262 = vmatpush1.msra.mxu0 0.0
      %4263 = vmatprep.subr.mxu0 0.0
      %4264 = vmatpush1.msra.mxu0 0.0
      %4265 = vmatprep.subr.mxu0 0.0
      %4266 = vmatpush1.msra.mxu0 0.0
      %4267 = vmatprep.mubr.f32.mxu0 0.0
      %4268 = vmatmul.mubr.f32.gmra.mrb[0].mxu0 %v4201
      %v4269 = vpop.f32.mrb[0].mxu0
      %v4270 = vadd.f32 0.0, %v4269
      %v4271 = vpop.f32.mrb[0].mxu0
      %4272 = vdwg.mxu0
      %v4274 = vsel %vm356, %v331, 0
      %4276 = vmatprep.subr.mxu0 0.0
      %4277 = vmatpush1.msra.mxu0 %v352
      %4278 = vmatprep.subr.mxu0 0.0
      %4279 = vmatpush1.msra.mxu0 %v353
      %4280 = vmatprep.subr.mxu0 0.0
      %4281 = vmatpush1.msra.mxu0 0.0
      %4282 = vmatprep.subr.mxu0 0.0
      %4283 = vmatpush1.msra.mxu0 0.0
      %4284 = vmatprep.subr.mxu0 0.0
      %4285 = vmatpush1.msra.mxu0 0.0
      %4286 = vmatprep.subr.mxu0 0.0
      %4287 = vmatpush1.msra.mxu0 0.0
      %4288 = vmatprep.subr.mxu0 0.0
      %4289 = vmatpush1.msra.mxu0 0.0
      %4290 = vmatprep.subr.mxu0 0.0
      %4291 = vmatpush1.msra.mxu0 0.0
      %4292 = vmatprep.subr.mxu0 0.0
      %4293 = vmatpush1.msra.mxu0 0.0
      %4294 = vmatprep.subr.mxu0 0.0
      %4295 = vmatpush1.msra.mxu0 0.0
      %4296 = vmatprep.subr.mxu0 0.0
      %4297 = vmatpush1.msra.mxu0 0.0
      %4298 = vmatprep.subr.mxu0 0.0
      %4299 = vmatpush1.msra.mxu0 0.0
      %4300 = vmatprep.subr.mxu0 0.0
      %4301 = vmatpush1.msra.mxu0 0.0
      %4302 = vmatprep.subr.mxu0 0.0
      %4303 = vmatpush1.msra.mxu0 0.0
      %4304 = vmatprep.subr.mxu0 0.0
      %4305 = vmatpush1.msra.mxu0 0.0
      %4306 = vmatprep.subr.mxu0 0.0
      %4307 = vmatpush1.msra.mxu0 0.0
      %4308 = vmatprep.subr.mxu0 0.0
      %4309 = vmatpush1.msra.mxu0 0.0
      %4310 = vmatprep.subr.mxu0 0.0
      %4311 = vmatpush1.msra.mxu0 0.0
      %4312 = vmatprep.subr.mxu0 0.0
      %4313 = vmatpush1.msra.mxu0 0.0
      %4314 = vmatprep.subr.mxu0 0.0
      %4315 = vmatpush1.msra.mxu0 0.0
      %4316 = vmatprep.subr.mxu0 0.0
      %4317 = vmatpush1.msra.mxu0 0.0
      %4318 = vmatprep.subr.mxu0 0.0
      %4319 = vmatpush1.msra.mxu0 0.0
      %4320 = vmatprep.subr.mxu0 0.0
      %4321 = vmatpush1.msra.mxu0 0.0
      %4322 = vmatprep.subr.mxu0 0.0
      %4323 = vmatpush1.msra.mxu0 0.0
      %4324 = vmatprep.subr.mxu0 0.0
      %4325 = vmatpush1.msra.mxu0 0.0
      %4326 = vmatprep.subr.mxu0 0.0
      %4327 = vmatpush1.msra.mxu0 0.0
      %4328 = vmatprep.subr.mxu0 0.0
      %4329 = vmatpush1.msra.mxu0 0.0
      %4330 = vmatprep.subr.mxu0 0.0
      %4331 = vmatpush1.msra.mxu0 0.0
      %4332 = vmatprep.subr.mxu0 0.0
      %4333 = vmatpush1.msra.mxu0 0.0
      %4334 = vmatprep.subr.mxu0 0.0
      %4335 = vmatpush1.msra.mxu0 0.0
      %4336 = vmatprep.subr.mxu0 0.0
      %4337 = vmatpush1.msra.mxu0 0.0
      %4338 = vmatprep.subr.mxu0 0.0
      %4339 = vmatpush1.msra.mxu0 0.0
      %4340 = vmatprep.mubr.f32.mxu0 0.0
      %4341 = vmatmul.mubr.f32.gmra.mrb[0].mxu0 %v4274
      %v4342 = vpop.f32.mrb[0].mxu0
      %v4343 = vadd.f32 %v4270, %v4342
      %v4344 = vpop.f32.mrb[0].mxu0
      %4345 = vdwg.mxu0
      %v4346 = vadd.f32 %v4343, %v506
      %v4347 = vmax.f32 %v4346, 0.0
      %v4349 = vcombine.high %v4347, %v4347
      %v4351 = vunpack.c.l.s4 1966171168
      %v4352 = vunpack.c.0.s8 %v4351
      %v4353 = vlaneseq
      %v4354 = vshrl.u32 %v4353, 7
      %v4355 = vsub.s32 %v4352, %v4354
      %v4356 = vrot.slane %v4347, %v4355
      %v4358 = vunpack.c.l.s4 1966171168
      %v4359 = vunpack.c.0.s8 %v4358
      %v4360 = vlaneseq
      %v4361 = vshrl.u32 %v4360, 7
      %v4362 = vsub.s32 %v4359, %v4361
      %v4363 = vrot.slane %v4349, %v4362
      %v4364 = vcombine.high %v4356, %v4356
      %v4365 = vcombine.high %v4363, %v4363
      %v4367 = vunpack.c.l.s4 1966171168
      %v4368 = vunpack.c.0.s8 %v4367
      %v4369 = vlaneseq
      %v4370 = vshrl.u32 %v4369, 7
      %v4371 = vsub.s32 %v4368, %v4370
      %v4372 = vrot.slane %v4356, %v4371
      %v4374 = vunpack.c.l.s4 1966171168
      %v4375 = vunpack.c.0.s8 %v4374
      %v4376 = vlaneseq
      %v4377 = vshrl.u32 %v4376, 7
      %v4378 = vsub.s32 %v4375, %v4377
      %v4379 = vrot.slane %v4363, %v4378
      %v4381 = vunpack.c.l.s4 1966171168
      %v4382 = vunpack.c.0.s8 %v4381
      %v4383 = vlaneseq
      %v4384 = vshrl.u32 %v4383, 7
      %v4385 = vsub.s32 %v4382, %v4384
      %v4386 = vrot.slane %v4364, %v4385
      %v4388 = vunpack.c.l.s4 1966171168
      %v4389 = vunpack.c.0.s8 %v4388
      %v4390 = vlaneseq
      %v4391 = vshrl.u32 %v4390, 7
      %v4392 = vsub.s32 %v4389, %v4391
      %v4393 = vrot.slane %v4365, %v4392
      %v4394 = vcombine.high %v4372, %v4372
      %v4395 = vcombine.high %v4379, %v4379
      %v4396 = vcombine.high %v4386, %v4386
      %v4397 = vcombine.high %v4393, %v4393
      %4406 = vst.msk [vmem:[%s235 + $0x8] sm:$0x1] %vm568, %v4372
      %4407 = vst.msk [vmem:[%s235 + $0x18] sm:$0x1] %vm568, %v4386
      %4408 = vst.msk [vmem:[%s235 + $0x28] sm:$0x1] %vm568, %v4394
      %4409 = vst.msk [vmem:[%s235 + $0x38] sm:$0x1] %vm568, %v4396
      %4410 = vst.msk [vmem:[%s235 + $0x48] sm:$0x1] %vm568, %v4379
      %4411 = vst.msk [vmem:[%s235 + $0x58] sm:$0x1] %vm568, %v4393
      %4412 = vst.msk [vmem:[%s235 + $0x68] sm:$0x1] %vm568, %v4395
      %4413 = vst.msk [vmem:[%s235 + $0x78] sm:$0x1] %vm568, %v4397
      %v4415 = vsel %vm356, %v349, 0
      %4417 = vmatprep.subr.mxu0 0.0
      %4418 = vmatpush1.msra.mxu0 %v354
      %4419 = vmatprep.subr.mxu0 0.0
      %4420 = vmatpush1.msra.mxu0 %v355
      %4421 = vmatprep.subr.mxu0 0.0
      %4422 = vmatpush1.msra.mxu0 0.0
      %4423 = vmatprep.subr.mxu0 0.0
      %4424 = vmatpush1.msra.mxu0 0.0
      %4425 = vmatprep.subr.mxu0 0.0
      %4426 = vmatpush1.msra.mxu0 0.0
      %4427 = vmatprep.subr.mxu0 0.0
      %4428 = vmatpush1.msra.mxu0 0.0
      %4429 = vmatprep.subr.mxu0 0.0
      %4430 = vmatpush1.msra.mxu0 0.0
      %4431 = vmatprep.subr.mxu0 0.0
      %4432 = vmatpush1.msra.mxu0 0.0
      %4433 = vmatprep.subr.mxu0 0.0
      %4434 = vmatpush1.msra.mxu0 0.0
      %4435 = vmatprep.subr.mxu0 0.0
      %4436 = vmatpush1.msra.mxu0 0.0
      %4437 = vmatprep.subr.mxu0 0.0
      %4438 = vmatpush1.msra.mxu0 0.0
      %4439 = vmatprep.subr.mxu0 0.0
      %4440 = vmatpush1.msra.mxu0 0.0
      %4441 = vmatprep.subr.mxu0 0.0
      %4442 = vmatpush1.msra.mxu0 0.0
      %4443 = vmatprep.subr.mxu0 0.0
      %4444 = vmatpush1.msra.mxu0 0.0
      %4445 = vmatprep.subr.mxu0 0.0
      %4446 = vmatpush1.msra.mxu0 0.0
      %4447 = vmatprep.subr.mxu0 0.0
      %4448 = vmatpush1.msra.mxu0 0.0
      %4449 = vmatprep.subr.mxu0 0.0
      %4450 = vmatpush1.msra.mxu0 0.0
      %4451 = vmatprep.subr.mxu0 0.0
      %4452 = vmatpush1.msra.mxu0 0.0
      %4453 = vmatprep.subr.mxu0 0.0
      %4454 = vmatpush1.msra.mxu0 0.0
      %4455 = vmatprep.subr.mxu0 0.0
      %4456 = vmatpush1.msra.mxu0 0.0
      %4457 = vmatprep.subr.mxu0 0.0
      %4458 = vmatpush1.msra.mxu0 0.0
      %4459 = vmatprep.subr.mxu0 0.0
      %4460 = vmatpush1.msra.mxu0 0.0
      %4461 = vmatprep.subr.mxu0 0.0
      %4462 = vmatpush1.msra.mxu0 0.0
      %4463 = vmatprep.subr.mxu0 0.0
      %4464 = vmatpush1.msra.mxu0 0.0
      %4465 = vmatprep.subr.mxu0 0.0
      %4466 = vmatpush1.msra.mxu0 0.0
      %4467 = vmatprep.subr.mxu0 0.0
      %4468 = vmatpush1.msra.mxu0 0.0
      %4469 = vmatprep.subr.mxu0 0.0
      %4470 = vmatpush1.msra.mxu0 0.0
      %4471 = vmatprep.subr.mxu0 0.0
      %4472 = vmatpush1.msra.mxu0 0.0
      %4473 = vmatprep.subr.mxu0 0.0
      %4474 = vmatpush1.msra.mxu0 0.0
      %4475 = vmatprep.subr.mxu0 0.0
      %4476 = vmatpush1.msra.mxu0 0.0
      %4477 = vmatprep.subr.mxu0 0.0
      %4478 = vmatpush1.msra.mxu0 0.0
      %4479 = vmatprep.subr.mxu0 0.0
      %4480 = vmatpush1.msra.mxu0 0.0
      %4481 = vmatprep.mubr.f32.mxu0 0.0
      %4482 = vmatmul.mubr.f32.gmra.mrb[0].mxu0 %v4415
      %v4483 = vpop.f32.mrb[0].mxu0
      %v4484 = vadd.f32 0.0, %v4483
      %v4485 = vpop.f32.mrb[0].mxu0
      %4486 = vdwg.mxu0
      %v4488 = vsel %vm356, %v343, 0
      %4490 = vmatprep.subr.mxu0 0.0
      %4491 = vmatpush1.msra.mxu0 %v352
      %4492 = vmatprep.subr.mxu0 0.0
      %4493 = vmatpush1.msra.mxu0 %v353
      %4494 = vmatprep.subr.mxu0 0.0
      %4495 = vmatpush1.msra.mxu0 0.0
      %4496 = vmatprep.subr.mxu0 0.0
      %4497 = vmatpush1.msra.mxu0 0.0
      %4498 = vmatprep.subr.mxu0 0.0
      %4499 = vmatpush1.msra.mxu0 0.0
      %4500 = vmatprep.subr.mxu0 0.0
      %4501 = vmatpush1.msra.mxu0 0.0
      %4502 = vmatprep.subr.mxu0 0.0
      %4503 = vmatpush1.msra.mxu0 0.0
      %4504 = vmatprep.subr.mxu0 0.0
      %4505 = vmatpush1.msra.mxu0 0.0
      %4506 = vmatprep.subr.mxu0 0.0
      %4507 = vmatpush1.msra.mxu0 0.0
      %4508 = vmatprep.subr.mxu0 0.0
      %4509 = vmatpush1.msra.mxu0 0.0
      %4510 = vmatprep.subr.mxu0 0.0
      %4511 = vmatpush1.msra.mxu0 0.0
      %4512 = vmatprep.subr.mxu0 0.0
      %4513 = vmatpush1.msra.mxu0 0.0
      %4514 = vmatprep.subr.mxu0 0.0
      %4515 = vmatpush1.msra.mxu0 0.0
      %4516 = vmatprep.subr.mxu0 0.0
      %4517 = vmatpush1.msra.mxu0 0.0
      %4518 = vmatprep.subr.mxu0 0.0
      %4519 = vmatpush1.msra.mxu0 0.0
      %4520 = vmatprep.subr.mxu0 0.0
      %4521 = vmatpush1.msra.mxu0 0.0
      %4522 = vmatprep.subr.mxu0 0.0
      %4523 = vmatpush1.msra.mxu0 0.0
      %4524 = vmatprep.subr.mxu0 0.0
      %4525 = vmatpush1.msra.mxu0 0.0
      %4526 = vmatprep.subr.mxu0 0.0
      %4527 = vmatpush1.msra.mxu0 0.0
      %4528 = vmatprep.subr.mxu0 0.0
      %4529 = vmatpush1.msra.mxu0 0.0
      %4530 = vmatprep.subr.mxu0 0.0
      %4531 = vmatpush1.msra.mxu0 0.0
      %4532 = vmatprep.subr.mxu0 0.0
      %4533 = vmatpush1.msra.mxu0 0.0
      %4534 = vmatprep.subr.mxu0 0.0
      %4535 = vmatpush1.msra.mxu0 0.0
      %4536 = vmatprep.subr.mxu0 0.0
      %4537 = vmatpush1.msra.mxu0 0.0
      %4538 = vmatprep.subr.mxu0 0.0
      %4539 = vmatpush1.msra.mxu0 0.0
      %4540 = vmatprep.subr.mxu0 0.0
      %4541 = vmatpush1.msra.mxu0 0.0
      %4542 = vmatprep.subr.mxu0 0.0
      %4543 = vmatpush1.msra.mxu0 0.0
      %4544 = vmatprep.subr.mxu0 0.0
      %4545 = vmatpush1.msra.mxu0 0.0
      %4546 = vmatprep.subr.mxu0 0.0
      %4547 = vmatpush1.msra.mxu0 0.0
      %4548 = vmatprep.subr.mxu0 0.0
      %4549 = vmatpush1.msra.mxu0 0.0
      %4550 = vmatprep.subr.mxu0 0.0
      %4551 = vmatpush1.msra.mxu0 0.0
      %4552 = vmatprep.subr.mxu0 0.0
      %4553 = vmatpush1.msra.mxu0 0.0
      %4554 = vmatprep.mubr.f32.mxu0 0.0
      %4555 = vmatmul.mubr.f32.gmra.mrb[0].mxu0 %v4488
      %v4556 = vpop.f32.mrb[0].mxu0
      %v4557 = vadd.f32 %v4484, %v4556
      %v4558 = vpop.f32.mrb[0].mxu0
      %4559 = vdwg.mxu0
      %v4560 = vadd.f32 %v4557, %v506
      %v4561 = vmax.f32 %v4560, 0.0
      %v4563 = vcombine.high %v4561, %v4561
      %v4565 = vunpack.c.l.s4 1966171168
      %v4566 = vunpack.c.0.s8 %v4565
      %v4567 = vlaneseq
      %v4568 = vshrl.u32 %v4567, 7
      %v4569 = vsub.s32 %v4566, %v4568
      %v4570 = vrot.slane %v4561, %v4569
      %v4572 = vunpack.c.l.s4 1966171168
      %v4573 = vunpack.c.0.s8 %v4572
      %v4574 = vlaneseq
      %v4575 = vshrl.u32 %v4574, 7
      %v4576 = vsub.s32 %v4573, %v4575
      %v4577 = vrot.slane %v4563, %v4576
      %v4578 = vcombine.high %v4570, %v4570
      %v4579 = vcombine.high %v4577, %v4577
      %v4581 = vunpack.c.l.s4 1966171168
      %v4582 = vunpack.c.0.s8 %v4581
      %v4583 = vlaneseq
      %v4584 = vshrl.u32 %v4583, 7
      %v4585 = vsub.s32 %v4582, %v4584
      %v4586 = vrot.slane %v4570, %v4585
      %v4588 = vunpack.c.l.s4 1966171168
      %v4589 = vunpack.c.0.s8 %v4588
      %v4590 = vlaneseq
      %v4591 = vshrl.u32 %v4590, 7
      %v4592 = vsub.s32 %v4589, %v4591
      %v4593 = vrot.slane %v4577, %v4592
      %v4595 = vunpack.c.l.s4 1966171168
      %v4596 = vunpack.c.0.s8 %v4595
      %v4597 = vlaneseq
      %v4598 = vshrl.u32 %v4597, 7
      %v4599 = vsub.s32 %v4596, %v4598
      %v4600 = vrot.slane %v4578, %v4599
      %v4602 = vunpack.c.l.s4 1966171168
      %v4603 = vunpack.c.0.s8 %v4602
      %v4604 = vlaneseq
      %v4605 = vshrl.u32 %v4604, 7
      %v4606 = vsub.s32 %v4603, %v4605
      %v4607 = vrot.slane %v4579, %v4606
      %v4608 = vcombine.high %v4586, %v4586
      %v4609 = vcombine.high %v4593, %v4593
      %v4610 = vcombine.high %v4600, %v4600
      %v4611 = vcombine.high %v4607, %v4607
      %v4612 = vlaneseq
      %v4613 = vshrl.u32 %v4612, 7
      %v4614 = vsub.s32 0, %v4613
      %v4615 = vrot.slane %v4586, %v4614
      %v4616 = vlaneseq
      %v4617 = vshrl.u32 %v4616, 7
      %v4618 = vsub.s32 0, %v4617
      %v4619 = vrot.slane %v4600, %v4618
      %v4620 = vlaneseq
      %v4621 = vshrl.u32 %v4620, 7
      %v4622 = vsub.s32 0, %v4621
      %v4623 = vrot.slane %v4608, %v4622
      %v4624 = vlaneseq
      %v4625 = vshrl.u32 %v4624, 7
      %v4626 = vsub.s32 0, %v4625
      %v4627 = vrot.slane %v4610, %v4626
      %v4628 = vlaneseq
      %v4629 = vshrl.u32 %v4628, 7
      %v4630 = vsub.s32 0, %v4629
      %v4631 = vrot.slane %v4593, %v4630
      %v4632 = vlaneseq
      %v4633 = vshrl.u32 %v4632, 7
      %v4634 = vsub.s32 0, %v4633
      %v4635 = vrot.slane %v4607, %v4634
      %v4636 = vlaneseq
      %v4637 = vshrl.u32 %v4636, 7
      %v4638 = vsub.s32 0, %v4637
      %v4639 = vrot.slane %v4609, %v4638
      %v4640 = vlaneseq
      %v4641 = vshrl.u32 %v4640, 7
      %v4642 = vsub.s32 0, %v4641
      %v4643 = vrot.slane %v4611, %v4642
      %4644 = vrot.lane.b32.xlu0 %v4615, 32
      %v4645 = vpop.permute.xlu0 %4644
      %4646 = vrot.lane.b32.xlu0 %v4619, 32
      %v4647 = vpop.permute.xlu0 %4646
      %4648 = vrot.lane.b32.xlu0 %v4623, 32
      %v4649 = vpop.permute.xlu0 %4648
      %4650 = vrot.lane.b32.xlu0 %v4627, 32
      %v4651 = vpop.permute.xlu0 %4650
      %4652 = vrot.lane.b32.xlu0 %v4631, 32
      %v4653 = vpop.permute.xlu0 %4652
      %4654 = vrot.lane.b32.xlu0 %v4635, 32
      %v4655 = vpop.permute.xlu0 %4654
      %4656 = vrot.lane.b32.xlu0 %v4639, 32
      %v4657 = vpop.permute.xlu0 %4656
      %4658 = vrot.lane.b32.xlu0 %v4643, 32
      %v4659 = vpop.permute.xlu0 %4658
      %4668 = vst.msk [vmem:[%s235 + $0x8] sm:$0x1] %vm831, %v4645
      %4669 = vst.msk [vmem:[%s235 + $0x18] sm:$0x1] %vm831, %v4647
      %4670 = vst.msk [vmem:[%s235 + $0x28] sm:$0x1] %vm831, %v4649
      %4671 = vst.msk [vmem:[%s235 + $0x38] sm:$0x1] %vm831, %v4651
      %4672 = vst.msk [vmem:[%s235 + $0x48] sm:$0x1] %vm831, %v4653
      %4673 = vst.msk [vmem:[%s235 + $0x58] sm:$0x1] %vm831, %v4655
      %4674 = vst.msk [vmem:[%s235 + $0x68] sm:$0x1] %vm831, %v4657
      %4675 = vst.msk [vmem:[%s235 + $0x78] sm:$0x1] %vm831, %v4659
      %4676 = vrot.lane.b32.xlu0 %v337, 112
      %v4677 = vpop.permute.xlu0 %4676
      %v4678 = vsel %vm356, %v4677, 0
      %4680 = vmatprep.subr.mxu0 0.0
      %4681 = vmatpush1.msra.mxu0 %v354
      %4682 = vmatprep.subr.mxu0 0.0
      %4683 = vmatpush1.msra.mxu0 %v355
      %4684 = vmatprep.subr.mxu0 0.0
      %4685 = vmatpush1.msra.mxu0 0.0
      %4686 = vmatprep.subr.mxu0 0.0
      %4687 = vmatpush1.msra.mxu0 0.0
      %4688 = vmatprep.subr.mxu0 0.0
      %4689 = vmatpush1.msra.mxu0 0.0
      %4690 = vmatprep.subr.mxu0 0.0
      %4691 = vmatpush1.msra.mxu0 0.0
      %4692 = vmatprep.subr.mxu0 0.0
      %4693 = vmatpush1.msra.mxu0 0.0
      %4694 = vmatprep.subr.mxu0 0.0
      %4695 = vmatpush1.msra.mxu0 0.0
      %4696 = vmatprep.subr.mxu0 0.0
      %4697 = vmatpush1.msra.mxu0 0.0
      %4698 = vmatprep.subr.mxu0 0.0
      %4699 = vmatpush1.msra.mxu0 0.0
      %4700 = vmatprep.subr.mxu0 0.0
      %4701 = vmatpush1.msra.mxu0 0.0
      %4702 = vmatprep.subr.mxu0 0.0
      %4703 = vmatpush1.msra.mxu0 0.0
      %4704 = vmatprep.subr.mxu0 0.0
      %4705 = vmatpush1.msra.mxu0 0.0
      %4706 = vmatprep.subr.mxu0 0.0
      %4707 = vmatpush1.msra.mxu0 0.0
      %4708 = vmatprep.subr.mxu0 0.0
      %4709 = vmatpush1.msra.mxu0 0.0
      %4710 = vmatprep.subr.mxu0 0.0
      %4711 = vmatpush1.msra.mxu0 0.0
      %4712 = vmatprep.subr.mxu0 0.0
      %4713 = vmatpush1.msra.mxu0 0.0
      %4714 = vmatprep.subr.mxu0 0.0
      %4715 = vmatpush1.msra.mxu0 0.0
      %4716 = vmatprep.subr.mxu0 0.0
      %4717 = vmatpush1.msra.mxu0 0.0
      %4718 = vmatprep.subr.mxu0 0.0
      %4719 = vmatpush1.msra.mxu0 0.0
      %4720 = vmatprep.subr.mxu0 0.0
      %4721 = vmatpush1.msra.mxu0 0.0
      %4722 = vmatprep.subr.mxu0 0.0
      %4723 = vmatpush1.msra.mxu0 0.0
      %4724 = vmatprep.subr.mxu0 0.0
      %4725 = vmatpush1.msra.mxu0 0.0
      %4726 = vmatprep.subr.mxu0 0.0
      %4727 = vmatpush1.msra.mxu0 0.0
      %4728 = vmatprep.subr.mxu0 0.0
      %4729 = vmatpush1.msra.mxu0 0.0
      %4730 = vmatprep.subr.mxu0 0.0
      %4731 = vmatpush1.msra.mxu0 0.0
      %4732 = vmatprep.subr.mxu0 0.0
      %4733 = vmatpush1.msra.mxu0 0.0
      %4734 = vmatprep.subr.mxu0 0.0
      %4735 = vmatpush1.msra.mxu0 0.0
      %4736 = vmatprep.subr.mxu0 0.0
      %4737 = vmatpush1.msra.mxu0 0.0
      %4738 = vmatprep.subr.mxu0 0.0
      %4739 = vmatpush1.msra.mxu0 0.0
      %4740 = vmatprep.subr.mxu0 0.0
      %4741 = vmatpush1.msra.mxu0 0.0
      %4742 = vmatprep.subr.mxu0 0.0
      %4743 = vmatpush1.msra.mxu0 0.0
      %4744 = vmatprep.mubr.f32.mxu0 0.0
      %4745 = vmatmul.mubr.f32.gmra.mrb[0].mxu0 %v4678
      %v4746 = vpop.f32.mrb[0].mxu0
      %v4747 = vadd.f32 0.0, %v4746
      %v4748 = vpop.f32.mrb[0].mxu0
      %4749 = vdwg.mxu0
      %4750 = vrot.lane.b32.xlu0 %v331, 112
      %v4751 = vpop.permute.xlu0 %4750
      %v4752 = vsel %vm356, %v4751, 0
      %4754 = vmatprep.subr.mxu0 0.0
      %4755 = vmatpush1.msra.mxu0 %v352
      %4756 = vmatprep.subr.mxu0 0.0
      %4757 = vmatpush1.msra.mxu0 %v353
      %4758 = vmatprep.subr.mxu0 0.0
      %4759 = vmatpush1.msra.mxu0 0.0
      %4760 = vmatprep.subr.mxu0 0.0
      %4761 = vmatpush1.msra.mxu0 0.0
      %4762 = vmatprep.subr.mxu0 0.0
      %4763 = vmatpush1.msra.mxu0 0.0
      %4764 = vmatprep.subr.mxu0 0.0
      %4765 = vmatpush1.msra.mxu0 0.0
      %4766 = vmatprep.subr.mxu0 0.0
      %4767 = vmatpush1.msra.mxu0 0.0
      %4768 = vmatprep.subr.mxu0 0.0
      %4769 = vmatpush1.msra.mxu0 0.0
      %4770 = vmatprep.subr.mxu0 0.0
      %4771 = vmatpush1.msra.mxu0 0.0
      %4772 = vmatprep.subr.mxu0 0.0
      %4773 = vmatpush1.msra.mxu0 0.0
      %4774 = vmatprep.subr.mxu0 0.0
      %4775 = vmatpush1.msra.mxu0 0.0
      %4776 = vmatprep.subr.mxu0 0.0
      %4777 = vmatpush1.msra.mxu0 0.0
      %4778 = vmatprep.subr.mxu0 0.0
      %4779 = vmatpush1.msra.mxu0 0.0
      %4780 = vmatprep.subr.mxu0 0.0
      %4781 = vmatpush1.msra.mxu0 0.0
      %4782 = vmatprep.subr.mxu0 0.0
      %4783 = vmatpush1.msra.mxu0 0.0
      %4784 = vmatprep.subr.mxu0 0.0
      %4785 = vmatpush1.msra.mxu0 0.0
      %4786 = vmatprep.subr.mxu0 0.0
      %4787 = vmatpush1.msra.mxu0 0.0
      %4788 = vmatprep.subr.mxu0 0.0
      %4789 = vmatpush1.msra.mxu0 0.0
      %4790 = vmatprep.subr.mxu0 0.0
      %4791 = vmatpush1.msra.mxu0 0.0
      %4792 = vmatprep.subr.mxu0 0.0
      %4793 = vmatpush1.msra.mxu0 0.0
      %4794 = vmatprep.subr.mxu0 0.0
      %4795 = vmatpush1.msra.mxu0 0.0
      %4796 = vmatprep.subr.mxu0 0.0
      %4797 = vmatpush1.msra.mxu0 0.0
      %4798 = vmatprep.subr.mxu0 0.0
      %4799 = vmatpush1.msra.mxu0 0.0
      %4800 = vmatprep.subr.mxu0 0.0
      %4801 = vmatpush1.msra.mxu0 0.0
      %4802 = vmatprep.subr.mxu0 0.0
      %4803 = vmatpush1.msra.mxu0 0.0
      %4804 = vmatprep.subr.mxu0 0.0
      %4805 = vmatpush1.msra.mxu0 0.0
      %4806 = vmatprep.subr.mxu0 0.0
      %4807 = vmatpush1.msra.mxu0 0.0
      %4808 = vmatprep.subr.mxu0 0.0
      %4809 = vmatpush1.msra.mxu0 0.0
      %4810 = vmatprep.subr.mxu0 0.0
      %4811 = vmatpush1.msra.mxu0 0.0
      %4812 = vmatprep.subr.mxu0 0.0
      %4813 = vmatpush1.msra.mxu0 0.0
      %4814 = vmatprep.subr.mxu0 0.0
      %4815 = vmatpush1.msra.mxu0 0.0
      %4816 = vmatprep.subr.mxu0 0.0
      %4817 = vmatpush1.msra.mxu0 0.0
      %4818 = vmatprep.mubr.f32.mxu0 0.0
      %4819 = vmatmul.mubr.f32.gmra.mrb[0].mxu0 %v4752
      %v4820 = vpop.f32.mrb[0].mxu0
      %v4821 = vadd.f32 %v4747, %v4820
      %v4822 = vpop.f32.mrb[0].mxu0
      %4823 = vdwg.mxu0
      %v4824 = vadd.f32 %v4821, %v506
      %v4825 = vmax.f32 %v4824, 0.0
      %v4827 = vcombine.high %v4825, %v4825
      %v4829 = vunpack.c.l.s4 1966171168
      %v4830 = vunpack.c.0.s8 %v4829
      %v4831 = vlaneseq
      %v4832 = vshrl.u32 %v4831, 7
      %v4833 = vsub.s32 %v4830, %v4832
      %v4834 = vrot.slane %v4825, %v4833
      %v4836 = vunpack.c.l.s4 1966171168
      %v4837 = vunpack.c.0.s8 %v4836
      %v4838 = vlaneseq
      %v4839 = vshrl.u32 %v4838, 7
      %v4840 = vsub.s32 %v4837, %v4839
      %v4841 = vrot.slane %v4827, %v4840
      %v4842 = vcombine.high %v4834, %v4834
      %v4843 = vcombine.high %v4841, %v4841
      %v4845 = vunpack.c.l.s4 1966171168
      %v4846 = vunpack.c.0.s8 %v4845
      %v4847 = vlaneseq
      %v4848 = vshrl.u32 %v4847, 7
      %v4849 = vsub.s32 %v4846, %v4848
      %v4850 = vrot.slane %v4834, %v4849
      %v4852 = vunpack.c.l.s4 1966171168
      %v4853 = vunpack.c.0.s8 %v4852
      %v4854 = vlaneseq
      %v4855 = vshrl.u32 %v4854, 7
      %v4856 = vsub.s32 %v4853, %v4855
      %v4857 = vrot.slane %v4841, %v4856
      %v4859 = vunpack.c.l.s4 1966171168
      %v4860 = vunpack.c.0.s8 %v4859
      %v4861 = vlaneseq
      %v4862 = vshrl.u32 %v4861, 7
      %v4863 = vsub.s32 %v4860, %v4862
      %v4864 = vrot.slane %v4842, %v4863
      %v4866 = vunpack.c.l.s4 1966171168
      %v4867 = vunpack.c.0.s8 %v4866
      %v4868 = vlaneseq
      %v4869 = vshrl.u32 %v4868, 7
      %v4870 = vsub.s32 %v4867, %v4869
      %v4871 = vrot.slane %v4843, %v4870
      %v4872 = vcombine.high %v4850, %v4850
      %v4873 = vcombine.high %v4857, %v4857
      %v4874 = vcombine.high %v4864, %v4864
      %v4875 = vcombine.high %v4871, %v4871
      %4884 = vst.msk [vmem:[%s235 + $0x9] sm:$0x1] %vm568, %v4850
      %4885 = vst.msk [vmem:[%s235 + $0x19] sm:$0x1] %vm568, %v4864
      %4886 = vst.msk [vmem:[%s235 + $0x29] sm:$0x1] %vm568, %v4872
      %4887 = vst.msk [vmem:[%s235 + $0x39] sm:$0x1] %vm568, %v4874
      %4888 = vst.msk [vmem:[%s235 + $0x49] sm:$0x1] %vm568, %v4857
      %4889 = vst.msk [vmem:[%s235 + $0x59] sm:$0x1] %vm568, %v4871
      %4890 = vst.msk [vmem:[%s235 + $0x69] sm:$0x1] %vm568, %v4873
      %4891 = vst.msk [vmem:[%s235 + $0x79] sm:$0x1] %vm568, %v4875
      %4892 = vrot.lane.b32.xlu0 %v349, 112
      %v4893 = vpop.permute.xlu0 %4892
      %v4894 = vsel %vm356, %v4893, 0
      %4896 = vmatprep.subr.mxu0 0.0
      %4897 = vmatpush1.msra.mxu0 %v354
      %4898 = vmatprep.subr.mxu0 0.0
      %4899 = vmatpush1.msra.mxu0 %v355
      %4900 = vmatprep.subr.mxu0 0.0
      %4901 = vmatpush1.msra.mxu0 0.0
      %4902 = vmatprep.subr.mxu0 0.0
      %4903 = vmatpush1.msra.mxu0 0.0
      %4904 = vmatprep.subr.mxu0 0.0
      %4905 = vmatpush1.msra.mxu0 0.0
      %4906 = vmatprep.subr.mxu0 0.0
      %4907 = vmatpush1.msra.mxu0 0.0
      %4908 = vmatprep.subr.mxu0 0.0
      %4909 = vmatpush1.msra.mxu0 0.0
      %4910 = vmatprep.subr.mxu0 0.0
      %4911 = vmatpush1.msra.mxu0 0.0
      %4912 = vmatprep.subr.mxu0 0.0
      %4913 = vmatpush1.msra.mxu0 0.0
      %4914 = vmatprep.subr.mxu0 0.0
      %4915 = vmatpush1.msra.mxu0 0.0
      %4916 = vmatprep.subr.mxu0 0.0
      %4917 = vmatpush1.msra.mxu0 0.0
      %4918 = vmatprep.subr.mxu0 0.0
      %4919 = vmatpush1.msra.mxu0 0.0
      %4920 = vmatprep.subr.mxu0 0.0
      %4921 = vmatpush1.msra.mxu0 0.0
      %4922 = vmatprep.subr.mxu0 0.0
      %4923 = vmatpush1.msra.mxu0 0.0
      %4924 = vmatprep.subr.mxu0 0.0
      %4925 = vmatpush1.msra.mxu0 0.0
      %4926 = vmatprep.subr.mxu0 0.0
      %4927 = vmatpush1.msra.mxu0 0.0
      %4928 = vmatprep.subr.mxu0 0.0
      %4929 = vmatpush1.msra.mxu0 0.0
      %4930 = vmatprep.subr.mxu0 0.0
      %4931 = vmatpush1.msra.mxu0 0.0
      %4932 = vmatprep.subr.mxu0 0.0
      %4933 = vmatpush1.msra.mxu0 0.0
      %4934 = vmatprep.subr.mxu0 0.0
      %4935 = vmatpush1.msra.mxu0 0.0
      %4936 = vmatprep.subr.mxu0 0.0
      %4937 = vmatpush1.msra.mxu0 0.0
      %4938 = vmatprep.subr.mxu0 0.0
      %4939 = vmatpush1.msra.mxu0 0.0
      %4940 = vmatprep.subr.mxu0 0.0
      %4941 = vmatpush1.msra.mxu0 0.0
      %4942 = vmatprep.subr.mxu0 0.0
      %4943 = vmatpush1.msra.mxu0 0.0
      %4944 = vmatprep.subr.mxu0 0.0
      %4945 = vmatpush1.msra.mxu0 0.0
      %4946 = vmatprep.subr.mxu0 0.0
      %4947 = vmatpush1.msra.mxu0 0.0
      %4948 = vmatprep.subr.mxu0 0.0
      %4949 = vmatpush1.msra.mxu0 0.0
      %4950 = vmatprep.subr.mxu0 0.0
      %4951 = vmatpush1.msra.mxu0 0.0
      %4952 = vmatprep.subr.mxu0 0.0
      %4953 = vmatpush1.msra.mxu0 0.0
      %4954 = vmatprep.subr.mxu0 0.0
      %4955 = vmatpush1.msra.mxu0 0.0
      %4956 = vmatprep.subr.mxu0 0.0
      %4957 = vmatpush1.msra.mxu0 0.0
      %4958 = vmatprep.subr.mxu0 0.0
      %4959 = vmatpush1.msra.mxu0 0.0
      %4960 = vmatprep.mubr.f32.mxu0 0.0
      %4961 = vmatmul.mubr.f32.gmra.mrb[0].mxu0 %v4894
      %v4962 = vpop.f32.mrb[0].mxu0
      %v4963 = vadd.f32 0.0, %v4962
      %v4964 = vpop.f32.mrb[0].mxu0
      %4965 = vdwg.mxu0
      %4966 = vrot.lane.b32.xlu0 %v343, 112
      %v4967 = vpop.permute.xlu0 %4966
      %v4968 = vsel %vm356, %v4967, 0
      %4970 = vmatprep.subr.mxu0 0.0
      %4971 = vmatpush1.msra.mxu0 %v352
      %4972 = vmatprep.subr.mxu0 0.0
      %4973 = vmatpush1.msra.mxu0 %v353
      %4974 = vmatprep.subr.mxu0 0.0
      %4975 = vmatpush1.msra.mxu0 0.0
      %4976 = vmatprep.subr.mxu0 0.0
      %4977 = vmatpush1.msra.mxu0 0.0
      %4978 = vmatprep.subr.mxu0 0.0
      %4979 = vmatpush1.msra.mxu0 0.0
      %4980 = vmatprep.subr.mxu0 0.0
      %4981 = vmatpush1.msra.mxu0 0.0
      %4982 = vmatprep.subr.mxu0 0.0
      %4983 = vmatpush1.msra.mxu0 0.0
      %4984 = vmatprep.subr.mxu0 0.0
      %4985 = vmatpush1.msra.mxu0 0.0
      %4986 = vmatprep.subr.mxu0 0.0
      %4987 = vmatpush1.msra.mxu0 0.0
      %4988 = vmatprep.subr.mxu0 0.0
      %4989 = vmatpush1.msra.mxu0 0.0
      %4990 = vmatprep.subr.mxu0 0.0
      %4991 = vmatpush1.msra.mxu0 0.0
      %4992 = vmatprep.subr.mxu0 0.0
      %4993 = vmatpush1.msra.mxu0 0.0
      %4994 = vmatprep.subr.mxu0 0.0
      %4995 = vmatpush1.msra.mxu0 0.0
      %4996 = vmatprep.subr.mxu0 0.0
      %4997 = vmatpush1.msra.mxu0 0.0
      %4998 = vmatprep.subr.mxu0 0.0
      %4999 = vmatpush1.msra.mxu0 0.0
      %5000 = vmatprep.subr.mxu0 0.0
      %5001 = vmatpush1.msra.mxu0 0.0
      %5002 = vmatprep.subr.mxu0 0.0
      %5003 = vmatpush1.msra.mxu0 0.0
      %5004 = vmatprep.subr.mxu0 0.0
      %5005 = vmatpush1.msra.mxu0 0.0
      %5006 = vmatprep.subr.mxu0 0.0
      %5007 = vmatpush1.msra.mxu0 0.0
      %5008 = vmatprep.subr.mxu0 0.0
      %5009 = vmatpush1.msra.mxu0 0.0
      %5010 = vmatprep.subr.mxu0 0.0
      %5011 = vmatpush1.msra.mxu0 0.0
      %5012 = vmatprep.subr.mxu0 0.0
      %5013 = vmatpush1.msra.mxu0 0.0
      %5014 = vmatprep.subr.mxu0 0.0
      %5015 = vmatpush1.msra.mxu0 0.0
      %5016 = vmatprep.subr.mxu0 0.0
      %5017 = vmatpush1.msra.mxu0 0.0
      %5018 = vmatprep.subr.mxu0 0.0
      %5019 = vmatpush1.msra.mxu0 0.0
      %5020 = vmatprep.subr.mxu0 0.0
      %5021 = vmatpush1.msra.mxu0 0.0
      %5022 = vmatprep.subr.mxu0 0.0
      %5023 = vmatpush1.msra.mxu0 0.0
      %5024 = vmatprep.subr.mxu0 0.0
      %5025 = vmatpush1.msra.mxu0 0.0
      %5026 = vmatprep.subr.mxu0 0.0
      %5027 = vmatpush1.msra.mxu0 0.0
      %5028 = vmatprep.subr.mxu0 0.0
      %5029 = vmatpush1.msra.mxu0 0.0
      %5030 = vmatprep.subr.mxu0 0.0
      %5031 = vmatpush1.msra.mxu0 0.0
      %5032 = vmatprep.subr.mxu0 0.0
      %5033 = vmatpush1.msra.mxu0 0.0
      %5034 = vmatprep.mubr.f32.mxu0 0.0
      %5035 = vmatmul.mubr.f32.gmra.mrb[0].mxu0 %v4968
      %v5036 = vpop.f32.mrb[0].mxu0
      %v5037 = vadd.f32 %v4963, %v5036
      %v5038 = vpop.f32.mrb[0].mxu0
      %5039 = vdwg.mxu0
      %v5040 = vadd.f32 %v5037, %v506
      %v5041 = vmax.f32 %v5040, 0.0
      %v5043 = vcombine.high %v5041, %v5041
      %v5045 = vunpack.c.l.s4 1966171168
      %v5046 = vunpack.c.0.s8 %v5045
      %v5047 = vlaneseq
      %v5048 = vshrl.u32 %v5047, 7
      %v5049 = vsub.s32 %v5046, %v5048
      %v5050 = vrot.slane %v5041, %v5049
      %v5052 = vunpack.c.l.s4 1966171168
      %v5053 = vunpack.c.0.s8 %v5052
      %v5054 = vlaneseq
      %v5055 = vshrl.u32 %v5054, 7
      %v5056 = vsub.s32 %v5053, %v5055
      %v5057 = vrot.slane %v5043, %v5056
      %v5058 = vcombine.high %v5050, %v5050
      %v5059 = vcombine.high %v5057, %v5057
      %v5061 = vunpack.c.l.s4 1966171168
      %v5062 = vunpack.c.0.s8 %v5061
      %v5063 = vlaneseq
      %v5064 = vshrl.u32 %v5063, 7
      %v5065 = vsub.s32 %v5062, %v5064
      %v5066 = vrot.slane %v5050, %v5065
      %v5068 = vunpack.c.l.s4 1966171168
      %v5069 = vunpack.c.0.s8 %v5068
      %v5070 = vlaneseq
      %v5071 = vshrl.u32 %v5070, 7
      %v5072 = vsub.s32 %v5069, %v5071
      %v5073 = vrot.slane %v5057, %v5072
      %v5075 = vunpack.c.l.s4 1966171168
      %v5076 = vunpack.c.0.s8 %v5075
      %v5077 = vlaneseq
      %v5078 = vshrl.u32 %v5077, 7
      %v5079 = vsub.s32 %v5076, %v5078
      %v5080 = vrot.slane %v5058, %v5079
      %v5082 = vunpack.c.l.s4 1966171168
      %v5083 = vunpack.c.0.s8 %v5082
      %v5084 = vlaneseq
      %v5085 = vshrl.u32 %v5084, 7
      %v5086 = vsub.s32 %v5083, %v5085
      %v5087 = vrot.slane %v5059, %v5086
      %v5088 = vcombine.high %v5066, %v5066
      %v5089 = vcombine.high %v5073, %v5073
      %v5090 = vcombine.high %v5080, %v5080
      %v5091 = vcombine.high %v5087, %v5087
      %v5092 = vlaneseq
      %v5093 = vshrl.u32 %v5092, 7
      %v5094 = vsub.s32 0, %v5093
      %v5095 = vrot.slane %v5066, %v5094
      %v5096 = vlaneseq
      %v5097 = vshrl.u32 %v5096, 7
      %v5098 = vsub.s32 0, %v5097
      %v5099 = vrot.slane %v5080, %v5098
      %v5100 = vlaneseq
      %v5101 = vshrl.u32 %v5100, 7
      %v5102 = vsub.s32 0, %v5101
      %v5103 = vrot.slane %v5088, %v5102
      %v5104 = vlaneseq
      %v5105 = vshrl.u32 %v5104, 7
      %v5106 = vsub.s32 0, %v5105
      %v5107 = vrot.slane %v5090, %v5106
      %v5108 = vlaneseq
      %v5109 = vshrl.u32 %v5108, 7
      %v5110 = vsub.s32 0, %v5109
      %v5111 = vrot.slane %v5073, %v5110
      %v5112 = vlaneseq
      %v5113 = vshrl.u32 %v5112, 7
      %v5114 = vsub.s32 0, %v5113
      %v5115 = vrot.slane %v5087, %v5114
      %v5116 = vlaneseq
      %v5117 = vshrl.u32 %v5116, 7
      %v5118 = vsub.s32 0, %v5117
      %v5119 = vrot.slane %v5089, %v5118
      %v5120 = vlaneseq
      %v5121 = vshrl.u32 %v5120, 7
      %v5122 = vsub.s32 0, %v5121
      %v5123 = vrot.slane %v5091, %v5122
      %5124 = vrot.lane.b32.xlu0 %v5095, 32
      %v5125 = vpop.permute.xlu0 %5124
      %5126 = vrot.lane.b32.xlu0 %v5099, 32
      %v5127 = vpop.permute.xlu0 %5126
      %5128 = vrot.lane.b32.xlu0 %v5103, 32
      %v5129 = vpop.permute.xlu0 %5128
      %5130 = vrot.lane.b32.xlu0 %v5107, 32
      %v5131 = vpop.permute.xlu0 %5130
      %5132 = vrot.lane.b32.xlu0 %v5111, 32
      %v5133 = vpop.permute.xlu0 %5132
      %5134 = vrot.lane.b32.xlu0 %v5115, 32
      %v5135 = vpop.permute.xlu0 %5134
      %5136 = vrot.lane.b32.xlu0 %v5119, 32
      %v5137 = vpop.permute.xlu0 %5136
      %5138 = vrot.lane.b32.xlu0 %v5123, 32
      %v5139 = vpop.permute.xlu0 %5138
      %5148 = vst.msk [vmem:[%s235 + $0x9] sm:$0x1] %vm831, %v5125
      %5149 = vst.msk [vmem:[%s235 + $0x19] sm:$0x1] %vm831, %v5127
      %5150 = vst.msk [vmem:[%s235 + $0x29] sm:$0x1] %vm831, %v5129
      %5151 = vst.msk [vmem:[%s235 + $0x39] sm:$0x1] %vm831, %v5131
      %5152 = vst.msk [vmem:[%s235 + $0x49] sm:$0x1] %vm831, %v5133
      %5153 = vst.msk [vmem:[%s235 + $0x59] sm:$0x1] %vm831, %v5135
      %5154 = vst.msk [vmem:[%s235 + $0x69] sm:$0x1] %vm831, %v5137
      %5155 = vst.msk [vmem:[%s235 + $0x79] sm:$0x1] %vm831, %v5139
      %5156 = vrot.lane.b32.xlu0 %v337, 96
      %v5157 = vpop.permute.xlu0 %5156
      %v5158 = vsel %vm356, %v5157, 0
      %5160 = vmatprep.subr.mxu0 0.0
      %5161 = vmatpush1.msra.mxu0 %v354
      %5162 = vmatprep.subr.mxu0 0.0
      %5163 = vmatpush1.msra.mxu0 %v355
      %5164 = vmatprep.subr.mxu0 0.0
      %5165 = vmatpush1.msra.mxu0 0.0
      %5166 = vmatprep.subr.mxu0 0.0
      %5167 = vmatpush1.msra.mxu0 0.0
      %5168 = vmatprep.subr.mxu0 0.0
      %5169 = vmatpush1.msra.mxu0 0.0
      %5170 = vmatprep.subr.mxu0 0.0
      %5171 = vmatpush1.msra.mxu0 0.0
      %5172 = vmatprep.subr.mxu0 0.0
      %5173 = vmatpush1.msra.mxu0 0.0
      %5174 = vmatprep.subr.mxu0 0.0
      %5175 = vmatpush1.msra.mxu0 0.0
      %5176 = vmatprep.subr.mxu0 0.0
      %5177 = vmatpush1.msra.mxu0 0.0
      %5178 = vmatprep.subr.mxu0 0.0
      %5179 = vmatpush1.msra.mxu0 0.0
      %5180 = vmatprep.subr.mxu0 0.0
      %5181 = vmatpush1.msra.mxu0 0.0
      %5182 = vmatprep.subr.mxu0 0.0
      %5183 = vmatpush1.msra.mxu0 0.0
      %5184 = vmatprep.subr.mxu0 0.0
      %5185 = vmatpush1.msra.mxu0 0.0
      %5186 = vmatprep.subr.mxu0 0.0
      %5187 = vmatpush1.msra.mxu0 0.0
      %5188 = vmatprep.subr.mxu0 0.0
      %5189 = vmatpush1.msra.mxu0 0.0
      %5190 = vmatprep.subr.mxu0 0.0
      %5191 = vmatpush1.msra.mxu0 0.0
      %5192 = vmatprep.subr.mxu0 0.0
      %5193 = vmatpush1.msra.mxu0 0.0
      %5194 = vmatprep.subr.mxu0 0.0
      %5195 = vmatpush1.msra.mxu0 0.0
      %5196 = vmatprep.subr.mxu0 0.0
      %5197 = vmatpush1.msra.mxu0 0.0
      %5198 = vmatprep.subr.mxu0 0.0
      %5199 = vmatpush1.msra.mxu0 0.0
      %5200 = vmatprep.subr.mxu0 0.0
      %5201 = vmatpush1.msra.mxu0 0.0
      %5202 = vmatprep.subr.mxu0 0.0
      %5203 = vmatpush1.msra.mxu0 0.0
      %5204 = vmatprep.subr.mxu0 0.0
      %5205 = vmatpush1.msra.mxu0 0.0
      %5206 = vmatprep.subr.mxu0 0.0
      %5207 = vmatpush1.msra.mxu0 0.0
      %5208 = vmatprep.subr.mxu0 0.0
      %5209 = vmatpush1.msra.mxu0 0.0
      %5210 = vmatprep.subr.mxu0 0.0
      %5211 = vmatpush1.msra.mxu0 0.0
      %5212 = vmatprep.subr.mxu0 0.0
      %5213 = vmatpush1.msra.mxu0 0.0
      %5214 = vmatprep.subr.mxu0 0.0
      %5215 = vmatpush1.msra.mxu0 0.0
      %5216 = vmatprep.subr.mxu0 0.0
      %5217 = vmatpush1.msra.mxu0 0.0
      %5218 = vmatprep.subr.mxu0 0.0
      %5219 = vmatpush1.msra.mxu0 0.0
      %5220 = vmatprep.subr.mxu0 0.0
      %5221 = vmatpush1.msra.mxu0 0.0
      %5222 = vmatprep.subr.mxu0 0.0
      %5223 = vmatpush1.msra.mxu0 0.0
      %5224 = vmatprep.mubr.f32.mxu0 0.0
      %5225 = vmatmul.mubr.f32.gmra.mrb[0].mxu0 %v5158
      %v5226 = vpop.f32.mrb[0].mxu0
      %v5227 = vadd.f32 0.0, %v5226
      %v5228 = vpop.f32.mrb[0].mxu0
      %5229 = vdwg.mxu0
      %5230 = vrot.lane.b32.xlu0 %v331, 96
      %v5231 = vpop.permute.xlu0 %5230
      %v5232 = vsel %vm356, %v5231, 0
      %5234 = vmatprep.subr.mxu0 0.0
      %5235 = vmatpush1.msra.mxu0 %v352
      %5236 = vmatprep.subr.mxu0 0.0
      %5237 = vmatpush1.msra.mxu0 %v353
      %5238 = vmatprep.subr.mxu0 0.0
      %5239 = vmatpush1.msra.mxu0 0.0
      %5240 = vmatprep.subr.mxu0 0.0
      %5241 = vmatpush1.msra.mxu0 0.0
      %5242 = vmatprep.subr.mxu0 0.0
      %5243 = vmatpush1.msra.mxu0 0.0
      %5244 = vmatprep.subr.mxu0 0.0
      %5245 = vmatpush1.msra.mxu0 0.0
      %5246 = vmatprep.subr.mxu0 0.0
      %5247 = vmatpush1.msra.mxu0 0.0
      %5248 = vmatprep.subr.mxu0 0.0
      %5249 = vmatpush1.msra.mxu0 0.0
      %5250 = vmatprep.subr.mxu0 0.0
      %5251 = vmatpush1.msra.mxu0 0.0
      %5252 = vmatprep.subr.mxu0 0.0
      %5253 = vmatpush1.msra.mxu0 0.0
      %5254 = vmatprep.subr.mxu0 0.0
      %5255 = vmatpush1.msra.mxu0 0.0
      %5256 = vmatprep.subr.mxu0 0.0
      %5257 = vmatpush1.msra.mxu0 0.0
      %5258 = vmatprep.subr.mxu0 0.0
      %5259 = vmatpush1.msra.mxu0 0.0
      %5260 = vmatprep.subr.mxu0 0.0
      %5261 = vmatpush1.msra.mxu0 0.0
      %5262 = vmatprep.subr.mxu0 0.0
      %5263 = vmatpush1.msra.mxu0 0.0
      %5264 = vmatprep.subr.mxu0 0.0
      %5265 = vmatpush1.msra.mxu0 0.0
      %5266 = vmatprep.subr.mxu0 0.0
      %5267 = vmatpush1.msra.mxu0 0.0
      %5268 = vmatprep.subr.mxu0 0.0
      %5269 = vmatpush1.msra.mxu0 0.0
      %5270 = vmatprep.subr.mxu0 0.0
      %5271 = vmatpush1.msra.mxu0 0.0
      %5272 = vmatprep.subr.mxu0 0.0
      %5273 = vmatpush1.msra.mxu0 0.0
      %5274 = vmatprep.subr.mxu0 0.0
      %5275 = vmatpush1.msra.mxu0 0.0
      %5276 = vmatprep.subr.mxu0 0.0
      %5277 = vmatpush1.msra.mxu0 0.0
      %5278 = vmatprep.subr.mxu0 0.0
      %5279 = vmatpush1.msra.mxu0 0.0
      %5280 = vmatprep.subr.mxu0 0.0
      %5281 = vmatpush1.msra.mxu0 0.0
      %5282 = vmatprep.subr.mxu0 0.0
      %5283 = vmatpush1.msra.mxu0 0.0
      %5284 = vmatprep.subr.mxu0 0.0
      %5285 = vmatpush1.msra.mxu0 0.0
      %5286 = vmatprep.subr.mxu0 0.0
      %5287 = vmatpush1.msra.mxu0 0.0
      %5288 = vmatprep.subr.mxu0 0.0
      %5289 = vmatpush1.msra.mxu0 0.0
      %5290 = vmatprep.subr.mxu0 0.0
      %5291 = vmatpush1.msra.mxu0 0.0
      %5292 = vmatprep.subr.mxu0 0.0
      %5293 = vmatpush1.msra.mxu0 0.0
      %5294 = vmatprep.subr.mxu0 0.0
      %5295 = vmatpush1.msra.mxu0 0.0
      %5296 = vmatprep.subr.mxu0 0.0
      %5297 = vmatpush1.msra.mxu0 0.0
      %5298 = vmatprep.mubr.f32.mxu0 0.0
      %5299 = vmatmul.mubr.f32.gmra.mrb[0].mxu0 %v5232
      %v5300 = vpop.f32.mrb[0].mxu0
      %v5301 = vadd.f32 %v5227, %v5300
      %v5302 = vpop.f32.mrb[0].mxu0
      %5303 = vdwg.mxu0
      %v5304 = vadd.f32 %v5301, %v506
      %v5305 = vmax.f32 %v5304, 0.0
      %v5307 = vcombine.high %v5305, %v5305
      %v5309 = vunpack.c.l.s4 1966171168
      %v5310 = vunpack.c.0.s8 %v5309
      %v5311 = vlaneseq
      %v5312 = vshrl.u32 %v5311, 7
      %v5313 = vsub.s32 %v5310, %v5312
      %v5314 = vrot.slane %v5305, %v5313
      %v5316 = vunpack.c.l.s4 1966171168
      %v5317 = vunpack.c.0.s8 %v5316
      %v5318 = vlaneseq
      %v5319 = vshrl.u32 %v5318, 7
      %v5320 = vsub.s32 %v5317, %v5319
      %v5321 = vrot.slane %v5307, %v5320
      %v5322 = vcombine.high %v5314, %v5314
      %v5323 = vcombine.high %v5321, %v5321
      %v5325 = vunpack.c.l.s4 1966171168
      %v5326 = vunpack.c.0.s8 %v5325
      %v5327 = vlaneseq
      %v5328 = vshrl.u32 %v5327, 7
      %v5329 = vsub.s32 %v5326, %v5328
      %v5330 = vrot.slane %v5314, %v5329
      %v5332 = vunpack.c.l.s4 1966171168
      %v5333 = vunpack.c.0.s8 %v5332
      %v5334 = vlaneseq
      %v5335 = vshrl.u32 %v5334, 7
      %v5336 = vsub.s32 %v5333, %v5335
      %v5337 = vrot.slane %v5321, %v5336
      %v5339 = vunpack.c.l.s4 1966171168
      %v5340 = vunpack.c.0.s8 %v5339
      %v5341 = vlaneseq
      %v5342 = vshrl.u32 %v5341, 7
      %v5343 = vsub.s32 %v5340, %v5342
      %v5344 = vrot.slane %v5322, %v5343
      %v5346 = vunpack.c.l.s4 1966171168
      %v5347 = vunpack.c.0.s8 %v5346
      %v5348 = vlaneseq
      %v5349 = vshrl.u32 %v5348, 7
      %v5350 = vsub.s32 %v5347, %v5349
      %v5351 = vrot.slane %v5323, %v5350
      %v5352 = vcombine.high %v5330, %v5330
      %v5353 = vcombine.high %v5337, %v5337
      %v5354 = vcombine.high %v5344, %v5344
      %v5355 = vcombine.high %v5351, %v5351
      %5364 = vst.msk [vmem:[%s235 + $0xa] sm:$0x1] %vm568, %v5330
      %5365 = vst.msk [vmem:[%s235 + $0x1a] sm:$0x1] %vm568, %v5344
      %5366 = vst.msk [vmem:[%s235 + $0x2a] sm:$0x1] %vm568, %v5352
      %5367 = vst.msk [vmem:[%s235 + $0x3a] sm:$0x1] %vm568, %v5354
      %5368 = vst.msk [vmem:[%s235 + $0x4a] sm:$0x1] %vm568, %v5337
      %5369 = vst.msk [vmem:[%s235 + $0x5a] sm:$0x1] %vm568, %v5351
      %5370 = vst.msk [vmem:[%s235 + $0x6a] sm:$0x1] %vm568, %v5353
      %5371 = vst.msk [vmem:[%s235 + $0x7a] sm:$0x1] %vm568, %v5355
      %5372 = vrot.lane.b32.xlu0 %v349, 96
      %v5373 = vpop.permute.xlu0 %5372
      %v5374 = vsel %vm356, %v5373, 0
      %5376 = vmatprep.subr.mxu0 0.0
      %5377 = vmatpush1.msra.mxu0 %v354
      %5378 = vmatprep.subr.mxu0 0.0
      %5379 = vmatpush1.msra.mxu0 %v355
      %5380 = vmatprep.subr.mxu0 0.0
      %5381 = vmatpush1.msra.mxu0 0.0
      %5382 = vmatprep.subr.mxu0 0.0
      %5383 = vmatpush1.msra.mxu0 0.0
      %5384 = vmatprep.subr.mxu0 0.0
      %5385 = vmatpush1.msra.mxu0 0.0
      %5386 = vmatprep.subr.mxu0 0.0
      %5387 = vmatpush1.msra.mxu0 0.0
      %5388 = vmatprep.subr.mxu0 0.0
      %5389 = vmatpush1.msra.mxu0 0.0
      %5390 = vmatprep.subr.mxu0 0.0
      %5391 = vmatpush1.msra.mxu0 0.0
      %5392 = vmatprep.subr.mxu0 0.0
      %5393 = vmatpush1.msra.mxu0 0.0
      %5394 = vmatprep.subr.mxu0 0.0
      %5395 = vmatpush1.msra.mxu0 0.0
      %5396 = vmatprep.subr.mxu0 0.0
      %5397 = vmatpush1.msra.mxu0 0.0
      %5398 = vmatprep.subr.mxu0 0.0
      %5399 = vmatpush1.msra.mxu0 0.0
      %5400 = vmatprep.subr.mxu0 0.0
      %5401 = vmatpush1.msra.mxu0 0.0
      %5402 = vmatprep.subr.mxu0 0.0
      %5403 = vmatpush1.msra.mxu0 0.0
      %5404 = vmatprep.subr.mxu0 0.0
      %5405 = vmatpush1.msra.mxu0 0.0
      %5406 = vmatprep.subr.mxu0 0.0
      %5407 = vmatpush1.msra.mxu0 0.0
      %5408 = vmatprep.subr.mxu0 0.0
      %5409 = vmatpush1.msra.mxu0 0.0
      %5410 = vmatprep.subr.mxu0 0.0
      %5411 = vmatpush1.msra.mxu0 0.0
      %5412 = vmatprep.subr.mxu0 0.0
      %5413 = vmatpush1.msra.mxu0 0.0
      %5414 = vmatprep.subr.mxu0 0.0
      %5415 = vmatpush1.msra.mxu0 0.0
      %5416 = vmatprep.subr.mxu0 0.0
      %5417 = vmatpush1.msra.mxu0 0.0
      %5418 = vmatprep.subr.mxu0 0.0
      %5419 = vmatpush1.msra.mxu0 0.0
      %5420 = vmatprep.subr.mxu0 0.0
      %5421 = vmatpush1.msra.mxu0 0.0
      %5422 = vmatprep.subr.mxu0 0.0
      %5423 = vmatpush1.msra.mxu0 0.0
      %5424 = vmatprep.subr.mxu0 0.0
      %5425 = vmatpush1.msra.mxu0 0.0
      %5426 = vmatprep.subr.mxu0 0.0
      %5427 = vmatpush1.msra.mxu0 0.0
      %5428 = vmatprep.subr.mxu0 0.0
      %5429 = vmatpush1.msra.mxu0 0.0
      %5430 = vmatprep.subr.mxu0 0.0
      %5431 = vmatpush1.msra.mxu0 0.0
      %5432 = vmatprep.subr.mxu0 0.0
      %5433 = vmatpush1.msra.mxu0 0.0
      %5434 = vmatprep.subr.mxu0 0.0
      %5435 = vmatpush1.msra.mxu0 0.0
      %5436 = vmatprep.subr.mxu0 0.0
      %5437 = vmatpush1.msra.mxu0 0.0
      %5438 = vmatprep.subr.mxu0 0.0
      %5439 = vmatpush1.msra.mxu0 0.0
      %5440 = vmatprep.mubr.f32.mxu0 0.0
      %5441 = vmatmul.mubr.f32.gmra.mrb[0].mxu0 %v5374
      %v5442 = vpop.f32.mrb[0].mxu0
      %v5443 = vadd.f32 0.0, %v5442
      %v5444 = vpop.f32.mrb[0].mxu0
      %5445 = vdwg.mxu0
      %5446 = vrot.lane.b32.xlu0 %v343, 96
      %v5447 = vpop.permute.xlu0 %5446
      %v5448 = vsel %vm356, %v5447, 0
      %5450 = vmatprep.subr.mxu0 0.0
      %5451 = vmatpush1.msra.mxu0 %v352
      %5452 = vmatprep.subr.mxu0 0.0
      %5453 = vmatpush1.msra.mxu0 %v353
      %5454 = vmatprep.subr.mxu0 0.0
      %5455 = vmatpush1.msra.mxu0 0.0
      %5456 = vmatprep.subr.mxu0 0.0
      %5457 = vmatpush1.msra.mxu0 0.0
      %5458 = vmatprep.subr.mxu0 0.0
      %5459 = vmatpush1.msra.mxu0 0.0
      %5460 = vmatprep.subr.mxu0 0.0
      %5461 = vmatpush1.msra.mxu0 0.0
      %5462 = vmatprep.subr.mxu0 0.0
      %5463 = vmatpush1.msra.mxu0 0.0
      %5464 = vmatprep.subr.mxu0 0.0
      %5465 = vmatpush1.msra.mxu0 0.0
      %5466 = vmatprep.subr.mxu0 0.0
      %5467 = vmatpush1.msra.mxu0 0.0
      %5468 = vmatprep.subr.mxu0 0.0
      %5469 = vmatpush1.msra.mxu0 0.0
      %5470 = vmatprep.subr.mxu0 0.0
      %5471 = vmatpush1.msra.mxu0 0.0
      %5472 = vmatprep.subr.mxu0 0.0
      %5473 = vmatpush1.msra.mxu0 0.0
      %5474 = vmatprep.subr.mxu0 0.0
      %5475 = vmatpush1.msra.mxu0 0.0
      %5476 = vmatprep.subr.mxu0 0.0
      %5477 = vmatpush1.msra.mxu0 0.0
      %5478 = vmatprep.subr.mxu0 0.0
      %5479 = vmatpush1.msra.mxu0 0.0
      %5480 = vmatprep.subr.mxu0 0.0
      %5481 = vmatpush1.msra.mxu0 0.0
      %5482 = vmatprep.subr.mxu0 0.0
      %5483 = vmatpush1.msra.mxu0 0.0
      %5484 = vmatprep.subr.mxu0 0.0
      %5485 = vmatpush1.msra.mxu0 0.0
      %5486 = vmatprep.subr.mxu0 0.0
      %5487 = vmatpush1.msra.mxu0 0.0
      %5488 = vmatprep.subr.mxu0 0.0
      %5489 = vmatpush1.msra.mxu0 0.0
      %5490 = vmatprep.subr.mxu0 0.0
      %5491 = vmatpush1.msra.mxu0 0.0
      %5492 = vmatprep.subr.mxu0 0.0
      %5493 = vmatpush1.msra.mxu0 0.0
      %5494 = vmatprep.subr.mxu0 0.0
      %5495 = vmatpush1.msra.mxu0 0.0
      %5496 = vmatprep.subr.mxu0 0.0
      %5497 = vmatpush1.msra.mxu0 0.0
      %5498 = vmatprep.subr.mxu0 0.0
      %5499 = vmatpush1.msra.mxu0 0.0
      %5500 = vmatprep.subr.mxu0 0.0
      %5501 = vmatpush1.msra.mxu0 0.0
      %5502 = vmatprep.subr.mxu0 0.0
      %5503 = vmatpush1.msra.mxu0 0.0
      %5504 = vmatprep.subr.mxu0 0.0
      %5505 = vmatpush1.msra.mxu0 0.0
      %5506 = vmatprep.subr.mxu0 0.0
      %5507 = vmatpush1.msra.mxu0 0.0
      %5508 = vmatprep.subr.mxu0 0.0
      %5509 = vmatpush1.msra.mxu0 0.0
      %5510 = vmatprep.subr.mxu0 0.0
      %5511 = vmatpush1.msra.mxu0 0.0
      %5512 = vmatprep.subr.mxu0 0.0
      %5513 = vmatpush1.msra.mxu0 0.0
      %5514 = vmatprep.mubr.f32.mxu0 0.0
      %5515 = vmatmul.mubr.f32.gmra.mrb[0].mxu0 %v5448
      %v5516 = vpop.f32.mrb[0].mxu0
      %v5517 = vadd.f32 %v5443, %v5516
      %v5518 = vpop.f32.mrb[0].mxu0
      %5519 = vdwg.mxu0
      %v5520 = vadd.f32 %v5517, %v506
      %v5521 = vmax.f32 %v5520, 0.0
      %v5523 = vcombine.high %v5521, %v5521
      %v5525 = vunpack.c.l.s4 1966171168
      %v5526 = vunpack.c.0.s8 %v5525
      %v5527 = vlaneseq
      %v5528 = vshrl.u32 %v5527, 7
      %v5529 = vsub.s32 %v5526, %v5528
      %v5530 = vrot.slane %v5521, %v5529
      %v5532 = vunpack.c.l.s4 1966171168
      %v5533 = vunpack.c.0.s8 %v5532
      %v5534 = vlaneseq
      %v5535 = vshrl.u32 %v5534, 7
      %v5536 = vsub.s32 %v5533, %v5535
      %v5537 = vrot.slane %v5523, %v5536
      %v5538 = vcombine.high %v5530, %v5530
      %v5539 = vcombine.high %v5537, %v5537
      %v5541 = vunpack.c.l.s4 1966171168
      %v5542 = vunpack.c.0.s8 %v5541
      %v5543 = vlaneseq
      %v5544 = vshrl.u32 %v5543, 7
      %v5545 = vsub.s32 %v5542, %v5544
      %v5546 = vrot.slane %v5530, %v5545
      %v5548 = vunpack.c.l.s4 1966171168
      %v5549 = vunpack.c.0.s8 %v5548
      %v5550 = vlaneseq
      %v5551 = vshrl.u32 %v5550, 7
      %v5552 = vsub.s32 %v5549, %v5551
      %v5553 = vrot.slane %v5537, %v5552
      %v5555 = vunpack.c.l.s4 1966171168
      %v5556 = vunpack.c.0.s8 %v5555
      %v5557 = vlaneseq
      %v5558 = vshrl.u32 %v5557, 7
      %v5559 = vsub.s32 %v5556, %v5558
      %v5560 = vrot.slane %v5538, %v5559
      %v5562 = vunpack.c.l.s4 1966171168
      %v5563 = vunpack.c.0.s8 %v5562
      %v5564 = vlaneseq
      %v5565 = vshrl.u32 %v5564, 7
      %v5566 = vsub.s32 %v5563, %v5565
      %v5567 = vrot.slane %v5539, %v5566
      %v5568 = vcombine.high %v5546, %v5546
      %v5569 = vcombine.high %v5553, %v5553
      %v5570 = vcombine.high %v5560, %v5560
      %v5571 = vcombine.high %v5567, %v5567
      %v5572 = vlaneseq
      %v5573 = vshrl.u32 %v5572, 7
      %v5574 = vsub.s32 0, %v5573
      %v5575 = vrot.slane %v5546, %v5574
      %v5576 = vlaneseq
      %v5577 = vshrl.u32 %v5576, 7
      %v5578 = vsub.s32 0, %v5577
      %v5579 = vrot.slane %v5560, %v5578
      %v5580 = vlaneseq
      %v5581 = vshrl.u32 %v5580, 7
      %v5582 = vsub.s32 0, %v5581
      %v5583 = vrot.slane %v5568, %v5582
      %v5584 = vlaneseq
      %v5585 = vshrl.u32 %v5584, 7
      %v5586 = vsub.s32 0, %v5585
      %v5587 = vrot.slane %v5570, %v5586
      %v5588 = vlaneseq
      %v5589 = vshrl.u32 %v5588, 7
      %v5590 = vsub.s32 0, %v5589
      %v5591 = vrot.slane %v5553, %v5590
      %v5592 = vlaneseq
      %v5593 = vshrl.u32 %v5592, 7
      %v5594 = vsub.s32 0, %v5593
      %v5595 = vrot.slane %v5567, %v5594
      %v5596 = vlaneseq
      %v5597 = vshrl.u32 %v5596, 7
      %v5598 = vsub.s32 0, %v5597
      %v5599 = vrot.slane %v5569, %v5598
      %v5600 = vlaneseq
      %v5601 = vshrl.u32 %v5600, 7
      %v5602 = vsub.s32 0, %v5601
      %v5603 = vrot.slane %v5571, %v5602
      %5604 = vrot.lane.b32.xlu0 %v5575, 32
      %v5605 = vpop.permute.xlu0 %5604
      %5606 = vrot.lane.b32.xlu0 %v5579, 32
      %v5607 = vpop.permute.xlu0 %5606
      %5608 = vrot.lane.b32.xlu0 %v5583, 32
      %v5609 = vpop.permute.xlu0 %5608
      %5610 = vrot.lane.b32.xlu0 %v5587, 32
      %v5611 = vpop.permute.xlu0 %5610
      %5612 = vrot.lane.b32.xlu0 %v5591, 32
      %v5613 = vpop.permute.xlu0 %5612
      %5614 = vrot.lane.b32.xlu0 %v5595, 32
      %v5615 = vpop.permute.xlu0 %5614
      %5616 = vrot.lane.b32.xlu0 %v5599, 32
      %v5617 = vpop.permute.xlu0 %5616
      %5618 = vrot.lane.b32.xlu0 %v5603, 32
      %v5619 = vpop.permute.xlu0 %5618
      %5628 = vst.msk [vmem:[%s235 + $0xa] sm:$0x1] %vm831, %v5605
      %5629 = vst.msk [vmem:[%s235 + $0x1a] sm:$0x1] %vm831, %v5607
      %5630 = vst.msk [vmem:[%s235 + $0x2a] sm:$0x1] %vm831, %v5609
      %5631 = vst.msk [vmem:[%s235 + $0x3a] sm:$0x1] %vm831, %v5611
      %5632 = vst.msk [vmem:[%s235 + $0x4a] sm:$0x1] %vm831, %v5613
      %5633 = vst.msk [vmem:[%s235 + $0x5a] sm:$0x1] %vm831, %v5615
      %5634 = vst.msk [vmem:[%s235 + $0x6a] sm:$0x1] %vm831, %v5617
      %5635 = vst.msk [vmem:[%s235 + $0x7a] sm:$0x1] %vm831, %v5619
      %5636 = vrot.lane.b32.xlu0 %v337, 80
      %v5637 = vpop.permute.xlu0 %5636
      %v5638 = vsel %vm356, %v5637, 0
      %5640 = vmatprep.subr.mxu0 0.0
      %5641 = vmatpush1.msra.mxu0 %v354
      %5642 = vmatprep.subr.mxu0 0.0
      %5643 = vmatpush1.msra.mxu0 %v355
      %5644 = vmatprep.subr.mxu0 0.0
      %5645 = vmatpush1.msra.mxu0 0.0
      %5646 = vmatprep.subr.mxu0 0.0
      %5647 = vmatpush1.msra.mxu0 0.0
      %5648 = vmatprep.subr.mxu0 0.0
      %5649 = vmatpush1.msra.mxu0 0.0
      %5650 = vmatprep.subr.mxu0 0.0
      %5651 = vmatpush1.msra.mxu0 0.0
      %5652 = vmatprep.subr.mxu0 0.0
      %5653 = vmatpush1.msra.mxu0 0.0
      %5654 = vmatprep.subr.mxu0 0.0
      %5655 = vmatpush1.msra.mxu0 0.0
      %5656 = vmatprep.subr.mxu0 0.0
      %5657 = vmatpush1.msra.mxu0 0.0
      %5658 = vmatprep.subr.mxu0 0.0
      %5659 = vmatpush1.msra.mxu0 0.0
      %5660 = vmatprep.subr.mxu0 0.0
      %5661 = vmatpush1.msra.mxu0 0.0
      %5662 = vmatprep.subr.mxu0 0.0
      %5663 = vmatpush1.msra.mxu0 0.0
      %5664 = vmatprep.subr.mxu0 0.0
      %5665 = vmatpush1.msra.mxu0 0.0
      %5666 = vmatprep.subr.mxu0 0.0
      %5667 = vmatpush1.msra.mxu0 0.0
      %5668 = vmatprep.subr.mxu0 0.0
      %5669 = vmatpush1.msra.mxu0 0.0
      %5670 = vmatprep.subr.mxu0 0.0
      %5671 = vmatpush1.msra.mxu0 0.0
      %5672 = vmatprep.subr.mxu0 0.0
      %5673 = vmatpush1.msra.mxu0 0.0
      %5674 = vmatprep.subr.mxu0 0.0
      %5675 = vmatpush1.msra.mxu0 0.0
      %5676 = vmatprep.subr.mxu0 0.0
      %5677 = vmatpush1.msra.mxu0 0.0
      %5678 = vmatprep.subr.mxu0 0.0
      %5679 = vmatpush1.msra.mxu0 0.0
      %5680 = vmatprep.subr.mxu0 0.0
      %5681 = vmatpush1.msra.mxu0 0.0
      %5682 = vmatprep.subr.mxu0 0.0
      %5683 = vmatpush1.msra.mxu0 0.0
      %5684 = vmatprep.subr.mxu0 0.0
      %5685 = vmatpush1.msra.mxu0 0.0
      %5686 = vmatprep.subr.mxu0 0.0
      %5687 = vmatpush1.msra.mxu0 0.0
      %5688 = vmatprep.subr.mxu0 0.0
      %5689 = vmatpush1.msra.mxu0 0.0
      %5690 = vmatprep.subr.mxu0 0.0
      %5691 = vmatpush1.msra.mxu0 0.0
      %5692 = vmatprep.subr.mxu0 0.0
      %5693 = vmatpush1.msra.mxu0 0.0
      %5694 = vmatprep.subr.mxu0 0.0
      %5695 = vmatpush1.msra.mxu0 0.0
      %5696 = vmatprep.subr.mxu0 0.0
      %5697 = vmatpush1.msra.mxu0 0.0
      %5698 = vmatprep.subr.mxu0 0.0
      %5699 = vmatpush1.msra.mxu0 0.0
      %5700 = vmatprep.subr.mxu0 0.0
      %5701 = vmatpush1.msra.mxu0 0.0
      %5702 = vmatprep.subr.mxu0 0.0
      %5703 = vmatpush1.msra.mxu0 0.0
      %5704 = vmatprep.mubr.f32.mxu0 0.0
      %5705 = vmatmul.mubr.f32.gmra.mrb[0].mxu0 %v5638
      %v5706 = vpop.f32.mrb[0].mxu0
      %v5707 = vadd.f32 0.0, %v5706
      %v5708 = vpop.f32.mrb[0].mxu0
      %5709 = vdwg.mxu0
      %5710 = vrot.lane.b32.xlu0 %v331, 80
      %v5711 = vpop.permute.xlu0 %5710
      %v5712 = vsel %vm356, %v5711, 0
      %5714 = vmatprep.subr.mxu0 0.0
      %5715 = vmatpush1.msra.mxu0 %v352
      %5716 = vmatprep.subr.mxu0 0.0
      %5717 = vmatpush1.msra.mxu0 %v353
      %5718 = vmatprep.subr.mxu0 0.0
      %5719 = vmatpush1.msra.mxu0 0.0
      %5720 = vmatprep.subr.mxu0 0.0
      %5721 = vmatpush1.msra.mxu0 0.0
      %5722 = vmatprep.subr.mxu0 0.0
      %5723 = vmatpush1.msra.mxu0 0.0
      %5724 = vmatprep.subr.mxu0 0.0
      %5725 = vmatpush1.msra.mxu0 0.0
      %5726 = vmatprep.subr.mxu0 0.0
      %5727 = vmatpush1.msra.mxu0 0.0
      %5728 = vmatprep.subr.mxu0 0.0
      %5729 = vmatpush1.msra.mxu0 0.0
      %5730 = vmatprep.subr.mxu0 0.0
      %5731 = vmatpush1.msra.mxu0 0.0
      %5732 = vmatprep.subr.mxu0 0.0
      %5733 = vmatpush1.msra.mxu0 0.0
      %5734 = vmatprep.subr.mxu0 0.0
      %5735 = vmatpush1.msra.mxu0 0.0
      %5736 = vmatprep.subr.mxu0 0.0
      %5737 = vmatpush1.msra.mxu0 0.0
      %5738 = vmatprep.subr.mxu0 0.0
      %5739 = vmatpush1.msra.mxu0 0.0
      %5740 = vmatprep.subr.mxu0 0.0
      %5741 = vmatpush1.msra.mxu0 0.0
      %5742 = vmatprep.subr.mxu0 0.0
      %5743 = vmatpush1.msra.mxu0 0.0
      %5744 = vmatprep.subr.mxu0 0.0
      %5745 = vmatpush1.msra.mxu0 0.0
      %5746 = vmatprep.subr.mxu0 0.0
      %5747 = vmatpush1.msra.mxu0 0.0
      %5748 = vmatprep.subr.mxu0 0.0
      %5749 = vmatpush1.msra.mxu0 0.0
      %5750 = vmatprep.subr.mxu0 0.0
      %5751 = vmatpush1.msra.mxu0 0.0
      %5752 = vmatprep.subr.mxu0 0.0
      %5753 = vmatpush1.msra.mxu0 0.0
      %5754 = vmatprep.subr.mxu0 0.0
      %5755 = vmatpush1.msra.mxu0 0.0
      %5756 = vmatprep.subr.mxu0 0.0
      %5757 = vmatpush1.msra.mxu0 0.0
      %5758 = vmatprep.subr.mxu0 0.0
      %5759 = vmatpush1.msra.mxu0 0.0
      %5760 = vmatprep.subr.mxu0 0.0
      %5761 = vmatpush1.msra.mxu0 0.0
      %5762 = vmatprep.subr.mxu0 0.0
      %5763 = vmatpush1.msra.mxu0 0.0
      %5764 = vmatprep.subr.mxu0 0.0
      %5765 = vmatpush1.msra.mxu0 0.0
      %5766 = vmatprep.subr.mxu0 0.0
      %5767 = vmatpush1.msra.mxu0 0.0
      %5768 = vmatprep.subr.mxu0 0.0
      %5769 = vmatpush1.msra.mxu0 0.0
      %5770 = vmatprep.subr.mxu0 0.0
      %5771 = vmatpush1.msra.mxu0 0.0
      %5772 = vmatprep.subr.mxu0 0.0
      %5773 = vmatpush1.msra.mxu0 0.0
      %5774 = vmatprep.subr.mxu0 0.0
      %5775 = vmatpush1.msra.mxu0 0.0
      %5776 = vmatprep.subr.mxu0 0.0
      %5777 = vmatpush1.msra.mxu0 0.0
      %5778 = vmatprep.mubr.f32.mxu0 0.0
      %5779 = vmatmul.mubr.f32.gmra.mrb[0].mxu0 %v5712
      %v5780 = vpop.f32.mrb[0].mxu0
      %v5781 = vadd.f32 %v5707, %v5780
      %v5782 = vpop.f32.mrb[0].mxu0
      %5783 = vdwg.mxu0
      %v5784 = vadd.f32 %v5781, %v506
      %v5785 = vmax.f32 %v5784, 0.0
      %v5787 = vcombine.high %v5785, %v5785
      %v5789 = vunpack.c.l.s4 1966171168
      %v5790 = vunpack.c.0.s8 %v5789
      %v5791 = vlaneseq
      %v5792 = vshrl.u32 %v5791, 7
      %v5793 = vsub.s32 %v5790, %v5792
      %v5794 = vrot.slane %v5785, %v5793
      %v5796 = vunpack.c.l.s4 1966171168
      %v5797 = vunpack.c.0.s8 %v5796
      %v5798 = vlaneseq
      %v5799 = vshrl.u32 %v5798, 7
      %v5800 = vsub.s32 %v5797, %v5799
      %v5801 = vrot.slane %v5787, %v5800
      %v5802 = vcombine.high %v5794, %v5794
      %v5803 = vcombine.high %v5801, %v5801
      %v5805 = vunpack.c.l.s4 1966171168
      %v5806 = vunpack.c.0.s8 %v5805
      %v5807 = vlaneseq
      %v5808 = vshrl.u32 %v5807, 7
      %v5809 = vsub.s32 %v5806, %v5808
      %v5810 = vrot.slane %v5794, %v5809
      %v5812 = vunpack.c.l.s4 1966171168
      %v5813 = vunpack.c.0.s8 %v5812
      %v5814 = vlaneseq
      %v5815 = vshrl.u32 %v5814, 7
      %v5816 = vsub.s32 %v5813, %v5815
      %v5817 = vrot.slane %v5801, %v5816
      %v5819 = vunpack.c.l.s4 1966171168
      %v5820 = vunpack.c.0.s8 %v5819
      %v5821 = vlaneseq
      %v5822 = vshrl.u32 %v5821, 7
      %v5823 = vsub.s32 %v5820, %v5822
      %v5824 = vrot.slane %v5802, %v5823
      %v5826 = vunpack.c.l.s4 1966171168
      %v5827 = vunpack.c.0.s8 %v5826
      %v5828 = vlaneseq
      %v5829 = vshrl.u32 %v5828, 7
      %v5830 = vsub.s32 %v5827, %v5829
      %v5831 = vrot.slane %v5803, %v5830
      %v5832 = vcombine.high %v5810, %v5810
      %v5833 = vcombine.high %v5817, %v5817
      %v5834 = vcombine.high %v5824, %v5824
      %v5835 = vcombine.high %v5831, %v5831
      %5844 = vst.msk [vmem:[%s235 + $0xb] sm:$0x1] %vm568, %v5810
      %5845 = vst.msk [vmem:[%s235 + $0x1b] sm:$0x1] %vm568, %v5824
      %5846 = vst.msk [vmem:[%s235 + $0x2b] sm:$0x1] %vm568, %v5832
      %5847 = vst.msk [vmem:[%s235 + $0x3b] sm:$0x1] %vm568, %v5834
      %5848 = vst.msk [vmem:[%s235 + $0x4b] sm:$0x1] %vm568, %v5817
      %5849 = vst.msk [vmem:[%s235 + $0x5b] sm:$0x1] %vm568, %v5831
      %5850 = vst.msk [vmem:[%s235 + $0x6b] sm:$0x1] %vm568, %v5833
      %5851 = vst.msk [vmem:[%s235 + $0x7b] sm:$0x1] %vm568, %v5835
      %5852 = vrot.lane.b32.xlu0 %v349, 80
      %v5853 = vpop.permute.xlu0 %5852
      %v5854 = vsel %vm356, %v5853, 0
      %5856 = vmatprep.subr.mxu0 0.0
      %5857 = vmatpush1.msra.mxu0 %v354
      %5858 = vmatprep.subr.mxu0 0.0
      %5859 = vmatpush1.msra.mxu0 %v355
      %5860 = vmatprep.subr.mxu0 0.0
      %5861 = vmatpush1.msra.mxu0 0.0
      %5862 = vmatprep.subr.mxu0 0.0
      %5863 = vmatpush1.msra.mxu0 0.0
      %5864 = vmatprep.subr.mxu0 0.0
      %5865 = vmatpush1.msra.mxu0 0.0
      %5866 = vmatprep.subr.mxu0 0.0
      %5867 = vmatpush1.msra.mxu0 0.0
      %5868 = vmatprep.subr.mxu0 0.0
      %5869 = vmatpush1.msra.mxu0 0.0
      %5870 = vmatprep.subr.mxu0 0.0
      %5871 = vmatpush1.msra.mxu0 0.0
      %5872 = vmatprep.subr.mxu0 0.0
      %5873 = vmatpush1.msra.mxu0 0.0
      %5874 = vmatprep.subr.mxu0 0.0
      %5875 = vmatpush1.msra.mxu0 0.0
      %5876 = vmatprep.subr.mxu0 0.0
      %5877 = vmatpush1.msra.mxu0 0.0
      %5878 = vmatprep.subr.mxu0 0.0
      %5879 = vmatpush1.msra.mxu0 0.0
      %5880 = vmatprep.subr.mxu0 0.0
      %5881 = vmatpush1.msra.mxu0 0.0
      %5882 = vmatprep.subr.mxu0 0.0
      %5883 = vmatpush1.msra.mxu0 0.0
      %5884 = vmatprep.subr.mxu0 0.0
      %5885 = vmatpush1.msra.mxu0 0.0
      %5886 = vmatprep.subr.mxu0 0.0
      %5887 = vmatpush1.msra.mxu0 0.0
      %5888 = vmatprep.subr.mxu0 0.0
      %5889 = vmatpush1.msra.mxu0 0.0
      %5890 = vmatprep.subr.mxu0 0.0
      %5891 = vmatpush1.msra.mxu0 0.0
      %5892 = vmatprep.subr.mxu0 0.0
      %5893 = vmatpush1.msra.mxu0 0.0
      %5894 = vmatprep.subr.mxu0 0.0
      %5895 = vmatpush1.msra.mxu0 0.0
      %5896 = vmatprep.subr.mxu0 0.0
      %5897 = vmatpush1.msra.mxu0 0.0
      %5898 = vmatprep.subr.mxu0 0.0
      %5899 = vmatpush1.msra.mxu0 0.0
      %5900 = vmatprep.subr.mxu0 0.0
      %5901 = vmatpush1.msra.mxu0 0.0
      %5902 = vmatprep.subr.mxu0 0.0
      %5903 = vmatpush1.msra.mxu0 0.0
      %5904 = vmatprep.subr.mxu0 0.0
      %5905 = vmatpush1.msra.mxu0 0.0
      %5906 = vmatprep.subr.mxu0 0.0
      %5907 = vmatpush1.msra.mxu0 0.0
      %5908 = vmatprep.subr.mxu0 0.0
      %5909 = vmatpush1.msra.mxu0 0.0
      %5910 = vmatprep.subr.mxu0 0.0
      %5911 = vmatpush1.msra.mxu0 0.0
      %5912 = vmatprep.subr.mxu0 0.0
      %5913 = vmatpush1.msra.mxu0 0.0
      %5914 = vmatprep.subr.mxu0 0.0
      %5915 = vmatpush1.msra.mxu0 0.0
      %5916 = vmatprep.subr.mxu0 0.0
      %5917 = vmatpush1.msra.mxu0 0.0
      %5918 = vmatprep.subr.mxu0 0.0
      %5919 = vmatpush1.msra.mxu0 0.0
      %5920 = vmatprep.mubr.f32.mxu0 0.0
      %5921 = vmatmul.mubr.f32.gmra.mrb[0].mxu0 %v5854
      %v5922 = vpop.f32.mrb[0].mxu0
      %v5923 = vadd.f32 0.0, %v5922
      %v5924 = vpop.f32.mrb[0].mxu0
      %5925 = vdwg.mxu0
      %5926 = vrot.lane.b32.xlu0 %v343, 80
      %v5927 = vpop.permute.xlu0 %5926
      %v5928 = vsel %vm356, %v5927, 0
      %5930 = vmatprep.subr.mxu0 0.0
      %5931 = vmatpush1.msra.mxu0 %v352
      %5932 = vmatprep.subr.mxu0 0.0
      %5933 = vmatpush1.msra.mxu0 %v353
      %5934 = vmatprep.subr.mxu0 0.0
      %5935 = vmatpush1.msra.mxu0 0.0
      %5936 = vmatprep.subr.mxu0 0.0
      %5937 = vmatpush1.msra.mxu0 0.0
      %5938 = vmatprep.subr.mxu0 0.0
      %5939 = vmatpush1.msra.mxu0 0.0
      %5940 = vmatprep.subr.mxu0 0.0
      %5941 = vmatpush1.msra.mxu0 0.0
      %5942 = vmatprep.subr.mxu0 0.0
      %5943 = vmatpush1.msra.mxu0 0.0
      %5944 = vmatprep.subr.mxu0 0.0
      %5945 = vmatpush1.msra.mxu0 0.0
      %5946 = vmatprep.subr.mxu0 0.0
      %5947 = vmatpush1.msra.mxu0 0.0
      %5948 = vmatprep.subr.mxu0 0.0
      %5949 = vmatpush1.msra.mxu0 0.0
      %5950 = vmatprep.subr.mxu0 0.0
      %5951 = vmatpush1.msra.mxu0 0.0
      %5952 = vmatprep.subr.mxu0 0.0
      %5953 = vmatpush1.msra.mxu0 0.0
      %5954 = vmatprep.subr.mxu0 0.0
      %5955 = vmatpush1.msra.mxu0 0.0
      %5956 = vmatprep.subr.mxu0 0.0
      %5957 = vmatpush1.msra.mxu0 0.0
      %5958 = vmatprep.subr.mxu0 0.0
      %5959 = vmatpush1.msra.mxu0 0.0
      %5960 = vmatprep.subr.mxu0 0.0
      %5961 = vmatpush1.msra.mxu0 0.0
      %5962 = vmatprep.subr.mxu0 0.0
      %5963 = vmatpush1.msra.mxu0 0.0
      %5964 = vmatprep.subr.mxu0 0.0
      %5965 = vmatpush1.msra.mxu0 0.0
      %5966 = vmatprep.subr.mxu0 0.0
      %5967 = vmatpush1.msra.mxu0 0.0
      %5968 = vmatprep.subr.mxu0 0.0
      %5969 = vmatpush1.msra.mxu0 0.0
      %5970 = vmatprep.subr.mxu0 0.0
      %5971 = vmatpush1.msra.mxu0 0.0
      %5972 = vmatprep.subr.mxu0 0.0
      %5973 = vmatpush1.msra.mxu0 0.0
      %5974 = vmatprep.subr.mxu0 0.0
      %5975 = vmatpush1.msra.mxu0 0.0
      %5976 = vmatprep.subr.mxu0 0.0
      %5977 = vmatpush1.msra.mxu0 0.0
      %5978 = vmatprep.subr.mxu0 0.0
      %5979 = vmatpush1.msra.mxu0 0.0
      %5980 = vmatprep.subr.mxu0 0.0
      %5981 = vmatpush1.msra.mxu0 0.0
      %5982 = vmatprep.subr.mxu0 0.0
      %5983 = vmatpush1.msra.mxu0 0.0
      %5984 = vmatprep.subr.mxu0 0.0
      %5985 = vmatpush1.msra.mxu0 0.0
      %5986 = vmatprep.subr.mxu0 0.0
      %5987 = vmatpush1.msra.mxu0 0.0
      %5988 = vmatprep.subr.mxu0 0.0
      %5989 = vmatpush1.msra.mxu0 0.0
      %5990 = vmatprep.subr.mxu0 0.0
      %5991 = vmatpush1.msra.mxu0 0.0
      %5992 = vmatprep.subr.mxu0 0.0
      %5993 = vmatpush1.msra.mxu0 0.0
      %5994 = vmatprep.mubr.f32.mxu0 0.0
      %5995 = vmatmul.mubr.f32.gmra.mrb[0].mxu0 %v5928
      %v5996 = vpop.f32.mrb[0].mxu0
      %v5997 = vadd.f32 %v5923, %v5996
      %v5998 = vpop.f32.mrb[0].mxu0
      %5999 = vdwg.mxu0
      %v6000 = vadd.f32 %v5997, %v506
      %v6001 = vmax.f32 %v6000, 0.0
      %v6003 = vcombine.high %v6001, %v6001
      %v6005 = vunpack.c.l.s4 1966171168
      %v6006 = vunpack.c.0.s8 %v6005
      %v6007 = vlaneseq
      %v6008 = vshrl.u32 %v6007, 7
      %v6009 = vsub.s32 %v6006, %v6008
      %v6010 = vrot.slane %v6001, %v6009
      %v6012 = vunpack.c.l.s4 1966171168
      %v6013 = vunpack.c.0.s8 %v6012
      %v6014 = vlaneseq
      %v6015 = vshrl.u32 %v6014, 7
      %v6016 = vsub.s32 %v6013, %v6015
      %v6017 = vrot.slane %v6003, %v6016
      %v6018 = vcombine.high %v6010, %v6010
      %v6019 = vcombine.high %v6017, %v6017
      %v6021 = vunpack.c.l.s4 1966171168
      %v6022 = vunpack.c.0.s8 %v6021
      %v6023 = vlaneseq
      %v6024 = vshrl.u32 %v6023, 7
      %v6025 = vsub.s32 %v6022, %v6024
      %v6026 = vrot.slane %v6010, %v6025
      %v6028 = vunpack.c.l.s4 1966171168
      %v6029 = vunpack.c.0.s8 %v6028
      %v6030 = vlaneseq
      %v6031 = vshrl.u32 %v6030, 7
      %v6032 = vsub.s32 %v6029, %v6031
      %v6033 = vrot.slane %v6017, %v6032
      %v6035 = vunpack.c.l.s4 1966171168
      %v6036 = vunpack.c.0.s8 %v6035
      %v6037 = vlaneseq
      %v6038 = vshrl.u32 %v6037, 7
      %v6039 = vsub.s32 %v6036, %v6038
      %v6040 = vrot.slane %v6018, %v6039
      %v6042 = vunpack.c.l.s4 1966171168
      %v6043 = vunpack.c.0.s8 %v6042
      %v6044 = vlaneseq
      %v6045 = vshrl.u32 %v6044, 7
      %v6046 = vsub.s32 %v6043, %v6045
      %v6047 = vrot.slane %v6019, %v6046
      %v6048 = vcombine.high %v6026, %v6026
      %v6049 = vcombine.high %v6033, %v6033
      %v6050 = vcombine.high %v6040, %v6040
      %v6051 = vcombine.high %v6047, %v6047
      %v6052 = vlaneseq
      %v6053 = vshrl.u32 %v6052, 7
      %v6054 = vsub.s32 0, %v6053
      %v6055 = vrot.slane %v6026, %v6054
      %v6056 = vlaneseq
      %v6057 = vshrl.u32 %v6056, 7
      %v6058 = vsub.s32 0, %v6057
      %v6059 = vrot.slane %v6040, %v6058
      %v6060 = vlaneseq
      %v6061 = vshrl.u32 %v6060, 7
      %v6062 = vsub.s32 0, %v6061
      %v6063 = vrot.slane %v6048, %v6062
      %v6064 = vlaneseq
      %v6065 = vshrl.u32 %v6064, 7
      %v6066 = vsub.s32 0, %v6065
      %v6067 = vrot.slane %v6050, %v6066
      %v6068 = vlaneseq
      %v6069 = vshrl.u32 %v6068, 7
      %v6070 = vsub.s32 0, %v6069
      %v6071 = vrot.slane %v6033, %v6070
      %v6072 = vlaneseq
      %v6073 = vshrl.u32 %v6072, 7
      %v6074 = vsub.s32 0, %v6073
      %v6075 = vrot.slane %v6047, %v6074
      %v6076 = vlaneseq
      %v6077 = vshrl.u32 %v6076, 7
      %v6078 = vsub.s32 0, %v6077
      %v6079 = vrot.slane %v6049, %v6078
      %v6080 = vlaneseq
      %v6081 = vshrl.u32 %v6080, 7
      %v6082 = vsub.s32 0, %v6081
      %v6083 = vrot.slane %v6051, %v6082
      %6084 = vrot.lane.b32.xlu0 %v6055, 32
      %v6085 = vpop.permute.xlu0 %6084
      %6086 = vrot.lane.b32.xlu0 %v6059, 32
      %v6087 = vpop.permute.xlu0 %6086
      %6088 = vrot.lane.b32.xlu0 %v6063, 32
      %v6089 = vpop.permute.xlu0 %6088
      %6090 = vrot.lane.b32.xlu0 %v6067, 32
      %v6091 = vpop.permute.xlu0 %6090
      %6092 = vrot.lane.b32.xlu0 %v6071, 32
      %v6093 = vpop.permute.xlu0 %6092
      %6094 = vrot.lane.b32.xlu0 %v6075, 32
      %v6095 = vpop.permute.xlu0 %6094
      %6096 = vrot.lane.b32.xlu0 %v6079, 32
      %v6097 = vpop.permute.xlu0 %6096
      %6098 = vrot.lane.b32.xlu0 %v6083, 32
      %v6099 = vpop.permute.xlu0 %6098
      %6108 = vst.msk [vmem:[%s235 + $0xb] sm:$0x1] %vm831, %v6085
      %6109 = vst.msk [vmem:[%s235 + $0x1b] sm:$0x1] %vm831, %v6087
      %6110 = vst.msk [vmem:[%s235 + $0x2b] sm:$0x1] %vm831, %v6089
      %6111 = vst.msk [vmem:[%s235 + $0x3b] sm:$0x1] %vm831, %v6091
      %6112 = vst.msk [vmem:[%s235 + $0x4b] sm:$0x1] %vm831, %v6093
      %6113 = vst.msk [vmem:[%s235 + $0x5b] sm:$0x1] %vm831, %v6095
      %6114 = vst.msk [vmem:[%s235 + $0x6b] sm:$0x1] %vm831, %v6097
      %6115 = vst.msk [vmem:[%s235 + $0x7b] sm:$0x1] %vm831, %v6099
      %6116 = vrot.lane.b32.xlu0 %v337, 64
      %v6117 = vpop.permute.xlu0 %6116
      %v6118 = vsel %vm356, %v6117, 0
      %6120 = vmatprep.subr.mxu0 0.0
      %6121 = vmatpush1.msra.mxu0 %v354
      %6122 = vmatprep.subr.mxu0 0.0
      %6123 = vmatpush1.msra.mxu0 %v355
      %6124 = vmatprep.subr.mxu0 0.0
      %6125 = vmatpush1.msra.mxu0 0.0
      %6126 = vmatprep.subr.mxu0 0.0
      %6127 = vmatpush1.msra.mxu0 0.0
      %6128 = vmatprep.subr.mxu0 0.0
      %6129 = vmatpush1.msra.mxu0 0.0
      %6130 = vmatprep.subr.mxu0 0.0
      %6131 = vmatpush1.msra.mxu0 0.0
      %6132 = vmatprep.subr.mxu0 0.0
      %6133 = vmatpush1.msra.mxu0 0.0
      %6134 = vmatprep.subr.mxu0 0.0
      %6135 = vmatpush1.msra.mxu0 0.0
      %6136 = vmatprep.subr.mxu0 0.0
      %6137 = vmatpush1.msra.mxu0 0.0
      %6138 = vmatprep.subr.mxu0 0.0
      %6139 = vmatpush1.msra.mxu0 0.0
      %6140 = vmatprep.subr.mxu0 0.0
      %6141 = vmatpush1.msra.mxu0 0.0
      %6142 = vmatprep.subr.mxu0 0.0
      %6143 = vmatpush1.msra.mxu0 0.0
      %6144 = vmatprep.subr.mxu0 0.0
      %6145 = vmatpush1.msra.mxu0 0.0
      %6146 = vmatprep.subr.mxu0 0.0
      %6147 = vmatpush1.msra.mxu0 0.0
      %6148 = vmatprep.subr.mxu0 0.0
      %6149 = vmatpush1.msra.mxu0 0.0
      %6150 = vmatprep.subr.mxu0 0.0
      %6151 = vmatpush1.msra.mxu0 0.0
      %6152 = vmatprep.subr.mxu0 0.0
      %6153 = vmatpush1.msra.mxu0 0.0
      %6154 = vmatprep.subr.mxu0 0.0
      %6155 = vmatpush1.msra.mxu0 0.0
      %6156 = vmatprep.subr.mxu0 0.0
      %6157 = vmatpush1.msra.mxu0 0.0
      %6158 = vmatprep.subr.mxu0 0.0
      %6159 = vmatpush1.msra.mxu0 0.0
      %6160 = vmatprep.subr.mxu0 0.0
      %6161 = vmatpush1.msra.mxu0 0.0
      %6162 = vmatprep.subr.mxu0 0.0
      %6163 = vmatpush1.msra.mxu0 0.0
      %6164 = vmatprep.subr.mxu0 0.0
      %6165 = vmatpush1.msra.mxu0 0.0
      %6166 = vmatprep.subr.mxu0 0.0
      %6167 = vmatpush1.msra.mxu0 0.0
      %6168 = vmatprep.subr.mxu0 0.0
      %6169 = vmatpush1.msra.mxu0 0.0
      %6170 = vmatprep.subr.mxu0 0.0
      %6171 = vmatpush1.msra.mxu0 0.0
      %6172 = vmatprep.subr.mxu0 0.0
      %6173 = vmatpush1.msra.mxu0 0.0
      %6174 = vmatprep.subr.mxu0 0.0
      %6175 = vmatpush1.msra.mxu0 0.0
      %6176 = vmatprep.subr.mxu0 0.0
      %6177 = vmatpush1.msra.mxu0 0.0
      %6178 = vmatprep.subr.mxu0 0.0
      %6179 = vmatpush1.msra.mxu0 0.0
      %6180 = vmatprep.subr.mxu0 0.0
      %6181 = vmatpush1.msra.mxu0 0.0
      %6182 = vmatprep.subr.mxu0 0.0
      %6183 = vmatpush1.msra.mxu0 0.0
      %6184 = vmatprep.mubr.f32.mxu0 0.0
      %6185 = vmatmul.mubr.f32.gmra.mrb[0].mxu0 %v6118
      %v6186 = vpop.f32.mrb[0].mxu0
      %v6187 = vadd.f32 0.0, %v6186
      %v6188 = vpop.f32.mrb[0].mxu0
      %6189 = vdwg.mxu0
      %6190 = vrot.lane.b32.xlu0 %v331, 64
      %v6191 = vpop.permute.xlu0 %6190
      %v6192 = vsel %vm356, %v6191, 0
      %6194 = vmatprep.subr.mxu0 0.0
      %6195 = vmatpush1.msra.mxu0 %v352
      %6196 = vmatprep.subr.mxu0 0.0
      %6197 = vmatpush1.msra.mxu0 %v353
      %6198 = vmatprep.subr.mxu0 0.0
      %6199 = vmatpush1.msra.mxu0 0.0
      %6200 = vmatprep.subr.mxu0 0.0
      %6201 = vmatpush1.msra.mxu0 0.0
      %6202 = vmatprep.subr.mxu0 0.0
      %6203 = vmatpush1.msra.mxu0 0.0
      %6204 = vmatprep.subr.mxu0 0.0
      %6205 = vmatpush1.msra.mxu0 0.0
      %6206 = vmatprep.subr.mxu0 0.0
      %6207 = vmatpush1.msra.mxu0 0.0
      %6208 = vmatprep.subr.mxu0 0.0
      %6209 = vmatpush1.msra.mxu0 0.0
      %6210 = vmatprep.subr.mxu0 0.0
      %6211 = vmatpush1.msra.mxu0 0.0
      %6212 = vmatprep.subr.mxu0 0.0
      %6213 = vmatpush1.msra.mxu0 0.0
      %6214 = vmatprep.subr.mxu0 0.0
      %6215 = vmatpush1.msra.mxu0 0.0
      %6216 = vmatprep.subr.mxu0 0.0
      %6217 = vmatpush1.msra.mxu0 0.0
      %6218 = vmatprep.subr.mxu0 0.0
      %6219 = vmatpush1.msra.mxu0 0.0
      %6220 = vmatprep.subr.mxu0 0.0
      %6221 = vmatpush1.msra.mxu0 0.0
      %6222 = vmatprep.subr.mxu0 0.0
      %6223 = vmatpush1.msra.mxu0 0.0
      %6224 = vmatprep.subr.mxu0 0.0
      %6225 = vmatpush1.msra.mxu0 0.0
      %6226 = vmatprep.subr.mxu0 0.0
      %6227 = vmatpush1.msra.mxu0 0.0
      %6228 = vmatprep.subr.mxu0 0.0
      %6229 = vmatpush1.msra.mxu0 0.0
      %6230 = vmatprep.subr.mxu0 0.0
      %6231 = vmatpush1.msra.mxu0 0.0
      %6232 = vmatprep.subr.mxu0 0.0
      %6233 = vmatpush1.msra.mxu0 0.0
      %6234 = vmatprep.subr.mxu0 0.0
      %6235 = vmatpush1.msra.mxu0 0.0
      %6236 = vmatprep.subr.mxu0 0.0
      %6237 = vmatpush1.msra.mxu0 0.0
      %6238 = vmatprep.subr.mxu0 0.0
      %6239 = vmatpush1.msra.mxu0 0.0
      %6240 = vmatprep.subr.mxu0 0.0
      %6241 = vmatpush1.msra.mxu0 0.0
      %6242 = vmatprep.subr.mxu0 0.0
      %6243 = vmatpush1.msra.mxu0 0.0
      %6244 = vmatprep.subr.mxu0 0.0
      %6245 = vmatpush1.msra.mxu0 0.0
      %6246 = vmatprep.subr.mxu0 0.0
      %6247 = vmatpush1.msra.mxu0 0.0
      %6248 = vmatprep.subr.mxu0 0.0
      %6249 = vmatpush1.msra.mxu0 0.0
      %6250 = vmatprep.subr.mxu0 0.0
      %6251 = vmatpush1.msra.mxu0 0.0
      %6252 = vmatprep.subr.mxu0 0.0
      %6253 = vmatpush1.msra.mxu0 0.0
      %6254 = vmatprep.subr.mxu0 0.0
      %6255 = vmatpush1.msra.mxu0 0.0
      %6256 = vmatprep.subr.mxu0 0.0
      %6257 = vmatpush1.msra.mxu0 0.0
      %6258 = vmatprep.mubr.f32.mxu0 0.0
      %6259 = vmatmul.mubr.f32.gmra.mrb[0].mxu0 %v6192
      %v6260 = vpop.f32.mrb[0].mxu0
      %v6261 = vadd.f32 %v6187, %v6260
      %v6262 = vpop.f32.mrb[0].mxu0
      %6263 = vdwg.mxu0
      %v6264 = vadd.f32 %v6261, %v506
      %v6265 = vmax.f32 %v6264, 0.0
      %v6267 = vcombine.high %v6265, %v6265
      %v6269 = vunpack.c.l.s4 1966171168
      %v6270 = vunpack.c.0.s8 %v6269
      %v6271 = vlaneseq
      %v6272 = vshrl.u32 %v6271, 7
      %v6273 = vsub.s32 %v6270, %v6272
      %v6274 = vrot.slane %v6265, %v6273
      %v6276 = vunpack.c.l.s4 1966171168
      %v6277 = vunpack.c.0.s8 %v6276
      %v6278 = vlaneseq
      %v6279 = vshrl.u32 %v6278, 7
      %v6280 = vsub.s32 %v6277, %v6279
      %v6281 = vrot.slane %v6267, %v6280
      %v6282 = vcombine.high %v6274, %v6274
      %v6283 = vcombine.high %v6281, %v6281
      %v6285 = vunpack.c.l.s4 1966171168
      %v6286 = vunpack.c.0.s8 %v6285
      %v6287 = vlaneseq
      %v6288 = vshrl.u32 %v6287, 7
      %v6289 = vsub.s32 %v6286, %v6288
      %v6290 = vrot.slane %v6274, %v6289
      %v6292 = vunpack.c.l.s4 1966171168
      %v6293 = vunpack.c.0.s8 %v6292
      %v6294 = vlaneseq
      %v6295 = vshrl.u32 %v6294, 7
      %v6296 = vsub.s32 %v6293, %v6295
      %v6297 = vrot.slane %v6281, %v6296
      %v6299 = vunpack.c.l.s4 1966171168
      %v6300 = vunpack.c.0.s8 %v6299
      %v6301 = vlaneseq
      %v6302 = vshrl.u32 %v6301, 7
      %v6303 = vsub.s32 %v6300, %v6302
      %v6304 = vrot.slane %v6282, %v6303
      %v6306 = vunpack.c.l.s4 1966171168
      %v6307 = vunpack.c.0.s8 %v6306
      %v6308 = vlaneseq
      %v6309 = vshrl.u32 %v6308, 7
      %v6310 = vsub.s32 %v6307, %v6309
      %v6311 = vrot.slane %v6283, %v6310
      %v6312 = vcombine.high %v6290, %v6290
      %v6313 = vcombine.high %v6297, %v6297
      %v6314 = vcombine.high %v6304, %v6304
      %v6315 = vcombine.high %v6311, %v6311
      %6324 = vst.msk [vmem:[%s235 + $0xc] sm:$0x1] %vm568, %v6290
      %6325 = vst.msk [vmem:[%s235 + $0x1c] sm:$0x1] %vm568, %v6304
      %6326 = vst.msk [vmem:[%s235 + $0x2c] sm:$0x1] %vm568, %v6312
      %6327 = vst.msk [vmem:[%s235 + $0x3c] sm:$0x1] %vm568, %v6314
      %6328 = vst.msk [vmem:[%s235 + $0x4c] sm:$0x1] %vm568, %v6297
      %6329 = vst.msk [vmem:[%s235 + $0x5c] sm:$0x1] %vm568, %v6311
      %6330 = vst.msk [vmem:[%s235 + $0x6c] sm:$0x1] %vm568, %v6313
      %6331 = vst.msk [vmem:[%s235 + $0x7c] sm:$0x1] %vm568, %v6315
      %6332 = vrot.lane.b32.xlu0 %v349, 64
      %v6333 = vpop.permute.xlu0 %6332
      %v6334 = vsel %vm356, %v6333, 0
      %6336 = vmatprep.subr.mxu0 0.0
      %6337 = vmatpush1.msra.mxu0 %v354
      %6338 = vmatprep.subr.mxu0 0.0
      %6339 = vmatpush1.msra.mxu0 %v355
      %6340 = vmatprep.subr.mxu0 0.0
      %6341 = vmatpush1.msra.mxu0 0.0
      %6342 = vmatprep.subr.mxu0 0.0
      %6343 = vmatpush1.msra.mxu0 0.0
      %6344 = vmatprep.subr.mxu0 0.0
      %6345 = vmatpush1.msra.mxu0 0.0
      %6346 = vmatprep.subr.mxu0 0.0
      %6347 = vmatpush1.msra.mxu0 0.0
      %6348 = vmatprep.subr.mxu0 0.0
      %6349 = vmatpush1.msra.mxu0 0.0
      %6350 = vmatprep.subr.mxu0 0.0
      %6351 = vmatpush1.msra.mxu0 0.0
      %6352 = vmatprep.subr.mxu0 0.0
      %6353 = vmatpush1.msra.mxu0 0.0
      %6354 = vmatprep.subr.mxu0 0.0
      %6355 = vmatpush1.msra.mxu0 0.0
      %6356 = vmatprep.subr.mxu0 0.0
      %6357 = vmatpush1.msra.mxu0 0.0
      %6358 = vmatprep.subr.mxu0 0.0
      %6359 = vmatpush1.msra.mxu0 0.0
      %6360 = vmatprep.subr.mxu0 0.0
      %6361 = vmatpush1.msra.mxu0 0.0
      %6362 = vmatprep.subr.mxu0 0.0
      %6363 = vmatpush1.msra.mxu0 0.0
      %6364 = vmatprep.subr.mxu0 0.0
      %6365 = vmatpush1.msra.mxu0 0.0
      %6366 = vmatprep.subr.mxu0 0.0
      %6367 = vmatpush1.msra.mxu0 0.0
      %6368 = vmatprep.subr.mxu0 0.0
      %6369 = vmatpush1.msra.mxu0 0.0
      %6370 = vmatprep.subr.mxu0 0.0
      %6371 = vmatpush1.msra.mxu0 0.0
      %6372 = vmatprep.subr.mxu0 0.0
      %6373 = vmatpush1.msra.mxu0 0.0
      %6374 = vmatprep.subr.mxu0 0.0
      %6375 = vmatpush1.msra.mxu0 0.0
      %6376 = vmatprep.subr.mxu0 0.0
      %6377 = vmatpush1.msra.mxu0 0.0
      %6378 = vmatprep.subr.mxu0 0.0
      %6379 = vmatpush1.msra.mxu0 0.0
      %6380 = vmatprep.subr.mxu0 0.0
      %6381 = vmatpush1.msra.mxu0 0.0
      %6382 = vmatprep.subr.mxu0 0.0
      %6383 = vmatpush1.msra.mxu0 0.0
      %6384 = vmatprep.subr.mxu0 0.0
      %6385 = vmatpush1.msra.mxu0 0.0
      %6386 = vmatprep.subr.mxu0 0.0
      %6387 = vmatpush1.msra.mxu0 0.0
      %6388 = vmatprep.subr.mxu0 0.0
      %6389 = vmatpush1.msra.mxu0 0.0
      %6390 = vmatprep.subr.mxu0 0.0
      %6391 = vmatpush1.msra.mxu0 0.0
      %6392 = vmatprep.subr.mxu0 0.0
      %6393 = vmatpush1.msra.mxu0 0.0
      %6394 = vmatprep.subr.mxu0 0.0
      %6395 = vmatpush1.msra.mxu0 0.0
      %6396 = vmatprep.subr.mxu0 0.0
      %6397 = vmatpush1.msra.mxu0 0.0
      %6398 = vmatprep.subr.mxu0 0.0
      %6399 = vmatpush1.msra.mxu0 0.0
      %6400 = vmatprep.mubr.f32.mxu0 0.0
      %6401 = vmatmul.mubr.f32.gmra.mrb[0].mxu0 %v6334
      %v6402 = vpop.f32.mrb[0].mxu0
      %v6403 = vadd.f32 0.0, %v6402
      %v6404 = vpop.f32.mrb[0].mxu0
      %6405 = vdwg.mxu0
      %6406 = vrot.lane.b32.xlu0 %v343, 64
      %v6407 = vpop.permute.xlu0 %6406
      %v6408 = vsel %vm356, %v6407, 0
      %6410 = vmatprep.subr.mxu0 0.0
      %6411 = vmatpush1.msra.mxu0 %v352
      %6412 = vmatprep.subr.mxu0 0.0
      %6413 = vmatpush1.msra.mxu0 %v353
      %6414 = vmatprep.subr.mxu0 0.0
      %6415 = vmatpush1.msra.mxu0 0.0
      %6416 = vmatprep.subr.mxu0 0.0
      %6417 = vmatpush1.msra.mxu0 0.0
      %6418 = vmatprep.subr.mxu0 0.0
      %6419 = vmatpush1.msra.mxu0 0.0
      %6420 = vmatprep.subr.mxu0 0.0
      %6421 = vmatpush1.msra.mxu0 0.0
      %6422 = vmatprep.subr.mxu0 0.0
      %6423 = vmatpush1.msra.mxu0 0.0
      %6424 = vmatprep.subr.mxu0 0.0
      %6425 = vmatpush1.msra.mxu0 0.0
      %6426 = vmatprep.subr.mxu0 0.0
      %6427 = vmatpush1.msra.mxu0 0.0
      %6428 = vmatprep.subr.mxu0 0.0
      %6429 = vmatpush1.msra.mxu0 0.0
      %6430 = vmatprep.subr.mxu0 0.0
      %6431 = vmatpush1.msra.mxu0 0.0
      %6432 = vmatprep.subr.mxu0 0.0
      %6433 = vmatpush1.msra.mxu0 0.0
      %6434 = vmatprep.subr.mxu0 0.0
      %6435 = vmatpush1.msra.mxu0 0.0
      %6436 = vmatprep.subr.mxu0 0.0
      %6437 = vmatpush1.msra.mxu0 0.0
      %6438 = vmatprep.subr.mxu0 0.0
      %6439 = vmatpush1.msra.mxu0 0.0
      %6440 = vmatprep.subr.mxu0 0.0
      %6441 = vmatpush1.msra.mxu0 0.0
      %6442 = vmatprep.subr.mxu0 0.0
      %6443 = vmatpush1.msra.mxu0 0.0
      %6444 = vmatprep.subr.mxu0 0.0
      %6445 = vmatpush1.msra.mxu0 0.0
      %6446 = vmatprep.subr.mxu0 0.0
      %6447 = vmatpush1.msra.mxu0 0.0
      %6448 = vmatprep.subr.mxu0 0.0
      %6449 = vmatpush1.msra.mxu0 0.0
      %6450 = vmatprep.subr.mxu0 0.0
      %6451 = vmatpush1.msra.mxu0 0.0
      %6452 = vmatprep.subr.mxu0 0.0
      %6453 = vmatpush1.msra.mxu0 0.0
      %6454 = vmatprep.subr.mxu0 0.0
      %6455 = vmatpush1.msra.mxu0 0.0
      %6456 = vmatprep.subr.mxu0 0.0
      %6457 = vmatpush1.msra.mxu0 0.0
      %6458 = vmatprep.subr.mxu0 0.0
      %6459 = vmatpush1.msra.mxu0 0.0
      %6460 = vmatprep.subr.mxu0 0.0
      %6461 = vmatpush1.msra.mxu0 0.0
      %6462 = vmatprep.subr.mxu0 0.0
      %6463 = vmatpush1.msra.mxu0 0.0
      %6464 = vmatprep.subr.mxu0 0.0
      %6465 = vmatpush1.msra.mxu0 0.0
      %6466 = vmatprep.subr.mxu0 0.0
      %6467 = vmatpush1.msra.mxu0 0.0
      %6468 = vmatprep.subr.mxu0 0.0
      %6469 = vmatpush1.msra.mxu0 0.0
      %6470 = vmatprep.subr.mxu0 0.0
      %6471 = vmatpush1.msra.mxu0 0.0
      %6472 = vmatprep.subr.mxu0 0.0
      %6473 = vmatpush1.msra.mxu0 0.0
      %6474 = vmatprep.mubr.f32.mxu0 0.0
      %6475 = vmatmul.mubr.f32.gmra.mrb[0].mxu0 %v6408
      %v6476 = vpop.f32.mrb[0].mxu0
      %v6477 = vadd.f32 %v6403, %v6476
      %v6478 = vpop.f32.mrb[0].mxu0
      %6479 = vdwg.mxu0
      %v6480 = vadd.f32 %v6477, %v506
      %v6481 = vmax.f32 %v6480, 0.0
      %v6483 = vcombine.high %v6481, %v6481
      %v6485 = vunpack.c.l.s4 1966171168
      %v6486 = vunpack.c.0.s8 %v6485
      %v6487 = vlaneseq
      %v6488 = vshrl.u32 %v6487, 7
      %v6489 = vsub.s32 %v6486, %v6488
      %v6490 = vrot.slane %v6481, %v6489
      %v6492 = vunpack.c.l.s4 1966171168
      %v6493 = vunpack.c.0.s8 %v6492
      %v6494 = vlaneseq
      %v6495 = vshrl.u32 %v6494, 7
      %v6496 = vsub.s32 %v6493, %v6495
      %v6497 = vrot.slane %v6483, %v6496
      %v6498 = vcombine.high %v6490, %v6490
      %v6499 = vcombine.high %v6497, %v6497
      %v6501 = vunpack.c.l.s4 1966171168
      %v6502 = vunpack.c.0.s8 %v6501
      %v6503 = vlaneseq
      %v6504 = vshrl.u32 %v6503, 7
      %v6505 = vsub.s32 %v6502, %v6504
      %v6506 = vrot.slane %v6490, %v6505
      %v6508 = vunpack.c.l.s4 1966171168
      %v6509 = vunpack.c.0.s8 %v6508
      %v6510 = vlaneseq
      %v6511 = vshrl.u32 %v6510, 7
      %v6512 = vsub.s32 %v6509, %v6511
      %v6513 = vrot.slane %v6497, %v6512
      %v6515 = vunpack.c.l.s4 1966171168
      %v6516 = vunpack.c.0.s8 %v6515
      %v6517 = vlaneseq
      %v6518 = vshrl.u32 %v6517, 7
      %v6519 = vsub.s32 %v6516, %v6518
      %v6520 = vrot.slane %v6498, %v6519
      %v6522 = vunpack.c.l.s4 1966171168
      %v6523 = vunpack.c.0.s8 %v6522
      %v6524 = vlaneseq
      %v6525 = vshrl.u32 %v6524, 7
      %v6526 = vsub.s32 %v6523, %v6525
      %v6527 = vrot.slane %v6499, %v6526
      %v6528 = vcombine.high %v6506, %v6506
      %v6529 = vcombine.high %v6513, %v6513
      %v6530 = vcombine.high %v6520, %v6520
      %v6531 = vcombine.high %v6527, %v6527
      %v6532 = vlaneseq
      %v6533 = vshrl.u32 %v6532, 7
      %v6534 = vsub.s32 0, %v6533
      %v6535 = vrot.slane %v6506, %v6534
      %v6536 = vlaneseq
      %v6537 = vshrl.u32 %v6536, 7
      %v6538 = vsub.s32 0, %v6537
      %v6539 = vrot.slane %v6520, %v6538
      %v6540 = vlaneseq
      %v6541 = vshrl.u32 %v6540, 7
      %v6542 = vsub.s32 0, %v6541
      %v6543 = vrot.slane %v6528, %v6542
      %v6544 = vlaneseq
      %v6545 = vshrl.u32 %v6544, 7
      %v6546 = vsub.s32 0, %v6545
      %v6547 = vrot.slane %v6530, %v6546
      %v6548 = vlaneseq
      %v6549 = vshrl.u32 %v6548, 7
      %v6550 = vsub.s32 0, %v6549
      %v6551 = vrot.slane %v6513, %v6550
      %v6552 = vlaneseq
      %v6553 = vshrl.u32 %v6552, 7
      %v6554 = vsub.s32 0, %v6553
      %v6555 = vrot.slane %v6527, %v6554
      %v6556 = vlaneseq
      %v6557 = vshrl.u32 %v6556, 7
      %v6558 = vsub.s32 0, %v6557
      %v6559 = vrot.slane %v6529, %v6558
      %v6560 = vlaneseq
      %v6561 = vshrl.u32 %v6560, 7
      %v6562 = vsub.s32 0, %v6561
      %v6563 = vrot.slane %v6531, %v6562
      %6564 = vrot.lane.b32.xlu0 %v6535, 32
      %v6565 = vpop.permute.xlu0 %6564
      %6566 = vrot.lane.b32.xlu0 %v6539, 32
      %v6567 = vpop.permute.xlu0 %6566
      %6568 = vrot.lane.b32.xlu0 %v6543, 32
      %v6569 = vpop.permute.xlu0 %6568
      %6570 = vrot.lane.b32.xlu0 %v6547, 32
      %v6571 = vpop.permute.xlu0 %6570
      %6572 = vrot.lane.b32.xlu0 %v6551, 32
      %v6573 = vpop.permute.xlu0 %6572
      %6574 = vrot.lane.b32.xlu0 %v6555, 32
      %v6575 = vpop.permute.xlu0 %6574
      %6576 = vrot.lane.b32.xlu0 %v6559, 32
      %v6577 = vpop.permute.xlu0 %6576
      %6578 = vrot.lane.b32.xlu0 %v6563, 32
      %v6579 = vpop.permute.xlu0 %6578
      %6588 = vst.msk [vmem:[%s235 + $0xc] sm:$0x1] %vm831, %v6565
      %6589 = vst.msk [vmem:[%s235 + $0x1c] sm:$0x1] %vm831, %v6567
      %6590 = vst.msk [vmem:[%s235 + $0x2c] sm:$0x1] %vm831, %v6569
      %6591 = vst.msk [vmem:[%s235 + $0x3c] sm:$0x1] %vm831, %v6571
      %6592 = vst.msk [vmem:[%s235 + $0x4c] sm:$0x1] %vm831, %v6573
      %6593 = vst.msk [vmem:[%s235 + $0x5c] sm:$0x1] %vm831, %v6575
      %6594 = vst.msk [vmem:[%s235 + $0x6c] sm:$0x1] %vm831, %v6577
      %6595 = vst.msk [vmem:[%s235 + $0x7c] sm:$0x1] %vm831, %v6579
      %6596 = vrot.lane.b32.xlu0 %v337, 48
      %v6597 = vpop.permute.xlu0 %6596
      %v6598 = vsel %vm356, %v6597, 0
      %6600 = vmatprep.subr.mxu0 0.0
      %6601 = vmatpush1.msra.mxu0 %v354
      %6602 = vmatprep.subr.mxu0 0.0
      %6603 = vmatpush1.msra.mxu0 %v355
      %6604 = vmatprep.subr.mxu0 0.0
      %6605 = vmatpush1.msra.mxu0 0.0
      %6606 = vmatprep.subr.mxu0 0.0
      %6607 = vmatpush1.msra.mxu0 0.0
      %6608 = vmatprep.subr.mxu0 0.0
      %6609 = vmatpush1.msra.mxu0 0.0
      %6610 = vmatprep.subr.mxu0 0.0
      %6611 = vmatpush1.msra.mxu0 0.0
      %6612 = vmatprep.subr.mxu0 0.0
      %6613 = vmatpush1.msra.mxu0 0.0
      %6614 = vmatprep.subr.mxu0 0.0
      %6615 = vmatpush1.msra.mxu0 0.0
      %6616 = vmatprep.subr.mxu0 0.0
      %6617 = vmatpush1.msra.mxu0 0.0
      %6618 = vmatprep.subr.mxu0 0.0
      %6619 = vmatpush1.msra.mxu0 0.0
      %6620 = vmatprep.subr.mxu0 0.0
      %6621 = vmatpush1.msra.mxu0 0.0
      %6622 = vmatprep.subr.mxu0 0.0
      %6623 = vmatpush1.msra.mxu0 0.0
      %6624 = vmatprep.subr.mxu0 0.0
      %6625 = vmatpush1.msra.mxu0 0.0
      %6626 = vmatprep.subr.mxu0 0.0
      %6627 = vmatpush1.msra.mxu0 0.0
      %6628 = vmatprep.subr.mxu0 0.0
      %6629 = vmatpush1.msra.mxu0 0.0
      %6630 = vmatprep.subr.mxu0 0.0
      %6631 = vmatpush1.msra.mxu0 0.0
      %6632 = vmatprep.subr.mxu0 0.0
      %6633 = vmatpush1.msra.mxu0 0.0
      %6634 = vmatprep.subr.mxu0 0.0
      %6635 = vmatpush1.msra.mxu0 0.0
      %6636 = vmatprep.subr.mxu0 0.0
      %6637 = vmatpush1.msra.mxu0 0.0
      %6638 = vmatprep.subr.mxu0 0.0
      %6639 = vmatpush1.msra.mxu0 0.0
      %6640 = vmatprep.subr.mxu0 0.0
      %6641 = vmatpush1.msra.mxu0 0.0
      %6642 = vmatprep.subr.mxu0 0.0
      %6643 = vmatpush1.msra.mxu0 0.0
      %6644 = vmatprep.subr.mxu0 0.0
      %6645 = vmatpush1.msra.mxu0 0.0
      %6646 = vmatprep.subr.mxu0 0.0
      %6647 = vmatpush1.msra.mxu0 0.0
      %6648 = vmatprep.subr.mxu0 0.0
      %6649 = vmatpush1.msra.mxu0 0.0
      %6650 = vmatprep.subr.mxu0 0.0
      %6651 = vmatpush1.msra.mxu0 0.0
      %6652 = vmatprep.subr.mxu0 0.0
      %6653 = vmatpush1.msra.mxu0 0.0
      %6654 = vmatprep.subr.mxu0 0.0
      %6655 = vmatpush1.msra.mxu0 0.0
      %6656 = vmatprep.subr.mxu0 0.0
      %6657 = vmatpush1.msra.mxu0 0.0
      %6658 = vmatprep.subr.mxu0 0.0
      %6659 = vmatpush1.msra.mxu0 0.0
      %6660 = vmatprep.subr.mxu0 0.0
      %6661 = vmatpush1.msra.mxu0 0.0
      %6662 = vmatprep.subr.mxu0 0.0
      %6663 = vmatpush1.msra.mxu0 0.0
      %6664 = vmatprep.mubr.f32.mxu0 0.0
      %6665 = vmatmul.mubr.f32.gmra.mrb[0].mxu0 %v6598
      %v6666 = vpop.f32.mrb[0].mxu0
      %v6667 = vadd.f32 0.0, %v6666
      %v6668 = vpop.f32.mrb[0].mxu0
      %6669 = vdwg.mxu0
      %6670 = vrot.lane.b32.xlu0 %v331, 48
      %v6671 = vpop.permute.xlu0 %6670
      %v6672 = vsel %vm356, %v6671, 0
      %6674 = vmatprep.subr.mxu0 0.0
      %6675 = vmatpush1.msra.mxu0 %v352
      %6676 = vmatprep.subr.mxu0 0.0
      %6677 = vmatpush1.msra.mxu0 %v353
      %6678 = vmatprep.subr.mxu0 0.0
      %6679 = vmatpush1.msra.mxu0 0.0
      %6680 = vmatprep.subr.mxu0 0.0
      %6681 = vmatpush1.msra.mxu0 0.0
      %6682 = vmatprep.subr.mxu0 0.0
      %6683 = vmatpush1.msra.mxu0 0.0
      %6684 = vmatprep.subr.mxu0 0.0
      %6685 = vmatpush1.msra.mxu0 0.0
      %6686 = vmatprep.subr.mxu0 0.0
      %6687 = vmatpush1.msra.mxu0 0.0
      %6688 = vmatprep.subr.mxu0 0.0
      %6689 = vmatpush1.msra.mxu0 0.0
      %6690 = vmatprep.subr.mxu0 0.0
      %6691 = vmatpush1.msra.mxu0 0.0
      %6692 = vmatprep.subr.mxu0 0.0
      %6693 = vmatpush1.msra.mxu0 0.0
      %6694 = vmatprep.subr.mxu0 0.0
      %6695 = vmatpush1.msra.mxu0 0.0
      %6696 = vmatprep.subr.mxu0 0.0
      %6697 = vmatpush1.msra.mxu0 0.0
      %6698 = vmatprep.subr.mxu0 0.0
      %6699 = vmatpush1.msra.mxu0 0.0
      %6700 = vmatprep.subr.mxu0 0.0
      %6701 = vmatpush1.msra.mxu0 0.0
      %6702 = vmatprep.subr.mxu0 0.0
      %6703 = vmatpush1.msra.mxu0 0.0
      %6704 = vmatprep.subr.mxu0 0.0
      %6705 = vmatpush1.msra.mxu0 0.0
      %6706 = vmatprep.subr.mxu0 0.0
      %6707 = vmatpush1.msra.mxu0 0.0
      %6708 = vmatprep.subr.mxu0 0.0
      %6709 = vmatpush1.msra.mxu0 0.0
      %6710 = vmatprep.subr.mxu0 0.0
      %6711 = vmatpush1.msra.mxu0 0.0
      %6712 = vmatprep.subr.mxu0 0.0
      %6713 = vmatpush1.msra.mxu0 0.0
      %6714 = vmatprep.subr.mxu0 0.0
      %6715 = vmatpush1.msra.mxu0 0.0
      %6716 = vmatprep.subr.mxu0 0.0
      %6717 = vmatpush1.msra.mxu0 0.0
      %6718 = vmatprep.subr.mxu0 0.0
      %6719 = vmatpush1.msra.mxu0 0.0
      %6720 = vmatprep.subr.mxu0 0.0
      %6721 = vmatpush1.msra.mxu0 0.0
      %6722 = vmatprep.subr.mxu0 0.0
      %6723 = vmatpush1.msra.mxu0 0.0
      %6724 = vmatprep.subr.mxu0 0.0
      %6725 = vmatpush1.msra.mxu0 0.0
      %6726 = vmatprep.subr.mxu0 0.0
      %6727 = vmatpush1.msra.mxu0 0.0
      %6728 = vmatprep.subr.mxu0 0.0
      %6729 = vmatpush1.msra.mxu0 0.0
      %6730 = vmatprep.subr.mxu0 0.0
      %6731 = vmatpush1.msra.mxu0 0.0
      %6732 = vmatprep.subr.mxu0 0.0
      %6733 = vmatpush1.msra.mxu0 0.0
      %6734 = vmatprep.subr.mxu0 0.0
      %6735 = vmatpush1.msra.mxu0 0.0
      %6736 = vmatprep.subr.mxu0 0.0
      %6737 = vmatpush1.msra.mxu0 0.0
      %6738 = vmatprep.mubr.f32.mxu0 0.0
      %6739 = vmatmul.mubr.f32.gmra.mrb[0].mxu0 %v6672
      %v6740 = vpop.f32.mrb[0].mxu0
      %v6741 = vadd.f32 %v6667, %v6740
      %v6742 = vpop.f32.mrb[0].mxu0
      %6743 = vdwg.mxu0
      %v6744 = vadd.f32 %v6741, %v506
      %v6745 = vmax.f32 %v6744, 0.0
      %v6747 = vcombine.high %v6745, %v6745
      %v6749 = vunpack.c.l.s4 1966171168
      %v6750 = vunpack.c.0.s8 %v6749
      %v6751 = vlaneseq
      %v6752 = vshrl.u32 %v6751, 7
      %v6753 = vsub.s32 %v6750, %v6752
      %v6754 = vrot.slane %v6745, %v6753
      %v6756 = vunpack.c.l.s4 1966171168
      %v6757 = vunpack.c.0.s8 %v6756
      %v6758 = vlaneseq
      %v6759 = vshrl.u32 %v6758, 7
      %v6760 = vsub.s32 %v6757, %v6759
      %v6761 = vrot.slane %v6747, %v6760
      %v6762 = vcombine.high %v6754, %v6754
      %v6763 = vcombine.high %v6761, %v6761
      %v6765 = vunpack.c.l.s4 1966171168
      %v6766 = vunpack.c.0.s8 %v6765
      %v6767 = vlaneseq
      %v6768 = vshrl.u32 %v6767, 7
      %v6769 = vsub.s32 %v6766, %v6768
      %v6770 = vrot.slane %v6754, %v6769
      %v6772 = vunpack.c.l.s4 1966171168
      %v6773 = vunpack.c.0.s8 %v6772
      %v6774 = vlaneseq
      %v6775 = vshrl.u32 %v6774, 7
      %v6776 = vsub.s32 %v6773, %v6775
      %v6777 = vrot.slane %v6761, %v6776
      %v6779 = vunpack.c.l.s4 1966171168
      %v6780 = vunpack.c.0.s8 %v6779
      %v6781 = vlaneseq
      %v6782 = vshrl.u32 %v6781, 7
      %v6783 = vsub.s32 %v6780, %v6782
      %v6784 = vrot.slane %v6762, %v6783
      %v6786 = vunpack.c.l.s4 1966171168
      %v6787 = vunpack.c.0.s8 %v6786
      %v6788 = vlaneseq
      %v6789 = vshrl.u32 %v6788, 7
      %v6790 = vsub.s32 %v6787, %v6789
      %v6791 = vrot.slane %v6763, %v6790
      %v6792 = vcombine.high %v6770, %v6770
      %v6793 = vcombine.high %v6777, %v6777
      %v6794 = vcombine.high %v6784, %v6784
      %v6795 = vcombine.high %v6791, %v6791
      %6804 = vst.msk [vmem:[%s235 + $0xd] sm:$0x1] %vm568, %v6770
      %6805 = vst.msk [vmem:[%s235 + $0x1d] sm:$0x1] %vm568, %v6784
      %6806 = vst.msk [vmem:[%s235 + $0x2d] sm:$0x1] %vm568, %v6792
      %6807 = vst.msk [vmem:[%s235 + $0x3d] sm:$0x1] %vm568, %v6794
      %6808 = vst.msk [vmem:[%s235 + $0x4d] sm:$0x1] %vm568, %v6777
      %6809 = vst.msk [vmem:[%s235 + $0x5d] sm:$0x1] %vm568, %v6791
      %6810 = vst.msk [vmem:[%s235 + $0x6d] sm:$0x1] %vm568, %v6793
      %6811 = vst.msk [vmem:[%s235 + $0x7d] sm:$0x1] %vm568, %v6795
      %6812 = vrot.lane.b32.xlu0 %v349, 48
      %v6813 = vpop.permute.xlu0 %6812
      %v6814 = vsel %vm356, %v6813, 0
      %6816 = vmatprep.subr.mxu0 0.0
      %6817 = vmatpush1.msra.mxu0 %v354
      %6818 = vmatprep.subr.mxu0 0.0
      %6819 = vmatpush1.msra.mxu0 %v355
      %6820 = vmatprep.subr.mxu0 0.0
      %6821 = vmatpush1.msra.mxu0 0.0
      %6822 = vmatprep.subr.mxu0 0.0
      %6823 = vmatpush1.msra.mxu0 0.0
      %6824 = vmatprep.subr.mxu0 0.0
      %6825 = vmatpush1.msra.mxu0 0.0
      %6826 = vmatprep.subr.mxu0 0.0
      %6827 = vmatpush1.msra.mxu0 0.0
      %6828 = vmatprep.subr.mxu0 0.0
      %6829 = vmatpush1.msra.mxu0 0.0
      %6830 = vmatprep.subr.mxu0 0.0
      %6831 = vmatpush1.msra.mxu0 0.0
      %6832 = vmatprep.subr.mxu0 0.0
      %6833 = vmatpush1.msra.mxu0 0.0
      %6834 = vmatprep.subr.mxu0 0.0
      %6835 = vmatpush1.msra.mxu0 0.0
      %6836 = vmatprep.subr.mxu0 0.0
      %6837 = vmatpush1.msra.mxu0 0.0
      %6838 = vmatprep.subr.mxu0 0.0
      %6839 = vmatpush1.msra.mxu0 0.0
      %6840 = vmatprep.subr.mxu0 0.0
      %6841 = vmatpush1.msra.mxu0 0.0
      %6842 = vmatprep.subr.mxu0 0.0
      %6843 = vmatpush1.msra.mxu0 0.0
      %6844 = vmatprep.subr.mxu0 0.0
      %6845 = vmatpush1.msra.mxu0 0.0
      %6846 = vmatprep.subr.mxu0 0.0
      %6847 = vmatpush1.msra.mxu0 0.0
      %6848 = vmatprep.subr.mxu0 0.0
      %6849 = vmatpush1.msra.mxu0 0.0
      %6850 = vmatprep.subr.mxu0 0.0
      %6851 = vmatpush1.msra.mxu0 0.0
      %6852 = vmatprep.subr.mxu0 0.0
      %6853 = vmatpush1.msra.mxu0 0.0
      %6854 = vmatprep.subr.mxu0 0.0
      %6855 = vmatpush1.msra.mxu0 0.0
      %6856 = vmatprep.subr.mxu0 0.0
      %6857 = vmatpush1.msra.mxu0 0.0
      %6858 = vmatprep.subr.mxu0 0.0
      %6859 = vmatpush1.msra.mxu0 0.0
      %6860 = vmatprep.subr.mxu0 0.0
      %6861 = vmatpush1.msra.mxu0 0.0
      %6862 = vmatprep.subr.mxu0 0.0
      %6863 = vmatpush1.msra.mxu0 0.0
      %6864 = vmatprep.subr.mxu0 0.0
      %6865 = vmatpush1.msra.mxu0 0.0
      %6866 = vmatprep.subr.mxu0 0.0
      %6867 = vmatpush1.msra.mxu0 0.0
      %6868 = vmatprep.subr.mxu0 0.0
      %6869 = vmatpush1.msra.mxu0 0.0
      %6870 = vmatprep.subr.mxu0 0.0
      %6871 = vmatpush1.msra.mxu0 0.0
      %6872 = vmatprep.subr.mxu0 0.0
      %6873 = vmatpush1.msra.mxu0 0.0
      %6874 = vmatprep.subr.mxu0 0.0
      %6875 = vmatpush1.msra.mxu0 0.0
      %6876 = vmatprep.subr.mxu0 0.0
      %6877 = vmatpush1.msra.mxu0 0.0
      %6878 = vmatprep.subr.mxu0 0.0
      %6879 = vmatpush1.msra.mxu0 0.0
      %6880 = vmatprep.mubr.f32.mxu0 0.0
      %6881 = vmatmul.mubr.f32.gmra.mrb[0].mxu0 %v6814
      %v6882 = vpop.f32.mrb[0].mxu0
      %v6883 = vadd.f32 0.0, %v6882
      %v6884 = vpop.f32.mrb[0].mxu0
      %6885 = vdwg.mxu0
      %6886 = vrot.lane.b32.xlu0 %v343, 48
      %v6887 = vpop.permute.xlu0 %6886
      %v6888 = vsel %vm356, %v6887, 0
      %6890 = vmatprep.subr.mxu0 0.0
      %6891 = vmatpush1.msra.mxu0 %v352
      %6892 = vmatprep.subr.mxu0 0.0
      %6893 = vmatpush1.msra.mxu0 %v353
      %6894 = vmatprep.subr.mxu0 0.0
      %6895 = vmatpush1.msra.mxu0 0.0
      %6896 = vmatprep.subr.mxu0 0.0
      %6897 = vmatpush1.msra.mxu0 0.0
      %6898 = vmatprep.subr.mxu0 0.0
      %6899 = vmatpush1.msra.mxu0 0.0
      %6900 = vmatprep.subr.mxu0 0.0
      %6901 = vmatpush1.msra.mxu0 0.0
      %6902 = vmatprep.subr.mxu0 0.0
      %6903 = vmatpush1.msra.mxu0 0.0
      %6904 = vmatprep.subr.mxu0 0.0
      %6905 = vmatpush1.msra.mxu0 0.0
      %6906 = vmatprep.subr.mxu0 0.0
      %6907 = vmatpush1.msra.mxu0 0.0
      %6908 = vmatprep.subr.mxu0 0.0
      %6909 = vmatpush1.msra.mxu0 0.0
      %6910 = vmatprep.subr.mxu0 0.0
      %6911 = vmatpush1.msra.mxu0 0.0
      %6912 = vmatprep.subr.mxu0 0.0
      %6913 = vmatpush1.msra.mxu0 0.0
      %6914 = vmatprep.subr.mxu0 0.0
      %6915 = vmatpush1.msra.mxu0 0.0
      %6916 = vmatprep.subr.mxu0 0.0
      %6917 = vmatpush1.msra.mxu0 0.0
      %6918 = vmatprep.subr.mxu0 0.0
      %6919 = vmatpush1.msra.mxu0 0.0
      %6920 = vmatprep.subr.mxu0 0.0
      %6921 = vmatpush1.msra.mxu0 0.0
      %6922 = vmatprep.subr.mxu0 0.0
      %6923 = vmatpush1.msra.mxu0 0.0
      %6924 = vmatprep.subr.mxu0 0.0
      %6925 = vmatpush1.msra.mxu0 0.0
      %6926 = vmatprep.subr.mxu0 0.0
      %6927 = vmatpush1.msra.mxu0 0.0
      %6928 = vmatprep.subr.mxu0 0.0
      %6929 = vmatpush1.msra.mxu0 0.0
      %6930 = vmatprep.subr.mxu0 0.0
      %6931 = vmatpush1.msra.mxu0 0.0
      %6932 = vmatprep.subr.mxu0 0.0
      %6933 = vmatpush1.msra.mxu0 0.0
      %6934 = vmatprep.subr.mxu0 0.0
      %6935 = vmatpush1.msra.mxu0 0.0
      %6936 = vmatprep.subr.mxu0 0.0
      %6937 = vmatpush1.msra.mxu0 0.0
      %6938 = vmatprep.subr.mxu0 0.0
      %6939 = vmatpush1.msra.mxu0 0.0
      %6940 = vmatprep.subr.mxu0 0.0
      %6941 = vmatpush1.msra.mxu0 0.0
      %6942 = vmatprep.subr.mxu0 0.0
      %6943 = vmatpush1.msra.mxu0 0.0
      %6944 = vmatprep.subr.mxu0 0.0
      %6945 = vmatpush1.msra.mxu0 0.0
      %6946 = vmatprep.subr.mxu0 0.0
      %6947 = vmatpush1.msra.mxu0 0.0
      %6948 = vmatprep.subr.mxu0 0.0
      %6949 = vmatpush1.msra.mxu0 0.0
      %6950 = vmatprep.subr.mxu0 0.0
      %6951 = vmatpush1.msra.mxu0 0.0
      %6952 = vmatprep.subr.mxu0 0.0
      %6953 = vmatpush1.msra.mxu0 0.0
      %6954 = vmatprep.mubr.f32.mxu0 0.0
      %6955 = vmatmul.mubr.f32.gmra.mrb[0].mxu0 %v6888
      %v6956 = vpop.f32.mrb[0].mxu0
      %v6957 = vadd.f32 %v6883, %v6956
      %v6958 = vpop.f32.mrb[0].mxu0
      %6959 = vdwg.mxu0
      %v6960 = vadd.f32 %v6957, %v506
      %v6961 = vmax.f32 %v6960, 0.0
      %v6963 = vcombine.high %v6961, %v6961
      %v6965 = vunpack.c.l.s4 1966171168
      %v6966 = vunpack.c.0.s8 %v6965
      %v6967 = vlaneseq
      %v6968 = vshrl.u32 %v6967, 7
      %v6969 = vsub.s32 %v6966, %v6968
      %v6970 = vrot.slane %v6961, %v6969
      %v6972 = vunpack.c.l.s4 1966171168
      %v6973 = vunpack.c.0.s8 %v6972
      %v6974 = vlaneseq
      %v6975 = vshrl.u32 %v6974, 7
      %v6976 = vsub.s32 %v6973, %v6975
      %v6977 = vrot.slane %v6963, %v6976
      %v6978 = vcombine.high %v6970, %v6970
      %v6979 = vcombine.high %v6977, %v6977
      %v6981 = vunpack.c.l.s4 1966171168
      %v6982 = vunpack.c.0.s8 %v6981
      %v6983 = vlaneseq
      %v6984 = vshrl.u32 %v6983, 7
      %v6985 = vsub.s32 %v6982, %v6984
      %v6986 = vrot.slane %v6970, %v6985
      %v6988 = vunpack.c.l.s4 1966171168
      %v6989 = vunpack.c.0.s8 %v6988
      %v6990 = vlaneseq
      %v6991 = vshrl.u32 %v6990, 7
      %v6992 = vsub.s32 %v6989, %v6991
      %v6993 = vrot.slane %v6977, %v6992
      %v6995 = vunpack.c.l.s4 1966171168
      %v6996 = vunpack.c.0.s8 %v6995
      %v6997 = vlaneseq
      %v6998 = vshrl.u32 %v6997, 7
      %v6999 = vsub.s32 %v6996, %v6998
      %v7000 = vrot.slane %v6978, %v6999
      %v7002 = vunpack.c.l.s4 1966171168
      %v7003 = vunpack.c.0.s8 %v7002
      %v7004 = vlaneseq
      %v7005 = vshrl.u32 %v7004, 7
      %v7006 = vsub.s32 %v7003, %v7005
      %v7007 = vrot.slane %v6979, %v7006
      %v7008 = vcombine.high %v6986, %v6986
      %v7009 = vcombine.high %v6993, %v6993
      %v7010 = vcombine.high %v7000, %v7000
      %v7011 = vcombine.high %v7007, %v7007
      %v7012 = vlaneseq
      %v7013 = vshrl.u32 %v7012, 7
      %v7014 = vsub.s32 0, %v7013
      %v7015 = vrot.slane %v6986, %v7014
      %v7016 = vlaneseq
      %v7017 = vshrl.u32 %v7016, 7
      %v7018 = vsub.s32 0, %v7017
      %v7019 = vrot.slane %v7000, %v7018
      %v7020 = vlaneseq
      %v7021 = vshrl.u32 %v7020, 7
      %v7022 = vsub.s32 0, %v7021
      %v7023 = vrot.slane %v7008, %v7022
      %v7024 = vlaneseq
      %v7025 = vshrl.u32 %v7024, 7
      %v7026 = vsub.s32 0, %v7025
      %v7027 = vrot.slane %v7010, %v7026
      %v7028 = vlaneseq
      %v7029 = vshrl.u32 %v7028, 7
      %v7030 = vsub.s32 0, %v7029
      %v7031 = vrot.slane %v6993, %v7030
      %v7032 = vlaneseq
      %v7033 = vshrl.u32 %v7032, 7
      %v7034 = vsub.s32 0, %v7033
      %v7035 = vrot.slane %v7007, %v7034
      %v7036 = vlaneseq
      %v7037 = vshrl.u32 %v7036, 7
      %v7038 = vsub.s32 0, %v7037
      %v7039 = vrot.slane %v7009, %v7038
      %v7040 = vlaneseq
      %v7041 = vshrl.u32 %v7040, 7
      %v7042 = vsub.s32 0, %v7041
      %v7043 = vrot.slane %v7011, %v7042
      %7044 = vrot.lane.b32.xlu0 %v7015, 32
      %v7045 = vpop.permute.xlu0 %7044
      %7046 = vrot.lane.b32.xlu0 %v7019, 32
      %v7047 = vpop.permute.xlu0 %7046
      %7048 = vrot.lane.b32.xlu0 %v7023, 32
      %v7049 = vpop.permute.xlu0 %7048
      %7050 = vrot.lane.b32.xlu0 %v7027, 32
      %v7051 = vpop.permute.xlu0 %7050
      %7052 = vrot.lane.b32.xlu0 %v7031, 32
      %v7053 = vpop.permute.xlu0 %7052
      %7054 = vrot.lane.b32.xlu0 %v7035, 32
      %v7055 = vpop.permute.xlu0 %7054
      %7056 = vrot.lane.b32.xlu0 %v7039, 32
      %v7057 = vpop.permute.xlu0 %7056
      %7058 = vrot.lane.b32.xlu0 %v7043, 32
      %v7059 = vpop.permute.xlu0 %7058
      %7068 = vst.msk [vmem:[%s235 + $0xd] sm:$0x1] %vm831, %v7045
      %7069 = vst.msk [vmem:[%s235 + $0x1d] sm:$0x1] %vm831, %v7047
      %7070 = vst.msk [vmem:[%s235 + $0x2d] sm:$0x1] %vm831, %v7049
      %7071 = vst.msk [vmem:[%s235 + $0x3d] sm:$0x1] %vm831, %v7051
      %7072 = vst.msk [vmem:[%s235 + $0x4d] sm:$0x1] %vm831, %v7053
      %7073 = vst.msk [vmem:[%s235 + $0x5d] sm:$0x1] %vm831, %v7055
      %7074 = vst.msk [vmem:[%s235 + $0x6d] sm:$0x1] %vm831, %v7057
      %7075 = vst.msk [vmem:[%s235 + $0x7d] sm:$0x1] %vm831, %v7059
      %7076 = vrot.lane.b32.xlu0 %v337, 32
      %v7077 = vpop.permute.xlu0 %7076
      %v7078 = vsel %vm356, %v7077, 0
      %7080 = vmatprep.subr.mxu0 0.0
      %7081 = vmatpush1.msra.mxu0 %v354
      %7082 = vmatprep.subr.mxu0 0.0
      %7083 = vmatpush1.msra.mxu0 %v355
      %7084 = vmatprep.subr.mxu0 0.0
      %7085 = vmatpush1.msra.mxu0 0.0
      %7086 = vmatprep.subr.mxu0 0.0
      %7087 = vmatpush1.msra.mxu0 0.0
      %7088 = vmatprep.subr.mxu0 0.0
      %7089 = vmatpush1.msra.mxu0 0.0
      %7090 = vmatprep.subr.mxu0 0.0
      %7091 = vmatpush1.msra.mxu0 0.0
      %7092 = vmatprep.subr.mxu0 0.0
      %7093 = vmatpush1.msra.mxu0 0.0
      %7094 = vmatprep.subr.mxu0 0.0
      %7095 = vmatpush1.msra.mxu0 0.0
      %7096 = vmatprep.subr.mxu0 0.0
      %7097 = vmatpush1.msra.mxu0 0.0
      %7098 = vmatprep.subr.mxu0 0.0
      %7099 = vmatpush1.msra.mxu0 0.0
      %7100 = vmatprep.subr.mxu0 0.0
      %7101 = vmatpush1.msra.mxu0 0.0
      %7102 = vmatprep.subr.mxu0 0.0
      %7103 = vmatpush1.msra.mxu0 0.0
      %7104 = vmatprep.subr.mxu0 0.0
      %7105 = vmatpush1.msra.mxu0 0.0
      %7106 = vmatprep.subr.mxu0 0.0
      %7107 = vmatpush1.msra.mxu0 0.0
      %7108 = vmatprep.subr.mxu0 0.0
      %7109 = vmatpush1.msra.mxu0 0.0
      %7110 = vmatprep.subr.mxu0 0.0
      %7111 = vmatpush1.msra.mxu0 0.0
      %7112 = vmatprep.subr.mxu0 0.0
      %7113 = vmatpush1.msra.mxu0 0.0
      %7114 = vmatprep.subr.mxu0 0.0
      %7115 = vmatpush1.msra.mxu0 0.0
      %7116 = vmatprep.subr.mxu0 0.0
      %7117 = vmatpush1.msra.mxu0 0.0
      %7118 = vmatprep.subr.mxu0 0.0
      %7119 = vmatpush1.msra.mxu0 0.0
      %7120 = vmatprep.subr.mxu0 0.0
      %7121 = vmatpush1.msra.mxu0 0.0
      %7122 = vmatprep.subr.mxu0 0.0
      %7123 = vmatpush1.msra.mxu0 0.0
      %7124 = vmatprep.subr.mxu0 0.0
      %7125 = vmatpush1.msra.mxu0 0.0
      %7126 = vmatprep.subr.mxu0 0.0
      %7127 = vmatpush1.msra.mxu0 0.0
      %7128 = vmatprep.subr.mxu0 0.0
      %7129 = vmatpush1.msra.mxu0 0.0
      %7130 = vmatprep.subr.mxu0 0.0
      %7131 = vmatpush1.msra.mxu0 0.0
      %7132 = vmatprep.subr.mxu0 0.0
      %7133 = vmatpush1.msra.mxu0 0.0
      %7134 = vmatprep.subr.mxu0 0.0
      %7135 = vmatpush1.msra.mxu0 0.0
      %7136 = vmatprep.subr.mxu0 0.0
      %7137 = vmatpush1.msra.mxu0 0.0
      %7138 = vmatprep.subr.mxu0 0.0
      %7139 = vmatpush1.msra.mxu0 0.0
      %7140 = vmatprep.subr.mxu0 0.0
      %7141 = vmatpush1.msra.mxu0 0.0
      %7142 = vmatprep.subr.mxu0 0.0
      %7143 = vmatpush1.msra.mxu0 0.0
      %7144 = vmatprep.mubr.f32.mxu0 0.0
      %7145 = vmatmul.mubr.f32.gmra.mrb[0].mxu0 %v7078
      %v7146 = vpop.f32.mrb[0].mxu0
      %v7147 = vadd.f32 0.0, %v7146
      %v7148 = vpop.f32.mrb[0].mxu0
      %7149 = vdwg.mxu0
      %7150 = vrot.lane.b32.xlu0 %v331, 32
      %v7151 = vpop.permute.xlu0 %7150
      %v7152 = vsel %vm356, %v7151, 0
      %7154 = vmatprep.subr.mxu0 0.0
      %7155 = vmatpush1.msra.mxu0 %v352
      %7156 = vmatprep.subr.mxu0 0.0
      %7157 = vmatpush1.msra.mxu0 %v353
      %7158 = vmatprep.subr.mxu0 0.0
      %7159 = vmatpush1.msra.mxu0 0.0
      %7160 = vmatprep.subr.mxu0 0.0
      %7161 = vmatpush1.msra.mxu0 0.0
      %7162 = vmatprep.subr.mxu0 0.0
      %7163 = vmatpush1.msra.mxu0 0.0
      %7164 = vmatprep.subr.mxu0 0.0
      %7165 = vmatpush1.msra.mxu0 0.0
      %7166 = vmatprep.subr.mxu0 0.0
      %7167 = vmatpush1.msra.mxu0 0.0
      %7168 = vmatprep.subr.mxu0 0.0
      %7169 = vmatpush1.msra.mxu0 0.0
      %7170 = vmatprep.subr.mxu0 0.0
      %7171 = vmatpush1.msra.mxu0 0.0
      %7172 = vmatprep.subr.mxu0 0.0
      %7173 = vmatpush1.msra.mxu0 0.0
      %7174 = vmatprep.subr.mxu0 0.0
      %7175 = vmatpush1.msra.mxu0 0.0
      %7176 = vmatprep.subr.mxu0 0.0
      %7177 = vmatpush1.msra.mxu0 0.0
      %7178 = vmatprep.subr.mxu0 0.0
      %7179 = vmatpush1.msra.mxu0 0.0
      %7180 = vmatprep.subr.mxu0 0.0
      %7181 = vmatpush1.msra.mxu0 0.0
      %7182 = vmatprep.subr.mxu0 0.0
      %7183 = vmatpush1.msra.mxu0 0.0
      %7184 = vmatprep.subr.mxu0 0.0
      %7185 = vmatpush1.msra.mxu0 0.0
      %7186 = vmatprep.subr.mxu0 0.0
      %7187 = vmatpush1.msra.mxu0 0.0
      %7188 = vmatprep.subr.mxu0 0.0
      %7189 = vmatpush1.msra.mxu0 0.0
      %7190 = vmatprep.subr.mxu0 0.0
      %7191 = vmatpush1.msra.mxu0 0.0
      %7192 = vmatprep.subr.mxu0 0.0
      %7193 = vmatpush1.msra.mxu0 0.0
      %7194 = vmatprep.subr.mxu0 0.0
      %7195 = vmatpush1.msra.mxu0 0.0
      %7196 = vmatprep.subr.mxu0 0.0
      %7197 = vmatpush1.msra.mxu0 0.0
      %7198 = vmatprep.subr.mxu0 0.0
      %7199 = vmatpush1.msra.mxu0 0.0
      %7200 = vmatprep.subr.mxu0 0.0
      %7201 = vmatpush1.msra.mxu0 0.0
      %7202 = vmatprep.subr.mxu0 0.0
      %7203 = vmatpush1.msra.mxu0 0.0
      %7204 = vmatprep.subr.mxu0 0.0
      %7205 = vmatpush1.msra.mxu0 0.0
      %7206 = vmatprep.subr.mxu0 0.0
      %7207 = vmatpush1.msra.mxu0 0.0
      %7208 = vmatprep.subr.mxu0 0.0
      %7209 = vmatpush1.msra.mxu0 0.0
      %7210 = vmatprep.subr.mxu0 0.0
      %7211 = vmatpush1.msra.mxu0 0.0
      %7212 = vmatprep.subr.mxu0 0.0
      %7213 = vmatpush1.msra.mxu0 0.0
      %7214 = vmatprep.subr.mxu0 0.0
      %7215 = vmatpush1.msra.mxu0 0.0
      %7216 = vmatprep.subr.mxu0 0.0
      %7217 = vmatpush1.msra.mxu0 0.0
      %7218 = vmatprep.mubr.f32.mxu0 0.0
      %7219 = vmatmul.mubr.f32.gmra.mrb[0].mxu0 %v7152
      %v7220 = vpop.f32.mrb[0].mxu0
      %v7221 = vadd.f32 %v7147, %v7220
      %v7222 = vpop.f32.mrb[0].mxu0
      %7223 = vdwg.mxu0
      %v7224 = vadd.f32 %v7221, %v506
      %v7225 = vmax.f32 %v7224, 0.0
      %v7227 = vcombine.high %v7225, %v7225
      %v7229 = vunpack.c.l.s4 1966171168
      %v7230 = vunpack.c.0.s8 %v7229
      %v7231 = vlaneseq
      %v7232 = vshrl.u32 %v7231, 7
      %v7233 = vsub.s32 %v7230, %v7232
      %v7234 = vrot.slane %v7225, %v7233
      %v7236 = vunpack.c.l.s4 1966171168
      %v7237 = vunpack.c.0.s8 %v7236
      %v7238 = vlaneseq
      %v7239 = vshrl.u32 %v7238, 7
      %v7240 = vsub.s32 %v7237, %v7239
      %v7241 = vrot.slane %v7227, %v7240
      %v7242 = vcombine.high %v7234, %v7234
      %v7243 = vcombine.high %v7241, %v7241
      %v7245 = vunpack.c.l.s4 1966171168
      %v7246 = vunpack.c.0.s8 %v7245
      %v7247 = vlaneseq
      %v7248 = vshrl.u32 %v7247, 7
      %v7249 = vsub.s32 %v7246, %v7248
      %v7250 = vrot.slane %v7234, %v7249
      %v7252 = vunpack.c.l.s4 1966171168
      %v7253 = vunpack.c.0.s8 %v7252
      %v7254 = vlaneseq
      %v7255 = vshrl.u32 %v7254, 7
      %v7256 = vsub.s32 %v7253, %v7255
      %v7257 = vrot.slane %v7241, %v7256
      %v7259 = vunpack.c.l.s4 1966171168
      %v7260 = vunpack.c.0.s8 %v7259
      %v7261 = vlaneseq
      %v7262 = vshrl.u32 %v7261, 7
      %v7263 = vsub.s32 %v7260, %v7262
      %v7264 = vrot.slane %v7242, %v7263
      %v7266 = vunpack.c.l.s4 1966171168
      %v7267 = vunpack.c.0.s8 %v7266
      %v7268 = vlaneseq
      %v7269 = vshrl.u32 %v7268, 7
      %v7270 = vsub.s32 %v7267, %v7269
      %v7271 = vrot.slane %v7243, %v7270
      %v7272 = vcombine.high %v7250, %v7250
      %v7273 = vcombine.high %v7257, %v7257
      %v7274 = vcombine.high %v7264, %v7264
      %v7275 = vcombine.high %v7271, %v7271
      %7284 = vst.msk [vmem:[%s235 + $0xe] sm:$0x1] %vm568, %v7250
      %7285 = vst.msk [vmem:[%s235 + $0x1e] sm:$0x1] %vm568, %v7264
      %7286 = vst.msk [vmem:[%s235 + $0x2e] sm:$0x1] %vm568, %v7272
      %7287 = vst.msk [vmem:[%s235 + $0x3e] sm:$0x1] %vm568, %v7274
      %7288 = vst.msk [vmem:[%s235 + $0x4e] sm:$0x1] %vm568, %v7257
      %7289 = vst.msk [vmem:[%s235 + $0x5e] sm:$0x1] %vm568, %v7271
      %7290 = vst.msk [vmem:[%s235 + $0x6e] sm:$0x1] %vm568, %v7273
      %7291 = vst.msk [vmem:[%s235 + $0x7e] sm:$0x1] %vm568, %v7275
      %7292 = vrot.lane.b32.xlu0 %v349, 32
      %v7293 = vpop.permute.xlu0 %7292
      %v7294 = vsel %vm356, %v7293, 0
      %7296 = vmatprep.subr.mxu0 0.0
      %7297 = vmatpush1.msra.mxu0 %v354
      %7298 = vmatprep.subr.mxu0 0.0
      %7299 = vmatpush1.msra.mxu0 %v355
      %7300 = vmatprep.subr.mxu0 0.0
      %7301 = vmatpush1.msra.mxu0 0.0
      %7302 = vmatprep.subr.mxu0 0.0
      %7303 = vmatpush1.msra.mxu0 0.0
      %7304 = vmatprep.subr.mxu0 0.0
      %7305 = vmatpush1.msra.mxu0 0.0
      %7306 = vmatprep.subr.mxu0 0.0
      %7307 = vmatpush1.msra.mxu0 0.0
      %7308 = vmatprep.subr.mxu0 0.0
      %7309 = vmatpush1.msra.mxu0 0.0
      %7310 = vmatprep.subr.mxu0 0.0
      %7311 = vmatpush1.msra.mxu0 0.0
      %7312 = vmatprep.subr.mxu0 0.0
      %7313 = vmatpush1.msra.mxu0 0.0
      %7314 = vmatprep.subr.mxu0 0.0
      %7315 = vmatpush1.msra.mxu0 0.0
      %7316 = vmatprep.subr.mxu0 0.0
      %7317 = vmatpush1.msra.mxu0 0.0
      %7318 = vmatprep.subr.mxu0 0.0
      %7319 = vmatpush1.msra.mxu0 0.0
      %7320 = vmatprep.subr.mxu0 0.0
      %7321 = vmatpush1.msra.mxu0 0.0
      %7322 = vmatprep.subr.mxu0 0.0
      %7323 = vmatpush1.msra.mxu0 0.0
      %7324 = vmatprep.subr.mxu0 0.0
      %7325 = vmatpush1.msra.mxu0 0.0
      %7326 = vmatprep.subr.mxu0 0.0
      %7327 = vmatpush1.msra.mxu0 0.0
      %7328 = vmatprep.subr.mxu0 0.0
      %7329 = vmatpush1.msra.mxu0 0.0
      %7330 = vmatprep.subr.mxu0 0.0
      %7331 = vmatpush1.msra.mxu0 0.0
      %7332 = vmatprep.subr.mxu0 0.0
      %7333 = vmatpush1.msra.mxu0 0.0
      %7334 = vmatprep.subr.mxu0 0.0
      %7335 = vmatpush1.msra.mxu0 0.0
      %7336 = vmatprep.subr.mxu0 0.0
      %7337 = vmatpush1.msra.mxu0 0.0
      %7338 = vmatprep.subr.mxu0 0.0
      %7339 = vmatpush1.msra.mxu0 0.0
      %7340 = vmatprep.subr.mxu0 0.0
      %7341 = vmatpush1.msra.mxu0 0.0
      %7342 = vmatprep.subr.mxu0 0.0
      %7343 = vmatpush1.msra.mxu0 0.0
      %7344 = vmatprep.subr.mxu0 0.0
      %7345 = vmatpush1.msra.mxu0 0.0
      %7346 = vmatprep.subr.mxu0 0.0
      %7347 = vmatpush1.msra.mxu0 0.0
      %7348 = vmatprep.subr.mxu0 0.0
      %7349 = vmatpush1.msra.mxu0 0.0
      %7350 = vmatprep.subr.mxu0 0.0
      %7351 = vmatpush1.msra.mxu0 0.0
      %7352 = vmatprep.subr.mxu0 0.0
      %7353 = vmatpush1.msra.mxu0 0.0
      %7354 = vmatprep.subr.mxu0 0.0
      %7355 = vmatpush1.msra.mxu0 0.0
      %7356 = vmatprep.subr.mxu0 0.0
      %7357 = vmatpush1.msra.mxu0 0.0
      %7358 = vmatprep.subr.mxu0 0.0
      %7359 = vmatpush1.msra.mxu0 0.0
      %7360 = vmatprep.mubr.f32.mxu0 0.0
      %7361 = vmatmul.mubr.f32.gmra.mrb[0].mxu0 %v7294
      %v7362 = vpop.f32.mrb[0].mxu0
      %v7363 = vadd.f32 0.0, %v7362
      %v7364 = vpop.f32.mrb[0].mxu0
      %7365 = vdwg.mxu0
      %7366 = vrot.lane.b32.xlu0 %v343, 32
      %v7367 = vpop.permute.xlu0 %7366
      %v7368 = vsel %vm356, %v7367, 0
      %7370 = vmatprep.subr.mxu0 0.0
      %7371 = vmatpush1.msra.mxu0 %v352
      %7372 = vmatprep.subr.mxu0 0.0
      %7373 = vmatpush1.msra.mxu0 %v353
      %7374 = vmatprep.subr.mxu0 0.0
      %7375 = vmatpush1.msra.mxu0 0.0
      %7376 = vmatprep.subr.mxu0 0.0
      %7377 = vmatpush1.msra.mxu0 0.0
      %7378 = vmatprep.subr.mxu0 0.0
      %7379 = vmatpush1.msra.mxu0 0.0
      %7380 = vmatprep.subr.mxu0 0.0
      %7381 = vmatpush1.msra.mxu0 0.0
      %7382 = vmatprep.subr.mxu0 0.0
      %7383 = vmatpush1.msra.mxu0 0.0
      %7384 = vmatprep.subr.mxu0 0.0
      %7385 = vmatpush1.msra.mxu0 0.0
      %7386 = vmatprep.subr.mxu0 0.0
      %7387 = vmatpush1.msra.mxu0 0.0
      %7388 = vmatprep.subr.mxu0 0.0
      %7389 = vmatpush1.msra.mxu0 0.0
      %7390 = vmatprep.subr.mxu0 0.0
      %7391 = vmatpush1.msra.mxu0 0.0
      %7392 = vmatprep.subr.mxu0 0.0
      %7393 = vmatpush1.msra.mxu0 0.0
      %7394 = vmatprep.subr.mxu0 0.0
      %7395 = vmatpush1.msra.mxu0 0.0
      %7396 = vmatprep.subr.mxu0 0.0
      %7397 = vmatpush1.msra.mxu0 0.0
      %7398 = vmatprep.subr.mxu0 0.0
      %7399 = vmatpush1.msra.mxu0 0.0
      %7400 = vmatprep.subr.mxu0 0.0
      %7401 = vmatpush1.msra.mxu0 0.0
      %7402 = vmatprep.subr.mxu0 0.0
      %7403 = vmatpush1.msra.mxu0 0.0
      %7404 = vmatprep.subr.mxu0 0.0
      %7405 = vmatpush1.msra.mxu0 0.0
      %7406 = vmatprep.subr.mxu0 0.0
      %7407 = vmatpush1.msra.mxu0 0.0
      %7408 = vmatprep.subr.mxu0 0.0
      %7409 = vmatpush1.msra.mxu0 0.0
      %7410 = vmatprep.subr.mxu0 0.0
      %7411 = vmatpush1.msra.mxu0 0.0
      %7412 = vmatprep.subr.mxu0 0.0
      %7413 = vmatpush1.msra.mxu0 0.0
      %7414 = vmatprep.subr.mxu0 0.0
      %7415 = vmatpush1.msra.mxu0 0.0
      %7416 = vmatprep.subr.mxu0 0.0
      %7417 = vmatpush1.msra.mxu0 0.0
      %7418 = vmatprep.subr.mxu0 0.0
      %7419 = vmatpush1.msra.mxu0 0.0
      %7420 = vmatprep.subr.mxu0 0.0
      %7421 = vmatpush1.msra.mxu0 0.0
      %7422 = vmatprep.subr.mxu0 0.0
      %7423 = vmatpush1.msra.mxu0 0.0
      %7424 = vmatprep.subr.mxu0 0.0
      %7425 = vmatpush1.msra.mxu0 0.0
      %7426 = vmatprep.subr.mxu0 0.0
      %7427 = vmatpush1.msra.mxu0 0.0
      %7428 = vmatprep.subr.mxu0 0.0
      %7429 = vmatpush1.msra.mxu0 0.0
      %7430 = vmatprep.subr.mxu0 0.0
      %7431 = vmatpush1.msra.mxu0 0.0
      %7432 = vmatprep.subr.mxu0 0.0
      %7433 = vmatpush1.msra.mxu0 0.0
      %7434 = vmatprep.mubr.f32.mxu0 0.0
      %7435 = vmatmul.mubr.f32.gmra.mrb[0].mxu0 %v7368
      %v7436 = vpop.f32.mrb[0].mxu0
      %v7437 = vadd.f32 %v7363, %v7436
      %v7438 = vpop.f32.mrb[0].mxu0
      %7439 = vdwg.mxu0
      %v7440 = vadd.f32 %v7437, %v506
      %v7441 = vmax.f32 %v7440, 0.0
      %v7443 = vcombine.high %v7441, %v7441
      %v7445 = vunpack.c.l.s4 1966171168
      %v7446 = vunpack.c.0.s8 %v7445
      %v7447 = vlaneseq
      %v7448 = vshrl.u32 %v7447, 7
      %v7449 = vsub.s32 %v7446, %v7448
      %v7450 = vrot.slane %v7441, %v7449
      %v7452 = vunpack.c.l.s4 1966171168
      %v7453 = vunpack.c.0.s8 %v7452
      %v7454 = vlaneseq
      %v7455 = vshrl.u32 %v7454, 7
      %v7456 = vsub.s32 %v7453, %v7455
      %v7457 = vrot.slane %v7443, %v7456
      %v7458 = vcombine.high %v7450, %v7450
      %v7459 = vcombine.high %v7457, %v7457
      %v7461 = vunpack.c.l.s4 1966171168
      %v7462 = vunpack.c.0.s8 %v7461
      %v7463 = vlaneseq
      %v7464 = vshrl.u32 %v7463, 7
      %v7465 = vsub.s32 %v7462, %v7464
      %v7466 = vrot.slane %v7450, %v7465
      %v7468 = vunpack.c.l.s4 1966171168
      %v7469 = vunpack.c.0.s8 %v7468
      %v7470 = vlaneseq
      %v7471 = vshrl.u32 %v7470, 7
      %v7472 = vsub.s32 %v7469, %v7471
      %v7473 = vrot.slane %v7457, %v7472
      %v7475 = vunpack.c.l.s4 1966171168
      %v7476 = vunpack.c.0.s8 %v7475
      %v7477 = vlaneseq
      %v7478 = vshrl.u32 %v7477, 7
      %v7479 = vsub.s32 %v7476, %v7478
      %v7480 = vrot.slane %v7458, %v7479
      %v7482 = vunpack.c.l.s4 1966171168
      %v7483 = vunpack.c.0.s8 %v7482
      %v7484 = vlaneseq
      %v7485 = vshrl.u32 %v7484, 7
      %v7486 = vsub.s32 %v7483, %v7485
      %v7487 = vrot.slane %v7459, %v7486
      %v7488 = vcombine.high %v7466, %v7466
      %v7489 = vcombine.high %v7473, %v7473
      %v7490 = vcombine.high %v7480, %v7480
      %v7491 = vcombine.high %v7487, %v7487
      %v7492 = vlaneseq
      %v7493 = vshrl.u32 %v7492, 7
      %v7494 = vsub.s32 0, %v7493
      %v7495 = vrot.slane %v7466, %v7494
      %v7496 = vlaneseq
      %v7497 = vshrl.u32 %v7496, 7
      %v7498 = vsub.s32 0, %v7497
      %v7499 = vrot.slane %v7480, %v7498
      %v7500 = vlaneseq
      %v7501 = vshrl.u32 %v7500, 7
      %v7502 = vsub.s32 0, %v7501
      %v7503 = vrot.slane %v7488, %v7502
      %v7504 = vlaneseq
      %v7505 = vshrl.u32 %v7504, 7
      %v7506 = vsub.s32 0, %v7505
      %v7507 = vrot.slane %v7490, %v7506
      %v7508 = vlaneseq
      %v7509 = vshrl.u32 %v7508, 7
      %v7510 = vsub.s32 0, %v7509
      %v7511 = vrot.slane %v7473, %v7510
      %v7512 = vlaneseq
      %v7513 = vshrl.u32 %v7512, 7
      %v7514 = vsub.s32 0, %v7513
      %v7515 = vrot.slane %v7487, %v7514
      %v7516 = vlaneseq
      %v7517 = vshrl.u32 %v7516, 7
      %v7518 = vsub.s32 0, %v7517
      %v7519 = vrot.slane %v7489, %v7518
      %v7520 = vlaneseq
      %v7521 = vshrl.u32 %v7520, 7
      %v7522 = vsub.s32 0, %v7521
      %v7523 = vrot.slane %v7491, %v7522
      %7524 = vrot.lane.b32.xlu0 %v7495, 32
      %v7525 = vpop.permute.xlu0 %7524
      %7526 = vrot.lane.b32.xlu0 %v7499, 32
      %v7527 = vpop.permute.xlu0 %7526
      %7528 = vrot.lane.b32.xlu0 %v7503, 32
      %v7529 = vpop.permute.xlu0 %7528
      %7530 = vrot.lane.b32.xlu0 %v7507, 32
      %v7531 = vpop.permute.xlu0 %7530
      %7532 = vrot.lane.b32.xlu0 %v7511, 32
      %v7533 = vpop.permute.xlu0 %7532
      %7534 = vrot.lane.b32.xlu0 %v7515, 32
      %v7535 = vpop.permute.xlu0 %7534
      %7536 = vrot.lane.b32.xlu0 %v7519, 32
      %v7537 = vpop.permute.xlu0 %7536
      %7538 = vrot.lane.b32.xlu0 %v7523, 32
      %v7539 = vpop.permute.xlu0 %7538
      %7548 = vst.msk [vmem:[%s235 + $0xe] sm:$0x1] %vm831, %v7525
      %7549 = vst.msk [vmem:[%s235 + $0x1e] sm:$0x1] %vm831, %v7527
      %7550 = vst.msk [vmem:[%s235 + $0x2e] sm:$0x1] %vm831, %v7529
      %7551 = vst.msk [vmem:[%s235 + $0x3e] sm:$0x1] %vm831, %v7531
      %7552 = vst.msk [vmem:[%s235 + $0x4e] sm:$0x1] %vm831, %v7533
      %7553 = vst.msk [vmem:[%s235 + $0x5e] sm:$0x1] %vm831, %v7535
      %7554 = vst.msk [vmem:[%s235 + $0x6e] sm:$0x1] %vm831, %v7537
      %7555 = vst.msk [vmem:[%s235 + $0x7e] sm:$0x1] %vm831, %v7539
      %7556 = vrot.lane.b32.xlu0 %v337, 16
      %v7557 = vpop.permute.xlu0 %7556
      %v7558 = vsel %vm356, %v7557, 0
      %7560 = vmatprep.subr.mxu0 0.0
      %7561 = vmatpush1.msra.mxu0 %v354
      %7562 = vmatprep.subr.mxu0 0.0
      %7563 = vmatpush1.msra.mxu0 %v355
      %7564 = vmatprep.subr.mxu0 0.0
      %7565 = vmatpush1.msra.mxu0 0.0
      %7566 = vmatprep.subr.mxu0 0.0
      %7567 = vmatpush1.msra.mxu0 0.0
      %7568 = vmatprep.subr.mxu0 0.0
      %7569 = vmatpush1.msra.mxu0 0.0
      %7570 = vmatprep.subr.mxu0 0.0
      %7571 = vmatpush1.msra.mxu0 0.0
      %7572 = vmatprep.subr.mxu0 0.0
      %7573 = vmatpush1.msra.mxu0 0.0
      %7574 = vmatprep.subr.mxu0 0.0
      %7575 = vmatpush1.msra.mxu0 0.0
      %7576 = vmatprep.subr.mxu0 0.0
      %7577 = vmatpush1.msra.mxu0 0.0
      %7578 = vmatprep.subr.mxu0 0.0
      %7579 = vmatpush1.msra.mxu0 0.0
      %7580 = vmatprep.subr.mxu0 0.0
      %7581 = vmatpush1.msra.mxu0 0.0
      %7582 = vmatprep.subr.mxu0 0.0
      %7583 = vmatpush1.msra.mxu0 0.0
      %7584 = vmatprep.subr.mxu0 0.0
      %7585 = vmatpush1.msra.mxu0 0.0
      %7586 = vmatprep.subr.mxu0 0.0
      %7587 = vmatpush1.msra.mxu0 0.0
      %7588 = vmatprep.subr.mxu0 0.0
      %7589 = vmatpush1.msra.mxu0 0.0
      %7590 = vmatprep.subr.mxu0 0.0
      %7591 = vmatpush1.msra.mxu0 0.0
      %7592 = vmatprep.subr.mxu0 0.0
      %7593 = vmatpush1.msra.mxu0 0.0
      %7594 = vmatprep.subr.mxu0 0.0
      %7595 = vmatpush1.msra.mxu0 0.0
      %7596 = vmatprep.subr.mxu0 0.0
      %7597 = vmatpush1.msra.mxu0 0.0
      %7598 = vmatprep.subr.mxu0 0.0
      %7599 = vmatpush1.msra.mxu0 0.0
      %7600 = vmatprep.subr.mxu0 0.0
      %7601 = vmatpush1.msra.mxu0 0.0
      %7602 = vmatprep.subr.mxu0 0.0
      %7603 = vmatpush1.msra.mxu0 0.0
      %7604 = vmatprep.subr.mxu0 0.0
      %7605 = vmatpush1.msra.mxu0 0.0
      %7606 = vmatprep.subr.mxu0 0.0
      %7607 = vmatpush1.msra.mxu0 0.0
      %7608 = vmatprep.subr.mxu0 0.0
      %7609 = vmatpush1.msra.mxu0 0.0
      %7610 = vmatprep.subr.mxu0 0.0
      %7611 = vmatpush1.msra.mxu0 0.0
      %7612 = vmatprep.subr.mxu0 0.0
      %7613 = vmatpush1.msra.mxu0 0.0
      %7614 = vmatprep.subr.mxu0 0.0
      %7615 = vmatpush1.msra.mxu0 0.0
      %7616 = vmatprep.subr.mxu0 0.0
      %7617 = vmatpush1.msra.mxu0 0.0
      %7618 = vmatprep.subr.mxu0 0.0
      %7619 = vmatpush1.msra.mxu0 0.0
      %7620 = vmatprep.subr.mxu0 0.0
      %7621 = vmatpush1.msra.mxu0 0.0
      %7622 = vmatprep.subr.mxu0 0.0
      %7623 = vmatpush1.msra.mxu0 0.0
      %7624 = vmatprep.mubr.f32.mxu0 0.0
      %7625 = vmatmul.mubr.f32.gmra.mrb[0].mxu0 %v7558
      %v7626 = vpop.f32.mrb[0].mxu0
      %v7627 = vadd.f32 0.0, %v7626
      %v7628 = vpop.f32.mrb[0].mxu0
      %7629 = vdwg.mxu0
      %7630 = vrot.lane.b32.xlu0 %v331, 16
      %v7631 = vpop.permute.xlu0 %7630
      %v7632 = vsel %vm356, %v7631, 0
      %7634 = vmatprep.subr.mxu0 0.0
      %7635 = vmatpush1.msra.mxu0 %v352
      %7636 = vmatprep.subr.mxu0 0.0
      %7637 = vmatpush1.msra.mxu0 %v353
      %7638 = vmatprep.subr.mxu0 0.0
      %7639 = vmatpush1.msra.mxu0 0.0
      %7640 = vmatprep.subr.mxu0 0.0
      %7641 = vmatpush1.msra.mxu0 0.0
      %7642 = vmatprep.subr.mxu0 0.0
      %7643 = vmatpush1.msra.mxu0 0.0
      %7644 = vmatprep.subr.mxu0 0.0
      %7645 = vmatpush1.msra.mxu0 0.0
      %7646 = vmatprep.subr.mxu0 0.0
      %7647 = vmatpush1.msra.mxu0 0.0
      %7648 = vmatprep.subr.mxu0 0.0
      %7649 = vmatpush1.msra.mxu0 0.0
      %7650 = vmatprep.subr.mxu0 0.0
      %7651 = vmatpush1.msra.mxu0 0.0
      %7652 = vmatprep.subr.mxu0 0.0
      %7653 = vmatpush1.msra.mxu0 0.0
      %7654 = vmatprep.subr.mxu0 0.0
      %7655 = vmatpush1.msra.mxu0 0.0
      %7656 = vmatprep.subr.mxu0 0.0
      %7657 = vmatpush1.msra.mxu0 0.0
      %7658 = vmatprep.subr.mxu0 0.0
      %7659 = vmatpush1.msra.mxu0 0.0
      %7660 = vmatprep.subr.mxu0 0.0
      %7661 = vmatpush1.msra.mxu0 0.0
      %7662 = vmatprep.subr.mxu0 0.0
      %7663 = vmatpush1.msra.mxu0 0.0
      %7664 = vmatprep.subr.mxu0 0.0
      %7665 = vmatpush1.msra.mxu0 0.0
      %7666 = vmatprep.subr.mxu0 0.0
      %7667 = vmatpush1.msra.mxu0 0.0
      %7668 = vmatprep.subr.mxu0 0.0
      %7669 = vmatpush1.msra.mxu0 0.0
      %7670 = vmatprep.subr.mxu0 0.0
      %7671 = vmatpush1.msra.mxu0 0.0
      %7672 = vmatprep.subr.mxu0 0.0
      %7673 = vmatpush1.msra.mxu0 0.0
      %7674 = vmatprep.subr.mxu0 0.0
      %7675 = vmatpush1.msra.mxu0 0.0
      %7676 = vmatprep.subr.mxu0 0.0
      %7677 = vmatpush1.msra.mxu0 0.0
      %7678 = vmatprep.subr.mxu0 0.0
      %7679 = vmatpush1.msra.mxu0 0.0
      %7680 = vmatprep.subr.mxu0 0.0
      %7681 = vmatpush1.msra.mxu0 0.0
      %7682 = vmatprep.subr.mxu0 0.0
      %7683 = vmatpush1.msra.mxu0 0.0
      %7684 = vmatprep.subr.mxu0 0.0
      %7685 = vmatpush1.msra.mxu0 0.0
      %7686 = vmatprep.subr.mxu0 0.0
      %7687 = vmatpush1.msra.mxu0 0.0
      %7688 = vmatprep.subr.mxu0 0.0
      %7689 = vmatpush1.msra.mxu0 0.0
      %7690 = vmatprep.subr.mxu0 0.0
      %7691 = vmatpush1.msra.mxu0 0.0
      %7692 = vmatprep.subr.mxu0 0.0
      %7693 = vmatpush1.msra.mxu0 0.0
      %7694 = vmatprep.subr.mxu0 0.0
      %7695 = vmatpush1.msra.mxu0 0.0
      %7696 = vmatprep.subr.mxu0 0.0
      %7697 = vmatpush1.msra.mxu0 0.0
      %7698 = vmatprep.mubr.f32.mxu0 0.0
      %7699 = vmatmul.mubr.f32.gmra.mrb[0].mxu0 %v7632
      %v7700 = vpop.f32.mrb[0].mxu0
      %v7701 = vadd.f32 %v7627, %v7700
      %v7702 = vpop.f32.mrb[0].mxu0
      %7703 = vdwg.mxu0
      %v7704 = vadd.f32 %v7701, %v506
      %v7705 = vmax.f32 %v7704, 0.0
      %v7707 = vcombine.high %v7705, %v7705
      %v7709 = vunpack.c.l.s4 1966171168
      %v7710 = vunpack.c.0.s8 %v7709
      %v7711 = vlaneseq
      %v7712 = vshrl.u32 %v7711, 7
      %v7713 = vsub.s32 %v7710, %v7712
      %v7714 = vrot.slane %v7705, %v7713
      %v7716 = vunpack.c.l.s4 1966171168
      %v7717 = vunpack.c.0.s8 %v7716
      %v7718 = vlaneseq
      %v7719 = vshrl.u32 %v7718, 7
      %v7720 = vsub.s32 %v7717, %v7719
      %v7721 = vrot.slane %v7707, %v7720
      %v7722 = vcombine.high %v7714, %v7714
      %v7723 = vcombine.high %v7721, %v7721
      %v7725 = vunpack.c.l.s4 1966171168
      %v7726 = vunpack.c.0.s8 %v7725
      %v7727 = vlaneseq
      %v7728 = vshrl.u32 %v7727, 7
      %v7729 = vsub.s32 %v7726, %v7728
      %v7730 = vrot.slane %v7714, %v7729
      %v7732 = vunpack.c.l.s4 1966171168
      %v7733 = vunpack.c.0.s8 %v7732
      %v7734 = vlaneseq
      %v7735 = vshrl.u32 %v7734, 7
      %v7736 = vsub.s32 %v7733, %v7735
      %v7737 = vrot.slane %v7721, %v7736
      %v7739 = vunpack.c.l.s4 1966171168
      %v7740 = vunpack.c.0.s8 %v7739
      %v7741 = vlaneseq
      %v7742 = vshrl.u32 %v7741, 7
      %v7743 = vsub.s32 %v7740, %v7742
      %v7744 = vrot.slane %v7722, %v7743
      %v7746 = vunpack.c.l.s4 1966171168
      %v7747 = vunpack.c.0.s8 %v7746
      %v7748 = vlaneseq
      %v7749 = vshrl.u32 %v7748, 7
      %v7750 = vsub.s32 %v7747, %v7749
      %v7751 = vrot.slane %v7723, %v7750
      %v7752 = vcombine.high %v7730, %v7730
      %v7753 = vcombine.high %v7737, %v7737
      %v7754 = vcombine.high %v7744, %v7744
      %v7755 = vcombine.high %v7751, %v7751
      %7764 = vst.msk [vmem:[%s235 + $0xf] sm:$0x1] %vm568, %v7730
      %7765 = vst.msk [vmem:[%s235 + $0x1f] sm:$0x1] %vm568, %v7744
      %7766 = vst.msk [vmem:[%s235 + $0x2f] sm:$0x1] %vm568, %v7752
      %7767 = vst.msk [vmem:[%s235 + $0x3f] sm:$0x1] %vm568, %v7754
      %7768 = vst.msk [vmem:[%s235 + $0x4f] sm:$0x1] %vm568, %v7737
      %7769 = vst.msk [vmem:[%s235 + $0x5f] sm:$0x1] %vm568, %v7751
      %7770 = vst.msk [vmem:[%s235 + $0x6f] sm:$0x1] %vm568, %v7753
      %7771 = vst.msk [vmem:[%s235 + $0x7f] sm:$0x1] %vm568, %v7755
      %7772 = vrot.lane.b32.xlu0 %v349, 16
      %v7773 = vpop.permute.xlu0 %7772
      %v7774 = vsel %vm356, %v7773, 0
      %7776 = vmatprep.subr.mxu0 0.0
      %7777 = vmatpush1.msra.mxu0 %v354
      %7778 = vmatprep.subr.mxu0 0.0
      %7779 = vmatpush1.msra.mxu0 %v355
      %7780 = vmatprep.subr.mxu0 0.0
      %7781 = vmatpush1.msra.mxu0 0.0
      %7782 = vmatprep.subr.mxu0 0.0
      %7783 = vmatpush1.msra.mxu0 0.0
      %7784 = vmatprep.subr.mxu0 0.0
      %7785 = vmatpush1.msra.mxu0 0.0
      %7786 = vmatprep.subr.mxu0 0.0
      %7787 = vmatpush1.msra.mxu0 0.0
      %7788 = vmatprep.subr.mxu0 0.0
      %7789 = vmatpush1.msra.mxu0 0.0
      %7790 = vmatprep.subr.mxu0 0.0
      %7791 = vmatpush1.msra.mxu0 0.0
      %7792 = vmatprep.subr.mxu0 0.0
      %7793 = vmatpush1.msra.mxu0 0.0
      %7794 = vmatprep.subr.mxu0 0.0
      %7795 = vmatpush1.msra.mxu0 0.0
      %7796 = vmatprep.subr.mxu0 0.0
      %7797 = vmatpush1.msra.mxu0 0.0
      %7798 = vmatprep.subr.mxu0 0.0
      %7799 = vmatpush1.msra.mxu0 0.0
      %7800 = vmatprep.subr.mxu0 0.0
      %7801 = vmatpush1.msra.mxu0 0.0
      %7802 = vmatprep.subr.mxu0 0.0
      %7803 = vmatpush1.msra.mxu0 0.0
      %7804 = vmatprep.subr.mxu0 0.0
      %7805 = vmatpush1.msra.mxu0 0.0
      %7806 = vmatprep.subr.mxu0 0.0
      %7807 = vmatpush1.msra.mxu0 0.0
      %7808 = vmatprep.subr.mxu0 0.0
      %7809 = vmatpush1.msra.mxu0 0.0
      %7810 = vmatprep.subr.mxu0 0.0
      %7811 = vmatpush1.msra.mxu0 0.0
      %7812 = vmatprep.subr.mxu0 0.0
      %7813 = vmatpush1.msra.mxu0 0.0
      %7814 = vmatprep.subr.mxu0 0.0
      %7815 = vmatpush1.msra.mxu0 0.0
      %7816 = vmatprep.subr.mxu0 0.0
      %7817 = vmatpush1.msra.mxu0 0.0
      %7818 = vmatprep.subr.mxu0 0.0
      %7819 = vmatpush1.msra.mxu0 0.0
      %7820 = vmatprep.subr.mxu0 0.0
      %7821 = vmatpush1.msra.mxu0 0.0
      %7822 = vmatprep.subr.mxu0 0.0
      %7823 = vmatpush1.msra.mxu0 0.0
      %7824 = vmatprep.subr.mxu0 0.0
      %7825 = vmatpush1.msra.mxu0 0.0
      %7826 = vmatprep.subr.mxu0 0.0
      %7827 = vmatpush1.msra.mxu0 0.0
      %7828 = vmatprep.subr.mxu0 0.0
      %7829 = vmatpush1.msra.mxu0 0.0
      %7830 = vmatprep.subr.mxu0 0.0
      %7831 = vmatpush1.msra.mxu0 0.0
      %7832 = vmatprep.subr.mxu0 0.0
      %7833 = vmatpush1.msra.mxu0 0.0
      %7834 = vmatprep.subr.mxu0 0.0
      %7835 = vmatpush1.msra.mxu0 0.0
      %7836 = vmatprep.subr.mxu0 0.0
      %7837 = vmatpush1.msra.mxu0 0.0
      %7838 = vmatprep.subr.mxu0 0.0
      %7839 = vmatpush1.msra.mxu0 0.0
      %7840 = vmatprep.mubr.f32.mxu0 0.0
      %7841 = vmatmul.mubr.f32.gmra.mrb[0].mxu0 %v7774
      %v7842 = vpop.f32.mrb[0].mxu0
      %v7843 = vadd.f32 0.0, %v7842
      %v7844 = vpop.f32.mrb[0].mxu0
      %7845 = vdwg.mxu0
      %7846 = vrot.lane.b32.xlu0 %v343, 16
      %v7847 = vpop.permute.xlu0 %7846
      %v7848 = vsel %vm356, %v7847, 0
      %7850 = vmatprep.subr.mxu0 0.0
      %7851 = vmatpush1.msra.mxu0 %v352
      %7852 = vmatprep.subr.mxu0 0.0
      %7853 = vmatpush1.msra.mxu0 %v353
      %7854 = vmatprep.subr.mxu0 0.0
      %7855 = vmatpush1.msra.mxu0 0.0
      %7856 = vmatprep.subr.mxu0 0.0
      %7857 = vmatpush1.msra.mxu0 0.0
      %7858 = vmatprep.subr.mxu0 0.0
      %7859 = vmatpush1.msra.mxu0 0.0
      %7860 = vmatprep.subr.mxu0 0.0
      %7861 = vmatpush1.msra.mxu0 0.0
      %7862 = vmatprep.subr.mxu0 0.0
      %7863 = vmatpush1.msra.mxu0 0.0
      %7864 = vmatprep.subr.mxu0 0.0
      %7865 = vmatpush1.msra.mxu0 0.0
      %7866 = vmatprep.subr.mxu0 0.0
      %7867 = vmatpush1.msra.mxu0 0.0
      %7868 = vmatprep.subr.mxu0 0.0
      %7869 = vmatpush1.msra.mxu0 0.0
      %7870 = vmatprep.subr.mxu0 0.0
      %7871 = vmatpush1.msra.mxu0 0.0
      %7872 = vmatprep.subr.mxu0 0.0
      %7873 = vmatpush1.msra.mxu0 0.0
      %7874 = vmatprep.subr.mxu0 0.0
      %7875 = vmatpush1.msra.mxu0 0.0
      %7876 = vmatprep.subr.mxu0 0.0
      %7877 = vmatpush1.msra.mxu0 0.0
      %7878 = vmatprep.subr.mxu0 0.0
      %7879 = vmatpush1.msra.mxu0 0.0
      %7880 = vmatprep.subr.mxu0 0.0
      %7881 = vmatpush1.msra.mxu0 0.0
      %7882 = vmatprep.subr.mxu0 0.0
      %7883 = vmatpush1.msra.mxu0 0.0
      %7884 = vmatprep.subr.mxu0 0.0
      %7885 = vmatpush1.msra.mxu0 0.0
      %7886 = vmatprep.subr.mxu0 0.0
      %7887 = vmatpush1.msra.mxu0 0.0
      %7888 = vmatprep.subr.mxu0 0.0
      %7889 = vmatpush1.msra.mxu0 0.0
      %7890 = vmatprep.subr.mxu0 0.0
      %7891 = vmatpush1.msra.mxu0 0.0
      %7892 = vmatprep.subr.mxu0 0.0
      %7893 = vmatpush1.msra.mxu0 0.0
      %7894 = vmatprep.subr.mxu0 0.0
      %7895 = vmatpush1.msra.mxu0 0.0
      %7896 = vmatprep.subr.mxu0 0.0
      %7897 = vmatpush1.msra.mxu0 0.0
      %7898 = vmatprep.subr.mxu0 0.0
      %7899 = vmatpush1.msra.mxu0 0.0
      %7900 = vmatprep.subr.mxu0 0.0
      %7901 = vmatpush1.msra.mxu0 0.0
      %7902 = vmatprep.subr.mxu0 0.0
      %7903 = vmatpush1.msra.mxu0 0.0
      %7904 = vmatprep.subr.mxu0 0.0
      %7905 = vmatpush1.msra.mxu0 0.0
      %7906 = vmatprep.subr.mxu0 0.0
      %7907 = vmatpush1.msra.mxu0 0.0
      %7908 = vmatprep.subr.mxu0 0.0
      %7909 = vmatpush1.msra.mxu0 0.0
      %7910 = vmatprep.subr.mxu0 0.0
      %7911 = vmatpush1.msra.mxu0 0.0
      %7912 = vmatprep.subr.mxu0 0.0
      %7913 = vmatpush1.msra.mxu0 0.0
      %7914 = vmatprep.mubr.f32.mxu0 0.0
      %7915 = vmatmul.mubr.f32.gmra.mrb[0].mxu0 %v7848
      %v7916 = vpop.f32.mrb[0].mxu0
      %v7917 = vadd.f32 %v7843, %v7916
      %v7918 = vpop.f32.mrb[0].mxu0
      %7919 = vdwg.mxu0
      %v7920 = vadd.f32 %v7917, %v506
      %v7921 = vmax.f32 %v7920, 0.0
      %v7923 = vcombine.high %v7921, %v7921
      %v7925 = vunpack.c.l.s4 1966171168
      %v7926 = vunpack.c.0.s8 %v7925
      %v7927 = vlaneseq
      %v7928 = vshrl.u32 %v7927, 7
      %v7929 = vsub.s32 %v7926, %v7928
      %v7930 = vrot.slane %v7921, %v7929
      %v7932 = vunpack.c.l.s4 1966171168
      %v7933 = vunpack.c.0.s8 %v7932
      %v7934 = vlaneseq
      %v7935 = vshrl.u32 %v7934, 7
      %v7936 = vsub.s32 %v7933, %v7935
      %v7937 = vrot.slane %v7923, %v7936
      %v7938 = vcombine.high %v7930, %v7930
      %v7939 = vcombine.high %v7937, %v7937
      %v7941 = vunpack.c.l.s4 1966171168
      %v7942 = vunpack.c.0.s8 %v7941
      %v7943 = vlaneseq
      %v7944 = vshrl.u32 %v7943, 7
      %v7945 = vsub.s32 %v7942, %v7944
      %v7946 = vrot.slane %v7930, %v7945
      %v7948 = vunpack.c.l.s4 1966171168
      %v7949 = vunpack.c.0.s8 %v7948
      %v7950 = vlaneseq
      %v7951 = vshrl.u32 %v7950, 7
      %v7952 = vsub.s32 %v7949, %v7951
      %v7953 = vrot.slane %v7937, %v7952
      %v7955 = vunpack.c.l.s4 1966171168
      %v7956 = vunpack.c.0.s8 %v7955
      %v7957 = vlaneseq
      %v7958 = vshrl.u32 %v7957, 7
      %v7959 = vsub.s32 %v7956, %v7958
      %v7960 = vrot.slane %v7938, %v7959
      %v7962 = vunpack.c.l.s4 1966171168
      %v7963 = vunpack.c.0.s8 %v7962
      %v7964 = vlaneseq
      %v7965 = vshrl.u32 %v7964, 7
      %v7966 = vsub.s32 %v7963, %v7965
      %v7967 = vrot.slane %v7939, %v7966
      %v7968 = vcombine.high %v7946, %v7946
      %v7969 = vcombine.high %v7953, %v7953
      %v7970 = vcombine.high %v7960, %v7960
      %v7971 = vcombine.high %v7967, %v7967
      %v7972 = vlaneseq
      %v7973 = vshrl.u32 %v7972, 7
      %v7974 = vsub.s32 0, %v7973
      %v7975 = vrot.slane %v7946, %v7974
      %v7976 = vlaneseq
      %v7977 = vshrl.u32 %v7976, 7
      %v7978 = vsub.s32 0, %v7977
      %v7979 = vrot.slane %v7960, %v7978
      %v7980 = vlaneseq
      %v7981 = vshrl.u32 %v7980, 7
      %v7982 = vsub.s32 0, %v7981
      %v7983 = vrot.slane %v7968, %v7982
      %v7984 = vlaneseq
      %v7985 = vshrl.u32 %v7984, 7
      %v7986 = vsub.s32 0, %v7985
      %v7987 = vrot.slane %v7970, %v7986
      %v7988 = vlaneseq
      %v7989 = vshrl.u32 %v7988, 7
      %v7990 = vsub.s32 0, %v7989
      %v7991 = vrot.slane %v7953, %v7990
      %v7992 = vlaneseq
      %v7993 = vshrl.u32 %v7992, 7
      %v7994 = vsub.s32 0, %v7993
      %v7995 = vrot.slane %v7967, %v7994
      %v7996 = vlaneseq
      %v7997 = vshrl.u32 %v7996, 7
      %v7998 = vsub.s32 0, %v7997
      %v7999 = vrot.slane %v7969, %v7998
      %v8000 = vlaneseq
      %v8001 = vshrl.u32 %v8000, 7
      %v8002 = vsub.s32 0, %v8001
      %v8003 = vrot.slane %v7971, %v8002
      %8004 = vrot.lane.b32.xlu0 %v7975, 32
      %v8005 = vpop.permute.xlu0 %8004
      %8006 = vrot.lane.b32.xlu0 %v7979, 32
      %v8007 = vpop.permute.xlu0 %8006
      %8008 = vrot.lane.b32.xlu0 %v7983, 32
      %v8009 = vpop.permute.xlu0 %8008
      %8010 = vrot.lane.b32.xlu0 %v7987, 32
      %v8011 = vpop.permute.xlu0 %8010
      %8012 = vrot.lane.b32.xlu0 %v7991, 32
      %v8013 = vpop.permute.xlu0 %8012
      %8014 = vrot.lane.b32.xlu0 %v7995, 32
      %v8015 = vpop.permute.xlu0 %8014
      %8016 = vrot.lane.b32.xlu0 %v7999, 32
      %v8017 = vpop.permute.xlu0 %8016
      %8018 = vrot.lane.b32.xlu0 %v8003, 32
      %v8019 = vpop.permute.xlu0 %8018
      %8028 = vst.msk [vmem:[%s235 + $0xf] sm:$0x1] %vm831, %v8005
      %8029 = vst.msk [vmem:[%s235 + $0x1f] sm:$0x1] %vm831, %v8007
      %8030 = vst.msk [vmem:[%s235 + $0x2f] sm:$0x1] %vm831, %v8009
      %8031 = vst.msk [vmem:[%s235 + $0x3f] sm:$0x1] %vm831, %v8011
      %8032 = vst.msk [vmem:[%s235 + $0x4f] sm:$0x1] %vm831, %v8013
      %8033 = vst.msk [vmem:[%s235 + $0x5f] sm:$0x1] %vm831, %v8015
      %8034 = vst.msk [vmem:[%s235 + $0x6f] sm:$0x1] %vm831, %v8017
      %8035 = vst.msk [vmem:[%s235 + $0x7f] sm:$0x1] %vm831, %v8019
      %s8036 = smul.u32 2, %s20
      %p8037 = scmp.lt.s32.totalorder %s19, 1
      %s8038 = scalar_select %p8037, %s19, 1
      %p8039 = scmp.lt.s32.totalorder %s8036, 1
      %s8040 = scalar_select %p8039, %s8036, 1
      %s8041 = smul.addr %s8038, 16
      %s8042 = sadd.s32 %s8040, %s8041
      %s8043 = smul.addr %s8042, 8
      %s8044 = scalar_lea.vmem %s4, %s8043
      // Predicated region
      $region37: #{conv2d_transpose_block.1} parent=35 // pred_check
        %p8045 = pneg %p138
      $region38: #{conv2d_transpose_block.1} parent=35 // pred_check_branch
        %8047 = sbr.rel (%p8045) target = $region40
      $region39: #{conv2d_transpose_block.1} parent=35 // pred_region
        %s8048 = smul.u32 2, %s20
      $region40: #{conv2d_transpose_block.1} parent=35 // pred_fallthru
        _
    $region36: #{conv2d_transpose_block.1} parent=5 // pred_fallthru
      _
    %p8049 = scmp.le.s32.totalorder 2, %s10
    // Predicated region
    $region41: #{conv2d_transpose_block.1} parent=5 // pred_check
      %p8050 = pneg %p8049
    $region42: #{conv2d_transpose_block.1} parent=5 // pred_check_branch
      %8052 = sbr.rel (%p8050) target = $region44
    $region43: #{conv2d_transpose_block.1} parent=5 // pred_region
      %s8053 = ssub.s32 %s10, 2
      // Predicated region
      $region45: #{conv2d_transpose_block.1} parent=43 // pred_check
        %p8054 = pneg %p144
      $region46: #{conv2d_transpose_block.1} parent=43 // pred_check_branch
        %8056 = sbr.rel (%p8054) target = $region48
      $region47: #{conv2d_transpose_block.1} parent=43 // pred_region
        %s8057 = smul.u32 2, %s22
        %p8058 = scmp.lt.s32.totalorder %s21, 1
        %s8059 = scalar_select %p8058, %s21, 1
        %p8060 = scmp.lt.s32.totalorder %s8057, 1
        %s8061 = scalar_select %p8060, %s8057, 1
        %s8062 = smul.addr %s8059, 16
        %s8063 = sadd.s32 %s8061, %s8062
        %s8064 = smul.addr %s8063, 8
        %s8065 = scalar_lea.vmem %s4, %s8064
      $region48: #{conv2d_transpose_block.1} parent=43 // pred_fallthru
        _
    $region44: #{conv2d_transpose_block.1} parent=5 // pred_fallthru
      _
  $region6: #{conv2d_transpose_block.1} parent=0 // loop_footer
    %s14 = sadd.s32 1, %s10
  $region7: #{conv2d_transpose_block.1} parent=0 // loop_footer_branch
    %9 = sbr.rel target = $region3
  $region8: #{conv2d_transpose_block.1} parent=0 // loop_exit
    _

</llo_original>
